<compile_context>
chip_gen: v5e
topology: v5e:2x2
jax: 0.10.0
libtpu: 0.0.40
codegen_flags: <defaults>
</compile_context>

<pallas_src>
import functools

import jax
import jax.numpy as jnp
from jax import lax
from jax.experimental import pallas as pl
from jax.experimental.pallas import tpu as pltpu


def _double_conv_kernel(x_ref, w1_ref, g1_ref, b1_ref, w2_ref, g2_ref, b2_ref,
                        o_ref, pad1_ref, im1_ref, pad2_ref, im2_ref, *, eps):
    """Fused DoubleConv forward.

    x_ref:  (N, H, W, Cin)        bf16 input (NHWC)
    w1_ref: (9*Cin,  Cmid) bf16   im2col-packed weights, (kh, kw, cin) rows
    w2_ref: (9*Cmid, Cout) bf16
    g*_ref, b*_ref: (1, C) f32    BatchNorm scale / shift
    o_ref:  (N, H, W, Cout) f32
    pad*_ref: zero-padded activation scratch (VMEM, f32)
    im*_ref:  im2col patch scratch (VMEM, f32)
    """
    N, H, W, Cout = o_ref.shape
    Cin = x_ref.shape[-1]
    Cmid = w1_ref.shape[-1]
    P = N * H * W

    def conv_bn_relu(pad_ref, im_ref, w_ref, g_ref, b_ref, c_in):
        # im2col: gather all 9 taps ONCE into (P, 9*c_in), then a single
        # bf16 MXU matmul with f32 accumulation.
        for kh in range(3):
            for kw in range(3):
                t = kh * 3 + kw
                im_ref[:, t * c_in:(t + 1) * c_in] = (
                    pad_ref[:, kh:kh + H, kw:kw + W, :].reshape(P, c_in))
        acc = jnp.dot(im_ref[...].astype(jnp.bfloat16), w_ref[...],
                      preferred_element_type=jnp.float32)        # (P, C) f32

        # BatchNorm2d (training mode): per-channel batch statistics over
        # (N, H, W), biased variance — exactly what PyTorch normalizes with
        # in .train().  Statistics stay in f32.
        mean = jnp.mean(acc, axis=0, keepdims=True)
        var = jnp.mean(jnp.square(acc - mean), axis=0, keepdims=True)
        y = (acc - mean) * (g_ref[...] * lax.rsqrt(var + eps)) + b_ref[...]
        return jnp.maximum(y, 0.0)                               # ReLU

    # ---- Block 1: pad input into VMEM scratch (no wrapper-side jnp.pad) ----
    pad1_ref[...] = jnp.zeros_like(pad1_ref)
    pad1_ref[:, 1:H + 1, 1:W + 1, :] = x_ref[...].astype(jnp.float32)
    h = conv_bn_relu(pad1_ref, im1_ref, w1_ref, g1_ref, b1_ref, Cin)

    # Dropout2d(p=0.0) -> Identity.

    # ---- Block 2: intermediate stays on-chip (VMEM), no HBM round-trip ----
    pad2_ref[...] = jnp.zeros_like(pad2_ref)
    pad2_ref[:, 1:H + 1, 1:W + 1, :] = h.reshape(N, H, W, Cmid)
    y = conv_bn_relu(pad2_ref, im2_ref, w2_ref, g2_ref, b2_ref, Cmid)

    o_ref[...] = y.reshape(N, H, W, Cout).astype(o_ref.dtype)


def double_conv_forward(x_nchw, params, *, eps=1e-5):
    """Equivalent of DoubleConv.forward. Input/output are NCHW like PyTorch."""
    x = jnp.transpose(x_nchw, (0, 2, 3, 1)).astype(jnp.bfloat16)  # NCHW->NHWC
    N, H, W, Cin = x.shape
    Cmid = params["w1"].shape[-1]
    Cout = params["w2"].shape[-1]

    # Pack HWIO weights for the im2col matmul: rows ordered (kh, kw, cin).
    w1 = params["w1"].reshape(9 * Cin, Cmid).astype(jnp.bfloat16)
    w2 = params["w2"].reshape(9 * Cmid, Cout).astype(jnp.bfloat16)
    g1 = params["gamma1"].reshape(1, Cmid).astype(jnp.float32)
    b1 = params["beta1"].reshape(1, Cmid).astype(jnp.float32)
    g2 = params["gamma2"].reshape(1, Cout).astype(jnp.float32)
    b2 = params["beta2"].reshape(1, Cout).astype(jnp.float32)

    kernel = functools.partial(_double_conv_kernel, eps=eps)
    out = pl.pallas_call(
        kernel,
        out_shape=jax.ShapeDtypeStruct((N, H, W, Cout), jnp.float32),
        # Single grid step: BatchNorm couples the whole batch; see TODO above
        # for the tiled two-pass variant needed at large activation sizes.
        grid=(1,),
        in_specs=[
            pl.BlockSpec((N, H, W, Cin), lambda i: (0, 0, 0, 0)),
            pl.BlockSpec((9 * Cin, Cmid), lambda i: (0, 0)),
            pl.BlockSpec((1, Cmid), lambda i: (0, 0)),
            pl.BlockSpec((1, Cmid), lambda i: (0, 0)),
            pl.BlockSpec((9 * Cmid, Cout), lambda i: (0, 0)),
            pl.BlockSpec((1, Cout), lambda i: (0, 0)),
            pl.BlockSpec((1, Cout), lambda i: (0, 0)),
        ],
        out_specs=pl.BlockSpec((N, H, W, Cout), lambda i: (0, 0, 0, 0)),
        scratch_shapes=[
            pltpu.VMEM((N, H + 2, W + 2, Cin), jnp.float32),    # pad1
            pltpu.VMEM((N * H * W, 9 * Cin), jnp.float32),      # im2col 1
            pltpu.VMEM((N, H + 2, W + 2, Cmid), jnp.float32),   # pad2
            pltpu.VMEM((N * H * W, 9 * Cmid), jnp.float32),     # im2col 2
        ],
        compiler_params=pltpu.CompilerParams(
            dimension_semantics=("arbitrary",)),
    )(x, w1, g1, b1, w2, g2, b2)
    return jnp.transpose(out, (0, 3, 1, 2))                      # NHWC->NCHW


def init_params(key, in_channels, out_channels, mid_channels=None):
    """Deterministic synthetic parameters with the module's shapes."""
    if not mid_channels:
        mid_channels = out_channels
    k1, k2, k3, k4, k5, k6 = jax.random.split(key, 6)
    # PyTorch Conv2d weights are OIHW; the kernel consumes HWIO (packed later).
    w1_oihw = 0.1 * jax.random.normal(k1, (mid_channels, in_channels, 3, 3), jnp.float32)
    w2_oihw = 0.1 * jax.random.normal(k2, (out_channels, mid_channels, 3, 3), jnp.float32)
    return dict(
        w1=jnp.transpose(w1_oihw, (2, 3, 1, 0)),
        w2=jnp.transpose(w2_oihw, (2, 3, 1, 0)),
        gamma1=1.0 + 0.1 * jax.random.normal(k3, (mid_channels,), jnp.float32),
        beta1=0.1 * jax.random.normal(k4, (mid_channels,), jnp.float32),
        gamma2=1.0 + 0.1 * jax.random.normal(k5, (out_channels,), jnp.float32),
        beta2=0.1 * jax.random.normal(k6, (out_channels,), jnp.float32),
    )


def _reference(x_nchw, params, eps=1e-5):
    """Pure-JAX reference mirroring the kernel's mixed precision:
    bf16-quantized conv inputs/weights, f32 accumulation and f32 BN stats."""
    def q(a):
        return a.astype(jnp.bfloat16).astype(jnp.float32)

    def block(x, w_hwio, gamma, beta):
        w_oihw = jnp.transpose(q(w_hwio), (3, 2, 0, 1))
        y = lax.conv_general_dilated(
            q(x), w_oihw, (1, 1), ((1, 1), (1, 1)),
            dimension_numbers=("NCHW", "OIHW", "NCHW"),
            precision=lax.Precision.HIGHEST)
        mean = jnp.mean(y, axis=(0, 2, 3), keepdims=True)
        var = jnp.mean((y - mean) ** 2, axis=(0, 2, 3), keepdims=True)
        y = (y - mean) * (gamma.reshape(1, -1, 1, 1) * lax.rsqrt(var + eps)) \
            + beta.reshape(1, -1, 1, 1)
        return jnp.maximum(y, 0.0)

    h = block(x_nchw, params["w1"], params["gamma1"], params["beta1"])
    return block(h, params["w2"], params["gamma2"], params["beta2"])


if __name__ == "__main__":
    key = jax.random.PRNGKey(0)
    kx, kp = jax.random.split(key)

    in_channels, out_channels = 4, 8
    x = jax.random.normal(kx, (2, in_channels, 16, 16), jnp.float32)  # NCHW
    params = init_params(kp, in_channels, out_channels)

    out = jax.block_until_ready(double_conv_forward(x, params))
    assert out.shape == (2, out_channels, 16, 16), out.shape

    ref = _reference(x, params)
    max_err = float(jnp.max(jnp.abs(out - ref)))
    assert jnp.allclose(out, ref, atol=3e-2, rtol=3e-2), max_err

    print("KERNEL_OK")
</pallas_src>

<mosaic_0001>
module attributes {stable_mosaic.version = 11 : i64} {
  func.func @_double_conv_kernel(%arg0: i32, %arg1: memref<2x16x16x4xbf16, #tpu.memory_space<vmem>>, %arg2: memref<36x8xbf16, #tpu.memory_space<vmem>>, %arg3: memref<1x8xf32, #tpu.memory_space<vmem>>, %arg4: memref<1x8xf32, #tpu.memory_space<vmem>>, %arg5: memref<72x8xbf16, #tpu.memory_space<vmem>>, %arg6: memref<1x8xf32, #tpu.memory_space<vmem>>, %arg7: memref<1x8xf32, #tpu.memory_space<vmem>>, %arg8: memref<2x16x16x8xf32, #tpu.memory_space<vmem>>, %arg9: memref<2x18x18x4xf32, #tpu.memory_space<vmem>>, %arg10: memref<512x36xf32, #tpu.memory_space<vmem>>, %arg11: memref<2x18x18x8xf32, #tpu.memory_space<vmem>>, %arg12: memref<512x72xf32, #tpu.memory_space<vmem>>) attributes {dimension_semantics = [#tpu.dimension_semantics<arbitrary>], iteration_bounds = array<i64: 1>, scalar_prefetch = 0 : i64, scratch_operands = 4 : i64, tpu.core_type = #tpu.core_type<tc>, window_params = [{pipeline_mode = #tpu.pipeline_mode<synchronous>, transform_indices = @transform_0, window_bounds = array<i64: 2, 16, 16, 4>}, {pipeline_mode = #tpu.pipeline_mode<synchronous>, transform_indices = @transform_1, window_bounds = array<i64: 36, 8>}, {pipeline_mode = #tpu.pipeline_mode<synchronous>, transform_indices = @transform_2, window_bounds = array<i64: 1, 8>}, {pipeline_mode = #tpu.pipeline_mode<synchronous>, transform_indices = @transform_3, window_bounds = array<i64: 1, 8>}, {pipeline_mode = #tpu.pipeline_mode<synchronous>, transform_indices = @transform_4, window_bounds = array<i64: 72, 8>}, {pipeline_mode = #tpu.pipeline_mode<synchronous>, transform_indices = @transform_5, window_bounds = array<i64: 1, 8>}, {pipeline_mode = #tpu.pipeline_mode<synchronous>, transform_indices = @transform_6, window_bounds = array<i64: 1, 8>}, {pipeline_mode = #tpu.pipeline_mode<synchronous>, transform_indices = @transform_7, window_bounds = array<i64: 2, 16, 16, 8>}]} {
    %cst = arith.constant 0.000000e+00 : f32
    %0 = vector.broadcast %cst : f32 to vector<2x18x18x4xf32>
    %c0 = arith.constant 0 : index
    %c0_0 = arith.constant 0 : index
    %c0_1 = arith.constant 0 : index
    %c0_2 = arith.constant 0 : index
    %1 = vector.load %arg9[%c0, %c0_0, %c0_1, %c0_2] : memref<2x18x18x4xf32, #tpu.memory_space<vmem>>, vector<2x18x18x4xf32>
    tpu.vector_store %arg9[%c0, %c0_0, %c0_1, %c0_2], %0 {strides = array<i32>} : memref<2x18x18x4xf32, #tpu.memory_space<vmem>>, vector<2x18x18x4xf32>,
    %c0_3 = arith.constant 0 : index
    %c0_4 = arith.constant 0 : index
    %c0_5 = arith.constant 0 : index
    %c0_6 = arith.constant 0 : index
    %2 = vector.load %arg1[%c0_3, %c0_4, %c0_5, %c0_6] : memref<2x16x16x4xbf16, #tpu.memory_space<vmem>>, vector<2x16x16x4xbf16>
    %3 = arith.extf %2 : vector<2x16x16x4xbf16> to vector<2x16x16x4xf32>
    %c0_7 = arith.constant 0 : index
    %c1 = arith.constant 1 : index
    %c1_8 = arith.constant 1 : index
    %c0_9 = arith.constant 0 : index
    %4 = vector.load %arg9[%c0_7, %c1, %c1_8, %c0_9] : memref<2x18x18x4xf32, #tpu.memory_space<vmem>>, vector<2x16x16x4xf32>
    tpu.vector_store %arg9[%c0_7, %c1, %c1_8, %c0_9], %3 {strides = array<i32>} : memref<2x18x18x4xf32, #tpu.memory_space<vmem>>, vector<2x16x16x4xf32>,
    %c0_10 = arith.constant 0 : index
    %c0_11 = arith.constant 0 : index
    %c0_12 = arith.constant 0 : index
    %c0_13 = arith.constant 0 : index
    %5 = vector.load %arg9[%c0_10, %c0_11, %c0_12, %c0_13] : memref<2x18x18x4xf32, #tpu.memory_space<vmem>>, vector<2x16x16x4xf32>
    %6 = vector.shape_cast %5 : vector<2x16x16x4xf32> to vector<512x4xf32>
    %c0_14 = arith.constant 0 : index
    %c0_15 = arith.constant 0 : index
    %7 = vector.load %arg10[%c0_14, %c0_15] : memref<512x36xf32, #tpu.memory_space<vmem>>, vector<512x4xf32>
    tpu.vector_store %arg10[%c0_14, %c0_15], %6 {strides = array<i32>} : memref<512x36xf32, #tpu.memory_space<vmem>>, vector<512x4xf32>,
    %c0_16 = arith.constant 0 : index
    %c0_17 = arith.constant 0 : index
    %c1_18 = arith.constant 1 : index
    %c0_19 = arith.constant 0 : index
    %8 = vector.load %arg9[%c0_16, %c0_17, %c1_18, %c0_19] : memref<2x18x18x4xf32, #tpu.memory_space<vmem>>, vector<2x16x16x4xf32>
    %9 = vector.shape_cast %8 : vector<2x16x16x4xf32> to vector<512x4xf32>
    %c0_20 = arith.constant 0 : index
    %c4 = arith.constant 4 : index
    %10 = vector.load %arg10[%c0_20, %c4] : memref<512x36xf32, #tpu.memory_space<vmem>>, vector<512x4xf32>
    tpu.vector_store %arg10[%c0_20, %c4], %9 {strides = array<i32>} : memref<512x36xf32, #tpu.memory_space<vmem>>, vector<512x4xf32>,
    %c0_21 = arith.constant 0 : index
    %c0_22 = arith.constant 0 : index
    %c2 = arith.constant 2 : index
    %c0_23 = arith.constant 0 : index
    %11 = vector.load %arg9[%c0_21, %c0_22, %c2, %c0_23] : memref<2x18x18x4xf32, #tpu.memory_space<vmem>>, vector<2x16x16x4xf32>
    %12 = vector.shape_cast %11 : vector<2x16x16x4xf32> to vector<512x4xf32>
    %c0_24 = arith.constant 0 : index
    %c8 = arith.constant 8 : index
    %13 = vector.load %arg10[%c0_24, %c8] : memref<512x36xf32, #tpu.memory_space<vmem>>, vector<512x4xf32>
    tpu.vector_store %arg10[%c0_24, %c8], %12 {strides = array<i32>} : memref<512x36xf32, #tpu.memory_space<vmem>>, vector<512x4xf32>,
    %c0_25 = arith.constant 0 : index
    %c1_26 = arith.constant 1 : index
    %c0_27 = arith.constant 0 : index
    %c0_28 = arith.constant 0 : index
    %14 = vector.load %arg9[%c0_25, %c1_26, %c0_27, %c0_28] : memref<2x18x18x4xf32, #tpu.memory_space<vmem>>, vector<2x16x16x4xf32>
    %15 = vector.shape_cast %14 : vector<2x16x16x4xf32> to vector<512x4xf32>
    %c0_29 = arith.constant 0 : index
    %c12 = arith.constant 12 : index
    %16 = vector.load %arg10[%c0_29, %c12] : memref<512x36xf32, #tpu.memory_space<vmem>>, vector<512x4xf32>
    tpu.vector_store %arg10[%c0_29, %c12], %15 {strides = array<i32>} : memref<512x36xf32, #tpu.memory_space<vmem>>, vector<512x4xf32>,
    %c0_30 = arith.constant 0 : index
    %c1_31 = arith.constant 1 : index
    %c1_32 = arith.constant 1 : index
    %c0_33 = arith.constant 0 : index
    %17 = vector.load %arg9[%c0_30, %c1_31, %c1_32, %c0_33] : memref<2x18x18x4xf32, #tpu.memory_space<vmem>>, vector<2x16x16x4xf32>
    %18 = vector.shape_cast %17 : vector<2x16x16x4xf32> to vector<512x4xf32>
    %c0_34 = arith.constant 0 : index
    %c16 = arith.constant 16 : index
    %19 = vector.load %arg10[%c0_34, %c16] : memref<512x36xf32, #tpu.memory_space<vmem>>, vector<512x4xf32>
    tpu.vector_store %arg10[%c0_34, %c16], %18 {strides = array<i32>} : memref<512x36xf32, #tpu.memory_space<vmem>>, vector<512x4xf32>,
    %c0_35 = arith.constant 0 : index
    %c1_36 = arith.constant 1 : index
    %c2_37 = arith.constant 2 : index
    %c0_38 = arith.constant 0 : index
    %20 = vector.load %arg9[%c0_35, %c1_36, %c2_37, %c0_38] : memref<2x18x18x4xf32, #tpu.memory_space<vmem>>, vector<2x16x16x4xf32>
    %21 = vector.shape_cast %20 : vector<2x16x16x4xf32> to vector<512x4xf32>
    %c0_39 = arith.constant 0 : index
    %c20 = arith.constant 20 : index
    %22 = vector.load %arg10[%c0_39, %c20] : memref<512x36xf32, #tpu.memory_space<vmem>>, vector<512x4xf32>
    tpu.vector_store %arg10[%c0_39, %c20], %21 {strides = array<i32>} : memref<512x36xf32, #tpu.memory_space<vmem>>, vector<512x4xf32>,
    %c0_40 = arith.constant 0 : index
    %c2_41 = arith.constant 2 : index
    %c0_42 = arith.constant 0 : index
    %c0_43 = arith.constant 0 : index
    %23 = vector.load %arg9[%c0_40, %c2_41, %c0_42, %c0_43] : memref<2x18x18x4xf32, #tpu.memory_space<vmem>>, vector<2x16x16x4xf32>
    %24 = vector.shape_cast %23 : vector<2x16x16x4xf32> to vector<512x4xf32>
    %c0_44 = arith.constant 0 : index
    %c24 = arith.constant 24 : index
    %25 = vector.load %arg10[%c0_44, %c24] : memref<512x36xf32, #tpu.memory_space<vmem>>, vector<512x4xf32>
    tpu.vector_store %arg10[%c0_44, %c24], %24 {strides = array<i32>} : memref<512x36xf32, #tpu.memory_space<vmem>>, vector<512x4xf32>,
    %c0_45 = arith.constant 0 : index
    %c2_46 = arith.constant 2 : index
    %c1_47 = arith.constant 1 : index
    %c0_48 = arith.constant 0 : index
    %26 = vector.load %arg9[%c0_45, %c2_46, %c1_47, %c0_48] : memref<2x18x18x4xf32, #tpu.memory_space<vmem>>, vector<2x16x16x4xf32>
    %27 = vector.shape_cast %26 : vector<2x16x16x4xf32> to vector<512x4xf32>
    %c0_49 = arith.constant 0 : index
    %c28 = arith.constant 28 : index
    %28 = vector.load %arg10[%c0_49, %c28] : memref<512x36xf32, #tpu.memory_space<vmem>>, vector<512x4xf32>
    tpu.vector_store %arg10[%c0_49, %c28], %27 {strides = array<i32>} : memref<512x36xf32, #tpu.memory_space<vmem>>, vector<512x4xf32>,
    %c0_50 = arith.constant 0 : index
    %c2_51 = arith.constant 2 : index
    %c2_52 = arith.constant 2 : index
    %c0_53 = arith.constant 0 : index
    %29 = vector.load %arg9[%c0_50, %c2_51, %c2_52, %c0_53] : memref<2x18x18x4xf32, #tpu.memory_space<vmem>>, vector<2x16x16x4xf32>
    %30 = vector.shape_cast %29 : vector<2x16x16x4xf32> to vector<512x4xf32>
    %c0_54 = arith.constant 0 : index
    %c32 = arith.constant 32 : index
    %31 = vector.load %arg10[%c0_54, %c32] : memref<512x36xf32, #tpu.memory_space<vmem>>, vector<512x4xf32>
    tpu.vector_store %arg10[%c0_54, %c32], %30 {strides = array<i32>} : memref<512x36xf32, #tpu.memory_space<vmem>>, vector<512x4xf32>,
    %c0_55 = arith.constant 0 : index
    %c0_56 = arith.constant 0 : index
    %32 = vector.load %arg10[%c0_55, %c0_56] : memref<512x36xf32, #tpu.memory_space<vmem>>, vector<512x36xf32>
    %33 = arith.truncf %32 : vector<512x36xf32> to vector<512x36xbf16>
    %c0_57 = arith.constant 0 : index
    %c0_58 = arith.constant 0 : index
    %34 = vector.load %arg2[%c0_57, %c0_58] : memref<36x8xbf16, #tpu.memory_space<vmem>>, vector<36x8xbf16>
    %cst_59 = arith.constant dense<0.000000e+00> : vector<512x8xf32>
    %35 = tpu.matmul %33, %34, %cst_59 {dimension_numbers = #tpu.dot_dimension_numbers<[1], [0], [0], [1], [0, 0, 1, 1], [], []>} : vector<512x36xbf16>, vector<36x8xbf16>, vector<512x8xf32> -> vector<512x8xf32>
    %cst_60 = arith.constant dense<0.000000e+00> : vector<8xf32>
    %36 = vector.multi_reduction <add>, %35, %cst_60 [0] : vector<512x8xf32> to vector<8xf32>
    %37 = vector.shape_cast %36 : vector<8xf32> to vector<1x8xf32>
    %cst_61 = arith.constant 5.120000e+02 : f32
    %38 = vector.broadcast %cst_61 : f32 to vector<1x8xf32>
    %39 = arith.divf %37, %38 : vector<1x8xf32>
    %40 = vector.broadcast %39 : vector<1x8xf32> to vector<512x8xf32>
    %41 = arith.subf %35, %40 : vector<512x8xf32>
    %42 = arith.mulf %41, %41 : vector<512x8xf32>
    %cst_62 = arith.constant dense<0.000000e+00> : vector<8xf32>
    %43 = vector.multi_reduction <add>, %42, %cst_62 [0] : vector<512x8xf32> to vector<8xf32>
    %44 = vector.shape_cast %43 : vector<8xf32> to vector<1x8xf32>
    %cst_63 = arith.constant 5.120000e+02 : f32
    %45 = vector.broadcast %cst_63 : f32 to vector<1x8xf32>
    %46 = arith.divf %44, %45 : vector<1x8xf32>
    %47 = vector.broadcast %39 : vector<1x8xf32> to vector<512x8xf32>
    %48 = arith.subf %35, %47 : vector<512x8xf32>
    %c0_64 = arith.constant 0 : index
    %c0_65 = arith.constant 0 : index
    %49 = vector.load %arg3[%c0_64, %c0_65] : memref<1x8xf32, #tpu.memory_space<vmem>>, vector<1x8xf32>
    %cst_66 = arith.constant 9.99999974E-6 : f32
    %50 = vector.broadcast %cst_66 : f32 to vector<1x8xf32>
    %51 = arith.addf %46, %50 : vector<1x8xf32>
    %52 = math.rsqrt %51 : vector<1x8xf32>
    %53 = arith.mulf %49, %52 : vector<1x8xf32>
    %54 = vector.broadcast %53 : vector<1x8xf32> to vector<512x8xf32>
    %55 = arith.mulf %48, %54 : vector<512x8xf32>
    %c0_67 = arith.constant 0 : index
    %c0_68 = arith.constant 0 : index
    %56 = vector.load %arg4[%c0_67, %c0_68] : memref<1x8xf32, #tpu.memory_space<vmem>>, vector<1x8xf32>
    %57 = vector.broadcast %56 : vector<1x8xf32> to vector<512x8xf32>
    %58 = arith.addf %55, %57 : vector<512x8xf32>
    %cst_69 = arith.constant 0.000000e+00 : f32
    %59 = vector.broadcast %cst_69 : f32 to vector<512x8xf32>
    %60 = arith.maximumf %58, %59 : vector<512x8xf32>
    %cst_70 = arith.constant 0.000000e+00 : f32
    %61 = vector.broadcast %cst_70 : f32 to vector<2x18x18x8xf32>
    %c0_71 = arith.constant 0 : index
    %c0_72 = arith.constant 0 : index
    %c0_73 = arith.constant 0 : index
    %c0_74 = arith.constant 0 : index
    %62 = vector.load %arg11[%c0_71, %c0_72, %c0_73, %c0_74] : memref<2x18x18x8xf32, #tpu.memory_space<vmem>>, vector<2x18x18x8xf32>
    tpu.vector_store %arg11[%c0_71, %c0_72, %c0_73, %c0_74], %61 {strides = array<i32>} : memref<2x18x18x8xf32, #tpu.memory_space<vmem>>, vector<2x18x18x8xf32>,
    %63 = vector.shape_cast %60 : vector<512x8xf32> to vector<2x16x16x8xf32>
    %c0_75 = arith.constant 0 : index
    %c1_76 = arith.constant 1 : index
    %c1_77 = arith.constant 1 : index
    %c0_78 = arith.constant 0 : index
    %64 = vector.load %arg11[%c0_75, %c1_76, %c1_77, %c0_78] : memref<2x18x18x8xf32, #tpu.memory_space<vmem>>, vector<2x16x16x8xf32>
    tpu.vector_store %arg11[%c0_75, %c1_76, %c1_77, %c0_78], %63 {strides = array<i32>} : memref<2x18x18x8xf32, #tpu.memory_space<vmem>>, vector<2x16x16x8xf32>,
    %c0_79 = arith.constant 0 : index
    %c0_80 = arith.constant 0 : index
    %c0_81 = arith.constant 0 : index
    %c0_82 = arith.constant 0 : index
    %65 = vector.load %arg11[%c0_79, %c0_80, %c0_81, %c0_82] : memref<2x18x18x8xf32, #tpu.memory_space<vmem>>, vector<2x16x16x8xf32>
    %66 = vector.shape_cast %65 : vector<2x16x16x8xf32> to vector<512x8xf32>
    %c0_83 = arith.constant 0 : index
    %c0_84 = arith.constant 0 : index
    %67 = vector.load %arg12[%c0_83, %c0_84] : memref<512x72xf32, #tpu.memory_space<vmem>>, vector<512x8xf32>
    tpu.vector_store %arg12[%c0_83, %c0_84], %66 {strides = array<i32>} : memref<512x72xf32, #tpu.memory_space<vmem>>, vector<512x8xf32>,
    %c0_85 = arith.constant 0 : index
    %c0_86 = arith.constant 0 : index
    %c1_87 = arith.constant 1 : index
    %c0_88 = arith.constant 0 : index
    %68 = vector.load %arg11[%c0_85, %c0_86, %c1_87, %c0_88] : memref<2x18x18x8xf32, #tpu.memory_space<vmem>>, vector<2x16x16x8xf32>
    %69 = vector.shape_cast %68 : vector<2x16x16x8xf32> to vector<512x8xf32>
    %c0_89 = arith.constant 0 : index
    %c8_90 = arith.constant 8 : index
    %70 = vector.load %arg12[%c0_89, %c8_90] : memref<512x72xf32, #tpu.memory_space<vmem>>, vector<512x8xf32>
    tpu.vector_store %arg12[%c0_89, %c8_90], %69 {strides = array<i32>} : memref<512x72xf32, #tpu.memory_space<vmem>>, vector<512x8xf32>,
    %c0_91 = arith.constant 0 : index
    %c0_92 = arith.constant 0 : index
    %c2_93 = arith.constant 2 : index
    %c0_94 = arith.constant 0 : index
    %71 = vector.load %arg11[%c0_91, %c0_92, %c2_93, %c0_94] : memref<2x18x18x8xf32, #tpu.memory_space<vmem>>, vector<2x16x16x8xf32>
    %72 = vector.shape_cast %71 : vector<2x16x16x8xf32> to vector<512x8xf32>
    %c0_95 = arith.constant 0 : index
    %c16_96 = arith.constant 16 : index
    %73 = vector.load %arg12[%c0_95, %c16_96] : memref<512x72xf32, #tpu.memory_space<vmem>>, vector<512x8xf32>
    tpu.vector_store %arg12[%c0_95, %c16_96], %72 {strides = array<i32>} : memref<512x72xf32, #tpu.memory_space<vmem>>, vector<512x8xf32>,
    %c0_97 = arith.constant 0 : index
    %c1_98 = arith.constant 1 : index
    %c0_99 = arith.constant 0 : index
    %c0_100 = arith.constant 0 : index
    %74 = vector.load %arg11[%c0_97, %c1_98, %c0_99, %c0_100] : memref<2x18x18x8xf32, #tpu.memory_space<vmem>>, vector<2x16x16x8xf32>
    %75 = vector.shape_cast %74 : vector<2x16x16x8xf32> to vector<512x8xf32>
    %c0_101 = arith.constant 0 : index
    %c24_102 = arith.constant 24 : index
    %76 = vector.load %arg12[%c0_101, %c24_102] : memref<512x72xf32, #tpu.memory_space<vmem>>, vector<512x8xf32>
    tpu.vector_store %arg12[%c0_101, %c24_102], %75 {strides = array<i32>} : memref<512x72xf32, #tpu.memory_space<vmem>>, vector<512x8xf32>,
    %c0_103 = arith.constant 0 : index
    %c1_104 = arith.constant 1 : index
    %c1_105 = arith.constant 1 : index
    %c0_106 = arith.constant 0 : index
    %77 = vector.load %arg11[%c0_103, %c1_104, %c1_105, %c0_106] : memref<2x18x18x8xf32, #tpu.memory_space<vmem>>, vector<2x16x16x8xf32>
    %78 = vector.shape_cast %77 : vector<2x16x16x8xf32> to vector<512x8xf32>
    %c0_107 = arith.constant 0 : index
    %c32_108 = arith.constant 32 : index
    %79 = vector.load %arg12[%c0_107, %c32_108] : memref<512x72xf32, #tpu.memory_space<vmem>>, vector<512x8xf32>
    tpu.vector_store %arg12[%c0_107, %c32_108], %78 {strides = array<i32>} : memref<512x72xf32, #tpu.memory_space<vmem>>, vector<512x8xf32>,
    %c0_109 = arith.constant 0 : index
    %c1_110 = arith.constant 1 : index
    %c2_111 = arith.constant 2 : index
    %c0_112 = arith.constant 0 : index
    %80 = vector.load %arg11[%c0_109, %c1_110, %c2_111, %c0_112] : memref<2x18x18x8xf32, #tpu.memory_space<vmem>>, vector<2x16x16x8xf32>
    %81 = vector.shape_cast %80 : vector<2x16x16x8xf32> to vector<512x8xf32>
    %c0_113 = arith.constant 0 : index
    %c40 = arith.constant 40 : index
    %82 = vector.load %arg12[%c0_113, %c40] : memref<512x72xf32, #tpu.memory_space<vmem>>, vector<512x8xf32>
    tpu.vector_store %arg12[%c0_113, %c40], %81 {strides = array<i32>} : memref<512x72xf32, #tpu.memory_space<vmem>>, vector<512x8xf32>,
    %c0_114 = arith.constant 0 : index
    %c2_115 = arith.constant 2 : index
    %c0_116 = arith.constant 0 : index
    %c0_117 = arith.constant 0 : index
    %83 = vector.load %arg11[%c0_114, %c2_115, %c0_116, %c0_117] : memref<2x18x18x8xf32, #tpu.memory_space<vmem>>, vector<2x16x16x8xf32>
    %84 = vector.shape_cast %83 : vector<2x16x16x8xf32> to vector<512x8xf32>
    %c0_118 = arith.constant 0 : index
    %c48 = arith.constant 48 : index
    %85 = vector.load %arg12[%c0_118, %c48] : memref<512x72xf32, #tpu.memory_space<vmem>>, vector<512x8xf32>
    tpu.vector_store %arg12[%c0_118, %c48], %84 {strides = array<i32>} : memref<512x72xf32, #tpu.memory_space<vmem>>, vector<512x8xf32>,
    %c0_119 = arith.constant 0 : index
    %c2_120 = arith.constant 2 : index
    %c1_121 = arith.constant 1 : index
    %c0_122 = arith.constant 0 : index
    %86 = vector.load %arg11[%c0_119, %c2_120, %c1_121, %c0_122] : memref<2x18x18x8xf32, #tpu.memory_space<vmem>>, vector<2x16x16x8xf32>
    %87 = vector.shape_cast %86 : vector<2x16x16x8xf32> to vector<512x8xf32>
    %c0_123 = arith.constant 0 : index
    %c56 = arith.constant 56 : index
    %88 = vector.load %arg12[%c0_123, %c56] : memref<512x72xf32, #tpu.memory_space<vmem>>, vector<512x8xf32>
    tpu.vector_store %arg12[%c0_123, %c56], %87 {strides = array<i32>} : memref<512x72xf32, #tpu.memory_space<vmem>>, vector<512x8xf32>,
    %c0_124 = arith.constant 0 : index
    %c2_125 = arith.constant 2 : index
    %c2_126 = arith.constant 2 : index
    %c0_127 = arith.constant 0 : index
    %89 = vector.load %arg11[%c0_124, %c2_125, %c2_126, %c0_127] : memref<2x18x18x8xf32, #tpu.memory_space<vmem>>, vector<2x16x16x8xf32>
    %90 = vector.shape_cast %89 : vector<2x16x16x8xf32> to vector<512x8xf32>
    %c0_128 = arith.constant 0 : index
    %c64 = arith.constant 64 : index
    %91 = vector.load %arg12[%c0_128, %c64] : memref<512x72xf32, #tpu.memory_space<vmem>>, vector<512x8xf32>
    tpu.vector_store %arg12[%c0_128, %c64], %90 {strides = array<i32>} : memref<512x72xf32, #tpu.memory_space<vmem>>, vector<512x8xf32>,
    %c0_129 = arith.constant 0 : index
    %c0_130 = arith.constant 0 : index
    %92 = vector.load %arg12[%c0_129, %c0_130] : memref<512x72xf32, #tpu.memory_space<vmem>>, vector<512x72xf32>
    %93 = arith.truncf %92 : vector<512x72xf32> to vector<512x72xbf16>
    %c0_131 = arith.constant 0 : index
    %c0_132 = arith.constant 0 : index
    %94 = vector.load %arg5[%c0_131, %c0_132] : memref<72x8xbf16, #tpu.memory_space<vmem>>, vector<72x8xbf16>
    %cst_133 = arith.constant dense<0.000000e+00> : vector<512x8xf32>
    %95 = tpu.matmul %93, %94, %cst_133 {dimension_numbers = #tpu.dot_dimension_numbers<[1], [0], [0], [1], [0, 0, 1, 1], [], []>} : vector<512x72xbf16>, vector<72x8xbf16>, vector<512x8xf32> -> vector<512x8xf32>
    %cst_134 = arith.constant dense<0.000000e+00> : vector<8xf32>
    %96 = vector.multi_reduction <add>, %95, %cst_134 [0] : vector<512x8xf32> to vector<8xf32>
    %97 = vector.shape_cast %96 : vector<8xf32> to vector<1x8xf32>
    %cst_135 = arith.constant 5.120000e+02 : f32
    %98 = vector.broadcast %cst_135 : f32 to vector<1x8xf32>
    %99 = arith.divf %97, %98 : vector<1x8xf32>
    %100 = vector.broadcast %99 : vector<1x8xf32> to vector<512x8xf32>
    %101 = arith.subf %95, %100 : vector<512x8xf32>
    %102 = arith.mulf %101, %101 : vector<512x8xf32>
    %cst_136 = arith.constant dense<0.000000e+00> : vector<8xf32>
    %103 = vector.multi_reduction <add>, %102, %cst_136 [0] : vector<512x8xf32> to vector<8xf32>
    %104 = vector.shape_cast %103 : vector<8xf32> to vector<1x8xf32>
    %cst_137 = arith.constant 5.120000e+02 : f32
    %105 = vector.broadcast %cst_137 : f32 to vector<1x8xf32>
    %106 = arith.divf %104, %105 : vector<1x8xf32>
    %107 = vector.broadcast %99 : vector<1x8xf32> to vector<512x8xf32>
    %108 = arith.subf %95, %107 : vector<512x8xf32>
    %c0_138 = arith.constant 0 : index
    %c0_139 = arith.constant 0 : index
    %109 = vector.load %arg6[%c0_138, %c0_139] : memref<1x8xf32, #tpu.memory_space<vmem>>, vector<1x8xf32>
    %cst_140 = arith.constant 9.99999974E-6 : f32
    %110 = vector.broadcast %cst_140 : f32 to vector<1x8xf32>
    %111 = arith.addf %106, %110 : vector<1x8xf32>
    %112 = math.rsqrt %111 : vector<1x8xf32>
    %113 = arith.mulf %109, %112 : vector<1x8xf32>
    %114 = vector.broadcast %113 : vector<1x8xf32> to vector<512x8xf32>
    %115 = arith.mulf %108, %114 : vector<512x8xf32>
    %c0_141 = arith.constant 0 : index
    %c0_142 = arith.constant 0 : index
    %116 = vector.load %arg7[%c0_141, %c0_142] : memref<1x8xf32, #tpu.memory_space<vmem>>, vector<1x8xf32>
    %117 = vector.broadcast %116 : vector<1x8xf32> to vector<512x8xf32>
    %118 = arith.addf %115, %117 : vector<512x8xf32>
    %cst_143 = arith.constant 0.000000e+00 : f32
    %119 = vector.broadcast %cst_143 : f32 to vector<512x8xf32>
    %120 = arith.maximumf %118, %119 : vector<512x8xf32>
    %121 = vector.shape_cast %120 : vector<512x8xf32> to vector<2x16x16x8xf32>
    %c0_144 = arith.constant 0 : index
    %c0_145 = arith.constant 0 : index
    %c0_146 = arith.constant 0 : index
    %c0_147 = arith.constant 0 : index
    %122 = vector.load %arg8[%c0_144, %c0_145, %c0_146, %c0_147] : memref<2x16x16x8xf32, #tpu.memory_space<vmem>>, vector<2x16x16x8xf32>
    tpu.vector_store %arg8[%c0_144, %c0_145, %c0_146, %c0_147], %121 {strides = array<i32>} : memref<2x16x16x8xf32, #tpu.memory_space<vmem>>, vector<2x16x16x8xf32>,
    return
  }
  func.func @transform_0(%arg0: i32) -> (i32, i32, i32, i32) {
    %c0_i32 = arith.constant 0 : i32
    %c0_i32_0 = arith.constant 0 : i32
    %c0_i32_1 = arith.constant 0 : i32
    %c0_i32_2 = arith.constant 0 : i32
    %c0_i32_3 = arith.constant 0 : i32
    return %c0_i32, %c0_i32_0, %c0_i32_1, %c0_i32_2 : i32, i32, i32, i32
  }
  func.func @transform_1(%arg0: i32) -> (i32, i32) {
    %c0_i32 = arith.constant 0 : i32
    %c0_i32_0 = arith.constant 0 : i32
    %c0_i32_1 = arith.constant 0 : i32
    return %c0_i32, %c0_i32_0 : i32, i32
  }
  func.func @transform_2(%arg0: i32) -> (i32, i32) {
    %c0_i32 = arith.constant 0 : i32
    %c0_i32_0 = arith.constant 0 : i32
    %c0_i32_1 = arith.constant 0 : i32
    return %c0_i32, %c0_i32_0 : i32, i32
  }
  func.func @transform_3(%arg0: i32) -> (i32, i32) {
    %c0_i32 = arith.constant 0 : i32
    %c0_i32_0 = arith.constant 0 : i32
    %c0_i32_1 = arith.constant 0 : i32
    return %c0_i32, %c0_i32_0 : i32, i32
  }
  func.func @transform_4(%arg0: i32) -> (i32, i32) {
    %c0_i32 = arith.constant 0 : i32
    %c0_i32_0 = arith.constant 0 : i32
    %c0_i32_1 = arith.constant 0 : i32
    return %c0_i32, %c0_i32_0 : i32, i32
  }
  func.func @transform_5(%arg0: i32) -> (i32, i32) {
    %c0_i32 = arith.constant 0 : i32
    %c0_i32_0 = arith.constant 0 : i32
    %c0_i32_1 = arith.constant 0 : i32
    return %c0_i32, %c0_i32_0 : i32, i32
  }
  func.func @transform_6(%arg0: i32) -> (i32, i32) {
    %c0_i32 = arith.constant 0 : i32
    %c0_i32_0 = arith.constant 0 : i32
    %c0_i32_1 = arith.constant 0 : i32
    return %c0_i32, %c0_i32_0 : i32, i32
  }
  func.func @transform_7(%arg0: i32) -> (i32, i32, i32, i32) {
    %c0_i32 = arith.constant 0 : i32
    %c0_i32_0 = arith.constant 0 : i32
    %c0_i32_1 = arith.constant 0 : i32
    %c0_i32_2 = arith.constant 0 : i32
    %c0_i32_3 = arith.constant 0 : i32
    return %c0_i32, %c0_i32_0, %c0_i32_1, %c0_i32_2 : i32, i32, i32, i32
  }
}

</mosaic_0001>

<llo_original>
// kernel: tpu_custom_call.1
$region0: #{tpu_custom_call.1}
  #allocation0 [shape = 'u32[]', space=smem, size = 0x4, offset = 0x4, fixed_abs, tag = 'smem constant byte address 0x4 - core index']
  #allocation1 [shape = 'u32[72,128]{1,0:T(1,128)}', space=vmem, size = 0x9000, scoped, tag = 'internal scratch']
  #allocation2 [shape = 'f32[2,18,18,4]{3,2,1,0:T(8,128)}', space=vmem, size = 0x6c000, scoped, tag = 'scratch operand']
  #allocation3 [shape = 'f32[512,36]{1,0:T(8,128)}', space=vmem, size = 0x40000, scoped, tag = 'scratch operand']
  #allocation4 [shape = 'f32[2,18,18,8]{3,2,1,0:T(8,128)}', space=vmem, size = 0x6c000, scoped, tag = 'scratch operand']
  #allocation5 [shape = 'f32[512,72]{1,0:T(8,128)}', space=vmem, size = 0x40000, scoped, tag = 'scratch operand']
  %s0 = inlined_call_operand.vmem [shape: bf16[2,16,16,4], index: 0, kind: input, shape index: {}]
  %s1 = inlined_call_operand.vmem [shape: bf16[36,8], index: 1, kind: input, shape index: {}]
  %s2 = inlined_call_operand.vmem [shape: f32[1,8], index: 2, kind: input, shape index: {}]
  %s3 = inlined_call_operand.vmem [shape: f32[1,8], index: 3, kind: input, shape index: {}]
  %s4 = inlined_call_operand.vmem [shape: bf16[72,8], index: 4, kind: input, shape index: {}]
  %s5 = inlined_call_operand.vmem [shape: f32[1,8], index: 5, kind: input, shape index: {}]
  %s6 = inlined_call_operand.vmem [shape: f32[1,8], index: 6, kind: input, shape index: {}]
  %s7 = inlined_call_operand.vmem [shape: f32[2,16,16,8], index: 7, kind: output, shape index: {}]
  %s8 = sld [smem:[#allocation0]]
  $region38: #{tpu_custom_call.1} parent=0
    _
  %s10 = ssub.s32 1, %s8
  %s11 = scalar_select 0, %s10, %s8
  // Predicated region
  $region2: #{tpu_custom_call.1} parent=0 // pred_check
    _
  $region3: #{tpu_custom_call.1} parent=0 // pred_check_branch
    %13 = sbr.rel (0) target = $region5
  $region4: #{tpu_custom_call.1} parent=0 // pred_region
    _
  $region5: #{tpu_custom_call.1} parent=0 // pred_fallthru
    _
  // Predicated region
  $region6: #{tpu_custom_call.1} parent=0 // pred_check
    _
  $region7: #{tpu_custom_call.1} parent=0 // pred_check_branch
    %15 = sbr.rel (0) target = $region9
  $region8: #{tpu_custom_call.1} parent=0 // pred_region
    _
  $region9: #{tpu_custom_call.1} parent=0 // pred_fallthru
    _
  // Predicated region
  $region10: #{tpu_custom_call.1} parent=0 // pred_check
    _
  $region11: #{tpu_custom_call.1} parent=0 // pred_check_branch
    %17 = sbr.rel (0) target = $region13
  $region12: #{tpu_custom_call.1} parent=0 // pred_region
    _
  $region13: #{tpu_custom_call.1} parent=0 // pred_fallthru
    _
  // Predicated region
  $region14: #{tpu_custom_call.1} parent=0 // pred_check
    _
  $region15: #{tpu_custom_call.1} parent=0 // pred_check_branch
    %19 = sbr.rel (0) target = $region17
  $region16: #{tpu_custom_call.1} parent=0 // pred_region
    _
  $region17: #{tpu_custom_call.1} parent=0 // pred_fallthru
    _
  // Predicated region
  $region18: #{tpu_custom_call.1} parent=0 // pred_check
    _
  $region19: #{tpu_custom_call.1} parent=0 // pred_check_branch
    %21 = sbr.rel (0) target = $region21
  $region20: #{tpu_custom_call.1} parent=0 // pred_region
    _
  $region21: #{tpu_custom_call.1} parent=0 // pred_fallthru
    _
  // Predicated region
  $region22: #{tpu_custom_call.1} parent=0 // pred_check
    _
  $region23: #{tpu_custom_call.1} parent=0 // pred_check_branch
    %23 = sbr.rel (0) target = $region25
  $region24: #{tpu_custom_call.1} parent=0 // pred_region
    _
  $region25: #{tpu_custom_call.1} parent=0 // pred_fallthru
    _
  // Predicated region
  $region26: #{tpu_custom_call.1} parent=0 // pred_check
    _
  $region27: #{tpu_custom_call.1} parent=0 // pred_check_branch
    %25 = sbr.rel (0) target = $region29
  $region28: #{tpu_custom_call.1} parent=0 // pred_region
    _
  $region29: #{tpu_custom_call.1} parent=0 // pred_fallthru
    _
  %vm27 = vcmask 31744
  %28 = vst.msk [vmem:[#allocation2] sm:$0xff] %vm27, 0.0
  %29 = vst.msk [vmem:[#allocation2 + $0x8] sm:$0xff] %vm27, 0.0
  %vm30 = vcmask 25600
  %31 = vst.msk [vmem:[#allocation2 + $0x10] sm:$0x3] %vm30, 0.0
  %32 = vst.msk [vmem:[#allocation2 + $0x18] sm:$0xff] %vm27, 0.0
  %33 = vst.msk [vmem:[#allocation2 + $0x20] sm:$0xff] %vm27, 0.0
  %34 = vst.msk [vmem:[#allocation2 + $0x28] sm:$0x3] %vm30, 0.0
  %35 = vst.msk [vmem:[#allocation2 + $0x30] sm:$0xff] %vm27, 0.0
  %36 = vst.msk [vmem:[#allocation2 + $0x38] sm:$0xff] %vm27, 0.0
  %37 = vst.msk [vmem:[#allocation2 + $0x40] sm:$0x3] %vm30, 0.0
  %38 = vst.msk [vmem:[#allocation2 + $0x48] sm:$0xff] %vm27, 0.0
  %39 = vst.msk [vmem:[#allocation2 + $0x50] sm:$0xff] %vm27, 0.0
  %40 = vst.msk [vmem:[#allocation2 + $0x58] sm:$0x3] %vm30, 0.0
  %41 = vst.msk [vmem:[#allocation2 + $0x60] sm:$0xff] %vm27, 0.0
  %42 = vst.msk [vmem:[#allocation2 + $0x68] sm:$0xff] %vm27, 0.0
  %43 = vst.msk [vmem:[#allocation2 + $0x70] sm:$0x3] %vm30, 0.0
  %44 = vst.msk [vmem:[#allocation2 + $0x78] sm:$0xff] %vm27, 0.0
  %45 = vst.msk [vmem:[#allocation2 + $0x80] sm:$0xff] %vm27, 0.0
  %46 = vst.msk [vmem:[#allocation2 + $0x88] sm:$0x3] %vm30, 0.0
  %47 = vst.msk [vmem:[#allocation2 + $0x90] sm:$0xff] %vm27, 0.0
  %48 = vst.msk [vmem:[#allocation2 + $0x98] sm:$0xff] %vm27, 0.0
  %49 = vst.msk [vmem:[#allocation2 + $0xa0] sm:$0x3] %vm30, 0.0
  %50 = vst.msk [vmem:[#allocation2 + $0xa8] sm:$0xff] %vm27, 0.0
  %51 = vst.msk [vmem:[#allocation2 + $0xb0] sm:$0xff] %vm27, 0.0
  %52 = vst.msk [vmem:[#allocation2 + $0xb8] sm:$0x3] %vm30, 0.0
  %53 = vst.msk [vmem:[#allocation2 + $0xc0] sm:$0xff] %vm27, 0.0
  %54 = vst.msk [vmem:[#allocation2 + $0xc8] sm:$0xff] %vm27, 0.0
  %55 = vst.msk [vmem:[#allocation2 + $0xd0] sm:$0x3] %vm30, 0.0
  %56 = vst.msk [vmem:[#allocation2 + $0xd8] sm:$0xff] %vm27, 0.0
  %57 = vst.msk [vmem:[#allocation2 + $0xe0] sm:$0xff] %vm27, 0.0
  %58 = vst.msk [vmem:[#allocation2 + $0xe8] sm:$0x3] %vm30, 0.0
  %59 = vst.msk [vmem:[#allocation2 + $0xf0] sm:$0xff] %vm27, 0.0
  %60 = vst.msk [vmem:[#allocation2 + $0xf8] sm:$0xff] %vm27, 0.0
  %61 = vst.msk [vmem:[#allocation2 + $0x100] sm:$0x3] %vm30, 0.0
  %62 = vst.msk [vmem:[#allocation2 + $0x108] sm:$0xff] %vm27, 0.0
  %63 = vst.msk [vmem:[#allocation2 + $0x110] sm:$0xff] %vm27, 0.0
  %64 = vst.msk [vmem:[#allocation2 + $0x118] sm:$0x3] %vm30, 0.0
  %65 = vst.msk [vmem:[#allocation2 + $0x120] sm:$0xff] %vm27, 0.0
  %66 = vst.msk [vmem:[#allocation2 + $0x128] sm:$0xff] %vm27, 0.0
  %67 = vst.msk [vmem:[#allocation2 + $0x130] sm:$0x3] %vm30, 0.0
  %68 = vst.msk [vmem:[#allocation2 + $0x138] sm:$0xff] %vm27, 0.0
  %69 = vst.msk [vmem:[#allocation2 + $0x140] sm:$0xff] %vm27, 0.0
  %70 = vst.msk [vmem:[#allocation2 + $0x148] sm:$0x3] %vm30, 0.0
  %71 = vst.msk [vmem:[#allocation2 + $0x150] sm:$0xff] %vm27, 0.0
  %72 = vst.msk [vmem:[#allocation2 + $0x158] sm:$0xff] %vm27, 0.0
  %73 = vst.msk [vmem:[#allocation2 + $0x160] sm:$0x3] %vm30, 0.0
  %74 = vst.msk [vmem:[#allocation2 + $0x168] sm:$0xff] %vm27, 0.0
  %75 = vst.msk [vmem:[#allocation2 + $0x170] sm:$0xff] %vm27, 0.0
  %76 = vst.msk [vmem:[#allocation2 + $0x178] sm:$0x3] %vm30, 0.0
  %77 = vst.msk [vmem:[#allocation2 + $0x180] sm:$0xff] %vm27, 0.0
  %78 = vst.msk [vmem:[#allocation2 + $0x188] sm:$0xff] %vm27, 0.0
  %79 = vst.msk [vmem:[#allocation2 + $0x190] sm:$0x3] %vm30, 0.0
  %80 = vst.msk [vmem:[#allocation2 + $0x198] sm:$0xff] %vm27, 0.0
  %81 = vst.msk [vmem:[#allocation2 + $0x1a0] sm:$0xff] %vm27, 0.0
  %82 = vst.msk [vmem:[#allocation2 + $0x1a8] sm:$0x3] %vm30, 0.0
  %83 = vst.msk [vmem:[#allocation2 + $0x1b0] sm:$0xff] %vm27, 0.0
  %84 = vst.msk [vmem:[#allocation2 + $0x1b8] sm:$0xff] %vm27, 0.0
  %85 = vst.msk [vmem:[#allocation2 + $0x1c0] sm:$0x3] %vm30, 0.0
  %86 = vst.msk [vmem:[#allocation2 + $0x1c8] sm:$0xff] %vm27, 0.0
  %87 = vst.msk [vmem:[#allocation2 + $0x1d0] sm:$0xff] %vm27, 0.0
  %88 = vst.msk [vmem:[#allocation2 + $0x1d8] sm:$0x3] %vm30, 0.0
  %89 = vst.msk [vmem:[#allocation2 + $0x1e0] sm:$0xff] %vm27, 0.0
  %90 = vst.msk [vmem:[#allocation2 + $0x1e8] sm:$0xff] %vm27, 0.0
  %91 = vst.msk [vmem:[#allocation2 + $0x1f0] sm:$0x3] %vm30, 0.0
  %92 = vst.msk [vmem:[#allocation2 + $0x1f8] sm:$0xff] %vm27, 0.0
  %93 = vst.msk [vmem:[#allocation2 + $0x200] sm:$0xff] %vm27, 0.0
  %94 = vst.msk [vmem:[#allocation2 + $0x208] sm:$0x3] %vm30, 0.0
  %95 = vst.msk [vmem:[#allocation2 + $0x210] sm:$0xff] %vm27, 0.0
  %96 = vst.msk [vmem:[#allocation2 + $0x218] sm:$0xff] %vm27, 0.0
  %97 = vst.msk [vmem:[#allocation2 + $0x220] sm:$0x3] %vm30, 0.0
  %98 = vst.msk [vmem:[#allocation2 + $0x228] sm:$0xff] %vm27, 0.0
  %99 = vst.msk [vmem:[#allocation2 + $0x230] sm:$0xff] %vm27, 0.0
  %100 = vst.msk [vmem:[#allocation2 + $0x238] sm:$0x3] %vm30, 0.0
  %101 = vst.msk [vmem:[#allocation2 + $0x240] sm:$0xff] %vm27, 0.0
  %102 = vst.msk [vmem:[#allocation2 + $0x248] sm:$0xff] %vm27, 0.0
  %103 = vst.msk [vmem:[#allocation2 + $0x250] sm:$0x3] %vm30, 0.0
  %104 = vst.msk [vmem:[#allocation2 + $0x258] sm:$0xff] %vm27, 0.0
  %105 = vst.msk [vmem:[#allocation2 + $0x260] sm:$0xff] %vm27, 0.0
  %106 = vst.msk [vmem:[#allocation2 + $0x268] sm:$0x3] %vm30, 0.0
  %107 = vst.msk [vmem:[#allocation2 + $0x270] sm:$0xff] %vm27, 0.0
  %108 = vst.msk [vmem:[#allocation2 + $0x278] sm:$0xff] %vm27, 0.0
  %109 = vst.msk [vmem:[#allocation2 + $0x280] sm:$0x3] %vm30, 0.0
  %110 = vst.msk [vmem:[#allocation2 + $0x288] sm:$0xff] %vm27, 0.0
  %111 = vst.msk [vmem:[#allocation2 + $0x290] sm:$0xff] %vm27, 0.0
  %112 = vst.msk [vmem:[#allocation2 + $0x298] sm:$0x3] %vm30, 0.0
  %113 = vst.msk [vmem:[#allocation2 + $0x2a0] sm:$0xff] %vm27, 0.0
  %114 = vst.msk [vmem:[#allocation2 + $0x2a8] sm:$0xff] %vm27, 0.0
  %115 = vst.msk [vmem:[#allocation2 + $0x2b0] sm:$0x3] %vm30, 0.0
  %116 = vst.msk [vmem:[#allocation2 + $0x2b8] sm:$0xff] %vm27, 0.0
  %117 = vst.msk [vmem:[#allocation2 + $0x2c0] sm:$0xff] %vm27, 0.0
  %118 = vst.msk [vmem:[#allocation2 + $0x2c8] sm:$0x3] %vm30, 0.0
  %119 = vst.msk [vmem:[#allocation2 + $0x2d0] sm:$0xff] %vm27, 0.0
  %120 = vst.msk [vmem:[#allocation2 + $0x2d8] sm:$0xff] %vm27, 0.0
  %121 = vst.msk [vmem:[#allocation2 + $0x2e0] sm:$0x3] %vm30, 0.0
  %122 = vst.msk [vmem:[#allocation2 + $0x2e8] sm:$0xff] %vm27, 0.0
  %123 = vst.msk [vmem:[#allocation2 + $0x2f0] sm:$0xff] %vm27, 0.0
  %124 = vst.msk [vmem:[#allocation2 + $0x2f8] sm:$0x3] %vm30, 0.0
  %125 = vst.msk [vmem:[#allocation2 + $0x300] sm:$0xff] %vm27, 0.0
  %126 = vst.msk [vmem:[#allocation2 + $0x308] sm:$0xff] %vm27, 0.0
  %127 = vst.msk [vmem:[#allocation2 + $0x310] sm:$0x3] %vm30, 0.0
  %128 = vst.msk [vmem:[#allocation2 + $0x318] sm:$0xff] %vm27, 0.0
  %129 = vst.msk [vmem:[#allocation2 + $0x320] sm:$0xff] %vm27, 0.0
  %130 = vst.msk [vmem:[#allocation2 + $0x328] sm:$0x3] %vm30, 0.0
  %131 = vst.msk [vmem:[#allocation2 + $0x330] sm:$0xff] %vm27, 0.0
  %132 = vst.msk [vmem:[#allocation2 + $0x338] sm:$0xff] %vm27, 0.0
  %133 = vst.msk [vmem:[#allocation2 + $0x340] sm:$0x3] %vm30, 0.0
  %134 = vst.msk [vmem:[#allocation2 + $0x348] sm:$0xff] %vm27, 0.0
  %135 = vst.msk [vmem:[#allocation2 + $0x350] sm:$0xff] %vm27, 0.0
  %136 = vst.msk [vmem:[#allocation2 + $0x358] sm:$0x3] %vm30, 0.0
  %v137 = vld [vmem:[%s0] sm:$0xf]
  %v138 = vld [vmem:[%s0 + $0x4] sm:$0xf]
  %v139 = vld [vmem:[%s0 + $0x8] sm:$0xf]
  %v140 = vld [vmem:[%s0 + $0xc] sm:$0xf]
  %v141 = vld [vmem:[%s0 + $0x10] sm:$0xf]
  %v142 = vld [vmem:[%s0 + $0x14] sm:$0xf]
  %v143 = vld [vmem:[%s0 + $0x18] sm:$0xf]
  %v144 = vld [vmem:[%s0 + $0x1c] sm:$0xf]
  %v145 = vld [vmem:[%s0 + $0x20] sm:$0xf]
  %v146 = vld [vmem:[%s0 + $0x24] sm:$0xf]
  %v147 = vld [vmem:[%s0 + $0x28] sm:$0xf]
  %v148 = vld [vmem:[%s0 + $0x2c] sm:$0xf]
  %v149 = vld [vmem:[%s0 + $0x30] sm:$0xf]
  %v150 = vld [vmem:[%s0 + $0x34] sm:$0xf]
  %v151 = vld [vmem:[%s0 + $0x38] sm:$0xf]
  %v152 = vld [vmem:[%s0 + $0x3c] sm:$0xf]
  %v153 = vld [vmem:[%s0 + $0x40] sm:$0xf]
  %v154 = vld [vmem:[%s0 + $0x44] sm:$0xf]
  %v155 = vld [vmem:[%s0 + $0x48] sm:$0xf]
  %v156 = vld [vmem:[%s0 + $0x4c] sm:$0xf]
  %v157 = vld [vmem:[%s0 + $0x50] sm:$0xf]
  %v158 = vld [vmem:[%s0 + $0x54] sm:$0xf]
  %v159 = vld [vmem:[%s0 + $0x58] sm:$0xf]
  %v160 = vld [vmem:[%s0 + $0x5c] sm:$0xf]
  %v161 = vld [vmem:[%s0 + $0x60] sm:$0xf]
  %v162 = vld [vmem:[%s0 + $0x64] sm:$0xf]
  %v163 = vld [vmem:[%s0 + $0x68] sm:$0xf]
  %v164 = vld [vmem:[%s0 + $0x6c] sm:$0xf]
  %v165 = vld [vmem:[%s0 + $0x70] sm:$0xf]
  %v166 = vld [vmem:[%s0 + $0x74] sm:$0xf]
  %v167 = vld [vmem:[%s0 + $0x78] sm:$0xf]
  %v168 = vld [vmem:[%s0 + $0x7c] sm:$0xf]
  %v169 = vld [vmem:[%s0 + $0x80] sm:$0xf]
  %v170 = vld [vmem:[%s0 + $0x84] sm:$0xf]
  %v171 = vld [vmem:[%s0 + $0x88] sm:$0xf]
  %v172 = vld [vmem:[%s0 + $0x8c] sm:$0xf]
  %v173 = vld [vmem:[%s0 + $0x90] sm:$0xf]
  %v174 = vld [vmem:[%s0 + $0x94] sm:$0xf]
  %v175 = vld [vmem:[%s0 + $0x98] sm:$0xf]
  %v176 = vld [vmem:[%s0 + $0x9c] sm:$0xf]
  %v177 = vld [vmem:[%s0 + $0xa0] sm:$0xf]
  %v178 = vld [vmem:[%s0 + $0xa4] sm:$0xf]
  %v179 = vld [vmem:[%s0 + $0xa8] sm:$0xf]
  %v180 = vld [vmem:[%s0 + $0xac] sm:$0xf]
  %v181 = vld [vmem:[%s0 + $0xb0] sm:$0xf]
  %v182 = vld [vmem:[%s0 + $0xb4] sm:$0xf]
  %v183 = vld [vmem:[%s0 + $0xb8] sm:$0xf]
  %v184 = vld [vmem:[%s0 + $0xbc] sm:$0xf]
  %v185 = vld [vmem:[%s0 + $0xc0] sm:$0xf]
  %v186 = vld [vmem:[%s0 + $0xc4] sm:$0xf]
  %v187 = vld [vmem:[%s0 + $0xc8] sm:$0xf]
  %v188 = vld [vmem:[%s0 + $0xcc] sm:$0xf]
  %v189 = vld [vmem:[%s0 + $0xd0] sm:$0xf]
  %v190 = vld [vmem:[%s0 + $0xd4] sm:$0xf]
  %v191 = vld [vmem:[%s0 + $0xd8] sm:$0xf]
  %v192 = vld [vmem:[%s0 + $0xdc] sm:$0xf]
  %v193 = vld [vmem:[%s0 + $0xe0] sm:$0xf]
  %v194 = vld [vmem:[%s0 + $0xe4] sm:$0xf]
  %v195 = vld [vmem:[%s0 + $0xe8] sm:$0xf]
  %v196 = vld [vmem:[%s0 + $0xec] sm:$0xf]
  %v197 = vld [vmem:[%s0 + $0xf0] sm:$0xf]
  %v198 = vld [vmem:[%s0 + $0xf4] sm:$0xf]
  %v199 = vld [vmem:[%s0 + $0xf8] sm:$0xf]
  %v200 = vld [vmem:[%s0 + $0xfc] sm:$0xf]
  %v201 = vunpack.c.l.bf16 %v137
  %v202 = vunpack.c.l.bf16 %v138
  %v203 = vunpack.c.l.bf16 %v139
  %v204 = vunpack.c.l.bf16 %v140
  %v205 = vunpack.c.l.bf16 %v141
  %v206 = vunpack.c.l.bf16 %v142
  %v207 = vunpack.c.l.bf16 %v143
  %v208 = vunpack.c.l.bf16 %v144
  %v209 = vunpack.c.l.bf16 %v145
  %v210 = vunpack.c.l.bf16 %v146
  %v211 = vunpack.c.l.bf16 %v147
  %v212 = vunpack.c.l.bf16 %v148
  %v213 = vunpack.c.l.bf16 %v149
  %v214 = vunpack.c.l.bf16 %v150
  %v215 = vunpack.c.l.bf16 %v151
  %v216 = vunpack.c.l.bf16 %v152
  %v217 = vunpack.c.l.bf16 %v153
  %v218 = vunpack.c.l.bf16 %v154
  %v219 = vunpack.c.l.bf16 %v155
  %v220 = vunpack.c.l.bf16 %v156
  %v221 = vunpack.c.l.bf16 %v157
  %v222 = vunpack.c.l.bf16 %v158
  %v223 = vunpack.c.l.bf16 %v159
  %v224 = vunpack.c.l.bf16 %v160
  %v225 = vunpack.c.l.bf16 %v161
  %v226 = vunpack.c.l.bf16 %v162
  %v227 = vunpack.c.l.bf16 %v163
  %v228 = vunpack.c.l.bf16 %v164
  %v229 = vunpack.c.l.bf16 %v165
  %v230 = vunpack.c.l.bf16 %v166
  %v231 = vunpack.c.l.bf16 %v167
  %v232 = vunpack.c.l.bf16 %v168
  %v233 = vunpack.c.l.bf16 %v169
  %v234 = vunpack.c.l.bf16 %v170
  %v235 = vunpack.c.l.bf16 %v171
  %v236 = vunpack.c.l.bf16 %v172
  %v237 = vunpack.c.l.bf16 %v173
  %v238 = vunpack.c.l.bf16 %v174
  %v239 = vunpack.c.l.bf16 %v175
  %v240 = vunpack.c.l.bf16 %v176
  %v241 = vunpack.c.l.bf16 %v177
  %v242 = vunpack.c.l.bf16 %v178
  %v243 = vunpack.c.l.bf16 %v179
  %v244 = vunpack.c.l.bf16 %v180
  %v245 = vunpack.c.l.bf16 %v181
  %v246 = vunpack.c.l.bf16 %v182
  %v247 = vunpack.c.l.bf16 %v183
  %v248 = vunpack.c.l.bf16 %v184
  %v249 = vunpack.c.l.bf16 %v185
  %v250 = vunpack.c.l.bf16 %v186
  %v251 = vunpack.c.l.bf16 %v187
  %v252 = vunpack.c.l.bf16 %v188
  %v253 = vunpack.c.l.bf16 %v189
  %v254 = vunpack.c.l.bf16 %v190
  %v255 = vunpack.c.l.bf16 %v191
  %v256 = vunpack.c.l.bf16 %v192
  %v257 = vunpack.c.l.bf16 %v193
  %v258 = vunpack.c.l.bf16 %v194
  %v259 = vunpack.c.l.bf16 %v195
  %v260 = vunpack.c.l.bf16 %v196
  %v261 = vunpack.c.l.bf16 %v197
  %v262 = vunpack.c.l.bf16 %v198
  %v263 = vunpack.c.l.bf16 %v199
  %v264 = vunpack.c.l.bf16 %v200
  %s265 = scalar_lea.vmem [#allocation2], 24
  %266 = vst.msk [vmem:[%s265 + $0x1] sm:$0xff] %vm27, %v201
  %267 = vst.msk [vmem:[%s265 + $0x9] sm:$0xff] %vm27, %v202
  %268 = vst.msk [vmem:[%s265 + $0x19] sm:$0xff] %vm27, %v203
  %269 = vst.msk [vmem:[%s265 + $0x21] sm:$0xff] %vm27, %v204
  %270 = vst.msk [vmem:[%s265 + $0x31] sm:$0xff] %vm27, %v205
  %271 = vst.msk [vmem:[%s265 + $0x39] sm:$0xff] %vm27, %v206
  %272 = vst.msk [vmem:[%s265 + $0x49] sm:$0xff] %vm27, %v207
  %273 = vst.msk [vmem:[%s265 + $0x51] sm:$0xff] %vm27, %v208
  %274 = vst.msk [vmem:[%s265 + $0x61] sm:$0xff] %vm27, %v209
  %275 = vst.msk [vmem:[%s265 + $0x69] sm:$0xff] %vm27, %v210
  %276 = vst.msk [vmem:[%s265 + $0x79] sm:$0xff] %vm27, %v211
  %277 = vst.msk [vmem:[%s265 + $0x81] sm:$0xff] %vm27, %v212
  %278 = vst.msk [vmem:[%s265 + $0x91] sm:$0xff] %vm27, %v213
  %279 = vst.msk [vmem:[%s265 + $0x99] sm:$0xff] %vm27, %v214
  %280 = vst.msk [vmem:[%s265 + $0xa9] sm:$0xff] %vm27, %v215
  %281 = vst.msk [vmem:[%s265 + $0xb1] sm:$0xff] %vm27, %v216
  %282 = vst.msk [vmem:[%s265 + $0xc1] sm:$0xff] %vm27, %v217
  %283 = vst.msk [vmem:[%s265 + $0xc9] sm:$0xff] %vm27, %v218
  %284 = vst.msk [vmem:[%s265 + $0xd9] sm:$0xff] %vm27, %v219
  %285 = vst.msk [vmem:[%s265 + $0xe1] sm:$0xff] %vm27, %v220
  %286 = vst.msk [vmem:[%s265 + $0xf1] sm:$0xff] %vm27, %v221
  %287 = vst.msk [vmem:[%s265 + $0xf9] sm:$0xff] %vm27, %v222
  %288 = vst.msk [vmem:[%s265 + $0x109] sm:$0xff] %vm27, %v223
  %289 = vst.msk [vmem:[%s265 + $0x111] sm:$0xff] %vm27, %v224
  %290 = vst.msk [vmem:[%s265 + $0x121] sm:$0xff] %vm27, %v225
  %291 = vst.msk [vmem:[%s265 + $0x129] sm:$0xff] %vm27, %v226
  %292 = vst.msk [vmem:[%s265 + $0x139] sm:$0xff] %vm27, %v227
  %293 = vst.msk [vmem:[%s265 + $0x141] sm:$0xff] %vm27, %v228
  %294 = vst.msk [vmem:[%s265 + $0x151] sm:$0xff] %vm27, %v229
  %295 = vst.msk [vmem:[%s265 + $0x159] sm:$0xff] %vm27, %v230
  %296 = vst.msk [vmem:[%s265 + $0x169] sm:$0xff] %vm27, %v231
  %297 = vst.msk [vmem:[%s265 + $0x171] sm:$0xff] %vm27, %v232
  %298 = vst.msk [vmem:[%s265 + $0x1b1] sm:$0xff] %vm27, %v233
  %299 = vst.msk [vmem:[%s265 + $0x1b9] sm:$0xff] %vm27, %v234
  %300 = vst.msk [vmem:[%s265 + $0x1c9] sm:$0xff] %vm27, %v235
  %301 = vst.msk [vmem:[%s265 + $0x1d1] sm:$0xff] %vm27, %v236
  %302 = vst.msk [vmem:[%s265 + $0x1e1] sm:$0xff] %vm27, %v237
  %303 = vst.msk [vmem:[%s265 + $0x1e9] sm:$0xff] %vm27, %v238
  %304 = vst.msk [vmem:[%s265 + $0x1f9] sm:$0xff] %vm27, %v239
  %305 = vst.msk [vmem:[%s265 + $0x201] sm:$0xff] %vm27, %v240
  %306 = vst.msk [vmem:[%s265 + $0x211] sm:$0xff] %vm27, %v241
  %307 = vst.msk [vmem:[%s265 + $0x219] sm:$0xff] %vm27, %v242
  %308 = vst.msk [vmem:[%s265 + $0x229] sm:$0xff] %vm27, %v243
  %309 = vst.msk [vmem:[%s265 + $0x231] sm:$0xff] %vm27, %v244
  %310 = vst.msk [vmem:[%s265 + $0x241] sm:$0xff] %vm27, %v245
  %311 = vst.msk [vmem:[%s265 + $0x249] sm:$0xff] %vm27, %v246
  %312 = vst.msk [vmem:[%s265 + $0x259] sm:$0xff] %vm27, %v247
  %313 = vst.msk [vmem:[%s265 + $0x261] sm:$0xff] %vm27, %v248
  %314 = vst.msk [vmem:[%s265 + $0x271] sm:$0xff] %vm27, %v249
  %315 = vst.msk [vmem:[%s265 + $0x279] sm:$0xff] %vm27, %v250
  %316 = vst.msk [vmem:[%s265 + $0x289] sm:$0xff] %vm27, %v251
  %317 = vst.msk [vmem:[%s265 + $0x291] sm:$0xff] %vm27, %v252
  %318 = vst.msk [vmem:[%s265 + $0x2a1] sm:$0xff] %vm27, %v253
  %319 = vst.msk [vmem:[%s265 + $0x2a9] sm:$0xff] %vm27, %v254
  %320 = vst.msk [vmem:[%s265 + $0x2b9] sm:$0xff] %vm27, %v255
  %321 = vst.msk [vmem:[%s265 + $0x2c1] sm:$0xff] %vm27, %v256
  %322 = vst.msk [vmem:[%s265 + $0x2d1] sm:$0xff] %vm27, %v257
  %323 = vst.msk [vmem:[%s265 + $0x2d9] sm:$0xff] %vm27, %v258
  %324 = vst.msk [vmem:[%s265 + $0x2e9] sm:$0xff] %vm27, %v259
  %325 = vst.msk [vmem:[%s265 + $0x2f1] sm:$0xff] %vm27, %v260
  %326 = vst.msk [vmem:[%s265 + $0x301] sm:$0xff] %vm27, %v261
  %327 = vst.msk [vmem:[%s265 + $0x309] sm:$0xff] %vm27, %v262
  %328 = vst.msk [vmem:[%s265 + $0x319] sm:$0xff] %vm27, %v263
  %329 = vst.msk [vmem:[%s265 + $0x321] sm:$0xff] %vm27, %v264
  %v330 = vld [vmem:[#allocation2] sm:$0xff]
  %v331 = vld [vmem:[#allocation2 + $0x8] sm:$0xff]
  %v332 = vld [vmem:[#allocation2 + $0x18] sm:$0xff]
  %v333 = vld [vmem:[#allocation2 + $0x20] sm:$0xff]
  %v334 = vld [vmem:[#allocation2 + $0x30] sm:$0xff]
  %v335 = vld [vmem:[#allocation2 + $0x38] sm:$0xff]
  %v336 = vld [vmem:[#allocation2 + $0x48] sm:$0xff]
  %v337 = vld [vmem:[#allocation2 + $0x50] sm:$0xff]
  %v338 = vld [vmem:[#allocation2 + $0x60] sm:$0xff]
  %v339 = vld [vmem:[#allocation2 + $0x68] sm:$0xff]
  %v340 = vld [vmem:[#allocation2 + $0x78] sm:$0xff]
  %v341 = vld [vmem:[#allocation2 + $0x80] sm:$0xff]
  %v342 = vld [vmem:[#allocation2 + $0x90] sm:$0xff]
  %v343 = vld [vmem:[#allocation2 + $0x98] sm:$0xff]
  %v344 = vld [vmem:[#allocation2 + $0xa8] sm:$0xff]
  %v345 = vld [vmem:[#allocation2 + $0xb0] sm:$0xff]
  %v346 = vld [vmem:[#allocation2 + $0xc0] sm:$0xff]
  %v347 = vld [vmem:[#allocation2 + $0xc8] sm:$0xff]
  %v348 = vld [vmem:[#allocation2 + $0xd8] sm:$0xff]
  %v349 = vld [vmem:[#allocation2 + $0xe0] sm:$0xff]
  %v350 = vld [vmem:[#allocation2 + $0xf0] sm:$0xff]
  %v351 = vld [vmem:[#allocation2 + $0xf8] sm:$0xff]
  %v352 = vld [vmem:[#allocation2 + $0x108] sm:$0xff]
  %v353 = vld [vmem:[#allocation2 + $0x110] sm:$0xff]
  %v354 = vld [vmem:[#allocation2 + $0x120] sm:$0xff]
  %v355 = vld [vmem:[#allocation2 + $0x128] sm:$0xff]
  %v356 = vld [vmem:[#allocation2 + $0x138] sm:$0xff]
  %v357 = vld [vmem:[#allocation2 + $0x140] sm:$0xff]
  %v358 = vld [vmem:[#allocation2 + $0x150] sm:$0xff]
  %v359 = vld [vmem:[#allocation2 + $0x158] sm:$0xff]
  %v360 = vld [vmem:[#allocation2 + $0x168] sm:$0xff]
  %v361 = vld [vmem:[#allocation2 + $0x170] sm:$0xff]
  %v362 = vld [vmem:[#allocation2 + $0x1b0] sm:$0xff]
  %v363 = vld [vmem:[#allocation2 + $0x1b8] sm:$0xff]
  %v364 = vld [vmem:[#allocation2 + $0x1c8] sm:$0xff]
  %v365 = vld [vmem:[#allocation2 + $0x1d0] sm:$0xff]
  %v366 = vld [vmem:[#allocation2 + $0x1e0] sm:$0xff]
  %v367 = vld [vmem:[#allocation2 + $0x1e8] sm:$0xff]
  %v368 = vld [vmem:[#allocation2 + $0x1f8] sm:$0xff]
  %v369 = vld [vmem:[#allocation2 + $0x200] sm:$0xff]
  %v370 = vld [vmem:[#allocation2 + $0x210] sm:$0xff]
  %v371 = vld [vmem:[#allocation2 + $0x218] sm:$0xff]
  %v372 = vld [vmem:[#allocation2 + $0x228] sm:$0xff]
  %v373 = vld [vmem:[#allocation2 + $0x230] sm:$0xff]
  %v374 = vld [vmem:[#allocation2 + $0x240] sm:$0xff]
  %v375 = vld [vmem:[#allocation2 + $0x248] sm:$0xff]
  %v376 = vld [vmem:[#allocation2 + $0x258] sm:$0xff]
  %v377 = vld [vmem:[#allocation2 + $0x260] sm:$0xff]
  %v378 = vld [vmem:[#allocation2 + $0x270] sm:$0xff]
  %v379 = vld [vmem:[#allocation2 + $0x278] sm:$0xff]
  %v380 = vld [vmem:[#allocation2 + $0x288] sm:$0xff]
  %v381 = vld [vmem:[#allocation2 + $0x290] sm:$0xff]
  %v382 = vld [vmem:[#allocation2 + $0x2a0] sm:$0xff]
  %v383 = vld [vmem:[#allocation2 + $0x2a8] sm:$0xff]
  %v384 = vld [vmem:[#allocation2 + $0x2b8] sm:$0xff]
  %v385 = vld [vmem:[#allocation2 + $0x2c0] sm:$0xff]
  %v386 = vld [vmem:[#allocation2 + $0x2d0] sm:$0xff]
  %v387 = vld [vmem:[#allocation2 + $0x2d8] sm:$0xff]
  %v388 = vld [vmem:[#allocation2 + $0x2e8] sm:$0xff]
  %v389 = vld [vmem:[#allocation2 + $0x2f0] sm:$0xff]
  %v390 = vld [vmem:[#allocation2 + $0x300] sm:$0xff]
  %v391 = vld [vmem:[#allocation2 + $0x308] sm:$0xff]
  %v392 = vld [vmem:[#allocation2 + $0x318] sm:$0xff]
  %v393 = vld [vmem:[#allocation2 + $0x320] sm:$0xff]
  %394 = vst.msk [vmem:[#allocation3] sm:$0xff] %vm27, %v330
  %395 = vst.msk [vmem:[#allocation3 + $0x8] sm:$0xff] %vm27, %v331
  %396 = vst.msk [vmem:[#allocation3 + $0x10] sm:$0xff] %vm27, %v332
  %397 = vst.msk [vmem:[#allocation3 + $0x18] sm:$0xff] %vm27, %v333
  %398 = vst.msk [vmem:[#allocation3 + $0x20] sm:$0xff] %vm27, %v334
  %399 = vst.msk [vmem:[#allocation3 + $0x28] sm:$0xff] %vm27, %v335
  %400 = vst.msk [vmem:[#allocation3 + $0x30] sm:$0xff] %vm27, %v336
  %401 = vst.msk [vmem:[#allocation3 + $0x38] sm:$0xff] %vm27, %v337
  %402 = vst.msk [vmem:[#allocation3 + $0x40] sm:$0xff] %vm27, %v338
  %403 = vst.msk [vmem:[#allocation3 + $0x48] sm:$0xff] %vm27, %v339
  %404 = vst.msk [vmem:[#allocation3 + $0x50] sm:$0xff] %vm27, %v340
  %405 = vst.msk [vmem:[#allocation3 + $0x58] sm:$0xff] %vm27, %v341
  %406 = vst.msk [vmem:[#allocation3 + $0x60] sm:$0xff] %vm27, %v342
  %407 = vst.msk [vmem:[#allocation3 + $0x68] sm:$0xff] %vm27, %v343
  %408 = vst.msk [vmem:[#allocation3 + $0x70] sm:$0xff] %vm27, %v344
  %409 = vst.msk [vmem:[#allocation3 + $0x78] sm:$0xff] %vm27, %v345
  %410 = vst.msk [vmem:[#allocation3 + $0x80] sm:$0xff] %vm27, %v346
  %411 = vst.msk [vmem:[#allocation3 + $0x88] sm:$0xff] %vm27, %v347
  %412 = vst.msk [vmem:[#allocation3 + $0x90] sm:$0xff] %vm27, %v348
  %413 = vst.msk [vmem:[#allocation3 + $0x98] sm:$0xff] %vm27, %v349
  %414 = vst.msk [vmem:[#allocation3 + $0xa0] sm:$0xff] %vm27, %v350
  %415 = vst.msk [vmem:[#allocation3 + $0xa8] sm:$0xff] %vm27, %v351
  %416 = vst.msk [vmem:[#allocation3 + $0xb0] sm:$0xff] %vm27, %v352
  %417 = vst.msk [vmem:[#allocation3 + $0xb8] sm:$0xff] %vm27, %v353
  %418 = vst.msk [vmem:[#allocation3 + $0xc0] sm:$0xff] %vm27, %v354
  %419 = vst.msk [vmem:[#allocation3 + $0xc8] sm:$0xff] %vm27, %v355
  %420 = vst.msk [vmem:[#allocation3 + $0xd0] sm:$0xff] %vm27, %v356
  %421 = vst.msk [vmem:[#allocation3 + $0xd8] sm:$0xff] %vm27, %v357
  %422 = vst.msk [vmem:[#allocation3 + $0xe0] sm:$0xff] %vm27, %v358
  %423 = vst.msk [vmem:[#allocation3 + $0xe8] sm:$0xff] %vm27, %v359
  %424 = vst.msk [vmem:[#allocation3 + $0xf0] sm:$0xff] %vm27, %v360
  %425 = vst.msk [vmem:[#allocation3 + $0xf8] sm:$0xff] %vm27, %v361
  %426 = vst.msk [vmem:[#allocation3 + $0x100] sm:$0xff] %vm27, %v362
  %427 = vst.msk [vmem:[#allocation3 + $0x108] sm:$0xff] %vm27, %v363
  %428 = vst.msk [vmem:[#allocation3 + $0x110] sm:$0xff] %vm27, %v364
  %429 = vst.msk [vmem:[#allocation3 + $0x118] sm:$0xff] %vm27, %v365
  %430 = vst.msk [vmem:[#allocation3 + $0x120] sm:$0xff] %vm27, %v366
  %431 = vst.msk [vmem:[#allocation3 + $0x128] sm:$0xff] %vm27, %v367
  %432 = vst.msk [vmem:[#allocation3 + $0x130] sm:$0xff] %vm27, %v368
  %433 = vst.msk [vmem:[#allocation3 + $0x138] sm:$0xff] %vm27, %v369
  %434 = vst.msk [vmem:[#allocation3 + $0x140] sm:$0xff] %vm27, %v370
  %435 = vst.msk [vmem:[#allocation3 + $0x148] sm:$0xff] %vm27, %v371
  %436 = vst.msk [vmem:[#allocation3 + $0x150] sm:$0xff] %vm27, %v372
  %437 = vst.msk [vmem:[#allocation3 + $0x158] sm:$0xff] %vm27, %v373
  %438 = vst.msk [vmem:[#allocation3 + $0x160] sm:$0xff] %vm27, %v374
  %439 = vst.msk [vmem:[#allocation3 + $0x168] sm:$0xff] %vm27, %v375
  %440 = vst.msk [vmem:[#allocation3 + $0x170] sm:$0xff] %vm27, %v376
  %441 = vst.msk [vmem:[#allocation3 + $0x178] sm:$0xff] %vm27, %v377
  %442 = vst.msk [vmem:[#allocation3 + $0x180] sm:$0xff] %vm27, %v378
  %443 = vst.msk [vmem:[#allocation3 + $0x188] sm:$0xff] %vm27, %v379
  %444 = vst.msk [vmem:[#allocation3 + $0x190] sm:$0xff] %vm27, %v380
  %445 = vst.msk [vmem:[#allocation3 + $0x198] sm:$0xff] %vm27, %v381
  %446 = vst.msk [vmem:[#allocation3 + $0x1a0] sm:$0xff] %vm27, %v382
  %447 = vst.msk [vmem:[#allocation3 + $0x1a8] sm:$0xff] %vm27, %v383
  %448 = vst.msk [vmem:[#allocation3 + $0x1b0] sm:$0xff] %vm27, %v384
  %449 = vst.msk [vmem:[#allocation3 + $0x1b8] sm:$0xff] %vm27, %v385
  %450 = vst.msk [vmem:[#allocation3 + $0x1c0] sm:$0xff] %vm27, %v386
  %451 = vst.msk [vmem:[#allocation3 + $0x1c8] sm:$0xff] %vm27, %v387
  %452 = vst.msk [vmem:[#allocation3 + $0x1d0] sm:$0xff] %vm27, %v388
  %453 = vst.msk [vmem:[#allocation3 + $0x1d8] sm:$0xff] %vm27, %v389
  %454 = vst.msk [vmem:[#allocation3 + $0x1e0] sm:$0xff] %vm27, %v390
  %455 = vst.msk [vmem:[#allocation3 + $0x1e8] sm:$0xff] %vm27, %v391
  %456 = vst.msk [vmem:[#allocation3 + $0x1f0] sm:$0xff] %vm27, %v392
  %457 = vst.msk [vmem:[#allocation3 + $0x1f8] sm:$0xff] %vm27, %v393
  %v458 = vld [vmem:[#allocation2 + $0x1] sm:$0xff]
  %v459 = vld [vmem:[#allocation2 + $0x9] sm:$0xff]
  %v460 = vld [vmem:[#allocation2 + $0x19] sm:$0xff]
  %v461 = vld [vmem:[#allocation2 + $0x21] sm:$0xff]
  %v462 = vld [vmem:[#allocation2 + $0x31] sm:$0xff]
  %v463 = vld [vmem:[#allocation2 + $0x39] sm:$0xff]
  %v464 = vld [vmem:[#allocation2 + $0x49] sm:$0xff]
  %v465 = vld [vmem:[#allocation2 + $0x51] sm:$0xff]
  %v466 = vld [vmem:[#allocation2 + $0x61] sm:$0xff]
  %v467 = vld [vmem:[#allocation2 + $0x69] sm:$0xff]
  %v468 = vld [vmem:[#allocation2 + $0x79] sm:$0xff]
  %v469 = vld [vmem:[#allocation2 + $0x81] sm:$0xff]
  %v470 = vld [vmem:[#allocation2 + $0x91] sm:$0xff]
  %v471 = vld [vmem:[#allocation2 + $0x99] sm:$0xff]
  %v472 = vld [vmem:[#allocation2 + $0xa9] sm:$0xff]
  %v473 = vld [vmem:[#allocation2 + $0xb1] sm:$0xff]
  %v474 = vld [vmem:[#allocation2 + $0xc1] sm:$0xff]
  %v475 = vld [vmem:[#allocation2 + $0xc9] sm:$0xff]
  %v476 = vld [vmem:[#allocation2 + $0xd9] sm:$0xff]
  %v477 = vld [vmem:[#allocation2 + $0xe1] sm:$0xff]
  %v478 = vld [vmem:[#allocation2 + $0xf1] sm:$0xff]
  %v479 = vld [vmem:[#allocation2 + $0xf9] sm:$0xff]
  %v480 = vld [vmem:[#allocation2 + $0x109] sm:$0xff]
  %v481 = vld [vmem:[#allocation2 + $0x111] sm:$0xff]
  %v482 = vld [vmem:[#allocation2 + $0x121] sm:$0xff]
  %v483 = vld [vmem:[#allocation2 + $0x129] sm:$0xff]
  %v484 = vld [vmem:[#allocation2 + $0x139] sm:$0xff]
  %v485 = vld [vmem:[#allocation2 + $0x141] sm:$0xff]
  %v486 = vld [vmem:[#allocation2 + $0x151] sm:$0xff]
  %v487 = vld [vmem:[#allocation2 + $0x159] sm:$0xff]
  %v488 = vld [vmem:[#allocation2 + $0x169] sm:$0xff]
  %v489 = vld [vmem:[#allocation2 + $0x171] sm:$0xff]
  %v490 = vld [vmem:[#allocation2 + $0x1b1] sm:$0xff]
  %v491 = vld [vmem:[#allocation2 + $0x1b9] sm:$0xff]
  %v492 = vld [vmem:[#allocation2 + $0x1c9] sm:$0xff]
  %v493 = vld [vmem:[#allocation2 + $0x1d1] sm:$0xff]
  %v494 = vld [vmem:[#allocation2 + $0x1e1] sm:$0xff]
  %v495 = vld [vmem:[#allocation2 + $0x1e9] sm:$0xff]
  %v496 = vld [vmem:[#allocation2 + $0x1f9] sm:$0xff]
  %v497 = vld [vmem:[#allocation2 + $0x201] sm:$0xff]
  %v498 = vld [vmem:[#allocation2 + $0x211] sm:$0xff]
  %v499 = vld [vmem:[#allocation2 + $0x219] sm:$0xff]
  %v500 = vld [vmem:[#allocation2 + $0x229] sm:$0xff]
  %v501 = vld [vmem:[#allocation2 + $0x231] sm:$0xff]
  %v502 = vld [vmem:[#allocation2 + $0x241] sm:$0xff]
  %v503 = vld [vmem:[#allocation2 + $0x249] sm:$0xff]
  %v504 = vld [vmem:[#allocation2 + $0x259] sm:$0xff]
  %v505 = vld [vmem:[#allocation2 + $0x261] sm:$0xff]
  %v506 = vld [vmem:[#allocation2 + $0x271] sm:$0xff]
  %v507 = vld [vmem:[#allocation2 + $0x279] sm:$0xff]
  %v508 = vld [vmem:[#allocation2 + $0x289] sm:$0xff]
  %v509 = vld [vmem:[#allocation2 + $0x291] sm:$0xff]
  %v510 = vld [vmem:[#allocation2 + $0x2a1] sm:$0xff]
  %v511 = vld [vmem:[#allocation2 + $0x2a9] sm:$0xff]
  %v512 = vld [vmem:[#allocation2 + $0x2b9] sm:$0xff]
  %v513 = vld [vmem:[#allocation2 + $0x2c1] sm:$0xff]
  %v514 = vld [vmem:[#allocation2 + $0x2d1] sm:$0xff]
  %v515 = vld [vmem:[#allocation2 + $0x2d9] sm:$0xff]
  %v516 = vld [vmem:[#allocation2 + $0x2e9] sm:$0xff]
  %v517 = vld [vmem:[#allocation2 + $0x2f1] sm:$0xff]
  %v518 = vld [vmem:[#allocation2 + $0x301] sm:$0xff]
  %v519 = vld [vmem:[#allocation2 + $0x309] sm:$0xff]
  %v520 = vld [vmem:[#allocation2 + $0x319] sm:$0xff]
  %v521 = vld [vmem:[#allocation2 + $0x321] sm:$0xff]
  %586 = vrot.lane.b32.xlu0 %v458, 4
  %v587 = vpop.permute.xlu0 %586
  %588 = vrot.lane.b32.xlu0 %v459, 4
  %v589 = vpop.permute.xlu0 %588
  %590 = vrot.lane.b32.xlu0 %v460, 4
  %v591 = vpop.permute.xlu0 %590
  %592 = vrot.lane.b32.xlu0 %v461, 4
  %v593 = vpop.permute.xlu0 %592
  %594 = vrot.lane.b32.xlu0 %v462, 4
  %v595 = vpop.permute.xlu0 %594
  %596 = vrot.lane.b32.xlu0 %v463, 4
  %v597 = vpop.permute.xlu0 %596
  %598 = vrot.lane.b32.xlu0 %v464, 4
  %v599 = vpop.permute.xlu0 %598
  %600 = vrot.lane.b32.xlu0 %v465, 4
  %v601 = vpop.permute.xlu0 %600
  %602 = vrot.lane.b32.xlu0 %v466, 4
  %v603 = vpop.permute.xlu0 %602
  %604 = vrot.lane.b32.xlu0 %v467, 4
  %v605 = vpop.permute.xlu0 %604
  %606 = vrot.lane.b32.xlu0 %v468, 4
  %v607 = vpop.permute.xlu0 %606
  %608 = vrot.lane.b32.xlu0 %v469, 4
  %v609 = vpop.permute.xlu0 %608
  %610 = vrot.lane.b32.xlu0 %v470, 4
  %v611 = vpop.permute.xlu0 %610
  %612 = vrot.lane.b32.xlu0 %v471, 4
  %v613 = vpop.permute.xlu0 %612
  %614 = vrot.lane.b32.xlu0 %v472, 4
  %v615 = vpop.permute.xlu0 %614
  %616 = vrot.lane.b32.xlu0 %v473, 4
  %v617 = vpop.permute.xlu0 %616
  %618 = vrot.lane.b32.xlu0 %v474, 4
  %v619 = vpop.permute.xlu0 %618
  %620 = vrot.lane.b32.xlu0 %v475, 4
  %v621 = vpop.permute.xlu0 %620
  %622 = vrot.lane.b32.xlu0 %v476, 4
  %v623 = vpop.permute.xlu0 %622
  %624 = vrot.lane.b32.xlu0 %v477, 4
  %v625 = vpop.permute.xlu0 %624
  %626 = vrot.lane.b32.xlu0 %v478, 4
  %v627 = vpop.permute.xlu0 %626
  %628 = vrot.lane.b32.xlu0 %v479, 4
  %v629 = vpop.permute.xlu0 %628
  %630 = vrot.lane.b32.xlu0 %v480, 4
  %v631 = vpop.permute.xlu0 %630
  %632 = vrot.lane.b32.xlu0 %v481, 4
  %v633 = vpop.permute.xlu0 %632
  %634 = vrot.lane.b32.xlu0 %v482, 4
  %v635 = vpop.permute.xlu0 %634
  %636 = vrot.lane.b32.xlu0 %v483, 4
  %v637 = vpop.permute.xlu0 %636
  %638 = vrot.lane.b32.xlu0 %v484, 4
  %v639 = vpop.permute.xlu0 %638
  %640 = vrot.lane.b32.xlu0 %v485, 4
  %v641 = vpop.permute.xlu0 %640
  %642 = vrot.lane.b32.xlu0 %v486, 4
  %v643 = vpop.permute.xlu0 %642
  %644 = vrot.lane.b32.xlu0 %v487, 4
  %v645 = vpop.permute.xlu0 %644
  %646 = vrot.lane.b32.xlu0 %v488, 4
  %v647 = vpop.permute.xlu0 %646
  %648 = vrot.lane.b32.xlu0 %v489, 4
  %v649 = vpop.permute.xlu0 %648
  %650 = vrot.lane.b32.xlu0 %v490, 4
  %v651 = vpop.permute.xlu0 %650
  %652 = vrot.lane.b32.xlu0 %v491, 4
  %v653 = vpop.permute.xlu0 %652
  %654 = vrot.lane.b32.xlu0 %v492, 4
  %v655 = vpop.permute.xlu0 %654
  %656 = vrot.lane.b32.xlu0 %v493, 4
  %v657 = vpop.permute.xlu0 %656
  %658 = vrot.lane.b32.xlu0 %v494, 4
  %v659 = vpop.permute.xlu0 %658
  %660 = vrot.lane.b32.xlu0 %v495, 4
  %v661 = vpop.permute.xlu0 %660
  %662 = vrot.lane.b32.xlu0 %v496, 4
  %v663 = vpop.permute.xlu0 %662
  %664 = vrot.lane.b32.xlu0 %v497, 4
  %v665 = vpop.permute.xlu0 %664
  %666 = vrot.lane.b32.xlu0 %v498, 4
  %v667 = vpop.permute.xlu0 %666
  %668 = vrot.lane.b32.xlu0 %v499, 4
  %v669 = vpop.permute.xlu0 %668
  %670 = vrot.lane.b32.xlu0 %v500, 4
  %v671 = vpop.permute.xlu0 %670
  %672 = vrot.lane.b32.xlu0 %v501, 4
  %v673 = vpop.permute.xlu0 %672
  %674 = vrot.lane.b32.xlu0 %v502, 4
  %v675 = vpop.permute.xlu0 %674
  %676 = vrot.lane.b32.xlu0 %v503, 4
  %v677 = vpop.permute.xlu0 %676
  %678 = vrot.lane.b32.xlu0 %v504, 4
  %v679 = vpop.permute.xlu0 %678
  %680 = vrot.lane.b32.xlu0 %v505, 4
  %v681 = vpop.permute.xlu0 %680
  %682 = vrot.lane.b32.xlu0 %v506, 4
  %v683 = vpop.permute.xlu0 %682
  %684 = vrot.lane.b32.xlu0 %v507, 4
  %v685 = vpop.permute.xlu0 %684
  %686 = vrot.lane.b32.xlu0 %v508, 4
  %v687 = vpop.permute.xlu0 %686
  %688 = vrot.lane.b32.xlu0 %v509, 4
  %v689 = vpop.permute.xlu0 %688
  %690 = vrot.lane.b32.xlu0 %v510, 4
  %v691 = vpop.permute.xlu0 %690
  %692 = vrot.lane.b32.xlu0 %v511, 4
  %v693 = vpop.permute.xlu0 %692
  %694 = vrot.lane.b32.xlu0 %v512, 4
  %v695 = vpop.permute.xlu0 %694
  %696 = vrot.lane.b32.xlu0 %v513, 4
  %v697 = vpop.permute.xlu0 %696
  %698 = vrot.lane.b32.xlu0 %v514, 4
  %v699 = vpop.permute.xlu0 %698
  %700 = vrot.lane.b32.xlu0 %v515, 4
  %v701 = vpop.permute.xlu0 %700
  %702 = vrot.lane.b32.xlu0 %v516, 4
  %v703 = vpop.permute.xlu0 %702
  %704 = vrot.lane.b32.xlu0 %v517, 4
  %v705 = vpop.permute.xlu0 %704
  %706 = vrot.lane.b32.xlu0 %v518, 4
  %v707 = vpop.permute.xlu0 %706
  %708 = vrot.lane.b32.xlu0 %v519, 4
  %v709 = vpop.permute.xlu0 %708
  %710 = vrot.lane.b32.xlu0 %v520, 4
  %v711 = vpop.permute.xlu0 %710
  %712 = vrot.lane.b32.xlu0 %v521, 4
  %v713 = vpop.permute.xlu0 %712
  %vm778 = vcmask 64544
  %779 = vst.msk [vmem:[#allocation3] sm:$0xff] %vm778, %v587
  %780 = vst.msk [vmem:[#allocation3 + $0x8] sm:$0xff] %vm778, %v589
  %781 = vst.msk [vmem:[#allocation3 + $0x10] sm:$0xff] %vm778, %v591
  %782 = vst.msk [vmem:[#allocation3 + $0x18] sm:$0xff] %vm778, %v593
  %783 = vst.msk [vmem:[#allocation3 + $0x20] sm:$0xff] %vm778, %v595
  %784 = vst.msk [vmem:[#allocation3 + $0x28] sm:$0xff] %vm778, %v597
  %785 = vst.msk [vmem:[#allocation3 + $0x30] sm:$0xff] %vm778, %v599
  %786 = vst.msk [vmem:[#allocation3 + $0x38] sm:$0xff] %vm778, %v601
  %787 = vst.msk [vmem:[#allocation3 + $0x40] sm:$0xff] %vm778, %v603
  %788 = vst.msk [vmem:[#allocation3 + $0x48] sm:$0xff] %vm778, %v605
  %789 = vst.msk [vmem:[#allocation3 + $0x50] sm:$0xff] %vm778, %v607
  %790 = vst.msk [vmem:[#allocation3 + $0x58] sm:$0xff] %vm778, %v609
  %791 = vst.msk [vmem:[#allocation3 + $0x60] sm:$0xff] %vm778, %v611
  %792 = vst.msk [vmem:[#allocation3 + $0x68] sm:$0xff] %vm778, %v613
  %793 = vst.msk [vmem:[#allocation3 + $0x70] sm:$0xff] %vm778, %v615
  %794 = vst.msk [vmem:[#allocation3 + $0x78] sm:$0xff] %vm778, %v617
  %795 = vst.msk [vmem:[#allocation3 + $0x80] sm:$0xff] %vm778, %v619
  %796 = vst.msk [vmem:[#allocation3 + $0x88] sm:$0xff] %vm778, %v621
  %797 = vst.msk [vmem:[#allocation3 + $0x90] sm:$0xff] %vm778, %v623
  %798 = vst.msk [vmem:[#allocation3 + $0x98] sm:$0xff] %vm778, %v625
  %799 = vst.msk [vmem:[#allocation3 + $0xa0] sm:$0xff] %vm778, %v627
  %800 = vst.msk [vmem:[#allocation3 + $0xa8] sm:$0xff] %vm778, %v629
  %801 = vst.msk [vmem:[#allocation3 + $0xb0] sm:$0xff] %vm778, %v631
  %802 = vst.msk [vmem:[#allocation3 + $0xb8] sm:$0xff] %vm778, %v633
  %803 = vst.msk [vmem:[#allocation3 + $0xc0] sm:$0xff] %vm778, %v635
  %804 = vst.msk [vmem:[#allocation3 + $0xc8] sm:$0xff] %vm778, %v637
  %805 = vst.msk [vmem:[#allocation3 + $0xd0] sm:$0xff] %vm778, %v639
  %806 = vst.msk [vmem:[#allocation3 + $0xd8] sm:$0xff] %vm778, %v641
  %807 = vst.msk [vmem:[#allocation3 + $0xe0] sm:$0xff] %vm778, %v643
  %808 = vst.msk [vmem:[#allocation3 + $0xe8] sm:$0xff] %vm778, %v645
  %809 = vst.msk [vmem:[#allocation3 + $0xf0] sm:$0xff] %vm778, %v647
  %810 = vst.msk [vmem:[#allocation3 + $0xf8] sm:$0xff] %vm778, %v649
  %811 = vst.msk [vmem:[#allocation3 + $0x100] sm:$0xff] %vm778, %v651
  %812 = vst.msk [vmem:[#allocation3 + $0x108] sm:$0xff] %vm778, %v653
  %813 = vst.msk [vmem:[#allocation3 + $0x110] sm:$0xff] %vm778, %v655
  %814 = vst.msk [vmem:[#allocation3 + $0x118] sm:$0xff] %vm778, %v657
  %815 = vst.msk [vmem:[#allocation3 + $0x120] sm:$0xff] %vm778, %v659
  %816 = vst.msk [vmem:[#allocation3 + $0x128] sm:$0xff] %vm778, %v661
  %817 = vst.msk [vmem:[#allocation3 + $0x130] sm:$0xff] %vm778, %v663
  %818 = vst.msk [vmem:[#allocation3 + $0x138] sm:$0xff] %vm778, %v665
  %819 = vst.msk [vmem:[#allocation3 + $0x140] sm:$0xff] %vm778, %v667
  %820 = vst.msk [vmem:[#allocation3 + $0x148] sm:$0xff] %vm778, %v669
  %821 = vst.msk [vmem:[#allocation3 + $0x150] sm:$0xff] %vm778, %v671
  %822 = vst.msk [vmem:[#allocation3 + $0x158] sm:$0xff] %vm778, %v673
  %823 = vst.msk [vmem:[#allocation3 + $0x160] sm:$0xff] %vm778, %v675
  %824 = vst.msk [vmem:[#allocation3 + $0x168] sm:$0xff] %vm778, %v677
  %825 = vst.msk [vmem:[#allocation3 + $0x170] sm:$0xff] %vm778, %v679
  %826 = vst.msk [vmem:[#allocation3 + $0x178] sm:$0xff] %vm778, %v681
  %827 = vst.msk [vmem:[#allocation3 + $0x180] sm:$0xff] %vm778, %v683
  %828 = vst.msk [vmem:[#allocation3 + $0x188] sm:$0xff] %vm778, %v685
  %829 = vst.msk [vmem:[#allocation3 + $0x190] sm:$0xff] %vm778, %v687
  %830 = vst.msk [vmem:[#allocation3 + $0x198] sm:$0xff] %vm778, %v689
  %831 = vst.msk [vmem:[#allocation3 + $0x1a0] sm:$0xff] %vm778, %v691
  %832 = vst.msk [vmem:[#allocation3 + $0x1a8] sm:$0xff] %vm778, %v693
  %833 = vst.msk [vmem:[#allocation3 + $0x1b0] sm:$0xff] %vm778, %v695
  %834 = vst.msk [vmem:[#allocation3 + $0x1b8] sm:$0xff] %vm778, %v697
  %835 = vst.msk [vmem:[#allocation3 + $0x1c0] sm:$0xff] %vm778, %v699
  %836 = vst.msk [vmem:[#allocation3 + $0x1c8] sm:$0xff] %vm778, %v701
  %837 = vst.msk [vmem:[#allocation3 + $0x1d0] sm:$0xff] %vm778, %v703
  %838 = vst.msk [vmem:[#allocation3 + $0x1d8] sm:$0xff] %vm778, %v705
  %839 = vst.msk [vmem:[#allocation3 + $0x1e0] sm:$0xff] %vm778, %v707
  %840 = vst.msk [vmem:[#allocation3 + $0x1e8] sm:$0xff] %vm778, %v709
  %841 = vst.msk [vmem:[#allocation3 + $0x1f0] sm:$0xff] %vm778, %v711
  %842 = vst.msk [vmem:[#allocation3 + $0x1f8] sm:$0xff] %vm778, %v713
  %v843 = vld [vmem:[#allocation2 + $0x2] sm:$0xff]
  %v844 = vld [vmem:[#allocation2 + $0xa] sm:$0xff]
  %v845 = vld [vmem:[#allocation2 + $0x1a] sm:$0xff]
  %v846 = vld [vmem:[#allocation2 + $0x22] sm:$0xff]
  %v847 = vld [vmem:[#allocation2 + $0x32] sm:$0xff]
  %v848 = vld [vmem:[#allocation2 + $0x3a] sm:$0xff]
  %v849 = vld [vmem:[#allocation2 + $0x4a] sm:$0xff]
  %v850 = vld [vmem:[#allocation2 + $0x52] sm:$0xff]
  %v851 = vld [vmem:[#allocation2 + $0x62] sm:$0xff]
  %v852 = vld [vmem:[#allocation2 + $0x6a] sm:$0xff]
  %v853 = vld [vmem:[#allocation2 + $0x7a] sm:$0xff]
  %v854 = vld [vmem:[#allocation2 + $0x82] sm:$0xff]
  %v855 = vld [vmem:[#allocation2 + $0x92] sm:$0xff]
  %v856 = vld [vmem:[#allocation2 + $0x9a] sm:$0xff]
  %v857 = vld [vmem:[#allocation2 + $0xaa] sm:$0xff]
  %v858 = vld [vmem:[#allocation2 + $0xb2] sm:$0xff]
  %v859 = vld [vmem:[#allocation2 + $0xc2] sm:$0xff]
  %v860 = vld [vmem:[#allocation2 + $0xca] sm:$0xff]
  %v861 = vld [vmem:[#allocation2 + $0xda] sm:$0xff]
  %v862 = vld [vmem:[#allocation2 + $0xe2] sm:$0xff]
  %v863 = vld [vmem:[#allocation2 + $0xf2] sm:$0xff]
  %v864 = vld [vmem:[#allocation2 + $0xfa] sm:$0xff]
  %v865 = vld [vmem:[#allocation2 + $0x10a] sm:$0xff]
  %v866 = vld [vmem:[#allocation2 + $0x112] sm:$0xff]
  %v867 = vld [vmem:[#allocation2 + $0x122] sm:$0xff]
  %v868 = vld [vmem:[#allocation2 + $0x12a] sm:$0xff]
  %v869 = vld [vmem:[#allocation2 + $0x13a] sm:$0xff]
  %v870 = vld [vmem:[#allocation2 + $0x142] sm:$0xff]
  %v871 = vld [vmem:[#allocation2 + $0x152] sm:$0xff]
  %v872 = vld [vmem:[#allocation2 + $0x15a] sm:$0xff]
  %v873 = vld [vmem:[#allocation2 + $0x16a] sm:$0xff]
  %v874 = vld [vmem:[#allocation2 + $0x172] sm:$0xff]
  %v875 = vld [vmem:[#allocation2 + $0x1b2] sm:$0xff]
  %v876 = vld [vmem:[#allocation2 + $0x1ba] sm:$0xff]
  %v877 = vld [vmem:[#allocation2 + $0x1ca] sm:$0xff]
  %v878 = vld [vmem:[#allocation2 + $0x1d2] sm:$0xff]
  %v879 = vld [vmem:[#allocation2 + $0x1e2] sm:$0xff]
  %v880 = vld [vmem:[#allocation2 + $0x1ea] sm:$0xff]
  %v881 = vld [vmem:[#allocation2 + $0x1fa] sm:$0xff]
  %v882 = vld [vmem:[#allocation2 + $0x202] sm:$0xff]
  %v883 = vld [vmem:[#allocation2 + $0x212] sm:$0xff]
  %v884 = vld [vmem:[#allocation2 + $0x21a] sm:$0xff]
  %v885 = vld [vmem:[#allocation2 + $0x22a] sm:$0xff]
  %v886 = vld [vmem:[#allocation2 + $0x232] sm:$0xff]
  %v887 = vld [vmem:[#allocation2 + $0x242] sm:$0xff]
  %v888 = vld [vmem:[#allocation2 + $0x24a] sm:$0xff]
  %v889 = vld [vmem:[#allocation2 + $0x25a] sm:$0xff]
  %v890 = vld [vmem:[#allocation2 + $0x262] sm:$0xff]
  %v891 = vld [vmem:[#allocation2 + $0x272] sm:$0xff]
  %v892 = vld [vmem:[#allocation2 + $0x27a] sm:$0xff]
  %v893 = vld [vmem:[#allocation2 + $0x28a] sm:$0xff]
  %v894 = vld [vmem:[#allocation2 + $0x292] sm:$0xff]
  %v895 = vld [vmem:[#allocation2 + $0x2a2] sm:$0xff]
  %v896 = vld [vmem:[#allocation2 + $0x2aa] sm:$0xff]
  %v897 = vld [vmem:[#allocation2 + $0x2ba] sm:$0xff]
  %v898 = vld [vmem:[#allocation2 + $0x2c2] sm:$0xff]
  %v899 = vld [vmem:[#allocation2 + $0x2d2] sm:$0xff]
  %v900 = vld [vmem:[#allocation2 + $0x2da] sm:$0xff]
  %v901 = vld [vmem:[#allocation2 + $0x2ea] sm:$0xff]
  %v902 = vld [vmem:[#allocation2 + $0x2f2] sm:$0xff]
  %v903 = vld [vmem:[#allocation2 + $0x302] sm:$0xff]
  %v904 = vld [vmem:[#allocation2 + $0x30a] sm:$0xff]
  %v905 = vld [vmem:[#allocation2 + $0x31a] sm:$0xff]
  %v906 = vld [vmem:[#allocation2 + $0x322] sm:$0xff]
  %971 = vrot.lane.b32.xlu0 %v843, 8
  %v972 = vpop.permute.xlu0 %971
  %973 = vrot.lane.b32.xlu0 %v844, 8
  %v974 = vpop.permute.xlu0 %973
  %975 = vrot.lane.b32.xlu0 %v845, 8
  %v976 = vpop.permute.xlu0 %975
  %977 = vrot.lane.b32.xlu0 %v846, 8
  %v978 = vpop.permute.xlu0 %977
  %979 = vrot.lane.b32.xlu0 %v847, 8
  %v980 = vpop.permute.xlu0 %979
  %981 = vrot.lane.b32.xlu0 %v848, 8
  %v982 = vpop.permute.xlu0 %981
  %983 = vrot.lane.b32.xlu0 %v849, 8
  %v984 = vpop.permute.xlu0 %983
  %985 = vrot.lane.b32.xlu0 %v850, 8
  %v986 = vpop.permute.xlu0 %985
  %987 = vrot.lane.b32.xlu0 %v851, 8
  %v988 = vpop.permute.xlu0 %987
  %989 = vrot.lane.b32.xlu0 %v852, 8
  %v990 = vpop.permute.xlu0 %989
  %991 = vrot.lane.b32.xlu0 %v853, 8
  %v992 = vpop.permute.xlu0 %991
  %993 = vrot.lane.b32.xlu0 %v854, 8
  %v994 = vpop.permute.xlu0 %993
  %995 = vrot.lane.b32.xlu0 %v855, 8
  %v996 = vpop.permute.xlu0 %995
  %997 = vrot.lane.b32.xlu0 %v856, 8
  %v998 = vpop.permute.xlu0 %997
  %999 = vrot.lane.b32.xlu0 %v857, 8
  %v1000 = vpop.permute.xlu0 %999
  %1001 = vrot.lane.b32.xlu0 %v858, 8
  %v1002 = vpop.permute.xlu0 %1001
  %1003 = vrot.lane.b32.xlu0 %v859, 8
  %v1004 = vpop.permute.xlu0 %1003
  %1005 = vrot.lane.b32.xlu0 %v860, 8
  %v1006 = vpop.permute.xlu0 %1005
  %1007 = vrot.lane.b32.xlu0 %v861, 8
  %v1008 = vpop.permute.xlu0 %1007
  %1009 = vrot.lane.b32.xlu0 %v862, 8
  %v1010 = vpop.permute.xlu0 %1009
  %1011 = vrot.lane.b32.xlu0 %v863, 8
  %v1012 = vpop.permute.xlu0 %1011
  %1013 = vrot.lane.b32.xlu0 %v864, 8
  %v1014 = vpop.permute.xlu0 %1013
  %1015 = vrot.lane.b32.xlu0 %v865, 8
  %v1016 = vpop.permute.xlu0 %1015
  %1017 = vrot.lane.b32.xlu0 %v866, 8
  %v1018 = vpop.permute.xlu0 %1017
  %1019 = vrot.lane.b32.xlu0 %v867, 8
  %v1020 = vpop.permute.xlu0 %1019
  %1021 = vrot.lane.b32.xlu0 %v868, 8
  %v1022 = vpop.permute.xlu0 %1021
  %1023 = vrot.lane.b32.xlu0 %v869, 8
  %v1024 = vpop.permute.xlu0 %1023
  %1025 = vrot.lane.b32.xlu0 %v870, 8
  %v1026 = vpop.permute.xlu0 %1025
  %1027 = vrot.lane.b32.xlu0 %v871, 8
  %v1028 = vpop.permute.xlu0 %1027
  %1029 = vrot.lane.b32.xlu0 %v872, 8
  %v1030 = vpop.permute.xlu0 %1029
  %1031 = vrot.lane.b32.xlu0 %v873, 8
  %v1032 = vpop.permute.xlu0 %1031
  %1033 = vrot.lane.b32.xlu0 %v874, 8
  %v1034 = vpop.permute.xlu0 %1033
  %1035 = vrot.lane.b32.xlu0 %v875, 8
  %v1036 = vpop.permute.xlu0 %1035
  %1037 = vrot.lane.b32.xlu0 %v876, 8
  %v1038 = vpop.permute.xlu0 %1037
  %1039 = vrot.lane.b32.xlu0 %v877, 8
  %v1040 = vpop.permute.xlu0 %1039
  %1041 = vrot.lane.b32.xlu0 %v878, 8
  %v1042 = vpop.permute.xlu0 %1041
  %1043 = vrot.lane.b32.xlu0 %v879, 8
  %v1044 = vpop.permute.xlu0 %1043
  %1045 = vrot.lane.b32.xlu0 %v880, 8
  %v1046 = vpop.permute.xlu0 %1045
  %1047 = vrot.lane.b32.xlu0 %v881, 8
  %v1048 = vpop.permute.xlu0 %1047
  %1049 = vrot.lane.b32.xlu0 %v882, 8
  %v1050 = vpop.permute.xlu0 %1049
  %1051 = vrot.lane.b32.xlu0 %v883, 8
  %v1052 = vpop.permute.xlu0 %1051
  %1053 = vrot.lane.b32.xlu0 %v884, 8
  %v1054 = vpop.permute.xlu0 %1053
  %1055 = vrot.lane.b32.xlu0 %v885, 8
  %v1056 = vpop.permute.xlu0 %1055
  %1057 = vrot.lane.b32.xlu0 %v886, 8
  %v1058 = vpop.permute.xlu0 %1057
  %1059 = vrot.lane.b32.xlu0 %v887, 8
  %v1060 = vpop.permute.xlu0 %1059
  %1061 = vrot.lane.b32.xlu0 %v888, 8
  %v1062 = vpop.permute.xlu0 %1061
  %1063 = vrot.lane.b32.xlu0 %v889, 8
  %v1064 = vpop.permute.xlu0 %1063
  %1065 = vrot.lane.b32.xlu0 %v890, 8
  %v1066 = vpop.permute.xlu0 %1065
  %1067 = vrot.lane.b32.xlu0 %v891, 8
  %v1068 = vpop.permute.xlu0 %1067
  %1069 = vrot.lane.b32.xlu0 %v892, 8
  %v1070 = vpop.permute.xlu0 %1069
  %1071 = vrot.lane.b32.xlu0 %v893, 8
  %v1072 = vpop.permute.xlu0 %1071
  %1073 = vrot.lane.b32.xlu0 %v894, 8
  %v1074 = vpop.permute.xlu0 %1073
  %1075 = vrot.lane.b32.xlu0 %v895, 8
  %v1076 = vpop.permute.xlu0 %1075
  %1077 = vrot.lane.b32.xlu0 %v896, 8
  %v1078 = vpop.permute.xlu0 %1077
  %1079 = vrot.lane.b32.xlu0 %v897, 8
  %v1080 = vpop.permute.xlu0 %1079
  %1081 = vrot.lane.b32.xlu0 %v898, 8
  %v1082 = vpop.permute.xlu0 %1081
  %1083 = vrot.lane.b32.xlu0 %v899, 8
  %v1084 = vpop.permute.xlu0 %1083
  %1085 = vrot.lane.b32.xlu0 %v900, 8
  %v1086 = vpop.permute.xlu0 %1085
  %1087 = vrot.lane.b32.xlu0 %v901, 8
  %v1088 = vpop.permute.xlu0 %1087
  %1089 = vrot.lane.b32.xlu0 %v902, 8
  %v1090 = vpop.permute.xlu0 %1089
  %1091 = vrot.lane.b32.xlu0 %v903, 8
  %v1092 = vpop.permute.xlu0 %1091
  %1093 = vrot.lane.b32.xlu0 %v904, 8
  %v1094 = vpop.permute.xlu0 %1093
  %1095 = vrot.lane.b32.xlu0 %v905, 8
  %v1096 = vpop.permute.xlu0 %1095
  %1097 = vrot.lane.b32.xlu0 %v906, 8
  %v1098 = vpop.permute.xlu0 %1097
  %vm1163 = vcmask 97344
  %1164 = vst.msk [vmem:[#allocation3] sm:$0xff] %vm1163, %v972
  %1165 = vst.msk [vmem:[#allocation3 + $0x8] sm:$0xff] %vm1163, %v974
  %1166 = vst.msk [vmem:[#allocation3 + $0x10] sm:$0xff] %vm1163, %v976
  %1167 = vst.msk [vmem:[#allocation3 + $0x18] sm:$0xff] %vm1163, %v978
  %1168 = vst.msk [vmem:[#allocation3 + $0x20] sm:$0xff] %vm1163, %v980
  %1169 = vst.msk [vmem:[#allocation3 + $0x28] sm:$0xff] %vm1163, %v982
  %1170 = vst.msk [vmem:[#allocation3 + $0x30] sm:$0xff] %vm1163, %v984
  %1171 = vst.msk [vmem:[#allocation3 + $0x38] sm:$0xff] %vm1163, %v986
  %1172 = vst.msk [vmem:[#allocation3 + $0x40] sm:$0xff] %vm1163, %v988
  %1173 = vst.msk [vmem:[#allocation3 + $0x48] sm:$0xff] %vm1163, %v990
  %1174 = vst.msk [vmem:[#allocation3 + $0x50] sm:$0xff] %vm1163, %v992
  %1175 = vst.msk [vmem:[#allocation3 + $0x58] sm:$0xff] %vm1163, %v994
  %1176 = vst.msk [vmem:[#allocation3 + $0x60] sm:$0xff] %vm1163, %v996
  %1177 = vst.msk [vmem:[#allocation3 + $0x68] sm:$0xff] %vm1163, %v998
  %1178 = vst.msk [vmem:[#allocation3 + $0x70] sm:$0xff] %vm1163, %v1000
  %1179 = vst.msk [vmem:[#allocation3 + $0x78] sm:$0xff] %vm1163, %v1002
  %1180 = vst.msk [vmem:[#allocation3 + $0x80] sm:$0xff] %vm1163, %v1004
  %1181 = vst.msk [vmem:[#allocation3 + $0x88] sm:$0xff] %vm1163, %v1006
  %1182 = vst.msk [vmem:[#allocation3 + $0x90] sm:$0xff] %vm1163, %v1008
  %1183 = vst.msk [vmem:[#allocation3 + $0x98] sm:$0xff] %vm1163, %v1010
  %1184 = vst.msk [vmem:[#allocation3 + $0xa0] sm:$0xff] %vm1163, %v1012
  %1185 = vst.msk [vmem:[#allocation3 + $0xa8] sm:$0xff] %vm1163, %v1014
  %1186 = vst.msk [vmem:[#allocation3 + $0xb0] sm:$0xff] %vm1163, %v1016
  %1187 = vst.msk [vmem:[#allocation3 + $0xb8] sm:$0xff] %vm1163, %v1018
  %1188 = vst.msk [vmem:[#allocation3 + $0xc0] sm:$0xff] %vm1163, %v1020
  %1189 = vst.msk [vmem:[#allocation3 + $0xc8] sm:$0xff] %vm1163, %v1022
  %1190 = vst.msk [vmem:[#allocation3 + $0xd0] sm:$0xff] %vm1163, %v1024
  %1191 = vst.msk [vmem:[#allocation3 + $0xd8] sm:$0xff] %vm1163, %v1026
  %1192 = vst.msk [vmem:[#allocation3 + $0xe0] sm:$0xff] %vm1163, %v1028
  %1193 = vst.msk [vmem:[#allocation3 + $0xe8] sm:$0xff] %vm1163, %v1030
  %1194 = vst.msk [vmem:[#allocation3 + $0xf0] sm:$0xff] %vm1163, %v1032
  %1195 = vst.msk [vmem:[#allocation3 + $0xf8] sm:$0xff] %vm1163, %v1034
  %1196 = vst.msk [vmem:[#allocation3 + $0x100] sm:$0xff] %vm1163, %v1036
  %1197 = vst.msk [vmem:[#allocation3 + $0x108] sm:$0xff] %vm1163, %v1038
  %1198 = vst.msk [vmem:[#allocation3 + $0x110] sm:$0xff] %vm1163, %v1040
  %1199 = vst.msk [vmem:[#allocation3 + $0x118] sm:$0xff] %vm1163, %v1042
  %1200 = vst.msk [vmem:[#allocation3 + $0x120] sm:$0xff] %vm1163, %v1044
  %1201 = vst.msk [vmem:[#allocation3 + $0x128] sm:$0xff] %vm1163, %v1046
  %1202 = vst.msk [vmem:[#allocation3 + $0x130] sm:$0xff] %vm1163, %v1048
  %1203 = vst.msk [vmem:[#allocation3 + $0x138] sm:$0xff] %vm1163, %v1050
  %1204 = vst.msk [vmem:[#allocation3 + $0x140] sm:$0xff] %vm1163, %v1052
  %1205 = vst.msk [vmem:[#allocation3 + $0x148] sm:$0xff] %vm1163, %v1054
  %1206 = vst.msk [vmem:[#allocation3 + $0x150] sm:$0xff] %vm1163, %v1056
  %1207 = vst.msk [vmem:[#allocation3 + $0x158] sm:$0xff] %vm1163, %v1058
  %1208 = vst.msk [vmem:[#allocation3 + $0x160] sm:$0xff] %vm1163, %v1060
  %1209 = vst.msk [vmem:[#allocation3 + $0x168] sm:$0xff] %vm1163, %v1062
  %1210 = vst.msk [vmem:[#allocation3 + $0x170] sm:$0xff] %vm1163, %v1064
  %1211 = vst.msk [vmem:[#allocation3 + $0x178] sm:$0xff] %vm1163, %v1066
  %1212 = vst.msk [vmem:[#allocation3 + $0x180] sm:$0xff] %vm1163, %v1068
  %1213 = vst.msk [vmem:[#allocation3 + $0x188] sm:$0xff] %vm1163, %v1070
  %1214 = vst.msk [vmem:[#allocation3 + $0x190] sm:$0xff] %vm1163, %v1072
  %1215 = vst.msk [vmem:[#allocation3 + $0x198] sm:$0xff] %vm1163, %v1074
  %1216 = vst.msk [vmem:[#allocation3 + $0x1a0] sm:$0xff] %vm1163, %v1076
  %1217 = vst.msk [vmem:[#allocation3 + $0x1a8] sm:$0xff] %vm1163, %v1078
  %1218 = vst.msk [vmem:[#allocation3 + $0x1b0] sm:$0xff] %vm1163, %v1080
  %1219 = vst.msk [vmem:[#allocation3 + $0x1b8] sm:$0xff] %vm1163, %v1082
  %1220 = vst.msk [vmem:[#allocation3 + $0x1c0] sm:$0xff] %vm1163, %v1084
  %1221 = vst.msk [vmem:[#allocation3 + $0x1c8] sm:$0xff] %vm1163, %v1086
  %1222 = vst.msk [vmem:[#allocation3 + $0x1d0] sm:$0xff] %vm1163, %v1088
  %1223 = vst.msk [vmem:[#allocation3 + $0x1d8] sm:$0xff] %vm1163, %v1090
  %1224 = vst.msk [vmem:[#allocation3 + $0x1e0] sm:$0xff] %vm1163, %v1092
  %1225 = vst.msk [vmem:[#allocation3 + $0x1e8] sm:$0xff] %vm1163, %v1094
  %1226 = vst.msk [vmem:[#allocation3 + $0x1f0] sm:$0xff] %vm1163, %v1096
  %1227 = vst.msk [vmem:[#allocation3 + $0x1f8] sm:$0xff] %vm1163, %v1098
  %v1228 = vld [vmem:[%s265] sm:$0xff]
  %v1229 = vld [vmem:[%s265 + $0x8] sm:$0xff]
  %v1230 = vld [vmem:[%s265 + $0x18] sm:$0xff]
  %v1231 = vld [vmem:[%s265 + $0x20] sm:$0xff]
  %v1232 = vld [vmem:[%s265 + $0x30] sm:$0xff]
  %v1233 = vld [vmem:[%s265 + $0x38] sm:$0xff]
  %v1234 = vld [vmem:[%s265 + $0x48] sm:$0xff]
  %v1235 = vld [vmem:[%s265 + $0x50] sm:$0xff]
  %v1236 = vld [vmem:[%s265 + $0x60] sm:$0xff]
  %v1237 = vld [vmem:[%s265 + $0x68] sm:$0xff]
  %v1238 = vld [vmem:[%s265 + $0x78] sm:$0xff]
  %v1239 = vld [vmem:[%s265 + $0x80] sm:$0xff]
  %v1240 = vld [vmem:[%s265 + $0x90] sm:$0xff]
  %v1241 = vld [vmem:[%s265 + $0x98] sm:$0xff]
  %v1242 = vld [vmem:[%s265 + $0xa8] sm:$0xff]
  %v1243 = vld [vmem:[%s265 + $0xb0] sm:$0xff]
  %v1244 = vld [vmem:[%s265 + $0xc0] sm:$0xff]
  %v1245 = vld [vmem:[%s265 + $0xc8] sm:$0xff]
  %v1246 = vld [vmem:[%s265 + $0xd8] sm:$0xff]
  %v1247 = vld [vmem:[%s265 + $0xe0] sm:$0xff]
  %v1248 = vld [vmem:[%s265 + $0xf0] sm:$0xff]
  %v1249 = vld [vmem:[%s265 + $0xf8] sm:$0xff]
  %v1250 = vld [vmem:[%s265 + $0x108] sm:$0xff]
  %v1251 = vld [vmem:[%s265 + $0x110] sm:$0xff]
  %v1252 = vld [vmem:[%s265 + $0x120] sm:$0xff]
  %v1253 = vld [vmem:[%s265 + $0x128] sm:$0xff]
  %v1254 = vld [vmem:[%s265 + $0x138] sm:$0xff]
  %v1255 = vld [vmem:[%s265 + $0x140] sm:$0xff]
  %v1256 = vld [vmem:[%s265 + $0x150] sm:$0xff]
  %v1257 = vld [vmem:[%s265 + $0x158] sm:$0xff]
  %v1258 = vld [vmem:[%s265 + $0x168] sm:$0xff]
  %v1259 = vld [vmem:[%s265 + $0x170] sm:$0xff]
  %v1260 = vld [vmem:[%s265 + $0x1b0] sm:$0xff]
  %v1261 = vld [vmem:[%s265 + $0x1b8] sm:$0xff]
  %v1262 = vld [vmem:[%s265 + $0x1c8] sm:$0xff]
  %v1263 = vld [vmem:[%s265 + $0x1d0] sm:$0xff]
  %v1264 = vld [vmem:[%s265 + $0x1e0] sm:$0xff]
  %v1265 = vld [vmem:[%s265 + $0x1e8] sm:$0xff]
  %v1266 = vld [vmem:[%s265 + $0x1f8] sm:$0xff]
  %v1267 = vld [vmem:[%s265 + $0x200] sm:$0xff]
  %v1268 = vld [vmem:[%s265 + $0x210] sm:$0xff]
  %v1269 = vld [vmem:[%s265 + $0x218] sm:$0xff]
  %v1270 = vld [vmem:[%s265 + $0x228] sm:$0xff]
  %v1271 = vld [vmem:[%s265 + $0x230] sm:$0xff]
  %v1272 = vld [vmem:[%s265 + $0x240] sm:$0xff]
  %v1273 = vld [vmem:[%s265 + $0x248] sm:$0xff]
  %v1274 = vld [vmem:[%s265 + $0x258] sm:$0xff]
  %v1275 = vld [vmem:[%s265 + $0x260] sm:$0xff]
  %v1276 = vld [vmem:[%s265 + $0x270] sm:$0xff]
  %v1277 = vld [vmem:[%s265 + $0x278] sm:$0xff]
  %v1278 = vld [vmem:[%s265 + $0x288] sm:$0xff]
  %v1279 = vld [vmem:[%s265 + $0x290] sm:$0xff]
  %v1280 = vld [vmem:[%s265 + $0x2a0] sm:$0xff]
  %v1281 = vld [vmem:[%s265 + $0x2a8] sm:$0xff]
  %v1282 = vld [vmem:[%s265 + $0x2b8] sm:$0xff]
  %v1283 = vld [vmem:[%s265 + $0x2c0] sm:$0xff]
  %v1284 = vld [vmem:[%s265 + $0x2d0] sm:$0xff]
  %v1285 = vld [vmem:[%s265 + $0x2d8] sm:$0xff]
  %v1286 = vld [vmem:[%s265 + $0x2e8] sm:$0xff]
  %v1287 = vld [vmem:[%s265 + $0x2f0] sm:$0xff]
  %v1288 = vld [vmem:[%s265 + $0x300] sm:$0xff]
  %v1289 = vld [vmem:[%s265 + $0x308] sm:$0xff]
  %v1290 = vld [vmem:[%s265 + $0x318] sm:$0xff]
  %v1291 = vld [vmem:[%s265 + $0x320] sm:$0xff]
  %1356 = vrot.lane.b32.xlu0 %v1228, 12
  %v1357 = vpop.permute.xlu0 %1356
  %1358 = vrot.lane.b32.xlu0 %v1229, 12
  %v1359 = vpop.permute.xlu0 %1358
  %1360 = vrot.lane.b32.xlu0 %v1230, 12
  %v1361 = vpop.permute.xlu0 %1360
  %1362 = vrot.lane.b32.xlu0 %v1231, 12
  %v1363 = vpop.permute.xlu0 %1362
  %1364 = vrot.lane.b32.xlu0 %v1232, 12
  %v1365 = vpop.permute.xlu0 %1364
  %1366 = vrot.lane.b32.xlu0 %v1233, 12
  %v1367 = vpop.permute.xlu0 %1366
  %1368 = vrot.lane.b32.xlu0 %v1234, 12
  %v1369 = vpop.permute.xlu0 %1368
  %1370 = vrot.lane.b32.xlu0 %v1235, 12
  %v1371 = vpop.permute.xlu0 %1370
  %1372 = vrot.lane.b32.xlu0 %v1236, 12
  %v1373 = vpop.permute.xlu0 %1372
  %1374 = vrot.lane.b32.xlu0 %v1237, 12
  %v1375 = vpop.permute.xlu0 %1374
  %1376 = vrot.lane.b32.xlu0 %v1238, 12
  %v1377 = vpop.permute.xlu0 %1376
  %1378 = vrot.lane.b32.xlu0 %v1239, 12
  %v1379 = vpop.permute.xlu0 %1378
  %1380 = vrot.lane.b32.xlu0 %v1240, 12
  %v1381 = vpop.permute.xlu0 %1380
  %1382 = vrot.lane.b32.xlu0 %v1241, 12
  %v1383 = vpop.permute.xlu0 %1382
  %1384 = vrot.lane.b32.xlu0 %v1242, 12
  %v1385 = vpop.permute.xlu0 %1384
  %1386 = vrot.lane.b32.xlu0 %v1243, 12
  %v1387 = vpop.permute.xlu0 %1386
  %1388 = vrot.lane.b32.xlu0 %v1244, 12
  %v1389 = vpop.permute.xlu0 %1388
  %1390 = vrot.lane.b32.xlu0 %v1245, 12
  %v1391 = vpop.permute.xlu0 %1390
  %1392 = vrot.lane.b32.xlu0 %v1246, 12
  %v1393 = vpop.permute.xlu0 %1392
  %1394 = vrot.lane.b32.xlu0 %v1247, 12
  %v1395 = vpop.permute.xlu0 %1394
  %1396 = vrot.lane.b32.xlu0 %v1248, 12
  %v1397 = vpop.permute.xlu0 %1396
  %1398 = vrot.lane.b32.xlu0 %v1249, 12
  %v1399 = vpop.permute.xlu0 %1398
  %1400 = vrot.lane.b32.xlu0 %v1250, 12
  %v1401 = vpop.permute.xlu0 %1400
  %1402 = vrot.lane.b32.xlu0 %v1251, 12
  %v1403 = vpop.permute.xlu0 %1402
  %1404 = vrot.lane.b32.xlu0 %v1252, 12
  %v1405 = vpop.permute.xlu0 %1404
  %1406 = vrot.lane.b32.xlu0 %v1253, 12
  %v1407 = vpop.permute.xlu0 %1406
  %1408 = vrot.lane.b32.xlu0 %v1254, 12
  %v1409 = vpop.permute.xlu0 %1408
  %1410 = vrot.lane.b32.xlu0 %v1255, 12
  %v1411 = vpop.permute.xlu0 %1410
  %1412 = vrot.lane.b32.xlu0 %v1256, 12
  %v1413 = vpop.permute.xlu0 %1412
  %1414 = vrot.lane.b32.xlu0 %v1257, 12
  %v1415 = vpop.permute.xlu0 %1414
  %1416 = vrot.lane.b32.xlu0 %v1258, 12
  %v1417 = vpop.permute.xlu0 %1416
  %1418 = vrot.lane.b32.xlu0 %v1259, 12
  %v1419 = vpop.permute.xlu0 %1418
  %1420 = vrot.lane.b32.xlu0 %v1260, 12
  %v1421 = vpop.permute.xlu0 %1420
  %1422 = vrot.lane.b32.xlu0 %v1261, 12
  %v1423 = vpop.permute.xlu0 %1422
  %1424 = vrot.lane.b32.xlu0 %v1262, 12
  %v1425 = vpop.permute.xlu0 %1424
  %1426 = vrot.lane.b32.xlu0 %v1263, 12
  %v1427 = vpop.permute.xlu0 %1426
  %1428 = vrot.lane.b32.xlu0 %v1264, 12
  %v1429 = vpop.permute.xlu0 %1428
  %1430 = vrot.lane.b32.xlu0 %v1265, 12
  %v1431 = vpop.permute.xlu0 %1430
  %1432 = vrot.lane.b32.xlu0 %v1266, 12
  %v1433 = vpop.permute.xlu0 %1432
  %1434 = vrot.lane.b32.xlu0 %v1267, 12
  %v1435 = vpop.permute.xlu0 %1434
  %1436 = vrot.lane.b32.xlu0 %v1268, 12
  %v1437 = vpop.permute.xlu0 %1436
  %1438 = vrot.lane.b32.xlu0 %v1269, 12
  %v1439 = vpop.permute.xlu0 %1438
  %1440 = vrot.lane.b32.xlu0 %v1270, 12
  %v1441 = vpop.permute.xlu0 %1440
  %1442 = vrot.lane.b32.xlu0 %v1271, 12
  %v1443 = vpop.permute.xlu0 %1442
  %1444 = vrot.lane.b32.xlu0 %v1272, 12
  %v1445 = vpop.permute.xlu0 %1444
  %1446 = vrot.lane.b32.xlu0 %v1273, 12
  %v1447 = vpop.permute.xlu0 %1446
  %1448 = vrot.lane.b32.xlu0 %v1274, 12
  %v1449 = vpop.permute.xlu0 %1448
  %1450 = vrot.lane.b32.xlu0 %v1275, 12
  %v1451 = vpop.permute.xlu0 %1450
  %1452 = vrot.lane.b32.xlu0 %v1276, 12
  %v1453 = vpop.permute.xlu0 %1452
  %1454 = vrot.lane.b32.xlu0 %v1277, 12
  %v1455 = vpop.permute.xlu0 %1454
  %1456 = vrot.lane.b32.xlu0 %v1278, 12
  %v1457 = vpop.permute.xlu0 %1456
  %1458 = vrot.lane.b32.xlu0 %v1279, 12
  %v1459 = vpop.permute.xlu0 %1458
  %1460 = vrot.lane.b32.xlu0 %v1280, 12
  %v1461 = vpop.permute.xlu0 %1460
  %1462 = vrot.lane.b32.xlu0 %v1281, 12
  %v1463 = vpop.permute.xlu0 %1462
  %1464 = vrot.lane.b32.xlu0 %v1282, 12
  %v1465 = vpop.permute.xlu0 %1464
  %1466 = vrot.lane.b32.xlu0 %v1283, 12
  %v1467 = vpop.permute.xlu0 %1466
  %1468 = vrot.lane.b32.xlu0 %v1284, 12
  %v1469 = vpop.permute.xlu0 %1468
  %1470 = vrot.lane.b32.xlu0 %v1285, 12
  %v1471 = vpop.permute.xlu0 %1470
  %1472 = vrot.lane.b32.xlu0 %v1286, 12
  %v1473 = vpop.permute.xlu0 %1472
  %1474 = vrot.lane.b32.xlu0 %v1287, 12
  %v1475 = vpop.permute.xlu0 %1474
  %1476 = vrot.lane.b32.xlu0 %v1288, 12
  %v1477 = vpop.permute.xlu0 %1476
  %1478 = vrot.lane.b32.xlu0 %v1289, 12
  %v1479 = vpop.permute.xlu0 %1478
  %1480 = vrot.lane.b32.xlu0 %v1290, 12
  %v1481 = vpop.permute.xlu0 %1480
  %1482 = vrot.lane.b32.xlu0 %v1291, 12
  %v1483 = vpop.permute.xlu0 %1482
  %vm1548 = vcmask 130144
  %1549 = vst.msk [vmem:[#allocation3] sm:$0xff] %vm1548, %v1357
  %1550 = vst.msk [vmem:[#allocation3 + $0x8] sm:$0xff] %vm1548, %v1359
  %1551 = vst.msk [vmem:[#allocation3 + $0x10] sm:$0xff] %vm1548, %v1361
  %1552 = vst.msk [vmem:[#allocation3 + $0x18] sm:$0xff] %vm1548, %v1363
  %1553 = vst.msk [vmem:[#allocation3 + $0x20] sm:$0xff] %vm1548, %v1365
  %1554 = vst.msk [vmem:[#allocation3 + $0x28] sm:$0xff] %vm1548, %v1367
  %1555 = vst.msk [vmem:[#allocation3 + $0x30] sm:$0xff] %vm1548, %v1369
  %1556 = vst.msk [vmem:[#allocation3 + $0x38] sm:$0xff] %vm1548, %v1371
  %1557 = vst.msk [vmem:[#allocation3 + $0x40] sm:$0xff] %vm1548, %v1373
  %1558 = vst.msk [vmem:[#allocation3 + $0x48] sm:$0xff] %vm1548, %v1375
  %1559 = vst.msk [vmem:[#allocation3 + $0x50] sm:$0xff] %vm1548, %v1377
  %1560 = vst.msk [vmem:[#allocation3 + $0x58] sm:$0xff] %vm1548, %v1379
  %1561 = vst.msk [vmem:[#allocation3 + $0x60] sm:$0xff] %vm1548, %v1381
  %1562 = vst.msk [vmem:[#allocation3 + $0x68] sm:$0xff] %vm1548, %v1383
  %1563 = vst.msk [vmem:[#allocation3 + $0x70] sm:$0xff] %vm1548, %v1385
  %1564 = vst.msk [vmem:[#allocation3 + $0x78] sm:$0xff] %vm1548, %v1387
  %1565 = vst.msk [vmem:[#allocation3 + $0x80] sm:$0xff] %vm1548, %v1389
  %1566 = vst.msk [vmem:[#allocation3 + $0x88] sm:$0xff] %vm1548, %v1391
  %1567 = vst.msk [vmem:[#allocation3 + $0x90] sm:$0xff] %vm1548, %v1393
  %1568 = vst.msk [vmem:[#allocation3 + $0x98] sm:$0xff] %vm1548, %v1395
  %1569 = vst.msk [vmem:[#allocation3 + $0xa0] sm:$0xff] %vm1548, %v1397
  %1570 = vst.msk [vmem:[#allocation3 + $0xa8] sm:$0xff] %vm1548, %v1399
  %1571 = vst.msk [vmem:[#allocation3 + $0xb0] sm:$0xff] %vm1548, %v1401
  %1572 = vst.msk [vmem:[#allocation3 + $0xb8] sm:$0xff] %vm1548, %v1403
  %1573 = vst.msk [vmem:[#allocation3 + $0xc0] sm:$0xff] %vm1548, %v1405
  %1574 = vst.msk [vmem:[#allocation3 + $0xc8] sm:$0xff] %vm1548, %v1407
  %1575 = vst.msk [vmem:[#allocation3 + $0xd0] sm:$0xff] %vm1548, %v1409
  %1576 = vst.msk [vmem:[#allocation3 + $0xd8] sm:$0xff] %vm1548, %v1411
  %1577 = vst.msk [vmem:[#allocation3 + $0xe0] sm:$0xff] %vm1548, %v1413
  %1578 = vst.msk [vmem:[#allocation3 + $0xe8] sm:$0xff] %vm1548, %v1415
  %1579 = vst.msk [vmem:[#allocation3 + $0xf0] sm:$0xff] %vm1548, %v1417
  %1580 = vst.msk [vmem:[#allocation3 + $0xf8] sm:$0xff] %vm1548, %v1419
  %1581 = vst.msk [vmem:[#allocation3 + $0x100] sm:$0xff] %vm1548, %v1421
  %1582 = vst.msk [vmem:[#allocation3 + $0x108] sm:$0xff] %vm1548, %v1423
  %1583 = vst.msk [vmem:[#allocation3 + $0x110] sm:$0xff] %vm1548, %v1425
  %1584 = vst.msk [vmem:[#allocation3 + $0x118] sm:$0xff] %vm1548, %v1427
  %1585 = vst.msk [vmem:[#allocation3 + $0x120] sm:$0xff] %vm1548, %v1429
  %1586 = vst.msk [vmem:[#allocation3 + $0x128] sm:$0xff] %vm1548, %v1431
  %1587 = vst.msk [vmem:[#allocation3 + $0x130] sm:$0xff] %vm1548, %v1433
  %1588 = vst.msk [vmem:[#allocation3 + $0x138] sm:$0xff] %vm1548, %v1435
  %1589 = vst.msk [vmem:[#allocation3 + $0x140] sm:$0xff] %vm1548, %v1437
  %1590 = vst.msk [vmem:[#allocation3 + $0x148] sm:$0xff] %vm1548, %v1439
  %1591 = vst.msk [vmem:[#allocation3 + $0x150] sm:$0xff] %vm1548, %v1441
  %1592 = vst.msk [vmem:[#allocation3 + $0x158] sm:$0xff] %vm1548, %v1443
  %1593 = vst.msk [vmem:[#allocation3 + $0x160] sm:$0xff] %vm1548, %v1445
  %1594 = vst.msk [vmem:[#allocation3 + $0x168] sm:$0xff] %vm1548, %v1447
  %1595 = vst.msk [vmem:[#allocation3 + $0x170] sm:$0xff] %vm1548, %v1449
  %1596 = vst.msk [vmem:[#allocation3 + $0x178] sm:$0xff] %vm1548, %v1451
  %1597 = vst.msk [vmem:[#allocation3 + $0x180] sm:$0xff] %vm1548, %v1453
  %1598 = vst.msk [vmem:[#allocation3 + $0x188] sm:$0xff] %vm1548, %v1455
  %1599 = vst.msk [vmem:[#allocation3 + $0x190] sm:$0xff] %vm1548, %v1457
  %1600 = vst.msk [vmem:[#allocation3 + $0x198] sm:$0xff] %vm1548, %v1459
  %1601 = vst.msk [vmem:[#allocation3 + $0x1a0] sm:$0xff] %vm1548, %v1461
  %1602 = vst.msk [vmem:[#allocation3 + $0x1a8] sm:$0xff] %vm1548, %v1463
  %1603 = vst.msk [vmem:[#allocation3 + $0x1b0] sm:$0xff] %vm1548, %v1465
  %1604 = vst.msk [vmem:[#allocation3 + $0x1b8] sm:$0xff] %vm1548, %v1467
  %1605 = vst.msk [vmem:[#allocation3 + $0x1c0] sm:$0xff] %vm1548, %v1469
  %1606 = vst.msk [vmem:[#allocation3 + $0x1c8] sm:$0xff] %vm1548, %v1471
  %1607 = vst.msk [vmem:[#allocation3 + $0x1d0] sm:$0xff] %vm1548, %v1473
  %1608 = vst.msk [vmem:[#allocation3 + $0x1d8] sm:$0xff] %vm1548, %v1475
  %1609 = vst.msk [vmem:[#allocation3 + $0x1e0] sm:$0xff] %vm1548, %v1477
  %1610 = vst.msk [vmem:[#allocation3 + $0x1e8] sm:$0xff] %vm1548, %v1479
  %1611 = vst.msk [vmem:[#allocation3 + $0x1f0] sm:$0xff] %vm1548, %v1481
  %1612 = vst.msk [vmem:[#allocation3 + $0x1f8] sm:$0xff] %vm1548, %v1483
  %v1613 = vld [vmem:[%s265 + $0x1] sm:$0xff]
  %v1614 = vld [vmem:[%s265 + $0x9] sm:$0xff]
  %v1615 = vld [vmem:[%s265 + $0x19] sm:$0xff]
  %v1616 = vld [vmem:[%s265 + $0x21] sm:$0xff]
  %v1617 = vld [vmem:[%s265 + $0x31] sm:$0xff]
  %v1618 = vld [vmem:[%s265 + $0x39] sm:$0xff]
  %v1619 = vld [vmem:[%s265 + $0x49] sm:$0xff]
  %v1620 = vld [vmem:[%s265 + $0x51] sm:$0xff]
  %v1621 = vld [vmem:[%s265 + $0x61] sm:$0xff]
  %v1622 = vld [vmem:[%s265 + $0x69] sm:$0xff]
  %v1623 = vld [vmem:[%s265 + $0x79] sm:$0xff]
  %v1624 = vld [vmem:[%s265 + $0x81] sm:$0xff]
  %v1625 = vld [vmem:[%s265 + $0x91] sm:$0xff]
  %v1626 = vld [vmem:[%s265 + $0x99] sm:$0xff]
  %v1627 = vld [vmem:[%s265 + $0xa9] sm:$0xff]
  %v1628 = vld [vmem:[%s265 + $0xb1] sm:$0xff]
  %v1629 = vld [vmem:[%s265 + $0xc1] sm:$0xff]
  %v1630 = vld [vmem:[%s265 + $0xc9] sm:$0xff]
  %v1631 = vld [vmem:[%s265 + $0xd9] sm:$0xff]
  %v1632 = vld [vmem:[%s265 + $0xe1] sm:$0xff]
  %v1633 = vld [vmem:[%s265 + $0xf1] sm:$0xff]
  %v1634 = vld [vmem:[%s265 + $0xf9] sm:$0xff]
  %v1635 = vld [vmem:[%s265 + $0x109] sm:$0xff]
  %v1636 = vld [vmem:[%s265 + $0x111] sm:$0xff]
  %v1637 = vld [vmem:[%s265 + $0x121] sm:$0xff]
  %v1638 = vld [vmem:[%s265 + $0x129] sm:$0xff]
  %v1639 = vld [vmem:[%s265 + $0x139] sm:$0xff]
  %v1640 = vld [vmem:[%s265 + $0x141] sm:$0xff]
  %v1641 = vld [vmem:[%s265 + $0x151] sm:$0xff]
  %v1642 = vld [vmem:[%s265 + $0x159] sm:$0xff]
  %v1643 = vld [vmem:[%s265 + $0x169] sm:$0xff]
  %v1644 = vld [vmem:[%s265 + $0x171] sm:$0xff]
  %v1645 = vld [vmem:[%s265 + $0x1b1] sm:$0xff]
  %v1646 = vld [vmem:[%s265 + $0x1b9] sm:$0xff]
  %v1647 = vld [vmem:[%s265 + $0x1c9] sm:$0xff]
  %v1648 = vld [vmem:[%s265 + $0x1d1] sm:$0xff]
  %v1649 = vld [vmem:[%s265 + $0x1e1] sm:$0xff]
  %v1650 = vld [vmem:[%s265 + $0x1e9] sm:$0xff]
  %v1651 = vld [vmem:[%s265 + $0x1f9] sm:$0xff]
  %v1652 = vld [vmem:[%s265 + $0x201] sm:$0xff]
  %v1653 = vld [vmem:[%s265 + $0x211] sm:$0xff]
  %v1654 = vld [vmem:[%s265 + $0x219] sm:$0xff]
  %v1655 = vld [vmem:[%s265 + $0x229] sm:$0xff]
  %v1656 = vld [vmem:[%s265 + $0x231] sm:$0xff]
  %v1657 = vld [vmem:[%s265 + $0x241] sm:$0xff]
  %v1658 = vld [vmem:[%s265 + $0x249] sm:$0xff]
  %v1659 = vld [vmem:[%s265 + $0x259] sm:$0xff]
  %v1660 = vld [vmem:[%s265 + $0x261] sm:$0xff]
  %v1661 = vld [vmem:[%s265 + $0x271] sm:$0xff]
  %v1662 = vld [vmem:[%s265 + $0x279] sm:$0xff]
  %v1663 = vld [vmem:[%s265 + $0x289] sm:$0xff]
  %v1664 = vld [vmem:[%s265 + $0x291] sm:$0xff]
  %v1665 = vld [vmem:[%s265 + $0x2a1] sm:$0xff]
  %v1666 = vld [vmem:[%s265 + $0x2a9] sm:$0xff]
  %v1667 = vld [vmem:[%s265 + $0x2b9] sm:$0xff]
  %v1668 = vld [vmem:[%s265 + $0x2c1] sm:$0xff]
  %v1669 = vld [vmem:[%s265 + $0x2d1] sm:$0xff]
  %v1670 = vld [vmem:[%s265 + $0x2d9] sm:$0xff]
  %v1671 = vld [vmem:[%s265 + $0x2e9] sm:$0xff]
  %v1672 = vld [vmem:[%s265 + $0x2f1] sm:$0xff]
  %v1673 = vld [vmem:[%s265 + $0x301] sm:$0xff]
  %v1674 = vld [vmem:[%s265 + $0x309] sm:$0xff]
  %v1675 = vld [vmem:[%s265 + $0x319] sm:$0xff]
  %v1676 = vld [vmem:[%s265 + $0x321] sm:$0xff]
  %1741 = vrot.lane.b32.xlu0 %v1613, 16
  %v1742 = vpop.permute.xlu0 %1741
  %1743 = vrot.lane.b32.xlu0 %v1614, 16
  %v1744 = vpop.permute.xlu0 %1743
  %1745 = vrot.lane.b32.xlu0 %v1615, 16
  %v1746 = vpop.permute.xlu0 %1745
  %1747 = vrot.lane.b32.xlu0 %v1616, 16
  %v1748 = vpop.permute.xlu0 %1747
  %1749 = vrot.lane.b32.xlu0 %v1617, 16
  %v1750 = vpop.permute.xlu0 %1749
  %1751 = vrot.lane.b32.xlu0 %v1618, 16
  %v1752 = vpop.permute.xlu0 %1751
  %1753 = vrot.lane.b32.xlu0 %v1619, 16
  %v1754 = vpop.permute.xlu0 %1753
  %1755 = vrot.lane.b32.xlu0 %v1620, 16
  %v1756 = vpop.permute.xlu0 %1755
  %1757 = vrot.lane.b32.xlu0 %v1621, 16
  %v1758 = vpop.permute.xlu0 %1757
  %1759 = vrot.lane.b32.xlu0 %v1622, 16
  %v1760 = vpop.permute.xlu0 %1759
  %1761 = vrot.lane.b32.xlu0 %v1623, 16
  %v1762 = vpop.permute.xlu0 %1761
  %1763 = vrot.lane.b32.xlu0 %v1624, 16
  %v1764 = vpop.permute.xlu0 %1763
  %1765 = vrot.lane.b32.xlu0 %v1625, 16
  %v1766 = vpop.permute.xlu0 %1765
  %1767 = vrot.lane.b32.xlu0 %v1626, 16
  %v1768 = vpop.permute.xlu0 %1767
  %1769 = vrot.lane.b32.xlu0 %v1627, 16
  %v1770 = vpop.permute.xlu0 %1769
  %1771 = vrot.lane.b32.xlu0 %v1628, 16
  %v1772 = vpop.permute.xlu0 %1771
  %1773 = vrot.lane.b32.xlu0 %v1629, 16
  %v1774 = vpop.permute.xlu0 %1773
  %1775 = vrot.lane.b32.xlu0 %v1630, 16
  %v1776 = vpop.permute.xlu0 %1775
  %1777 = vrot.lane.b32.xlu0 %v1631, 16
  %v1778 = vpop.permute.xlu0 %1777
  %1779 = vrot.lane.b32.xlu0 %v1632, 16
  %v1780 = vpop.permute.xlu0 %1779
  %1781 = vrot.lane.b32.xlu0 %v1633, 16
  %v1782 = vpop.permute.xlu0 %1781
  %1783 = vrot.lane.b32.xlu0 %v1634, 16
  %v1784 = vpop.permute.xlu0 %1783
  %1785 = vrot.lane.b32.xlu0 %v1635, 16
  %v1786 = vpop.permute.xlu0 %1785
  %1787 = vrot.lane.b32.xlu0 %v1636, 16
  %v1788 = vpop.permute.xlu0 %1787
  %1789 = vrot.lane.b32.xlu0 %v1637, 16
  %v1790 = vpop.permute.xlu0 %1789
  %1791 = vrot.lane.b32.xlu0 %v1638, 16
  %v1792 = vpop.permute.xlu0 %1791
  %1793 = vrot.lane.b32.xlu0 %v1639, 16
  %v1794 = vpop.permute.xlu0 %1793
  %1795 = vrot.lane.b32.xlu0 %v1640, 16
  %v1796 = vpop.permute.xlu0 %1795
  %1797 = vrot.lane.b32.xlu0 %v1641, 16
  %v1798 = vpop.permute.xlu0 %1797
  %1799 = vrot.lane.b32.xlu0 %v1642, 16
  %v1800 = vpop.permute.xlu0 %1799
  %1801 = vrot.lane.b32.xlu0 %v1643, 16
  %v1802 = vpop.permute.xlu0 %1801
  %1803 = vrot.lane.b32.xlu0 %v1644, 16
  %v1804 = vpop.permute.xlu0 %1803
  %1805 = vrot.lane.b32.xlu0 %v1645, 16
  %v1806 = vpop.permute.xlu0 %1805
  %1807 = vrot.lane.b32.xlu0 %v1646, 16
  %v1808 = vpop.permute.xlu0 %1807
  %1809 = vrot.lane.b32.xlu0 %v1647, 16
  %v1810 = vpop.permute.xlu0 %1809
  %1811 = vrot.lane.b32.xlu0 %v1648, 16
  %v1812 = vpop.permute.xlu0 %1811
  %1813 = vrot.lane.b32.xlu0 %v1649, 16
  %v1814 = vpop.permute.xlu0 %1813
  %1815 = vrot.lane.b32.xlu0 %v1650, 16
  %v1816 = vpop.permute.xlu0 %1815
  %1817 = vrot.lane.b32.xlu0 %v1651, 16
  %v1818 = vpop.permute.xlu0 %1817
  %1819 = vrot.lane.b32.xlu0 %v1652, 16
  %v1820 = vpop.permute.xlu0 %1819
  %1821 = vrot.lane.b32.xlu0 %v1653, 16
  %v1822 = vpop.permute.xlu0 %1821
  %1823 = vrot.lane.b32.xlu0 %v1654, 16
  %v1824 = vpop.permute.xlu0 %1823
  %1825 = vrot.lane.b32.xlu0 %v1655, 16
  %v1826 = vpop.permute.xlu0 %1825
  %1827 = vrot.lane.b32.xlu0 %v1656, 16
  %v1828 = vpop.permute.xlu0 %1827
  %1829 = vrot.lane.b32.xlu0 %v1657, 16
  %v1830 = vpop.permute.xlu0 %1829
  %1831 = vrot.lane.b32.xlu0 %v1658, 16
  %v1832 = vpop.permute.xlu0 %1831
  %1833 = vrot.lane.b32.xlu0 %v1659, 16
  %v1834 = vpop.permute.xlu0 %1833
  %1835 = vrot.lane.b32.xlu0 %v1660, 16
  %v1836 = vpop.permute.xlu0 %1835
  %1837 = vrot.lane.b32.xlu0 %v1661, 16
  %v1838 = vpop.permute.xlu0 %1837
  %1839 = vrot.lane.b32.xlu0 %v1662, 16
  %v1840 = vpop.permute.xlu0 %1839
  %1841 = vrot.lane.b32.xlu0 %v1663, 16
  %v1842 = vpop.permute.xlu0 %1841
  %1843 = vrot.lane.b32.xlu0 %v1664, 16
  %v1844 = vpop.permute.xlu0 %1843
  %1845 = vrot.lane.b32.xlu0 %v1665, 16
  %v1846 = vpop.permute.xlu0 %1845
  %1847 = vrot.lane.b32.xlu0 %v1666, 16
  %v1848 = vpop.permute.xlu0 %1847
  %1849 = vrot.lane.b32.xlu0 %v1667, 16
  %v1850 = vpop.permute.xlu0 %1849
  %1851 = vrot.lane.b32.xlu0 %v1668, 16
  %v1852 = vpop.permute.xlu0 %1851
  %1853 = vrot.lane.b32.xlu0 %v1669, 16
  %v1854 = vpop.permute.xlu0 %1853
  %1855 = vrot.lane.b32.xlu0 %v1670, 16
  %v1856 = vpop.permute.xlu0 %1855
  %1857 = vrot.lane.b32.xlu0 %v1671, 16
  %v1858 = vpop.permute.xlu0 %1857
  %1859 = vrot.lane.b32.xlu0 %v1672, 16
  %v1860 = vpop.permute.xlu0 %1859
  %1861 = vrot.lane.b32.xlu0 %v1673, 16
  %v1862 = vpop.permute.xlu0 %1861
  %1863 = vrot.lane.b32.xlu0 %v1674, 16
  %v1864 = vpop.permute.xlu0 %1863
  %1865 = vrot.lane.b32.xlu0 %v1675, 16
  %v1866 = vpop.permute.xlu0 %1865
  %1867 = vrot.lane.b32.xlu0 %v1676, 16
  %v1868 = vpop.permute.xlu0 %1867
  %vm1933 = vcmask 162944
  %1934 = vst.msk [vmem:[#allocation3] sm:$0xff] %vm1933, %v1742
  %1935 = vst.msk [vmem:[#allocation3 + $0x8] sm:$0xff] %vm1933, %v1744
  %1936 = vst.msk [vmem:[#allocation3 + $0x10] sm:$0xff] %vm1933, %v1746
  %1937 = vst.msk [vmem:[#allocation3 + $0x18] sm:$0xff] %vm1933, %v1748
  %1938 = vst.msk [vmem:[#allocation3 + $0x20] sm:$0xff] %vm1933, %v1750
  %1939 = vst.msk [vmem:[#allocation3 + $0x28] sm:$0xff] %vm1933, %v1752
  %1940 = vst.msk [vmem:[#allocation3 + $0x30] sm:$0xff] %vm1933, %v1754
  %1941 = vst.msk [vmem:[#allocation3 + $0x38] sm:$0xff] %vm1933, %v1756
  %1942 = vst.msk [vmem:[#allocation3 + $0x40] sm:$0xff] %vm1933, %v1758
  %1943 = vst.msk [vmem:[#allocation3 + $0x48] sm:$0xff] %vm1933, %v1760
  %1944 = vst.msk [vmem:[#allocation3 + $0x50] sm:$0xff] %vm1933, %v1762
  %1945 = vst.msk [vmem:[#allocation3 + $0x58] sm:$0xff] %vm1933, %v1764
  %1946 = vst.msk [vmem:[#allocation3 + $0x60] sm:$0xff] %vm1933, %v1766
  %1947 = vst.msk [vmem:[#allocation3 + $0x68] sm:$0xff] %vm1933, %v1768
  %1948 = vst.msk [vmem:[#allocation3 + $0x70] sm:$0xff] %vm1933, %v1770
  %1949 = vst.msk [vmem:[#allocation3 + $0x78] sm:$0xff] %vm1933, %v1772
  %1950 = vst.msk [vmem:[#allocation3 + $0x80] sm:$0xff] %vm1933, %v1774
  %1951 = vst.msk [vmem:[#allocation3 + $0x88] sm:$0xff] %vm1933, %v1776
  %1952 = vst.msk [vmem:[#allocation3 + $0x90] sm:$0xff] %vm1933, %v1778
  %1953 = vst.msk [vmem:[#allocation3 + $0x98] sm:$0xff] %vm1933, %v1780
  %1954 = vst.msk [vmem:[#allocation3 + $0xa0] sm:$0xff] %vm1933, %v1782
  %1955 = vst.msk [vmem:[#allocation3 + $0xa8] sm:$0xff] %vm1933, %v1784
  %1956 = vst.msk [vmem:[#allocation3 + $0xb0] sm:$0xff] %vm1933, %v1786
  %1957 = vst.msk [vmem:[#allocation3 + $0xb8] sm:$0xff] %vm1933, %v1788
  %1958 = vst.msk [vmem:[#allocation3 + $0xc0] sm:$0xff] %vm1933, %v1790
  %1959 = vst.msk [vmem:[#allocation3 + $0xc8] sm:$0xff] %vm1933, %v1792
  %1960 = vst.msk [vmem:[#allocation3 + $0xd0] sm:$0xff] %vm1933, %v1794
  %1961 = vst.msk [vmem:[#allocation3 + $0xd8] sm:$0xff] %vm1933, %v1796
  %1962 = vst.msk [vmem:[#allocation3 + $0xe0] sm:$0xff] %vm1933, %v1798
  %1963 = vst.msk [vmem:[#allocation3 + $0xe8] sm:$0xff] %vm1933, %v1800
  %1964 = vst.msk [vmem:[#allocation3 + $0xf0] sm:$0xff] %vm1933, %v1802
  %1965 = vst.msk [vmem:[#allocation3 + $0xf8] sm:$0xff] %vm1933, %v1804
  %1966 = vst.msk [vmem:[#allocation3 + $0x100] sm:$0xff] %vm1933, %v1806
  %1967 = vst.msk [vmem:[#allocation3 + $0x108] sm:$0xff] %vm1933, %v1808
  %1968 = vst.msk [vmem:[#allocation3 + $0x110] sm:$0xff] %vm1933, %v1810
  %1969 = vst.msk [vmem:[#allocation3 + $0x118] sm:$0xff] %vm1933, %v1812
  %1970 = vst.msk [vmem:[#allocation3 + $0x120] sm:$0xff] %vm1933, %v1814
  %1971 = vst.msk [vmem:[#allocation3 + $0x128] sm:$0xff] %vm1933, %v1816
  %1972 = vst.msk [vmem:[#allocation3 + $0x130] sm:$0xff] %vm1933, %v1818
  %1973 = vst.msk [vmem:[#allocation3 + $0x138] sm:$0xff] %vm1933, %v1820
  %1974 = vst.msk [vmem:[#allocation3 + $0x140] sm:$0xff] %vm1933, %v1822
  %1975 = vst.msk [vmem:[#allocation3 + $0x148] sm:$0xff] %vm1933, %v1824
  %1976 = vst.msk [vmem:[#allocation3 + $0x150] sm:$0xff] %vm1933, %v1826
  %1977 = vst.msk [vmem:[#allocation3 + $0x158] sm:$0xff] %vm1933, %v1828
  %1978 = vst.msk [vmem:[#allocation3 + $0x160] sm:$0xff] %vm1933, %v1830
  %1979 = vst.msk [vmem:[#allocation3 + $0x168] sm:$0xff] %vm1933, %v1832
  %1980 = vst.msk [vmem:[#allocation3 + $0x170] sm:$0xff] %vm1933, %v1834
  %1981 = vst.msk [vmem:[#allocation3 + $0x178] sm:$0xff] %vm1933, %v1836
  %1982 = vst.msk [vmem:[#allocation3 + $0x180] sm:$0xff] %vm1933, %v1838
  %1983 = vst.msk [vmem:[#allocation3 + $0x188] sm:$0xff] %vm1933, %v1840
  %1984 = vst.msk [vmem:[#allocation3 + $0x190] sm:$0xff] %vm1933, %v1842
  %1985 = vst.msk [vmem:[#allocation3 + $0x198] sm:$0xff] %vm1933, %v1844
  %1986 = vst.msk [vmem:[#allocation3 + $0x1a0] sm:$0xff] %vm1933, %v1846
  %1987 = vst.msk [vmem:[#allocation3 + $0x1a8] sm:$0xff] %vm1933, %v1848
  %1988 = vst.msk [vmem:[#allocation3 + $0x1b0] sm:$0xff] %vm1933, %v1850
  %1989 = vst.msk [vmem:[#allocation3 + $0x1b8] sm:$0xff] %vm1933, %v1852
  %1990 = vst.msk [vmem:[#allocation3 + $0x1c0] sm:$0xff] %vm1933, %v1854
  %1991 = vst.msk [vmem:[#allocation3 + $0x1c8] sm:$0xff] %vm1933, %v1856
  %1992 = vst.msk [vmem:[#allocation3 + $0x1d0] sm:$0xff] %vm1933, %v1858
  %1993 = vst.msk [vmem:[#allocation3 + $0x1d8] sm:$0xff] %vm1933, %v1860
  %1994 = vst.msk [vmem:[#allocation3 + $0x1e0] sm:$0xff] %vm1933, %v1862
  %1995 = vst.msk [vmem:[#allocation3 + $0x1e8] sm:$0xff] %vm1933, %v1864
  %1996 = vst.msk [vmem:[#allocation3 + $0x1f0] sm:$0xff] %vm1933, %v1866
  %1997 = vst.msk [vmem:[#allocation3 + $0x1f8] sm:$0xff] %vm1933, %v1868
  %v1998 = vld [vmem:[%s265 + $0x2] sm:$0xff]
  %v1999 = vld [vmem:[%s265 + $0xa] sm:$0xff]
  %v2000 = vld [vmem:[%s265 + $0x1a] sm:$0xff]
  %v2001 = vld [vmem:[%s265 + $0x22] sm:$0xff]
  %v2002 = vld [vmem:[%s265 + $0x32] sm:$0xff]
  %v2003 = vld [vmem:[%s265 + $0x3a] sm:$0xff]
  %v2004 = vld [vmem:[%s265 + $0x4a] sm:$0xff]
  %v2005 = vld [vmem:[%s265 + $0x52] sm:$0xff]
  %v2006 = vld [vmem:[%s265 + $0x62] sm:$0xff]
  %v2007 = vld [vmem:[%s265 + $0x6a] sm:$0xff]
  %v2008 = vld [vmem:[%s265 + $0x7a] sm:$0xff]
  %v2009 = vld [vmem:[%s265 + $0x82] sm:$0xff]
  %v2010 = vld [vmem:[%s265 + $0x92] sm:$0xff]
  %v2011 = vld [vmem:[%s265 + $0x9a] sm:$0xff]
  %v2012 = vld [vmem:[%s265 + $0xaa] sm:$0xff]
  %v2013 = vld [vmem:[%s265 + $0xb2] sm:$0xff]
  %v2014 = vld [vmem:[%s265 + $0xc2] sm:$0xff]
  %v2015 = vld [vmem:[%s265 + $0xca] sm:$0xff]
  %v2016 = vld [vmem:[%s265 + $0xda] sm:$0xff]
  %v2017 = vld [vmem:[%s265 + $0xe2] sm:$0xff]
  %v2018 = vld [vmem:[%s265 + $0xf2] sm:$0xff]
  %v2019 = vld [vmem:[%s265 + $0xfa] sm:$0xff]
  %v2020 = vld [vmem:[%s265 + $0x10a] sm:$0xff]
  %v2021 = vld [vmem:[%s265 + $0x112] sm:$0xff]
  %v2022 = vld [vmem:[%s265 + $0x122] sm:$0xff]
  %v2023 = vld [vmem:[%s265 + $0x12a] sm:$0xff]
  %v2024 = vld [vmem:[%s265 + $0x13a] sm:$0xff]
  %v2025 = vld [vmem:[%s265 + $0x142] sm:$0xff]
  %v2026 = vld [vmem:[%s265 + $0x152] sm:$0xff]
  %v2027 = vld [vmem:[%s265 + $0x15a] sm:$0xff]
  %v2028 = vld [vmem:[%s265 + $0x16a] sm:$0xff]
  %v2029 = vld [vmem:[%s265 + $0x172] sm:$0xff]
  %v2030 = vld [vmem:[%s265 + $0x1b2] sm:$0xff]
  %v2031 = vld [vmem:[%s265 + $0x1ba] sm:$0xff]
  %v2032 = vld [vmem:[%s265 + $0x1ca] sm:$0xff]
  %v2033 = vld [vmem:[%s265 + $0x1d2] sm:$0xff]
  %v2034 = vld [vmem:[%s265 + $0x1e2] sm:$0xff]
  %v2035 = vld [vmem:[%s265 + $0x1ea] sm:$0xff]
  %v2036 = vld [vmem:[%s265 + $0x1fa] sm:$0xff]
  %v2037 = vld [vmem:[%s265 + $0x202] sm:$0xff]
  %v2038 = vld [vmem:[%s265 + $0x212] sm:$0xff]
  %v2039 = vld [vmem:[%s265 + $0x21a] sm:$0xff]
  %v2040 = vld [vmem:[%s265 + $0x22a] sm:$0xff]
  %v2041 = vld [vmem:[%s265 + $0x232] sm:$0xff]
  %v2042 = vld [vmem:[%s265 + $0x242] sm:$0xff]
  %v2043 = vld [vmem:[%s265 + $0x24a] sm:$0xff]
  %v2044 = vld [vmem:[%s265 + $0x25a] sm:$0xff]
  %v2045 = vld [vmem:[%s265 + $0x262] sm:$0xff]
  %v2046 = vld [vmem:[%s265 + $0x272] sm:$0xff]
  %v2047 = vld [vmem:[%s265 + $0x27a] sm:$0xff]
  %v2048 = vld [vmem:[%s265 + $0x28a] sm:$0xff]
  %v2049 = vld [vmem:[%s265 + $0x292] sm:$0xff]
  %v2050 = vld [vmem:[%s265 + $0x2a2] sm:$0xff]
  %v2051 = vld [vmem:[%s265 + $0x2aa] sm:$0xff]
  %v2052 = vld [vmem:[%s265 + $0x2ba] sm:$0xff]
  %v2053 = vld [vmem:[%s265 + $0x2c2] sm:$0xff]
  %v2054 = vld [vmem:[%s265 + $0x2d2] sm:$0xff]
  %v2055 = vld [vmem:[%s265 + $0x2da] sm:$0xff]
  %v2056 = vld [vmem:[%s265 + $0x2ea] sm:$0xff]
  %v2057 = vld [vmem:[%s265 + $0x2f2] sm:$0xff]
  %v2058 = vld [vmem:[%s265 + $0x302] sm:$0xff]
  %v2059 = vld [vmem:[%s265 + $0x30a] sm:$0xff]
  %v2060 = vld [vmem:[%s265 + $0x31a] sm:$0xff]
  %v2061 = vld [vmem:[%s265 + $0x322] sm:$0xff]
  %2126 = vrot.lane.b32.xlu0 %v1998, 20
  %v2127 = vpop.permute.xlu0 %2126
  %2128 = vrot.lane.b32.xlu0 %v1999, 20
  %v2129 = vpop.permute.xlu0 %2128
  %2130 = vrot.lane.b32.xlu0 %v2000, 20
  %v2131 = vpop.permute.xlu0 %2130
  %2132 = vrot.lane.b32.xlu0 %v2001, 20
  %v2133 = vpop.permute.xlu0 %2132
  %2134 = vrot.lane.b32.xlu0 %v2002, 20
  %v2135 = vpop.permute.xlu0 %2134
  %2136 = vrot.lane.b32.xlu0 %v2003, 20
  %v2137 = vpop.permute.xlu0 %2136
  %2138 = vrot.lane.b32.xlu0 %v2004, 20
  %v2139 = vpop.permute.xlu0 %2138
  %2140 = vrot.lane.b32.xlu0 %v2005, 20
  %v2141 = vpop.permute.xlu0 %2140
  %2142 = vrot.lane.b32.xlu0 %v2006, 20
  %v2143 = vpop.permute.xlu0 %2142
  %2144 = vrot.lane.b32.xlu0 %v2007, 20
  %v2145 = vpop.permute.xlu0 %2144
  %2146 = vrot.lane.b32.xlu0 %v2008, 20
  %v2147 = vpop.permute.xlu0 %2146
  %2148 = vrot.lane.b32.xlu0 %v2009, 20
  %v2149 = vpop.permute.xlu0 %2148
  %2150 = vrot.lane.b32.xlu0 %v2010, 20
  %v2151 = vpop.permute.xlu0 %2150
  %2152 = vrot.lane.b32.xlu0 %v2011, 20
  %v2153 = vpop.permute.xlu0 %2152
  %2154 = vrot.lane.b32.xlu0 %v2012, 20
  %v2155 = vpop.permute.xlu0 %2154
  %2156 = vrot.lane.b32.xlu0 %v2013, 20
  %v2157 = vpop.permute.xlu0 %2156
  %2158 = vrot.lane.b32.xlu0 %v2014, 20
  %v2159 = vpop.permute.xlu0 %2158
  %2160 = vrot.lane.b32.xlu0 %v2015, 20
  %v2161 = vpop.permute.xlu0 %2160
  %2162 = vrot.lane.b32.xlu0 %v2016, 20
  %v2163 = vpop.permute.xlu0 %2162
  %2164 = vrot.lane.b32.xlu0 %v2017, 20
  %v2165 = vpop.permute.xlu0 %2164
  %2166 = vrot.lane.b32.xlu0 %v2018, 20
  %v2167 = vpop.permute.xlu0 %2166
  %2168 = vrot.lane.b32.xlu0 %v2019, 20
  %v2169 = vpop.permute.xlu0 %2168
  %2170 = vrot.lane.b32.xlu0 %v2020, 20
  %v2171 = vpop.permute.xlu0 %2170
  %2172 = vrot.lane.b32.xlu0 %v2021, 20
  %v2173 = vpop.permute.xlu0 %2172
  %2174 = vrot.lane.b32.xlu0 %v2022, 20
  %v2175 = vpop.permute.xlu0 %2174
  %2176 = vrot.lane.b32.xlu0 %v2023, 20
  %v2177 = vpop.permute.xlu0 %2176
  %2178 = vrot.lane.b32.xlu0 %v2024, 20
  %v2179 = vpop.permute.xlu0 %2178
  %2180 = vrot.lane.b32.xlu0 %v2025, 20
  %v2181 = vpop.permute.xlu0 %2180
  %2182 = vrot.lane.b32.xlu0 %v2026, 20
  %v2183 = vpop.permute.xlu0 %2182
  %2184 = vrot.lane.b32.xlu0 %v2027, 20
  %v2185 = vpop.permute.xlu0 %2184
  %2186 = vrot.lane.b32.xlu0 %v2028, 20
  %v2187 = vpop.permute.xlu0 %2186
  %2188 = vrot.lane.b32.xlu0 %v2029, 20
  %v2189 = vpop.permute.xlu0 %2188
  %2190 = vrot.lane.b32.xlu0 %v2030, 20
  %v2191 = vpop.permute.xlu0 %2190
  %2192 = vrot.lane.b32.xlu0 %v2031, 20
  %v2193 = vpop.permute.xlu0 %2192
  %2194 = vrot.lane.b32.xlu0 %v2032, 20
  %v2195 = vpop.permute.xlu0 %2194
  %2196 = vrot.lane.b32.xlu0 %v2033, 20
  %v2197 = vpop.permute.xlu0 %2196
  %2198 = vrot.lane.b32.xlu0 %v2034, 20
  %v2199 = vpop.permute.xlu0 %2198
  %2200 = vrot.lane.b32.xlu0 %v2035, 20
  %v2201 = vpop.permute.xlu0 %2200
  %2202 = vrot.lane.b32.xlu0 %v2036, 20
  %v2203 = vpop.permute.xlu0 %2202
  %2204 = vrot.lane.b32.xlu0 %v2037, 20
  %v2205 = vpop.permute.xlu0 %2204
  %2206 = vrot.lane.b32.xlu0 %v2038, 20
  %v2207 = vpop.permute.xlu0 %2206
  %2208 = vrot.lane.b32.xlu0 %v2039, 20
  %v2209 = vpop.permute.xlu0 %2208
  %2210 = vrot.lane.b32.xlu0 %v2040, 20
  %v2211 = vpop.permute.xlu0 %2210
  %2212 = vrot.lane.b32.xlu0 %v2041, 20
  %v2213 = vpop.permute.xlu0 %2212
  %2214 = vrot.lane.b32.xlu0 %v2042, 20
  %v2215 = vpop.permute.xlu0 %2214
  %2216 = vrot.lane.b32.xlu0 %v2043, 20
  %v2217 = vpop.permute.xlu0 %2216
  %2218 = vrot.lane.b32.xlu0 %v2044, 20
  %v2219 = vpop.permute.xlu0 %2218
  %2220 = vrot.lane.b32.xlu0 %v2045, 20
  %v2221 = vpop.permute.xlu0 %2220
  %2222 = vrot.lane.b32.xlu0 %v2046, 20
  %v2223 = vpop.permute.xlu0 %2222
  %2224 = vrot.lane.b32.xlu0 %v2047, 20
  %v2225 = vpop.permute.xlu0 %2224
  %2226 = vrot.lane.b32.xlu0 %v2048, 20
  %v2227 = vpop.permute.xlu0 %2226
  %2228 = vrot.lane.b32.xlu0 %v2049, 20
  %v2229 = vpop.permute.xlu0 %2228
  %2230 = vrot.lane.b32.xlu0 %v2050, 20
  %v2231 = vpop.permute.xlu0 %2230
  %2232 = vrot.lane.b32.xlu0 %v2051, 20
  %v2233 = vpop.permute.xlu0 %2232
  %2234 = vrot.lane.b32.xlu0 %v2052, 20
  %v2235 = vpop.permute.xlu0 %2234
  %2236 = vrot.lane.b32.xlu0 %v2053, 20
  %v2237 = vpop.permute.xlu0 %2236
  %2238 = vrot.lane.b32.xlu0 %v2054, 20
  %v2239 = vpop.permute.xlu0 %2238
  %2240 = vrot.lane.b32.xlu0 %v2055, 20
  %v2241 = vpop.permute.xlu0 %2240
  %2242 = vrot.lane.b32.xlu0 %v2056, 20
  %v2243 = vpop.permute.xlu0 %2242
  %2244 = vrot.lane.b32.xlu0 %v2057, 20
  %v2245 = vpop.permute.xlu0 %2244
  %2246 = vrot.lane.b32.xlu0 %v2058, 20
  %v2247 = vpop.permute.xlu0 %2246
  %2248 = vrot.lane.b32.xlu0 %v2059, 20
  %v2249 = vpop.permute.xlu0 %2248
  %2250 = vrot.lane.b32.xlu0 %v2060, 20
  %v2251 = vpop.permute.xlu0 %2250
  %2252 = vrot.lane.b32.xlu0 %v2061, 20
  %v2253 = vpop.permute.xlu0 %2252
  %vm2318 = vcmask 195744
  %2319 = vst.msk [vmem:[#allocation3] sm:$0xff] %vm2318, %v2127
  %2320 = vst.msk [vmem:[#allocation3 + $0x8] sm:$0xff] %vm2318, %v2129
  %2321 = vst.msk [vmem:[#allocation3 + $0x10] sm:$0xff] %vm2318, %v2131
  %2322 = vst.msk [vmem:[#allocation3 + $0x18] sm:$0xff] %vm2318, %v2133
  %2323 = vst.msk [vmem:[#allocation3 + $0x20] sm:$0xff] %vm2318, %v2135
  %2324 = vst.msk [vmem:[#allocation3 + $0x28] sm:$0xff] %vm2318, %v2137
  %2325 = vst.msk [vmem:[#allocation3 + $0x30] sm:$0xff] %vm2318, %v2139
  %2326 = vst.msk [vmem:[#allocation3 + $0x38] sm:$0xff] %vm2318, %v2141
  %2327 = vst.msk [vmem:[#allocation3 + $0x40] sm:$0xff] %vm2318, %v2143
  %2328 = vst.msk [vmem:[#allocation3 + $0x48] sm:$0xff] %vm2318, %v2145
  %2329 = vst.msk [vmem:[#allocation3 + $0x50] sm:$0xff] %vm2318, %v2147
  %2330 = vst.msk [vmem:[#allocation3 + $0x58] sm:$0xff] %vm2318, %v2149
  %2331 = vst.msk [vmem:[#allocation3 + $0x60] sm:$0xff] %vm2318, %v2151
  %2332 = vst.msk [vmem:[#allocation3 + $0x68] sm:$0xff] %vm2318, %v2153
  %2333 = vst.msk [vmem:[#allocation3 + $0x70] sm:$0xff] %vm2318, %v2155
  %2334 = vst.msk [vmem:[#allocation3 + $0x78] sm:$0xff] %vm2318, %v2157
  %2335 = vst.msk [vmem:[#allocation3 + $0x80] sm:$0xff] %vm2318, %v2159
  %2336 = vst.msk [vmem:[#allocation3 + $0x88] sm:$0xff] %vm2318, %v2161
  %2337 = vst.msk [vmem:[#allocation3 + $0x90] sm:$0xff] %vm2318, %v2163
  %2338 = vst.msk [vmem:[#allocation3 + $0x98] sm:$0xff] %vm2318, %v2165
  %2339 = vst.msk [vmem:[#allocation3 + $0xa0] sm:$0xff] %vm2318, %v2167
  %2340 = vst.msk [vmem:[#allocation3 + $0xa8] sm:$0xff] %vm2318, %v2169
  %2341 = vst.msk [vmem:[#allocation3 + $0xb0] sm:$0xff] %vm2318, %v2171
  %2342 = vst.msk [vmem:[#allocation3 + $0xb8] sm:$0xff] %vm2318, %v2173
  %2343 = vst.msk [vmem:[#allocation3 + $0xc0] sm:$0xff] %vm2318, %v2175
  %2344 = vst.msk [vmem:[#allocation3 + $0xc8] sm:$0xff] %vm2318, %v2177
  %2345 = vst.msk [vmem:[#allocation3 + $0xd0] sm:$0xff] %vm2318, %v2179
  %2346 = vst.msk [vmem:[#allocation3 + $0xd8] sm:$0xff] %vm2318, %v2181
  %2347 = vst.msk [vmem:[#allocation3 + $0xe0] sm:$0xff] %vm2318, %v2183
  %2348 = vst.msk [vmem:[#allocation3 + $0xe8] sm:$0xff] %vm2318, %v2185
  %2349 = vst.msk [vmem:[#allocation3 + $0xf0] sm:$0xff] %vm2318, %v2187
  %2350 = vst.msk [vmem:[#allocation3 + $0xf8] sm:$0xff] %vm2318, %v2189
  %2351 = vst.msk [vmem:[#allocation3 + $0x100] sm:$0xff] %vm2318, %v2191
  %2352 = vst.msk [vmem:[#allocation3 + $0x108] sm:$0xff] %vm2318, %v2193
  %2353 = vst.msk [vmem:[#allocation3 + $0x110] sm:$0xff] %vm2318, %v2195
  %2354 = vst.msk [vmem:[#allocation3 + $0x118] sm:$0xff] %vm2318, %v2197
  %2355 = vst.msk [vmem:[#allocation3 + $0x120] sm:$0xff] %vm2318, %v2199
  %2356 = vst.msk [vmem:[#allocation3 + $0x128] sm:$0xff] %vm2318, %v2201
  %2357 = vst.msk [vmem:[#allocation3 + $0x130] sm:$0xff] %vm2318, %v2203
  %2358 = vst.msk [vmem:[#allocation3 + $0x138] sm:$0xff] %vm2318, %v2205
  %2359 = vst.msk [vmem:[#allocation3 + $0x140] sm:$0xff] %vm2318, %v2207
  %2360 = vst.msk [vmem:[#allocation3 + $0x148] sm:$0xff] %vm2318, %v2209
  %2361 = vst.msk [vmem:[#allocation3 + $0x150] sm:$0xff] %vm2318, %v2211
  %2362 = vst.msk [vmem:[#allocation3 + $0x158] sm:$0xff] %vm2318, %v2213
  %2363 = vst.msk [vmem:[#allocation3 + $0x160] sm:$0xff] %vm2318, %v2215
  %2364 = vst.msk [vmem:[#allocation3 + $0x168] sm:$0xff] %vm2318, %v2217
  %2365 = vst.msk [vmem:[#allocation3 + $0x170] sm:$0xff] %vm2318, %v2219
  %2366 = vst.msk [vmem:[#allocation3 + $0x178] sm:$0xff] %vm2318, %v2221
  %2367 = vst.msk [vmem:[#allocation3 + $0x180] sm:$0xff] %vm2318, %v2223
  %2368 = vst.msk [vmem:[#allocation3 + $0x188] sm:$0xff] %vm2318, %v2225
  %2369 = vst.msk [vmem:[#allocation3 + $0x190] sm:$0xff] %vm2318, %v2227
  %2370 = vst.msk [vmem:[#allocation3 + $0x198] sm:$0xff] %vm2318, %v2229
  %2371 = vst.msk [vmem:[#allocation3 + $0x1a0] sm:$0xff] %vm2318, %v2231
  %2372 = vst.msk [vmem:[#allocation3 + $0x1a8] sm:$0xff] %vm2318, %v2233
  %2373 = vst.msk [vmem:[#allocation3 + $0x1b0] sm:$0xff] %vm2318, %v2235
  %2374 = vst.msk [vmem:[#allocation3 + $0x1b8] sm:$0xff] %vm2318, %v2237
  %2375 = vst.msk [vmem:[#allocation3 + $0x1c0] sm:$0xff] %vm2318, %v2239
  %2376 = vst.msk [vmem:[#allocation3 + $0x1c8] sm:$0xff] %vm2318, %v2241
  %2377 = vst.msk [vmem:[#allocation3 + $0x1d0] sm:$0xff] %vm2318, %v2243
  %2378 = vst.msk [vmem:[#allocation3 + $0x1d8] sm:$0xff] %vm2318, %v2245
  %2379 = vst.msk [vmem:[#allocation3 + $0x1e0] sm:$0xff] %vm2318, %v2247
  %2380 = vst.msk [vmem:[#allocation3 + $0x1e8] sm:$0xff] %vm2318, %v2249
  %2381 = vst.msk [vmem:[#allocation3 + $0x1f0] sm:$0xff] %vm2318, %v2251
  %2382 = vst.msk [vmem:[#allocation3 + $0x1f8] sm:$0xff] %vm2318, %v2253
  %s2383 = scalar_lea.vmem [#allocation2], 48
  %v2384 = vld [vmem:[%s2383] sm:$0xff]
  %v2385 = vld [vmem:[%s2383 + $0x8] sm:$0xff]
  %v2386 = vld [vmem:[%s2383 + $0x18] sm:$0xff]
  %v2387 = vld [vmem:[%s2383 + $0x20] sm:$0xff]
  %v2388 = vld [vmem:[%s2383 + $0x30] sm:$0xff]
  %v2389 = vld [vmem:[%s2383 + $0x38] sm:$0xff]
  %v2390 = vld [vmem:[%s2383 + $0x48] sm:$0xff]
  %v2391 = vld [vmem:[%s2383 + $0x50] sm:$0xff]
  %v2392 = vld [vmem:[%s2383 + $0x60] sm:$0xff]
  %v2393 = vld [vmem:[%s2383 + $0x68] sm:$0xff]
  %v2394 = vld [vmem:[%s2383 + $0x78] sm:$0xff]
  %v2395 = vld [vmem:[%s2383 + $0x80] sm:$0xff]
  %v2396 = vld [vmem:[%s2383 + $0x90] sm:$0xff]
  %v2397 = vld [vmem:[%s2383 + $0x98] sm:$0xff]
  %v2398 = vld [vmem:[%s2383 + $0xa8] sm:$0xff]
  %v2399 = vld [vmem:[%s2383 + $0xb0] sm:$0xff]
  %v2400 = vld [vmem:[%s2383 + $0xc0] sm:$0xff]
  %v2401 = vld [vmem:[%s2383 + $0xc8] sm:$0xff]
  %v2402 = vld [vmem:[%s2383 + $0xd8] sm:$0xff]
  %v2403 = vld [vmem:[%s2383 + $0xe0] sm:$0xff]
  %v2404 = vld [vmem:[%s2383 + $0xf0] sm:$0xff]
  %v2405 = vld [vmem:[%s2383 + $0xf8] sm:$0xff]
  %v2406 = vld [vmem:[%s2383 + $0x108] sm:$0xff]
  %v2407 = vld [vmem:[%s2383 + $0x110] sm:$0xff]
  %v2408 = vld [vmem:[%s2383 + $0x120] sm:$0xff]
  %v2409 = vld [vmem:[%s2383 + $0x128] sm:$0xff]
  %v2410 = vld [vmem:[%s2383 + $0x138] sm:$0xff]
  %v2411 = vld [vmem:[%s2383 + $0x140] sm:$0xff]
  %v2412 = vld [vmem:[%s2383 + $0x150] sm:$0xff]
  %v2413 = vld [vmem:[%s2383 + $0x158] sm:$0xff]
  %v2414 = vld [vmem:[%s2383 + $0x168] sm:$0xff]
  %v2415 = vld [vmem:[%s2383 + $0x170] sm:$0xff]
  %v2416 = vld [vmem:[%s2383 + $0x1b0] sm:$0xff]
  %v2417 = vld [vmem:[%s2383 + $0x1b8] sm:$0xff]
  %v2418 = vld [vmem:[%s2383 + $0x1c8] sm:$0xff]
  %v2419 = vld [vmem:[%s2383 + $0x1d0] sm:$0xff]
  %v2420 = vld [vmem:[%s2383 + $0x1e0] sm:$0xff]
  %v2421 = vld [vmem:[%s2383 + $0x1e8] sm:$0xff]
  %v2422 = vld [vmem:[%s2383 + $0x1f8] sm:$0xff]
  %v2423 = vld [vmem:[%s2383 + $0x200] sm:$0xff]
  %v2424 = vld [vmem:[%s2383 + $0x210] sm:$0xff]
  %v2425 = vld [vmem:[%s2383 + $0x218] sm:$0xff]
  %v2426 = vld [vmem:[%s2383 + $0x228] sm:$0xff]
  %v2427 = vld [vmem:[%s2383 + $0x230] sm:$0xff]
  %v2428 = vld [vmem:[%s2383 + $0x240] sm:$0xff]
  %v2429 = vld [vmem:[%s2383 + $0x248] sm:$0xff]
  %v2430 = vld [vmem:[%s2383 + $0x258] sm:$0xff]
  %v2431 = vld [vmem:[%s2383 + $0x260] sm:$0xff]
  %v2432 = vld [vmem:[%s2383 + $0x270] sm:$0xff]
  %v2433 = vld [vmem:[%s2383 + $0x278] sm:$0xff]
  %v2434 = vld [vmem:[%s2383 + $0x288] sm:$0xff]
  %v2435 = vld [vmem:[%s2383 + $0x290] sm:$0xff]
  %v2436 = vld [vmem:[%s2383 + $0x2a0] sm:$0xff]
  %v2437 = vld [vmem:[%s2383 + $0x2a8] sm:$0xff]
  %v2438 = vld [vmem:[%s2383 + $0x2b8] sm:$0xff]
  %v2439 = vld [vmem:[%s2383 + $0x2c0] sm:$0xff]
  %v2440 = vld [vmem:[%s2383 + $0x2d0] sm:$0xff]
  %v2441 = vld [vmem:[%s2383 + $0x2d8] sm:$0xff]
  %v2442 = vld [vmem:[%s2383 + $0x2e8] sm:$0xff]
  %v2443 = vld [vmem:[%s2383 + $0x2f0] sm:$0xff]
  %v2444 = vld [vmem:[%s2383 + $0x300] sm:$0xff]
  %v2445 = vld [vmem:[%s2383 + $0x308] sm:$0xff]
  %v2446 = vld [vmem:[%s2383 + $0x318] sm:$0xff]
  %v2447 = vld [vmem:[%s2383 + $0x320] sm:$0xff]
  %2512 = vrot.lane.b32.xlu0 %v2384, 24
  %v2513 = vpop.permute.xlu0 %2512
  %2514 = vrot.lane.b32.xlu0 %v2385, 24
  %v2515 = vpop.permute.xlu0 %2514
  %2516 = vrot.lane.b32.xlu0 %v2386, 24
  %v2517 = vpop.permute.xlu0 %2516
  %2518 = vrot.lane.b32.xlu0 %v2387, 24
  %v2519 = vpop.permute.xlu0 %2518
  %2520 = vrot.lane.b32.xlu0 %v2388, 24
  %v2521 = vpop.permute.xlu0 %2520
  %2522 = vrot.lane.b32.xlu0 %v2389, 24
  %v2523 = vpop.permute.xlu0 %2522
  %2524 = vrot.lane.b32.xlu0 %v2390, 24
  %v2525 = vpop.permute.xlu0 %2524
  %2526 = vrot.lane.b32.xlu0 %v2391, 24
  %v2527 = vpop.permute.xlu0 %2526
  %2528 = vrot.lane.b32.xlu0 %v2392, 24
  %v2529 = vpop.permute.xlu0 %2528
  %2530 = vrot.lane.b32.xlu0 %v2393, 24
  %v2531 = vpop.permute.xlu0 %2530
  %2532 = vrot.lane.b32.xlu0 %v2394, 24
  %v2533 = vpop.permute.xlu0 %2532
  %2534 = vrot.lane.b32.xlu0 %v2395, 24
  %v2535 = vpop.permute.xlu0 %2534
  %2536 = vrot.lane.b32.xlu0 %v2396, 24
  %v2537 = vpop.permute.xlu0 %2536
  %2538 = vrot.lane.b32.xlu0 %v2397, 24
  %v2539 = vpop.permute.xlu0 %2538
  %2540 = vrot.lane.b32.xlu0 %v2398, 24
  %v2541 = vpop.permute.xlu0 %2540
  %2542 = vrot.lane.b32.xlu0 %v2399, 24
  %v2543 = vpop.permute.xlu0 %2542
  %2544 = vrot.lane.b32.xlu0 %v2400, 24
  %v2545 = vpop.permute.xlu0 %2544
  %2546 = vrot.lane.b32.xlu0 %v2401, 24
  %v2547 = vpop.permute.xlu0 %2546
  %2548 = vrot.lane.b32.xlu0 %v2402, 24
  %v2549 = vpop.permute.xlu0 %2548
  %2550 = vrot.lane.b32.xlu0 %v2403, 24
  %v2551 = vpop.permute.xlu0 %2550
  %2552 = vrot.lane.b32.xlu0 %v2404, 24
  %v2553 = vpop.permute.xlu0 %2552
  %2554 = vrot.lane.b32.xlu0 %v2405, 24
  %v2555 = vpop.permute.xlu0 %2554
  %2556 = vrot.lane.b32.xlu0 %v2406, 24
  %v2557 = vpop.permute.xlu0 %2556
  %2558 = vrot.lane.b32.xlu0 %v2407, 24
  %v2559 = vpop.permute.xlu0 %2558
  %2560 = vrot.lane.b32.xlu0 %v2408, 24
  %v2561 = vpop.permute.xlu0 %2560
  %2562 = vrot.lane.b32.xlu0 %v2409, 24
  %v2563 = vpop.permute.xlu0 %2562
  %2564 = vrot.lane.b32.xlu0 %v2410, 24
  %v2565 = vpop.permute.xlu0 %2564
  %2566 = vrot.lane.b32.xlu0 %v2411, 24
  %v2567 = vpop.permute.xlu0 %2566
  %2568 = vrot.lane.b32.xlu0 %v2412, 24
  %v2569 = vpop.permute.xlu0 %2568
  %2570 = vrot.lane.b32.xlu0 %v2413, 24
  %v2571 = vpop.permute.xlu0 %2570
  %2572 = vrot.lane.b32.xlu0 %v2414, 24
  %v2573 = vpop.permute.xlu0 %2572
  %2574 = vrot.lane.b32.xlu0 %v2415, 24
  %v2575 = vpop.permute.xlu0 %2574
  %2576 = vrot.lane.b32.xlu0 %v2416, 24
  %v2577 = vpop.permute.xlu0 %2576
  %2578 = vrot.lane.b32.xlu0 %v2417, 24
  %v2579 = vpop.permute.xlu0 %2578
  %2580 = vrot.lane.b32.xlu0 %v2418, 24
  %v2581 = vpop.permute.xlu0 %2580
  %2582 = vrot.lane.b32.xlu0 %v2419, 24
  %v2583 = vpop.permute.xlu0 %2582
  %2584 = vrot.lane.b32.xlu0 %v2420, 24
  %v2585 = vpop.permute.xlu0 %2584
  %2586 = vrot.lane.b32.xlu0 %v2421, 24
  %v2587 = vpop.permute.xlu0 %2586
  %2588 = vrot.lane.b32.xlu0 %v2422, 24
  %v2589 = vpop.permute.xlu0 %2588
  %2590 = vrot.lane.b32.xlu0 %v2423, 24
  %v2591 = vpop.permute.xlu0 %2590
  %2592 = vrot.lane.b32.xlu0 %v2424, 24
  %v2593 = vpop.permute.xlu0 %2592
  %2594 = vrot.lane.b32.xlu0 %v2425, 24
  %v2595 = vpop.permute.xlu0 %2594
  %2596 = vrot.lane.b32.xlu0 %v2426, 24
  %v2597 = vpop.permute.xlu0 %2596
  %2598 = vrot.lane.b32.xlu0 %v2427, 24
  %v2599 = vpop.permute.xlu0 %2598
  %2600 = vrot.lane.b32.xlu0 %v2428, 24
  %v2601 = vpop.permute.xlu0 %2600
  %2602 = vrot.lane.b32.xlu0 %v2429, 24
  %v2603 = vpop.permute.xlu0 %2602
  %2604 = vrot.lane.b32.xlu0 %v2430, 24
  %v2605 = vpop.permute.xlu0 %2604
  %2606 = vrot.lane.b32.xlu0 %v2431, 24
  %v2607 = vpop.permute.xlu0 %2606
  %2608 = vrot.lane.b32.xlu0 %v2432, 24
  %v2609 = vpop.permute.xlu0 %2608
  %2610 = vrot.lane.b32.xlu0 %v2433, 24
  %v2611 = vpop.permute.xlu0 %2610
  %2612 = vrot.lane.b32.xlu0 %v2434, 24
  %v2613 = vpop.permute.xlu0 %2612
  %2614 = vrot.lane.b32.xlu0 %v2435, 24
  %v2615 = vpop.permute.xlu0 %2614
  %2616 = vrot.lane.b32.xlu0 %v2436, 24
  %v2617 = vpop.permute.xlu0 %2616
  %2618 = vrot.lane.b32.xlu0 %v2437, 24
  %v2619 = vpop.permute.xlu0 %2618
  %2620 = vrot.lane.b32.xlu0 %v2438, 24
  %v2621 = vpop.permute.xlu0 %2620
  %2622 = vrot.lane.b32.xlu0 %v2439, 24
  %v2623 = vpop.permute.xlu0 %2622
  %2624 = vrot.lane.b32.xlu0 %v2440, 24
  %v2625 = vpop.permute.xlu0 %2624
  %2626 = vrot.lane.b32.xlu0 %v2441, 24
  %v2627 = vpop.permute.xlu0 %2626
  %2628 = vrot.lane.b32.xlu0 %v2442, 24
  %v2629 = vpop.permute.xlu0 %2628
  %2630 = vrot.lane.b32.xlu0 %v2443, 24
  %v2631 = vpop.permute.xlu0 %2630
  %2632 = vrot.lane.b32.xlu0 %v2444, 24
  %v2633 = vpop.permute.xlu0 %2632
  %2634 = vrot.lane.b32.xlu0 %v2445, 24
  %v2635 = vpop.permute.xlu0 %2634
  %2636 = vrot.lane.b32.xlu0 %v2446, 24
  %v2637 = vpop.permute.xlu0 %2636
  %2638 = vrot.lane.b32.xlu0 %v2447, 24
  %v2639 = vpop.permute.xlu0 %2638
  %vm2704 = vcmask 228544
  %2705 = vst.msk [vmem:[#allocation3] sm:$0xff] %vm2704, %v2513
  %2706 = vst.msk [vmem:[#allocation3 + $0x8] sm:$0xff] %vm2704, %v2515
  %2707 = vst.msk [vmem:[#allocation3 + $0x10] sm:$0xff] %vm2704, %v2517
  %2708 = vst.msk [vmem:[#allocation3 + $0x18] sm:$0xff] %vm2704, %v2519
  %2709 = vst.msk [vmem:[#allocation3 + $0x20] sm:$0xff] %vm2704, %v2521
  %2710 = vst.msk [vmem:[#allocation3 + $0x28] sm:$0xff] %vm2704, %v2523
  %2711 = vst.msk [vmem:[#allocation3 + $0x30] sm:$0xff] %vm2704, %v2525
  %2712 = vst.msk [vmem:[#allocation3 + $0x38] sm:$0xff] %vm2704, %v2527
  %2713 = vst.msk [vmem:[#allocation3 + $0x40] sm:$0xff] %vm2704, %v2529
  %2714 = vst.msk [vmem:[#allocation3 + $0x48] sm:$0xff] %vm2704, %v2531
  %2715 = vst.msk [vmem:[#allocation3 + $0x50] sm:$0xff] %vm2704, %v2533
  %2716 = vst.msk [vmem:[#allocation3 + $0x58] sm:$0xff] %vm2704, %v2535
  %2717 = vst.msk [vmem:[#allocation3 + $0x60] sm:$0xff] %vm2704, %v2537
  %2718 = vst.msk [vmem:[#allocation3 + $0x68] sm:$0xff] %vm2704, %v2539
  %2719 = vst.msk [vmem:[#allocation3 + $0x70] sm:$0xff] %vm2704, %v2541
  %2720 = vst.msk [vmem:[#allocation3 + $0x78] sm:$0xff] %vm2704, %v2543
  %2721 = vst.msk [vmem:[#allocation3 + $0x80] sm:$0xff] %vm2704, %v2545
  %2722 = vst.msk [vmem:[#allocation3 + $0x88] sm:$0xff] %vm2704, %v2547
  %2723 = vst.msk [vmem:[#allocation3 + $0x90] sm:$0xff] %vm2704, %v2549
  %2724 = vst.msk [vmem:[#allocation3 + $0x98] sm:$0xff] %vm2704, %v2551
  %2725 = vst.msk [vmem:[#allocation3 + $0xa0] sm:$0xff] %vm2704, %v2553
  %2726 = vst.msk [vmem:[#allocation3 + $0xa8] sm:$0xff] %vm2704, %v2555
  %2727 = vst.msk [vmem:[#allocation3 + $0xb0] sm:$0xff] %vm2704, %v2557
  %2728 = vst.msk [vmem:[#allocation3 + $0xb8] sm:$0xff] %vm2704, %v2559
  %2729 = vst.msk [vmem:[#allocation3 + $0xc0] sm:$0xff] %vm2704, %v2561
  %2730 = vst.msk [vmem:[#allocation3 + $0xc8] sm:$0xff] %vm2704, %v2563
  %2731 = vst.msk [vmem:[#allocation3 + $0xd0] sm:$0xff] %vm2704, %v2565
  %2732 = vst.msk [vmem:[#allocation3 + $0xd8] sm:$0xff] %vm2704, %v2567
  %2733 = vst.msk [vmem:[#allocation3 + $0xe0] sm:$0xff] %vm2704, %v2569
  %2734 = vst.msk [vmem:[#allocation3 + $0xe8] sm:$0xff] %vm2704, %v2571
  %2735 = vst.msk [vmem:[#allocation3 + $0xf0] sm:$0xff] %vm2704, %v2573
  %2736 = vst.msk [vmem:[#allocation3 + $0xf8] sm:$0xff] %vm2704, %v2575
  %2737 = vst.msk [vmem:[#allocation3 + $0x100] sm:$0xff] %vm2704, %v2577
  %2738 = vst.msk [vmem:[#allocation3 + $0x108] sm:$0xff] %vm2704, %v2579
  %2739 = vst.msk [vmem:[#allocation3 + $0x110] sm:$0xff] %vm2704, %v2581
  %2740 = vst.msk [vmem:[#allocation3 + $0x118] sm:$0xff] %vm2704, %v2583
  %2741 = vst.msk [vmem:[#allocation3 + $0x120] sm:$0xff] %vm2704, %v2585
  %2742 = vst.msk [vmem:[#allocation3 + $0x128] sm:$0xff] %vm2704, %v2587
  %2743 = vst.msk [vmem:[#allocation3 + $0x130] sm:$0xff] %vm2704, %v2589
  %2744 = vst.msk [vmem:[#allocation3 + $0x138] sm:$0xff] %vm2704, %v2591
  %2745 = vst.msk [vmem:[#allocation3 + $0x140] sm:$0xff] %vm2704, %v2593
  %2746 = vst.msk [vmem:[#allocation3 + $0x148] sm:$0xff] %vm2704, %v2595
  %2747 = vst.msk [vmem:[#allocation3 + $0x150] sm:$0xff] %vm2704, %v2597
  %2748 = vst.msk [vmem:[#allocation3 + $0x158] sm:$0xff] %vm2704, %v2599
  %2749 = vst.msk [vmem:[#allocation3 + $0x160] sm:$0xff] %vm2704, %v2601
  %2750 = vst.msk [vmem:[#allocation3 + $0x168] sm:$0xff] %vm2704, %v2603
  %2751 = vst.msk [vmem:[#allocation3 + $0x170] sm:$0xff] %vm2704, %v2605
  %2752 = vst.msk [vmem:[#allocation3 + $0x178] sm:$0xff] %vm2704, %v2607
  %2753 = vst.msk [vmem:[#allocation3 + $0x180] sm:$0xff] %vm2704, %v2609
  %2754 = vst.msk [vmem:[#allocation3 + $0x188] sm:$0xff] %vm2704, %v2611
  %2755 = vst.msk [vmem:[#allocation3 + $0x190] sm:$0xff] %vm2704, %v2613
  %2756 = vst.msk [vmem:[#allocation3 + $0x198] sm:$0xff] %vm2704, %v2615
  %2757 = vst.msk [vmem:[#allocation3 + $0x1a0] sm:$0xff] %vm2704, %v2617
  %2758 = vst.msk [vmem:[#allocation3 + $0x1a8] sm:$0xff] %vm2704, %v2619
  %2759 = vst.msk [vmem:[#allocation3 + $0x1b0] sm:$0xff] %vm2704, %v2621
  %2760 = vst.msk [vmem:[#allocation3 + $0x1b8] sm:$0xff] %vm2704, %v2623
  %2761 = vst.msk [vmem:[#allocation3 + $0x1c0] sm:$0xff] %vm2704, %v2625
  %2762 = vst.msk [vmem:[#allocation3 + $0x1c8] sm:$0xff] %vm2704, %v2627
  %2763 = vst.msk [vmem:[#allocation3 + $0x1d0] sm:$0xff] %vm2704, %v2629
  %2764 = vst.msk [vmem:[#allocation3 + $0x1d8] sm:$0xff] %vm2704, %v2631
  %2765 = vst.msk [vmem:[#allocation3 + $0x1e0] sm:$0xff] %vm2704, %v2633
  %2766 = vst.msk [vmem:[#allocation3 + $0x1e8] sm:$0xff] %vm2704, %v2635
  %2767 = vst.msk [vmem:[#allocation3 + $0x1f0] sm:$0xff] %vm2704, %v2637
  %2768 = vst.msk [vmem:[#allocation3 + $0x1f8] sm:$0xff] %vm2704, %v2639
  %v2769 = vld [vmem:[%s2383 + $0x1] sm:$0xff]
  %v2770 = vld [vmem:[%s2383 + $0x9] sm:$0xff]
  %v2771 = vld [vmem:[%s2383 + $0x19] sm:$0xff]
  %v2772 = vld [vmem:[%s2383 + $0x21] sm:$0xff]
  %v2773 = vld [vmem:[%s2383 + $0x31] sm:$0xff]
  %v2774 = vld [vmem:[%s2383 + $0x39] sm:$0xff]
  %v2775 = vld [vmem:[%s2383 + $0x49] sm:$0xff]
  %v2776 = vld [vmem:[%s2383 + $0x51] sm:$0xff]
  %v2777 = vld [vmem:[%s2383 + $0x61] sm:$0xff]
  %v2778 = vld [vmem:[%s2383 + $0x69] sm:$0xff]
  %v2779 = vld [vmem:[%s2383 + $0x79] sm:$0xff]
  %v2780 = vld [vmem:[%s2383 + $0x81] sm:$0xff]
  %v2781 = vld [vmem:[%s2383 + $0x91] sm:$0xff]
  %v2782 = vld [vmem:[%s2383 + $0x99] sm:$0xff]
  %v2783 = vld [vmem:[%s2383 + $0xa9] sm:$0xff]
  %v2784 = vld [vmem:[%s2383 + $0xb1] sm:$0xff]
  %v2785 = vld [vmem:[%s2383 + $0xc1] sm:$0xff]
  %v2786 = vld [vmem:[%s2383 + $0xc9] sm:$0xff]
  %v2787 = vld [vmem:[%s2383 + $0xd9] sm:$0xff]
  %v2788 = vld [vmem:[%s2383 + $0xe1] sm:$0xff]
  %v2789 = vld [vmem:[%s2383 + $0xf1] sm:$0xff]
  %v2790 = vld [vmem:[%s2383 + $0xf9] sm:$0xff]
  %v2791 = vld [vmem:[%s2383 + $0x109] sm:$0xff]
  %v2792 = vld [vmem:[%s2383 + $0x111] sm:$0xff]
  %v2793 = vld [vmem:[%s2383 + $0x121] sm:$0xff]
  %v2794 = vld [vmem:[%s2383 + $0x129] sm:$0xff]
  %v2795 = vld [vmem:[%s2383 + $0x139] sm:$0xff]
  %v2796 = vld [vmem:[%s2383 + $0x141] sm:$0xff]
  %v2797 = vld [vmem:[%s2383 + $0x151] sm:$0xff]
  %v2798 = vld [vmem:[%s2383 + $0x159] sm:$0xff]
  %v2799 = vld [vmem:[%s2383 + $0x169] sm:$0xff]
  %v2800 = vld [vmem:[%s2383 + $0x171] sm:$0xff]
  %v2801 = vld [vmem:[%s2383 + $0x1b1] sm:$0xff]
  %v2802 = vld [vmem:[%s2383 + $0x1b9] sm:$0xff]
  %v2803 = vld [vmem:[%s2383 + $0x1c9] sm:$0xff]
  %v2804 = vld [vmem:[%s2383 + $0x1d1] sm:$0xff]
  %v2805 = vld [vmem:[%s2383 + $0x1e1] sm:$0xff]
  %v2806 = vld [vmem:[%s2383 + $0x1e9] sm:$0xff]
  %v2807 = vld [vmem:[%s2383 + $0x1f9] sm:$0xff]
  %v2808 = vld [vmem:[%s2383 + $0x201] sm:$0xff]
  %v2809 = vld [vmem:[%s2383 + $0x211] sm:$0xff]
  %v2810 = vld [vmem:[%s2383 + $0x219] sm:$0xff]
  %v2811 = vld [vmem:[%s2383 + $0x229] sm:$0xff]
  %v2812 = vld [vmem:[%s2383 + $0x231] sm:$0xff]
  %v2813 = vld [vmem:[%s2383 + $0x241] sm:$0xff]
  %v2814 = vld [vmem:[%s2383 + $0x249] sm:$0xff]
  %v2815 = vld [vmem:[%s2383 + $0x259] sm:$0xff]
  %v2816 = vld [vmem:[%s2383 + $0x261] sm:$0xff]
  %v2817 = vld [vmem:[%s2383 + $0x271] sm:$0xff]
  %v2818 = vld [vmem:[%s2383 + $0x279] sm:$0xff]
  %v2819 = vld [vmem:[%s2383 + $0x289] sm:$0xff]
  %v2820 = vld [vmem:[%s2383 + $0x291] sm:$0xff]
  %v2821 = vld [vmem:[%s2383 + $0x2a1] sm:$0xff]
  %v2822 = vld [vmem:[%s2383 + $0x2a9] sm:$0xff]
  %v2823 = vld [vmem:[%s2383 + $0x2b9] sm:$0xff]
  %v2824 = vld [vmem:[%s2383 + $0x2c1] sm:$0xff]
  %v2825 = vld [vmem:[%s2383 + $0x2d1] sm:$0xff]
  %v2826 = vld [vmem:[%s2383 + $0x2d9] sm:$0xff]
  %v2827 = vld [vmem:[%s2383 + $0x2e9] sm:$0xff]
  %v2828 = vld [vmem:[%s2383 + $0x2f1] sm:$0xff]
  %v2829 = vld [vmem:[%s2383 + $0x301] sm:$0xff]
  %v2830 = vld [vmem:[%s2383 + $0x309] sm:$0xff]
  %v2831 = vld [vmem:[%s2383 + $0x319] sm:$0xff]
  %v2832 = vld [vmem:[%s2383 + $0x321] sm:$0xff]
  %2897 = vrot.lane.b32.xlu0 %v2769, 28
  %v2898 = vpop.permute.xlu0 %2897
  %2899 = vrot.lane.b32.xlu0 %v2770, 28
  %v2900 = vpop.permute.xlu0 %2899
  %2901 = vrot.lane.b32.xlu0 %v2771, 28
  %v2902 = vpop.permute.xlu0 %2901
  %2903 = vrot.lane.b32.xlu0 %v2772, 28
  %v2904 = vpop.permute.xlu0 %2903
  %2905 = vrot.lane.b32.xlu0 %v2773, 28
  %v2906 = vpop.permute.xlu0 %2905
  %2907 = vrot.lane.b32.xlu0 %v2774, 28
  %v2908 = vpop.permute.xlu0 %2907
  %2909 = vrot.lane.b32.xlu0 %v2775, 28
  %v2910 = vpop.permute.xlu0 %2909
  %2911 = vrot.lane.b32.xlu0 %v2776, 28
  %v2912 = vpop.permute.xlu0 %2911
  %2913 = vrot.lane.b32.xlu0 %v2777, 28
  %v2914 = vpop.permute.xlu0 %2913
  %2915 = vrot.lane.b32.xlu0 %v2778, 28
  %v2916 = vpop.permute.xlu0 %2915
  %2917 = vrot.lane.b32.xlu0 %v2779, 28
  %v2918 = vpop.permute.xlu0 %2917
  %2919 = vrot.lane.b32.xlu0 %v2780, 28
  %v2920 = vpop.permute.xlu0 %2919
  %2921 = vrot.lane.b32.xlu0 %v2781, 28
  %v2922 = vpop.permute.xlu0 %2921
  %2923 = vrot.lane.b32.xlu0 %v2782, 28
  %v2924 = vpop.permute.xlu0 %2923
  %2925 = vrot.lane.b32.xlu0 %v2783, 28
  %v2926 = vpop.permute.xlu0 %2925
  %2927 = vrot.lane.b32.xlu0 %v2784, 28
  %v2928 = vpop.permute.xlu0 %2927
  %2929 = vrot.lane.b32.xlu0 %v2785, 28
  %v2930 = vpop.permute.xlu0 %2929
  %2931 = vrot.lane.b32.xlu0 %v2786, 28
  %v2932 = vpop.permute.xlu0 %2931
  %2933 = vrot.lane.b32.xlu0 %v2787, 28
  %v2934 = vpop.permute.xlu0 %2933
  %2935 = vrot.lane.b32.xlu0 %v2788, 28
  %v2936 = vpop.permute.xlu0 %2935
  %2937 = vrot.lane.b32.xlu0 %v2789, 28
  %v2938 = vpop.permute.xlu0 %2937
  %2939 = vrot.lane.b32.xlu0 %v2790, 28
  %v2940 = vpop.permute.xlu0 %2939
  %2941 = vrot.lane.b32.xlu0 %v2791, 28
  %v2942 = vpop.permute.xlu0 %2941
  %2943 = vrot.lane.b32.xlu0 %v2792, 28
  %v2944 = vpop.permute.xlu0 %2943
  %2945 = vrot.lane.b32.xlu0 %v2793, 28
  %v2946 = vpop.permute.xlu0 %2945
  %2947 = vrot.lane.b32.xlu0 %v2794, 28
  %v2948 = vpop.permute.xlu0 %2947
  %2949 = vrot.lane.b32.xlu0 %v2795, 28
  %v2950 = vpop.permute.xlu0 %2949
  %2951 = vrot.lane.b32.xlu0 %v2796, 28
  %v2952 = vpop.permute.xlu0 %2951
  %2953 = vrot.lane.b32.xlu0 %v2797, 28
  %v2954 = vpop.permute.xlu0 %2953
  %2955 = vrot.lane.b32.xlu0 %v2798, 28
  %v2956 = vpop.permute.xlu0 %2955
  %2957 = vrot.lane.b32.xlu0 %v2799, 28
  %v2958 = vpop.permute.xlu0 %2957
  %2959 = vrot.lane.b32.xlu0 %v2800, 28
  %v2960 = vpop.permute.xlu0 %2959
  %2961 = vrot.lane.b32.xlu0 %v2801, 28
  %v2962 = vpop.permute.xlu0 %2961
  %2963 = vrot.lane.b32.xlu0 %v2802, 28
  %v2964 = vpop.permute.xlu0 %2963
  %2965 = vrot.lane.b32.xlu0 %v2803, 28
  %v2966 = vpop.permute.xlu0 %2965
  %2967 = vrot.lane.b32.xlu0 %v2804, 28
  %v2968 = vpop.permute.xlu0 %2967
  %2969 = vrot.lane.b32.xlu0 %v2805, 28
  %v2970 = vpop.permute.xlu0 %2969
  %2971 = vrot.lane.b32.xlu0 %v2806, 28
  %v2972 = vpop.permute.xlu0 %2971
  %2973 = vrot.lane.b32.xlu0 %v2807, 28
  %v2974 = vpop.permute.xlu0 %2973
  %2975 = vrot.lane.b32.xlu0 %v2808, 28
  %v2976 = vpop.permute.xlu0 %2975
  %2977 = vrot.lane.b32.xlu0 %v2809, 28
  %v2978 = vpop.permute.xlu0 %2977
  %2979 = vrot.lane.b32.xlu0 %v2810, 28
  %v2980 = vpop.permute.xlu0 %2979
  %2981 = vrot.lane.b32.xlu0 %v2811, 28
  %v2982 = vpop.permute.xlu0 %2981
  %2983 = vrot.lane.b32.xlu0 %v2812, 28
  %v2984 = vpop.permute.xlu0 %2983
  %2985 = vrot.lane.b32.xlu0 %v2813, 28
  %v2986 = vpop.permute.xlu0 %2985
  %2987 = vrot.lane.b32.xlu0 %v2814, 28
  %v2988 = vpop.permute.xlu0 %2987
  %2989 = vrot.lane.b32.xlu0 %v2815, 28
  %v2990 = vpop.permute.xlu0 %2989
  %2991 = vrot.lane.b32.xlu0 %v2816, 28
  %v2992 = vpop.permute.xlu0 %2991
  %2993 = vrot.lane.b32.xlu0 %v2817, 28
  %v2994 = vpop.permute.xlu0 %2993
  %2995 = vrot.lane.b32.xlu0 %v2818, 28
  %v2996 = vpop.permute.xlu0 %2995
  %2997 = vrot.lane.b32.xlu0 %v2819, 28
  %v2998 = vpop.permute.xlu0 %2997
  %2999 = vrot.lane.b32.xlu0 %v2820, 28
  %v3000 = vpop.permute.xlu0 %2999
  %3001 = vrot.lane.b32.xlu0 %v2821, 28
  %v3002 = vpop.permute.xlu0 %3001
  %3003 = vrot.lane.b32.xlu0 %v2822, 28
  %v3004 = vpop.permute.xlu0 %3003
  %3005 = vrot.lane.b32.xlu0 %v2823, 28
  %v3006 = vpop.permute.xlu0 %3005
  %3007 = vrot.lane.b32.xlu0 %v2824, 28
  %v3008 = vpop.permute.xlu0 %3007
  %3009 = vrot.lane.b32.xlu0 %v2825, 28
  %v3010 = vpop.permute.xlu0 %3009
  %3011 = vrot.lane.b32.xlu0 %v2826, 28
  %v3012 = vpop.permute.xlu0 %3011
  %3013 = vrot.lane.b32.xlu0 %v2827, 28
  %v3014 = vpop.permute.xlu0 %3013
  %3015 = vrot.lane.b32.xlu0 %v2828, 28
  %v3016 = vpop.permute.xlu0 %3015
  %3017 = vrot.lane.b32.xlu0 %v2829, 28
  %v3018 = vpop.permute.xlu0 %3017
  %3019 = vrot.lane.b32.xlu0 %v2830, 28
  %v3020 = vpop.permute.xlu0 %3019
  %3021 = vrot.lane.b32.xlu0 %v2831, 28
  %v3022 = vpop.permute.xlu0 %3021
  %3023 = vrot.lane.b32.xlu0 %v2832, 28
  %v3024 = vpop.permute.xlu0 %3023
  %vm3089 = vcmask 261344
  %3090 = vst.msk [vmem:[#allocation3] sm:$0xff] %vm3089, %v2898
  %3091 = vst.msk [vmem:[#allocation3 + $0x8] sm:$0xff] %vm3089, %v2900
  %3092 = vst.msk [vmem:[#allocation3 + $0x10] sm:$0xff] %vm3089, %v2902
  %3093 = vst.msk [vmem:[#allocation3 + $0x18] sm:$0xff] %vm3089, %v2904
  %3094 = vst.msk [vmem:[#allocation3 + $0x20] sm:$0xff] %vm3089, %v2906
  %3095 = vst.msk [vmem:[#allocation3 + $0x28] sm:$0xff] %vm3089, %v2908
  %3096 = vst.msk [vmem:[#allocation3 + $0x30] sm:$0xff] %vm3089, %v2910
  %3097 = vst.msk [vmem:[#allocation3 + $0x38] sm:$0xff] %vm3089, %v2912
  %3098 = vst.msk [vmem:[#allocation3 + $0x40] sm:$0xff] %vm3089, %v2914
  %3099 = vst.msk [vmem:[#allocation3 + $0x48] sm:$0xff] %vm3089, %v2916
  %3100 = vst.msk [vmem:[#allocation3 + $0x50] sm:$0xff] %vm3089, %v2918
  %3101 = vst.msk [vmem:[#allocation3 + $0x58] sm:$0xff] %vm3089, %v2920
  %3102 = vst.msk [vmem:[#allocation3 + $0x60] sm:$0xff] %vm3089, %v2922
  %3103 = vst.msk [vmem:[#allocation3 + $0x68] sm:$0xff] %vm3089, %v2924
  %3104 = vst.msk [vmem:[#allocation3 + $0x70] sm:$0xff] %vm3089, %v2926
  %3105 = vst.msk [vmem:[#allocation3 + $0x78] sm:$0xff] %vm3089, %v2928
  %3106 = vst.msk [vmem:[#allocation3 + $0x80] sm:$0xff] %vm3089, %v2930
  %3107 = vst.msk [vmem:[#allocation3 + $0x88] sm:$0xff] %vm3089, %v2932
  %3108 = vst.msk [vmem:[#allocation3 + $0x90] sm:$0xff] %vm3089, %v2934
  %3109 = vst.msk [vmem:[#allocation3 + $0x98] sm:$0xff] %vm3089, %v2936
  %3110 = vst.msk [vmem:[#allocation3 + $0xa0] sm:$0xff] %vm3089, %v2938
  %3111 = vst.msk [vmem:[#allocation3 + $0xa8] sm:$0xff] %vm3089, %v2940
  %3112 = vst.msk [vmem:[#allocation3 + $0xb0] sm:$0xff] %vm3089, %v2942
  %3113 = vst.msk [vmem:[#allocation3 + $0xb8] sm:$0xff] %vm3089, %v2944
  %3114 = vst.msk [vmem:[#allocation3 + $0xc0] sm:$0xff] %vm3089, %v2946
  %3115 = vst.msk [vmem:[#allocation3 + $0xc8] sm:$0xff] %vm3089, %v2948
  %3116 = vst.msk [vmem:[#allocation3 + $0xd0] sm:$0xff] %vm3089, %v2950
  %3117 = vst.msk [vmem:[#allocation3 + $0xd8] sm:$0xff] %vm3089, %v2952
  %3118 = vst.msk [vmem:[#allocation3 + $0xe0] sm:$0xff] %vm3089, %v2954
  %3119 = vst.msk [vmem:[#allocation3 + $0xe8] sm:$0xff] %vm3089, %v2956
  %3120 = vst.msk [vmem:[#allocation3 + $0xf0] sm:$0xff] %vm3089, %v2958
  %3121 = vst.msk [vmem:[#allocation3 + $0xf8] sm:$0xff] %vm3089, %v2960
  %3122 = vst.msk [vmem:[#allocation3 + $0x100] sm:$0xff] %vm3089, %v2962
  %3123 = vst.msk [vmem:[#allocation3 + $0x108] sm:$0xff] %vm3089, %v2964
  %3124 = vst.msk [vmem:[#allocation3 + $0x110] sm:$0xff] %vm3089, %v2966
  %3125 = vst.msk [vmem:[#allocation3 + $0x118] sm:$0xff] %vm3089, %v2968
  %3126 = vst.msk [vmem:[#allocation3 + $0x120] sm:$0xff] %vm3089, %v2970
  %3127 = vst.msk [vmem:[#allocation3 + $0x128] sm:$0xff] %vm3089, %v2972
  %3128 = vst.msk [vmem:[#allocation3 + $0x130] sm:$0xff] %vm3089, %v2974
  %3129 = vst.msk [vmem:[#allocation3 + $0x138] sm:$0xff] %vm3089, %v2976
  %3130 = vst.msk [vmem:[#allocation3 + $0x140] sm:$0xff] %vm3089, %v2978
  %3131 = vst.msk [vmem:[#allocation3 + $0x148] sm:$0xff] %vm3089, %v2980
  %3132 = vst.msk [vmem:[#allocation3 + $0x150] sm:$0xff] %vm3089, %v2982
  %3133 = vst.msk [vmem:[#allocation3 + $0x158] sm:$0xff] %vm3089, %v2984
  %3134 = vst.msk [vmem:[#allocation3 + $0x160] sm:$0xff] %vm3089, %v2986
  %3135 = vst.msk [vmem:[#allocation3 + $0x168] sm:$0xff] %vm3089, %v2988
  %3136 = vst.msk [vmem:[#allocation3 + $0x170] sm:$0xff] %vm3089, %v2990
  %3137 = vst.msk [vmem:[#allocation3 + $0x178] sm:$0xff] %vm3089, %v2992
  %3138 = vst.msk [vmem:[#allocation3 + $0x180] sm:$0xff] %vm3089, %v2994
  %3139 = vst.msk [vmem:[#allocation3 + $0x188] sm:$0xff] %vm3089, %v2996
  %3140 = vst.msk [vmem:[#allocation3 + $0x190] sm:$0xff] %vm3089, %v2998
  %3141 = vst.msk [vmem:[#allocation3 + $0x198] sm:$0xff] %vm3089, %v3000
  %3142 = vst.msk [vmem:[#allocation3 + $0x1a0] sm:$0xff] %vm3089, %v3002
  %3143 = vst.msk [vmem:[#allocation3 + $0x1a8] sm:$0xff] %vm3089, %v3004
  %3144 = vst.msk [vmem:[#allocation3 + $0x1b0] sm:$0xff] %vm3089, %v3006
  %3145 = vst.msk [vmem:[#allocation3 + $0x1b8] sm:$0xff] %vm3089, %v3008
  %3146 = vst.msk [vmem:[#allocation3 + $0x1c0] sm:$0xff] %vm3089, %v3010
  %3147 = vst.msk [vmem:[#allocation3 + $0x1c8] sm:$0xff] %vm3089, %v3012
  %3148 = vst.msk [vmem:[#allocation3 + $0x1d0] sm:$0xff] %vm3089, %v3014
  %3149 = vst.msk [vmem:[#allocation3 + $0x1d8] sm:$0xff] %vm3089, %v3016
  %3150 = vst.msk [vmem:[#allocation3 + $0x1e0] sm:$0xff] %vm3089, %v3018
  %3151 = vst.msk [vmem:[#allocation3 + $0x1e8] sm:$0xff] %vm3089, %v3020
  %3152 = vst.msk [vmem:[#allocation3 + $0x1f0] sm:$0xff] %vm3089, %v3022
  %3153 = vst.msk [vmem:[#allocation3 + $0x1f8] sm:$0xff] %vm3089, %v3024
  %v3154 = vld [vmem:[%s2383 + $0x2] sm:$0xff]
  %v3155 = vld [vmem:[%s2383 + $0xa] sm:$0xff]
  %v3156 = vld [vmem:[%s2383 + $0x1a] sm:$0xff]
  %v3157 = vld [vmem:[%s2383 + $0x22] sm:$0xff]
  %v3158 = vld [vmem:[%s2383 + $0x32] sm:$0xff]
  %v3159 = vld [vmem:[%s2383 + $0x3a] sm:$0xff]
  %v3160 = vld [vmem:[%s2383 + $0x4a] sm:$0xff]
  %v3161 = vld [vmem:[%s2383 + $0x52] sm:$0xff]
  %v3162 = vld [vmem:[%s2383 + $0x62] sm:$0xff]
  %v3163 = vld [vmem:[%s2383 + $0x6a] sm:$0xff]
  %v3164 = vld [vmem:[%s2383 + $0x7a] sm:$0xff]
  %v3165 = vld [vmem:[%s2383 + $0x82] sm:$0xff]
  %v3166 = vld [vmem:[%s2383 + $0x92] sm:$0xff]
  %v3167 = vld [vmem:[%s2383 + $0x9a] sm:$0xff]
  %v3168 = vld [vmem:[%s2383 + $0xaa] sm:$0xff]
  %v3169 = vld [vmem:[%s2383 + $0xb2] sm:$0xff]
  %v3170 = vld [vmem:[%s2383 + $0xc2] sm:$0xff]
  %v3171 = vld [vmem:[%s2383 + $0xca] sm:$0xff]
  %v3172 = vld [vmem:[%s2383 + $0xda] sm:$0xff]
  %v3173 = vld [vmem:[%s2383 + $0xe2] sm:$0xff]
  %v3174 = vld [vmem:[%s2383 + $0xf2] sm:$0xff]
  %v3175 = vld [vmem:[%s2383 + $0xfa] sm:$0xff]
  %v3176 = vld [vmem:[%s2383 + $0x10a] sm:$0xff]
  %v3177 = vld [vmem:[%s2383 + $0x112] sm:$0xff]
  %v3178 = vld [vmem:[%s2383 + $0x122] sm:$0xff]
  %v3179 = vld [vmem:[%s2383 + $0x12a] sm:$0xff]
  %v3180 = vld [vmem:[%s2383 + $0x13a] sm:$0xff]
  %v3181 = vld [vmem:[%s2383 + $0x142] sm:$0xff]
  %v3182 = vld [vmem:[%s2383 + $0x152] sm:$0xff]
  %v3183 = vld [vmem:[%s2383 + $0x15a] sm:$0xff]
  %v3184 = vld [vmem:[%s2383 + $0x16a] sm:$0xff]
  %v3185 = vld [vmem:[%s2383 + $0x172] sm:$0xff]
  %v3186 = vld [vmem:[%s2383 + $0x1b2] sm:$0xff]
  %v3187 = vld [vmem:[%s2383 + $0x1ba] sm:$0xff]
  %v3188 = vld [vmem:[%s2383 + $0x1ca] sm:$0xff]
  %v3189 = vld [vmem:[%s2383 + $0x1d2] sm:$0xff]
  %v3190 = vld [vmem:[%s2383 + $0x1e2] sm:$0xff]
  %v3191 = vld [vmem:[%s2383 + $0x1ea] sm:$0xff]
  %v3192 = vld [vmem:[%s2383 + $0x1fa] sm:$0xff]
  %v3193 = vld [vmem:[%s2383 + $0x202] sm:$0xff]
  %v3194 = vld [vmem:[%s2383 + $0x212] sm:$0xff]
  %v3195 = vld [vmem:[%s2383 + $0x21a] sm:$0xff]
  %v3196 = vld [vmem:[%s2383 + $0x22a] sm:$0xff]
  %v3197 = vld [vmem:[%s2383 + $0x232] sm:$0xff]
  %v3198 = vld [vmem:[%s2383 + $0x242] sm:$0xff]
  %v3199 = vld [vmem:[%s2383 + $0x24a] sm:$0xff]
  %v3200 = vld [vmem:[%s2383 + $0x25a] sm:$0xff]
  %v3201 = vld [vmem:[%s2383 + $0x262] sm:$0xff]
  %v3202 = vld [vmem:[%s2383 + $0x272] sm:$0xff]
  %v3203 = vld [vmem:[%s2383 + $0x27a] sm:$0xff]
  %v3204 = vld [vmem:[%s2383 + $0x28a] sm:$0xff]
  %v3205 = vld [vmem:[%s2383 + $0x292] sm:$0xff]
  %v3206 = vld [vmem:[%s2383 + $0x2a2] sm:$0xff]
  %v3207 = vld [vmem:[%s2383 + $0x2aa] sm:$0xff]
  %v3208 = vld [vmem:[%s2383 + $0x2ba] sm:$0xff]
  %v3209 = vld [vmem:[%s2383 + $0x2c2] sm:$0xff]
  %v3210 = vld [vmem:[%s2383 + $0x2d2] sm:$0xff]
  %v3211 = vld [vmem:[%s2383 + $0x2da] sm:$0xff]
  %v3212 = vld [vmem:[%s2383 + $0x2ea] sm:$0xff]
  %v3213 = vld [vmem:[%s2383 + $0x2f2] sm:$0xff]
  %v3214 = vld [vmem:[%s2383 + $0x302] sm:$0xff]
  %v3215 = vld [vmem:[%s2383 + $0x30a] sm:$0xff]
  %v3216 = vld [vmem:[%s2383 + $0x31a] sm:$0xff]
  %v3217 = vld [vmem:[%s2383 + $0x322] sm:$0xff]
  %3282 = vrot.lane.b32.xlu0 %v3154, 32
  %v3283 = vpop.permute.xlu0 %3282
  %3284 = vrot.lane.b32.xlu0 %v3155, 32
  %v3285 = vpop.permute.xlu0 %3284
  %3286 = vrot.lane.b32.xlu0 %v3156, 32
  %v3287 = vpop.permute.xlu0 %3286
  %3288 = vrot.lane.b32.xlu0 %v3157, 32
  %v3289 = vpop.permute.xlu0 %3288
  %3290 = vrot.lane.b32.xlu0 %v3158, 32
  %v3291 = vpop.permute.xlu0 %3290
  %3292 = vrot.lane.b32.xlu0 %v3159, 32
  %v3293 = vpop.permute.xlu0 %3292
  %3294 = vrot.lane.b32.xlu0 %v3160, 32
  %v3295 = vpop.permute.xlu0 %3294
  %3296 = vrot.lane.b32.xlu0 %v3161, 32
  %v3297 = vpop.permute.xlu0 %3296
  %3298 = vrot.lane.b32.xlu0 %v3162, 32
  %v3299 = vpop.permute.xlu0 %3298
  %3300 = vrot.lane.b32.xlu0 %v3163, 32
  %v3301 = vpop.permute.xlu0 %3300
  %3302 = vrot.lane.b32.xlu0 %v3164, 32
  %v3303 = vpop.permute.xlu0 %3302
  %3304 = vrot.lane.b32.xlu0 %v3165, 32
  %v3305 = vpop.permute.xlu0 %3304
  %3306 = vrot.lane.b32.xlu0 %v3166, 32
  %v3307 = vpop.permute.xlu0 %3306
  %3308 = vrot.lane.b32.xlu0 %v3167, 32
  %v3309 = vpop.permute.xlu0 %3308
  %3310 = vrot.lane.b32.xlu0 %v3168, 32
  %v3311 = vpop.permute.xlu0 %3310
  %3312 = vrot.lane.b32.xlu0 %v3169, 32
  %v3313 = vpop.permute.xlu0 %3312
  %3314 = vrot.lane.b32.xlu0 %v3170, 32
  %v3315 = vpop.permute.xlu0 %3314
  %3316 = vrot.lane.b32.xlu0 %v3171, 32
  %v3317 = vpop.permute.xlu0 %3316
  %3318 = vrot.lane.b32.xlu0 %v3172, 32
  %v3319 = vpop.permute.xlu0 %3318
  %3320 = vrot.lane.b32.xlu0 %v3173, 32
  %v3321 = vpop.permute.xlu0 %3320
  %3322 = vrot.lane.b32.xlu0 %v3174, 32
  %v3323 = vpop.permute.xlu0 %3322
  %3324 = vrot.lane.b32.xlu0 %v3175, 32
  %v3325 = vpop.permute.xlu0 %3324
  %3326 = vrot.lane.b32.xlu0 %v3176, 32
  %v3327 = vpop.permute.xlu0 %3326
  %3328 = vrot.lane.b32.xlu0 %v3177, 32
  %v3329 = vpop.permute.xlu0 %3328
  %3330 = vrot.lane.b32.xlu0 %v3178, 32
  %v3331 = vpop.permute.xlu0 %3330
  %3332 = vrot.lane.b32.xlu0 %v3179, 32
  %v3333 = vpop.permute.xlu0 %3332
  %3334 = vrot.lane.b32.xlu0 %v3180, 32
  %v3335 = vpop.permute.xlu0 %3334
  %3336 = vrot.lane.b32.xlu0 %v3181, 32
  %v3337 = vpop.permute.xlu0 %3336
  %3338 = vrot.lane.b32.xlu0 %v3182, 32
  %v3339 = vpop.permute.xlu0 %3338
  %3340 = vrot.lane.b32.xlu0 %v3183, 32
  %v3341 = vpop.permute.xlu0 %3340
  %3342 = vrot.lane.b32.xlu0 %v3184, 32
  %v3343 = vpop.permute.xlu0 %3342
  %3344 = vrot.lane.b32.xlu0 %v3185, 32
  %v3345 = vpop.permute.xlu0 %3344
  %3346 = vrot.lane.b32.xlu0 %v3186, 32
  %v3347 = vpop.permute.xlu0 %3346
  %3348 = vrot.lane.b32.xlu0 %v3187, 32
  %v3349 = vpop.permute.xlu0 %3348
  %3350 = vrot.lane.b32.xlu0 %v3188, 32
  %v3351 = vpop.permute.xlu0 %3350
  %3352 = vrot.lane.b32.xlu0 %v3189, 32
  %v3353 = vpop.permute.xlu0 %3352
  %3354 = vrot.lane.b32.xlu0 %v3190, 32
  %v3355 = vpop.permute.xlu0 %3354
  %3356 = vrot.lane.b32.xlu0 %v3191, 32
  %v3357 = vpop.permute.xlu0 %3356
  %3358 = vrot.lane.b32.xlu0 %v3192, 32
  %v3359 = vpop.permute.xlu0 %3358
  %3360 = vrot.lane.b32.xlu0 %v3193, 32
  %v3361 = vpop.permute.xlu0 %3360
  %3362 = vrot.lane.b32.xlu0 %v3194, 32
  %v3363 = vpop.permute.xlu0 %3362
  %3364 = vrot.lane.b32.xlu0 %v3195, 32
  %v3365 = vpop.permute.xlu0 %3364
  %3366 = vrot.lane.b32.xlu0 %v3196, 32
  %v3367 = vpop.permute.xlu0 %3366
  %3368 = vrot.lane.b32.xlu0 %v3197, 32
  %v3369 = vpop.permute.xlu0 %3368
  %3370 = vrot.lane.b32.xlu0 %v3198, 32
  %v3371 = vpop.permute.xlu0 %3370
  %3372 = vrot.lane.b32.xlu0 %v3199, 32
  %v3373 = vpop.permute.xlu0 %3372
  %3374 = vrot.lane.b32.xlu0 %v3200, 32
  %v3375 = vpop.permute.xlu0 %3374
  %3376 = vrot.lane.b32.xlu0 %v3201, 32
  %v3377 = vpop.permute.xlu0 %3376
  %3378 = vrot.lane.b32.xlu0 %v3202, 32
  %v3379 = vpop.permute.xlu0 %3378
  %3380 = vrot.lane.b32.xlu0 %v3203, 32
  %v3381 = vpop.permute.xlu0 %3380
  %3382 = vrot.lane.b32.xlu0 %v3204, 32
  %v3383 = vpop.permute.xlu0 %3382
  %3384 = vrot.lane.b32.xlu0 %v3205, 32
  %v3385 = vpop.permute.xlu0 %3384
  %3386 = vrot.lane.b32.xlu0 %v3206, 32
  %v3387 = vpop.permute.xlu0 %3386
  %3388 = vrot.lane.b32.xlu0 %v3207, 32
  %v3389 = vpop.permute.xlu0 %3388
  %3390 = vrot.lane.b32.xlu0 %v3208, 32
  %v3391 = vpop.permute.xlu0 %3390
  %3392 = vrot.lane.b32.xlu0 %v3209, 32
  %v3393 = vpop.permute.xlu0 %3392
  %3394 = vrot.lane.b32.xlu0 %v3210, 32
  %v3395 = vpop.permute.xlu0 %3394
  %3396 = vrot.lane.b32.xlu0 %v3211, 32
  %v3397 = vpop.permute.xlu0 %3396
  %3398 = vrot.lane.b32.xlu0 %v3212, 32
  %v3399 = vpop.permute.xlu0 %3398
  %3400 = vrot.lane.b32.xlu0 %v3213, 32
  %v3401 = vpop.permute.xlu0 %3400
  %3402 = vrot.lane.b32.xlu0 %v3214, 32
  %v3403 = vpop.permute.xlu0 %3402
  %3404 = vrot.lane.b32.xlu0 %v3215, 32
  %v3405 = vpop.permute.xlu0 %3404
  %3406 = vrot.lane.b32.xlu0 %v3216, 32
  %v3407 = vpop.permute.xlu0 %3406
  %3408 = vrot.lane.b32.xlu0 %v3217, 32
  %v3409 = vpop.permute.xlu0 %3408
  %vm3474 = vcmask 294144
  %3475 = vst.msk [vmem:[#allocation3] sm:$0xff] %vm3474, %v3283
  %3476 = vst.msk [vmem:[#allocation3 + $0x8] sm:$0xff] %vm3474, %v3285
  %3477 = vst.msk [vmem:[#allocation3 + $0x10] sm:$0xff] %vm3474, %v3287
  %3478 = vst.msk [vmem:[#allocation3 + $0x18] sm:$0xff] %vm3474, %v3289
  %3479 = vst.msk [vmem:[#allocation3 + $0x20] sm:$0xff] %vm3474, %v3291
  %3480 = vst.msk [vmem:[#allocation3 + $0x28] sm:$0xff] %vm3474, %v3293
  %3481 = vst.msk [vmem:[#allocation3 + $0x30] sm:$0xff] %vm3474, %v3295
  %3482 = vst.msk [vmem:[#allocation3 + $0x38] sm:$0xff] %vm3474, %v3297
  %3483 = vst.msk [vmem:[#allocation3 + $0x40] sm:$0xff] %vm3474, %v3299
  %3484 = vst.msk [vmem:[#allocation3 + $0x48] sm:$0xff] %vm3474, %v3301
  %3485 = vst.msk [vmem:[#allocation3 + $0x50] sm:$0xff] %vm3474, %v3303
  %3486 = vst.msk [vmem:[#allocation3 + $0x58] sm:$0xff] %vm3474, %v3305
  %3487 = vst.msk [vmem:[#allocation3 + $0x60] sm:$0xff] %vm3474, %v3307
  %3488 = vst.msk [vmem:[#allocation3 + $0x68] sm:$0xff] %vm3474, %v3309
  %3489 = vst.msk [vmem:[#allocation3 + $0x70] sm:$0xff] %vm3474, %v3311
  %3490 = vst.msk [vmem:[#allocation3 + $0x78] sm:$0xff] %vm3474, %v3313
  %3491 = vst.msk [vmem:[#allocation3 + $0x80] sm:$0xff] %vm3474, %v3315
  %3492 = vst.msk [vmem:[#allocation3 + $0x88] sm:$0xff] %vm3474, %v3317
  %3493 = vst.msk [vmem:[#allocation3 + $0x90] sm:$0xff] %vm3474, %v3319
  %3494 = vst.msk [vmem:[#allocation3 + $0x98] sm:$0xff] %vm3474, %v3321
  %3495 = vst.msk [vmem:[#allocation3 + $0xa0] sm:$0xff] %vm3474, %v3323
  %3496 = vst.msk [vmem:[#allocation3 + $0xa8] sm:$0xff] %vm3474, %v3325
  %3497 = vst.msk [vmem:[#allocation3 + $0xb0] sm:$0xff] %vm3474, %v3327
  %3498 = vst.msk [vmem:[#allocation3 + $0xb8] sm:$0xff] %vm3474, %v3329
  %3499 = vst.msk [vmem:[#allocation3 + $0xc0] sm:$0xff] %vm3474, %v3331
  %3500 = vst.msk [vmem:[#allocation3 + $0xc8] sm:$0xff] %vm3474, %v3333
  %3501 = vst.msk [vmem:[#allocation3 + $0xd0] sm:$0xff] %vm3474, %v3335
  %3502 = vst.msk [vmem:[#allocation3 + $0xd8] sm:$0xff] %vm3474, %v3337
  %3503 = vst.msk [vmem:[#allocation3 + $0xe0] sm:$0xff] %vm3474, %v3339
  %3504 = vst.msk [vmem:[#allocation3 + $0xe8] sm:$0xff] %vm3474, %v3341
  %3505 = vst.msk [vmem:[#allocation3 + $0xf0] sm:$0xff] %vm3474, %v3343
  %3506 = vst.msk [vmem:[#allocation3 + $0xf8] sm:$0xff] %vm3474, %v3345
  %3507 = vst.msk [vmem:[#allocation3 + $0x100] sm:$0xff] %vm3474, %v3347
  %3508 = vst.msk [vmem:[#allocation3 + $0x108] sm:$0xff] %vm3474, %v3349
  %3509 = vst.msk [vmem:[#allocation3 + $0x110] sm:$0xff] %vm3474, %v3351
  %3510 = vst.msk [vmem:[#allocation3 + $0x118] sm:$0xff] %vm3474, %v3353
  %3511 = vst.msk [vmem:[#allocation3 + $0x120] sm:$0xff] %vm3474, %v3355
  %3512 = vst.msk [vmem:[#allocation3 + $0x128] sm:$0xff] %vm3474, %v3357
  %3513 = vst.msk [vmem:[#allocation3 + $0x130] sm:$0xff] %vm3474, %v3359
  %3514 = vst.msk [vmem:[#allocation3 + $0x138] sm:$0xff] %vm3474, %v3361
  %3515 = vst.msk [vmem:[#allocation3 + $0x140] sm:$0xff] %vm3474, %v3363
  %3516 = vst.msk [vmem:[#allocation3 + $0x148] sm:$0xff] %vm3474, %v3365
  %3517 = vst.msk [vmem:[#allocation3 + $0x150] sm:$0xff] %vm3474, %v3367
  %3518 = vst.msk [vmem:[#allocation3 + $0x158] sm:$0xff] %vm3474, %v3369
  %3519 = vst.msk [vmem:[#allocation3 + $0x160] sm:$0xff] %vm3474, %v3371
  %3520 = vst.msk [vmem:[#allocation3 + $0x168] sm:$0xff] %vm3474, %v3373
  %3521 = vst.msk [vmem:[#allocation3 + $0x170] sm:$0xff] %vm3474, %v3375
  %3522 = vst.msk [vmem:[#allocation3 + $0x178] sm:$0xff] %vm3474, %v3377
  %3523 = vst.msk [vmem:[#allocation3 + $0x180] sm:$0xff] %vm3474, %v3379
  %3524 = vst.msk [vmem:[#allocation3 + $0x188] sm:$0xff] %vm3474, %v3381
  %3525 = vst.msk [vmem:[#allocation3 + $0x190] sm:$0xff] %vm3474, %v3383
  %3526 = vst.msk [vmem:[#allocation3 + $0x198] sm:$0xff] %vm3474, %v3385
  %3527 = vst.msk [vmem:[#allocation3 + $0x1a0] sm:$0xff] %vm3474, %v3387
  %3528 = vst.msk [vmem:[#allocation3 + $0x1a8] sm:$0xff] %vm3474, %v3389
  %3529 = vst.msk [vmem:[#allocation3 + $0x1b0] sm:$0xff] %vm3474, %v3391
  %3530 = vst.msk [vmem:[#allocation3 + $0x1b8] sm:$0xff] %vm3474, %v3393
  %3531 = vst.msk [vmem:[#allocation3 + $0x1c0] sm:$0xff] %vm3474, %v3395
  %3532 = vst.msk [vmem:[#allocation3 + $0x1c8] sm:$0xff] %vm3474, %v3397
  %3533 = vst.msk [vmem:[#allocation3 + $0x1d0] sm:$0xff] %vm3474, %v3399
  %3534 = vst.msk [vmem:[#allocation3 + $0x1d8] sm:$0xff] %vm3474, %v3401
  %3535 = vst.msk [vmem:[#allocation3 + $0x1e0] sm:$0xff] %vm3474, %v3403
  %3536 = vst.msk [vmem:[#allocation3 + $0x1e8] sm:$0xff] %vm3474, %v3405
  %3537 = vst.msk [vmem:[#allocation3 + $0x1f0] sm:$0xff] %vm3474, %v3407
  %3538 = vst.msk [vmem:[#allocation3 + $0x1f8] sm:$0xff] %vm3474, %v3409
  %v3539 = vld [vmem:[#allocation3] sm:$0xff]
  %v3540 = vld [vmem:[#allocation3 + $0x8] sm:$0xff]
  %v3541 = vld [vmem:[#allocation3 + $0x10] sm:$0xff]
  %v3542 = vld [vmem:[#allocation3 + $0x18] sm:$0xff]
  %v3543 = vld [vmem:[#allocation3 + $0x20] sm:$0xff]
  %v3544 = vld [vmem:[#allocation3 + $0x28] sm:$0xff]
  %v3545 = vld [vmem:[#allocation3 + $0x30] sm:$0xff]
  %v3546 = vld [vmem:[#allocation3 + $0x38] sm:$0xff]
  %v3547 = vld [vmem:[#allocation3 + $0x40] sm:$0xff]
  %v3548 = vld [vmem:[#allocation3 + $0x48] sm:$0xff]
  %v3549 = vld [vmem:[#allocation3 + $0x50] sm:$0xff]
  %v3550 = vld [vmem:[#allocation3 + $0x58] sm:$0xff]
  %v3551 = vld [vmem:[#allocation3 + $0x60] sm:$0xff]
  %v3552 = vld [vmem:[#allocation3 + $0x68] sm:$0xff]
  %v3553 = vld [vmem:[#allocation3 + $0x70] sm:$0xff]
  %v3554 = vld [vmem:[#allocation3 + $0x78] sm:$0xff]
  %v3555 = vld [vmem:[#allocation3 + $0x80] sm:$0xff]
  %v3556 = vld [vmem:[#allocation3 + $0x88] sm:$0xff]
  %v3557 = vld [vmem:[#allocation3 + $0x90] sm:$0xff]
  %v3558 = vld [vmem:[#allocation3 + $0x98] sm:$0xff]
  %v3559 = vld [vmem:[#allocation3 + $0xa0] sm:$0xff]
  %v3560 = vld [vmem:[#allocation3 + $0xa8] sm:$0xff]
  %v3561 = vld [vmem:[#allocation3 + $0xb0] sm:$0xff]
  %v3562 = vld [vmem:[#allocation3 + $0xb8] sm:$0xff]
  %v3563 = vld [vmem:[#allocation3 + $0xc0] sm:$0xff]
  %v3564 = vld [vmem:[#allocation3 + $0xc8] sm:$0xff]
  %v3565 = vld [vmem:[#allocation3 + $0xd0] sm:$0xff]
  %v3566 = vld [vmem:[#allocation3 + $0xd8] sm:$0xff]
  %v3567 = vld [vmem:[#allocation3 + $0xe0] sm:$0xff]
  %v3568 = vld [vmem:[#allocation3 + $0xe8] sm:$0xff]
  %v3569 = vld [vmem:[#allocation3 + $0xf0] sm:$0xff]
  %v3570 = vld [vmem:[#allocation3 + $0xf8] sm:$0xff]
  %v3571 = vld [vmem:[#allocation3 + $0x100] sm:$0xff]
  %v3572 = vld [vmem:[#allocation3 + $0x108] sm:$0xff]
  %v3573 = vld [vmem:[#allocation3 + $0x110] sm:$0xff]
  %v3574 = vld [vmem:[#allocation3 + $0x118] sm:$0xff]
  %v3575 = vld [vmem:[#allocation3 + $0x120] sm:$0xff]
  %v3576 = vld [vmem:[#allocation3 + $0x128] sm:$0xff]
  %v3577 = vld [vmem:[#allocation3 + $0x130] sm:$0xff]
  %v3578 = vld [vmem:[#allocation3 + $0x138] sm:$0xff]
  %v3579 = vld [vmem:[#allocation3 + $0x140] sm:$0xff]
  %v3580 = vld [vmem:[#allocation3 + $0x148] sm:$0xff]
  %v3581 = vld [vmem:[#allocation3 + $0x150] sm:$0xff]
  %v3582 = vld [vmem:[#allocation3 + $0x158] sm:$0xff]
  %v3583 = vld [vmem:[#allocation3 + $0x160] sm:$0xff]
  %v3584 = vld [vmem:[#allocation3 + $0x168] sm:$0xff]
  %v3585 = vld [vmem:[#allocation3 + $0x170] sm:$0xff]
  %v3586 = vld [vmem:[#allocation3 + $0x178] sm:$0xff]
  %v3587 = vld [vmem:[#allocation3 + $0x180] sm:$0xff]
  %v3588 = vld [vmem:[#allocation3 + $0x188] sm:$0xff]
  %v3589 = vld [vmem:[#allocation3 + $0x190] sm:$0xff]
  %v3590 = vld [vmem:[#allocation3 + $0x198] sm:$0xff]
  %v3591 = vld [vmem:[#allocation3 + $0x1a0] sm:$0xff]
  %v3592 = vld [vmem:[#allocation3 + $0x1a8] sm:$0xff]
  %v3593 = vld [vmem:[#allocation3 + $0x1b0] sm:$0xff]
  %v3594 = vld [vmem:[#allocation3 + $0x1b8] sm:$0xff]
  %v3595 = vld [vmem:[#allocation3 + $0x1c0] sm:$0xff]
  %v3596 = vld [vmem:[#allocation3 + $0x1c8] sm:$0xff]
  %v3597 = vld [vmem:[#allocation3 + $0x1d0] sm:$0xff]
  %v3598 = vld [vmem:[#allocation3 + $0x1d8] sm:$0xff]
  %v3599 = vld [vmem:[#allocation3 + $0x1e0] sm:$0xff]
  %v3600 = vld [vmem:[#allocation3 + $0x1e8] sm:$0xff]
  %v3601 = vld [vmem:[#allocation3 + $0x1f0] sm:$0xff]
  %v3602 = vld [vmem:[#allocation3 + $0x1f8] sm:$0xff]
  %v3603 = vpack.c.bf16 %v3540, %v3539
  %v3604 = vpack.c.bf16 %v3542, %v3541
  %v3605 = vpack.c.bf16 %v3544, %v3543
  %v3606 = vpack.c.bf16 %v3546, %v3545
  %v3607 = vpack.c.bf16 %v3548, %v3547
  %v3608 = vpack.c.bf16 %v3550, %v3549
  %v3609 = vpack.c.bf16 %v3552, %v3551
  %v3610 = vpack.c.bf16 %v3554, %v3553
  %v3611 = vpack.c.bf16 %v3556, %v3555
  %v3612 = vpack.c.bf16 %v3558, %v3557
  %v3613 = vpack.c.bf16 %v3560, %v3559
  %v3614 = vpack.c.bf16 %v3562, %v3561
  %v3615 = vpack.c.bf16 %v3564, %v3563
  %v3616 = vpack.c.bf16 %v3566, %v3565
  %v3617 = vpack.c.bf16 %v3568, %v3567
  %v3618 = vpack.c.bf16 %v3570, %v3569
  %v3619 = vpack.c.bf16 %v3572, %v3571
  %v3620 = vpack.c.bf16 %v3574, %v3573
  %v3621 = vpack.c.bf16 %v3576, %v3575
  %v3622 = vpack.c.bf16 %v3578, %v3577
  %v3623 = vpack.c.bf16 %v3580, %v3579
  %v3624 = vpack.c.bf16 %v3582, %v3581
  %v3625 = vpack.c.bf16 %v3584, %v3583
  %v3626 = vpack.c.bf16 %v3586, %v3585
  %v3627 = vpack.c.bf16 %v3588, %v3587
  %v3628 = vpack.c.bf16 %v3590, %v3589
  %v3629 = vpack.c.bf16 %v3592, %v3591
  %v3630 = vpack.c.bf16 %v3594, %v3593
  %v3631 = vpack.c.bf16 %v3596, %v3595
  %v3632 = vpack.c.bf16 %v3598, %v3597
  %v3633 = vpack.c.bf16 %v3600, %v3599
  %v3634 = vpack.c.bf16 %v3602, %v3601
  %v3635 = vld [vmem:[%s1] sm:$0xf]
  %v3636 = vld [vmem:[%s1 + $0x4] sm:$0xf]
  %v3637 = vld [vmem:[%s1 + $0x8] sm:$0xf]
  %v3638 = vld [vmem:[%s1 + $0xc] sm:$0xf]
  %v3639 = vld [vmem:[%s1 + $0x10] sm:$0x3]
  %v3645 = vunpack.c.l.b16 %v3635
  %v3646 = vunpack.c.l.b16 %v3636
  %v3647 = vunpack.c.l.b16 %v3637
  %v3648 = vunpack.c.l.b16 %v3638
  %v3649 = vunpack.c.l.b16 %v3639
  %v3650 = vpack.c.b16 %v3646, %v3645
  %v3651 = vpack.c.b16 %v3648, %v3647
  %v3652 = vpack.c.b16 %v3649, %v3649
  %vm3655 = vcmask 293888
  %v3657 = vsel %vm3655, %v3603, 0
  %v3660 = vsel %vm3655, %v3604, 0
  %v3663 = vsel %vm3655, %v3605, 0
  %v3666 = vsel %vm3655, %v3606, 0
  %v3669 = vsel %vm3655, %v3607, 0
  %v3672 = vsel %vm3655, %v3608, 0
  %v3675 = vsel %vm3655, %v3609, 0
  %v3678 = vsel %vm3655, %v3610, 0
  %v3681 = vsel %vm3655, %v3611, 0
  %v3684 = vsel %vm3655, %v3612, 0
  %v3687 = vsel %vm3655, %v3613, 0
  %v3690 = vsel %vm3655, %v3614, 0
  %v3693 = vsel %vm3655, %v3615, 0
  %v3696 = vsel %vm3655, %v3616, 0
  %v3699 = vsel %vm3655, %v3617, 0
  %v3702 = vsel %vm3655, %v3618, 0
  %v3705 = vsel %vm3655, %v3619, 0
  %v3708 = vsel %vm3655, %v3620, 0
  %v3711 = vsel %vm3655, %v3621, 0
  %v3714 = vsel %vm3655, %v3622, 0
  %v3717 = vsel %vm3655, %v3623, 0
  %v3720 = vsel %vm3655, %v3624, 0
  %v3723 = vsel %vm3655, %v3625, 0
  %v3726 = vsel %vm3655, %v3626, 0
  %v3729 = vsel %vm3655, %v3627, 0
  %v3732 = vsel %vm3655, %v3628, 0
  %v3735 = vsel %vm3655, %v3629, 0
  %v3738 = vsel %vm3655, %v3630, 0
  %v3741 = vsel %vm3655, %v3631, 0
  %v3744 = vsel %vm3655, %v3632, 0
  %v3747 = vsel %vm3655, %v3633, 0
  %v3750 = vsel %vm3655, %v3634, 0
  %vm3752 = vcmask 1041408
  %v3754 = vsel %vm3752, %v3652, 0
  %3756 = vmatpush.bf16.msra.mxu0 0
  %3757 = vmatpush.bf16.msra.mxu0 0
  %3758 = vmatpush.bf16.msra.mxu0 0
  %3759 = vmatpush.bf16.msra.mxu0 0
  %3760 = vmatpush.bf16.msra.mxu0 0
  %3761 = vmatpush.bf16.msra.mxu0 %v3754
  %3762 = vmatpush.bf16.msra.mxu0 %v3651
  %3763 = vmatpush.bf16.msra.mxu0 %v3650
  %3764 = vmatmul.bf16.gmra.mxu0 %v3657
  %v3765 = vpop.f32.mrf.mxu0
  %v3766 = vadd.f32 0.0, %v3765
  %v3767 = vpop.f32.mrf.mxu0
  %v3768 = vadd.f32 0.0, %v3767
  %3769 = vmatmul.bf16.gmra.mxu0 %v3660
  %v3770 = vpop.f32.mrf.mxu0
  %v3771 = vadd.f32 0.0, %v3770
  %v3772 = vpop.f32.mrf.mxu0
  %v3773 = vadd.f32 0.0, %v3772
  %3774 = vmatmul.bf16.gmra.mxu0 %v3663
  %v3775 = vpop.f32.mrf.mxu0
  %v3776 = vadd.f32 0.0, %v3775
  %v3777 = vpop.f32.mrf.mxu0
  %v3778 = vadd.f32 0.0, %v3777
  %3779 = vmatmul.bf16.gmra.mxu0 %v3666
  %v3780 = vpop.f32.mrf.mxu0
  %v3781 = vadd.f32 0.0, %v3780
  %v3782 = vpop.f32.mrf.mxu0
  %v3783 = vadd.f32 0.0, %v3782
  %3784 = vmatmul.bf16.gmra.mxu0 %v3669
  %v3785 = vpop.f32.mrf.mxu0
  %v3786 = vadd.f32 0.0, %v3785
  %v3787 = vpop.f32.mrf.mxu0
  %v3788 = vadd.f32 0.0, %v3787
  %3789 = vmatmul.bf16.gmra.mxu0 %v3672
  %v3790 = vpop.f32.mrf.mxu0
  %v3791 = vadd.f32 0.0, %v3790
  %v3792 = vpop.f32.mrf.mxu0
  %v3793 = vadd.f32 0.0, %v3792
  %3794 = vmatmul.bf16.gmra.mxu0 %v3675
  %v3795 = vpop.f32.mrf.mxu0
  %v3796 = vadd.f32 0.0, %v3795
  %v3797 = vpop.f32.mrf.mxu0
  %v3798 = vadd.f32 0.0, %v3797
  %3799 = vmatmul.bf16.gmra.mxu0 %v3678
  %v3800 = vpop.f32.mrf.mxu0
  %v3801 = vadd.f32 0.0, %v3800
  %v3802 = vpop.f32.mrf.mxu0
  %v3803 = vadd.f32 0.0, %v3802
  %3804 = vmatmul.bf16.gmra.mxu0 %v3681
  %v3805 = vpop.f32.mrf.mxu0
  %v3806 = vadd.f32 0.0, %v3805
  %v3807 = vpop.f32.mrf.mxu0
  %v3808 = vadd.f32 0.0, %v3807
  %3809 = vmatmul.bf16.gmra.mxu0 %v3684
  %v3810 = vpop.f32.mrf.mxu0
  %v3811 = vadd.f32 0.0, %v3810
  %v3812 = vpop.f32.mrf.mxu0
  %v3813 = vadd.f32 0.0, %v3812
  %3814 = vmatmul.bf16.gmra.mxu0 %v3687
  %v3815 = vpop.f32.mrf.mxu0
  %v3816 = vadd.f32 0.0, %v3815
  %v3817 = vpop.f32.mrf.mxu0
  %v3818 = vadd.f32 0.0, %v3817
  %3819 = vmatmul.bf16.gmra.mxu0 %v3690
  %v3820 = vpop.f32.mrf.mxu0
  %v3821 = vadd.f32 0.0, %v3820
  %v3822 = vpop.f32.mrf.mxu0
  %v3823 = vadd.f32 0.0, %v3822
  %3824 = vmatmul.bf16.gmra.mxu0 %v3693
  %v3825 = vpop.f32.mrf.mxu0
  %v3826 = vadd.f32 0.0, %v3825
  %v3827 = vpop.f32.mrf.mxu0
  %v3828 = vadd.f32 0.0, %v3827
  %3829 = vmatmul.bf16.gmra.mxu0 %v3696
  %v3830 = vpop.f32.mrf.mxu0
  %v3831 = vadd.f32 0.0, %v3830
  %v3832 = vpop.f32.mrf.mxu0
  %v3833 = vadd.f32 0.0, %v3832
  %3834 = vmatmul.bf16.gmra.mxu0 %v3699
  %v3835 = vpop.f32.mrf.mxu0
  %v3836 = vadd.f32 0.0, %v3835
  %v3837 = vpop.f32.mrf.mxu0
  %v3838 = vadd.f32 0.0, %v3837
  %3839 = vmatmul.bf16.gmra.mxu0 %v3702
  %v3840 = vpop.f32.mrf.mxu0
  %v3841 = vadd.f32 0.0, %v3840
  %v3842 = vpop.f32.mrf.mxu0
  %v3843 = vadd.f32 0.0, %v3842
  %3844 = vmatmul.bf16.gmra.mxu0 %v3705
  %v3845 = vpop.f32.mrf.mxu0
  %v3846 = vadd.f32 0.0, %v3845
  %v3847 = vpop.f32.mrf.mxu0
  %v3848 = vadd.f32 0.0, %v3847
  %3849 = vmatmul.bf16.gmra.mxu0 %v3708
  %v3850 = vpop.f32.mrf.mxu0
  %v3851 = vadd.f32 0.0, %v3850
  %v3852 = vpop.f32.mrf.mxu0
  %v3853 = vadd.f32 0.0, %v3852
  %3854 = vmatmul.bf16.gmra.mxu0 %v3711
  %v3855 = vpop.f32.mrf.mxu0
  %v3856 = vadd.f32 0.0, %v3855
  %v3857 = vpop.f32.mrf.mxu0
  %v3858 = vadd.f32 0.0, %v3857
  %3859 = vmatmul.bf16.gmra.mxu0 %v3714
  %v3860 = vpop.f32.mrf.mxu0
  %v3861 = vadd.f32 0.0, %v3860
  %v3862 = vpop.f32.mrf.mxu0
  %v3863 = vadd.f32 0.0, %v3862
  %3864 = vmatmul.bf16.gmra.mxu0 %v3717
  %v3865 = vpop.f32.mrf.mxu0
  %v3866 = vadd.f32 0.0, %v3865
  %v3867 = vpop.f32.mrf.mxu0
  %v3868 = vadd.f32 0.0, %v3867
  %3869 = vmatmul.bf16.gmra.mxu0 %v3720
  %v3870 = vpop.f32.mrf.mxu0
  %v3871 = vadd.f32 0.0, %v3870
  %v3872 = vpop.f32.mrf.mxu0
  %v3873 = vadd.f32 0.0, %v3872
  %3874 = vmatmul.bf16.gmra.mxu0 %v3723
  %v3875 = vpop.f32.mrf.mxu0
  %v3876 = vadd.f32 0.0, %v3875
  %v3877 = vpop.f32.mrf.mxu0
  %v3878 = vadd.f32 0.0, %v3877
  %3879 = vmatmul.bf16.gmra.mxu0 %v3726
  %v3880 = vpop.f32.mrf.mxu0
  %v3881 = vadd.f32 0.0, %v3880
  %v3882 = vpop.f32.mrf.mxu0
  %v3883 = vadd.f32 0.0, %v3882
  %3884 = vmatmul.bf16.gmra.mxu0 %v3729
  %v3885 = vpop.f32.mrf.mxu0
  %v3886 = vadd.f32 0.0, %v3885
  %v3887 = vpop.f32.mrf.mxu0
  %v3888 = vadd.f32 0.0, %v3887
  %3889 = vmatmul.bf16.gmra.mxu0 %v3732
  %v3890 = vpop.f32.mrf.mxu0
  %v3891 = vadd.f32 0.0, %v3890
  %v3892 = vpop.f32.mrf.mxu0
  %v3893 = vadd.f32 0.0, %v3892
  %3894 = vmatmul.bf16.gmra.mxu0 %v3735
  %v3895 = vpop.f32.mrf.mxu0
  %v3896 = vadd.f32 0.0, %v3895
  %v3897 = vpop.f32.mrf.mxu0
  %v3898 = vadd.f32 0.0, %v3897
  %3899 = vmatmul.bf16.gmra.mxu0 %v3738
  %v3900 = vpop.f32.mrf.mxu0
  %v3901 = vadd.f32 0.0, %v3900
  %v3902 = vpop.f32.mrf.mxu0
  %v3903 = vadd.f32 0.0, %v3902
  %3904 = vmatmul.bf16.gmra.mxu0 %v3741
  %v3905 = vpop.f32.mrf.mxu0
  %v3906 = vadd.f32 0.0, %v3905
  %v3907 = vpop.f32.mrf.mxu0
  %v3908 = vadd.f32 0.0, %v3907
  %3909 = vmatmul.bf16.gmra.mxu0 %v3744
  %v3910 = vpop.f32.mrf.mxu0
  %v3911 = vadd.f32 0.0, %v3910
  %v3912 = vpop.f32.mrf.mxu0
  %v3913 = vadd.f32 0.0, %v3912
  %3914 = vmatmul.bf16.gmra.mxu0 %v3747
  %v3915 = vpop.f32.mrf.mxu0
  %v3916 = vadd.f32 0.0, %v3915
  %v3917 = vpop.f32.mrf.mxu0
  %v3918 = vadd.f32 0.0, %v3917
  %3919 = vmatmul.bf16.gmra.mxu0 %v3750
  %v3920 = vpop.f32.mrf.mxu0
  %v3921 = vadd.f32 0.0, %v3920
  %v3922 = vpop.f32.mrf.mxu0
  %v3923 = vadd.f32 0.0, %v3922
  %3924 = vdwg.mxu0
  %vm3925 = vcmask 64512
  %v3926 = vsel %vm3925, %v3766, 0.0
  %v3927 = vsel %vm3925, %v3768, 0.0
  %v3928 = vadd.f32 %v3926, %v3927
  %v3929 = vsel %vm3925, %v3771, 0.0
  %v3930 = vadd.f32 %v3928, %v3929
  %v3931 = vsel %vm3925, %v3773, 0.0
  %v3932 = vadd.f32 %v3930, %v3931
  %v3933 = vsel %vm3925, %v3776, 0.0
  %v3934 = vadd.f32 %v3932, %v3933
  %v3935 = vsel %vm3925, %v3778, 0.0
  %v3936 = vadd.f32 %v3934, %v3935
  %v3937 = vsel %vm3925, %v3781, 0.0
  %v3938 = vadd.f32 %v3936, %v3937
  %v3939 = vsel %vm3925, %v3783, 0.0
  %v3940 = vadd.f32 %v3938, %v3939
  %v3941 = vsel %vm3925, %v3786, 0.0
  %v3942 = vadd.f32 %v3940, %v3941
  %v3943 = vsel %vm3925, %v3788, 0.0
  %v3944 = vadd.f32 %v3942, %v3943
  %v3945 = vsel %vm3925, %v3791, 0.0
  %v3946 = vadd.f32 %v3944, %v3945
  %v3947 = vsel %vm3925, %v3793, 0.0
  %v3948 = vadd.f32 %v3946, %v3947
  %v3949 = vsel %vm3925, %v3796, 0.0
  %v3950 = vadd.f32 %v3948, %v3949
  %v3951 = vsel %vm3925, %v3798, 0.0
  %v3952 = vadd.f32 %v3950, %v3951
  %v3953 = vsel %vm3925, %v3801, 0.0
  %v3954 = vadd.f32 %v3952, %v3953
  %v3955 = vsel %vm3925, %v3803, 0.0
  %v3956 = vadd.f32 %v3954, %v3955
  %v3957 = vsel %vm3925, %v3806, 0.0
  %v3958 = vadd.f32 %v3956, %v3957
  %v3959 = vsel %vm3925, %v3808, 0.0
  %v3960 = vadd.f32 %v3958, %v3959
  %v3961 = vsel %vm3925, %v3811, 0.0
  %v3962 = vadd.f32 %v3960, %v3961
  %v3963 = vsel %vm3925, %v3813, 0.0
  %v3964 = vadd.f32 %v3962, %v3963
  %v3965 = vsel %vm3925, %v3816, 0.0
  %v3966 = vadd.f32 %v3964, %v3965
  %v3967 = vsel %vm3925, %v3818, 0.0
  %v3968 = vadd.f32 %v3966, %v3967
  %v3969 = vsel %vm3925, %v3821, 0.0
  %v3970 = vadd.f32 %v3968, %v3969
  %v3971 = vsel %vm3925, %v3823, 0.0
  %v3972 = vadd.f32 %v3970, %v3971
  %v3973 = vsel %vm3925, %v3826, 0.0
  %v3974 = vadd.f32 %v3972, %v3973
  %v3975 = vsel %vm3925, %v3828, 0.0
  %v3976 = vadd.f32 %v3974, %v3975
  %v3977 = vsel %vm3925, %v3831, 0.0
  %v3978 = vadd.f32 %v3976, %v3977
  %v3979 = vsel %vm3925, %v3833, 0.0
  %v3980 = vadd.f32 %v3978, %v3979
  %v3981 = vsel %vm3925, %v3836, 0.0
  %v3982 = vadd.f32 %v3980, %v3981
  %v3983 = vsel %vm3925, %v3838, 0.0
  %v3984 = vadd.f32 %v3982, %v3983
  %v3985 = vsel %vm3925, %v3841, 0.0
  %v3986 = vadd.f32 %v3984, %v3985
  %v3987 = vsel %vm3925, %v3843, 0.0
  %v3988 = vadd.f32 %v3986, %v3987
  %v3989 = vsel %vm3925, %v3846, 0.0
  %v3990 = vadd.f32 %v3988, %v3989
  %v3991 = vsel %vm3925, %v3848, 0.0
  %v3992 = vadd.f32 %v3990, %v3991
  %v3993 = vsel %vm3925, %v3851, 0.0
  %v3994 = vadd.f32 %v3992, %v3993
  %v3995 = vsel %vm3925, %v3853, 0.0
  %v3996 = vadd.f32 %v3994, %v3995
  %v3997 = vsel %vm3925, %v3856, 0.0
  %v3998 = vadd.f32 %v3996, %v3997
  %v3999 = vsel %vm3925, %v3858, 0.0
  %v4000 = vadd.f32 %v3998, %v3999
  %v4001 = vsel %vm3925, %v3861, 0.0
  %v4002 = vadd.f32 %v4000, %v4001
  %v4003 = vsel %vm3925, %v3863, 0.0
  %v4004 = vadd.f32 %v4002, %v4003
  %v4005 = vsel %vm3925, %v3866, 0.0
  %v4006 = vadd.f32 %v4004, %v4005
  %v4007 = vsel %vm3925, %v3868, 0.0
  %v4008 = vadd.f32 %v4006, %v4007
  %v4009 = vsel %vm3925, %v3871, 0.0
  %v4010 = vadd.f32 %v4008, %v4009
  %v4011 = vsel %vm3925, %v3873, 0.0
  %v4012 = vadd.f32 %v4010, %v4011
  %v4013 = vsel %vm3925, %v3876, 0.0
  %v4014 = vadd.f32 %v4012, %v4013
  %v4015 = vsel %vm3925, %v3878, 0.0
  %v4016 = vadd.f32 %v4014, %v4015
  %v4017 = vsel %vm3925, %v3881, 0.0
  %v4018 = vadd.f32 %v4016, %v4017
  %v4019 = vsel %vm3925, %v3883, 0.0
  %v4020 = vadd.f32 %v4018, %v4019
  %v4021 = vsel %vm3925, %v3886, 0.0
  %v4022 = vadd.f32 %v4020, %v4021
  %v4023 = vsel %vm3925, %v3888, 0.0
  %v4024 = vadd.f32 %v4022, %v4023
  %v4025 = vsel %vm3925, %v3891, 0.0
  %v4026 = vadd.f32 %v4024, %v4025
  %v4027 = vsel %vm3925, %v3893, 0.0
  %v4028 = vadd.f32 %v4026, %v4027
  %v4029 = vsel %vm3925, %v3896, 0.0
  %v4030 = vadd.f32 %v4028, %v4029
  %v4031 = vsel %vm3925, %v3898, 0.0
  %v4032 = vadd.f32 %v4030, %v4031
  %v4033 = vsel %vm3925, %v3901, 0.0
  %v4034 = vadd.f32 %v4032, %v4033
  %v4035 = vsel %vm3925, %v3903, 0.0
  %v4036 = vadd.f32 %v4034, %v4035
  %v4037 = vsel %vm3925, %v3906, 0.0
  %v4038 = vadd.f32 %v4036, %v4037
  %v4039 = vsel %vm3925, %v3908, 0.0
  %v4040 = vadd.f32 %v4038, %v4039
  %v4041 = vsel %vm3925, %v3911, 0.0
  %v4042 = vadd.f32 %v4040, %v4041
  %v4043 = vsel %vm3925, %v3913, 0.0
  %v4044 = vadd.f32 %v4042, %v4043
  %v4045 = vsel %vm3925, %v3916, 0.0
  %v4046 = vadd.f32 %v4044, %v4045
  %v4047 = vsel %vm3925, %v3918, 0.0
  %v4048 = vadd.f32 %v4046, %v4047
  %v4049 = vsel %vm3925, %v3921, 0.0
  %v4050 = vadd.f32 %v4048, %v4049
  %v4051 = vsel %vm3925, %v3923, 0.0
  %v4052 = vadd.f32 %v4050, %v4051
  %v4053 = vrot.slane %v4052, 4
  %v4054 = vadd.f32 %v4052, %v4053
  %v4055 = vrot.slane %v4054, 2
  %v4056 = vadd.f32 %v4054, %v4055
  %v4057 = vrot.slane %v4056, 1
  %v4058 = vadd.f32 %v4056, %v4057
  %v4059 = vrcp.pop 512.0
  %v4060 = vmul.f32 512.0, %v4059
  %v4061 = vsub.f32 1.0, %v4060
  %v4062 = vmul.f32 %v4059, %v4061
  %v4063 = vadd.f32 %v4059, %v4062
  %vm4064 = vweird.f32 %v4059
  %v4065 = vsel %vm4064, %v4059, %v4063
  %v4066 = vmul.f32 %v4058, %v4065
  %v4067 = vsub.f32 %v3766, %v4066
  %v4068 = vsub.f32 %v3768, %v4066
  %v4069 = vsub.f32 %v3771, %v4066
  %v4070 = vsub.f32 %v3773, %v4066
  %v4071 = vsub.f32 %v3776, %v4066
  %v4072 = vsub.f32 %v3778, %v4066
  %v4073 = vsub.f32 %v3781, %v4066
  %v4074 = vsub.f32 %v3783, %v4066
  %v4075 = vsub.f32 %v3786, %v4066
  %v4076 = vsub.f32 %v3788, %v4066
  %v4077 = vsub.f32 %v3791, %v4066
  %v4078 = vsub.f32 %v3793, %v4066
  %v4079 = vsub.f32 %v3796, %v4066
  %v4080 = vsub.f32 %v3798, %v4066
  %v4081 = vsub.f32 %v3801, %v4066
  %v4082 = vsub.f32 %v3803, %v4066
  %v4083 = vsub.f32 %v3806, %v4066
  %v4084 = vsub.f32 %v3808, %v4066
  %v4085 = vsub.f32 %v3811, %v4066
  %v4086 = vsub.f32 %v3813, %v4066
  %v4087 = vsub.f32 %v3816, %v4066
  %v4088 = vsub.f32 %v3818, %v4066
  %v4089 = vsub.f32 %v3821, %v4066
  %v4090 = vsub.f32 %v3823, %v4066
  %v4091 = vsub.f32 %v3826, %v4066
  %v4092 = vsub.f32 %v3828, %v4066
  %v4093 = vsub.f32 %v3831, %v4066
  %v4094 = vsub.f32 %v3833, %v4066
  %v4095 = vsub.f32 %v3836, %v4066
  %v4096 = vsub.f32 %v3838, %v4066
  %v4097 = vsub.f32 %v3841, %v4066
  %v4098 = vsub.f32 %v3843, %v4066
  %v4099 = vsub.f32 %v3846, %v4066
  %v4100 = vsub.f32 %v3848, %v4066
  %v4101 = vsub.f32 %v3851, %v4066
  %v4102 = vsub.f32 %v3853, %v4066
  %v4103 = vsub.f32 %v3856, %v4066
  %v4104 = vsub.f32 %v3858, %v4066
  %v4105 = vsub.f32 %v3861, %v4066
  %v4106 = vsub.f32 %v3863, %v4066
  %v4107 = vsub.f32 %v3866, %v4066
  %v4108 = vsub.f32 %v3868, %v4066
  %v4109 = vsub.f32 %v3871, %v4066
  %v4110 = vsub.f32 %v3873, %v4066
  %v4111 = vsub.f32 %v3876, %v4066
  %v4112 = vsub.f32 %v3878, %v4066
  %v4113 = vsub.f32 %v3881, %v4066
  %v4114 = vsub.f32 %v3883, %v4066
  %v4115 = vsub.f32 %v3886, %v4066
  %v4116 = vsub.f32 %v3888, %v4066
  %v4117 = vsub.f32 %v3891, %v4066
  %v4118 = vsub.f32 %v3893, %v4066
  %v4119 = vsub.f32 %v3896, %v4066
  %v4120 = vsub.f32 %v3898, %v4066
  %v4121 = vsub.f32 %v3901, %v4066
  %v4122 = vsub.f32 %v3903, %v4066
  %v4123 = vsub.f32 %v3906, %v4066
  %v4124 = vsub.f32 %v3908, %v4066
  %v4125 = vsub.f32 %v3911, %v4066
  %v4126 = vsub.f32 %v3913, %v4066
  %v4127 = vsub.f32 %v3916, %v4066
  %v4128 = vsub.f32 %v3918, %v4066
  %v4129 = vsub.f32 %v3921, %v4066
  %v4130 = vsub.f32 %v3923, %v4066
  %v4131 = vmul.f32 %v4067, %v4067
  %v4132 = vmul.f32 %v4068, %v4068
  %v4133 = vmul.f32 %v4069, %v4069
  %v4134 = vmul.f32 %v4070, %v4070
  %v4135 = vmul.f32 %v4071, %v4071
  %v4136 = vmul.f32 %v4072, %v4072
  %v4137 = vmul.f32 %v4073, %v4073
  %v4138 = vmul.f32 %v4074, %v4074
  %v4139 = vmul.f32 %v4075, %v4075
  %v4140 = vmul.f32 %v4076, %v4076
  %v4141 = vmul.f32 %v4077, %v4077
  %v4142 = vmul.f32 %v4078, %v4078
  %v4143 = vmul.f32 %v4079, %v4079
  %v4144 = vmul.f32 %v4080, %v4080
  %v4145 = vmul.f32 %v4081, %v4081
  %v4146 = vmul.f32 %v4082, %v4082
  %v4147 = vmul.f32 %v4083, %v4083
  %v4148 = vmul.f32 %v4084, %v4084
  %v4149 = vmul.f32 %v4085, %v4085
  %v4150 = vmul.f32 %v4086, %v4086
  %v4151 = vmul.f32 %v4087, %v4087
  %v4152 = vmul.f32 %v4088, %v4088
  %v4153 = vmul.f32 %v4089, %v4089
  %v4154 = vmul.f32 %v4090, %v4090
  %v4155 = vmul.f32 %v4091, %v4091
  %v4156 = vmul.f32 %v4092, %v4092
  %v4157 = vmul.f32 %v4093, %v4093
  %v4158 = vmul.f32 %v4094, %v4094
  %v4159 = vmul.f32 %v4095, %v4095
  %v4160 = vmul.f32 %v4096, %v4096
  %v4161 = vmul.f32 %v4097, %v4097
  %v4162 = vmul.f32 %v4098, %v4098
  %v4163 = vmul.f32 %v4099, %v4099
  %v4164 = vmul.f32 %v4100, %v4100
  %v4165 = vmul.f32 %v4101, %v4101
  %v4166 = vmul.f32 %v4102, %v4102
  %v4167 = vmul.f32 %v4103, %v4103
  %v4168 = vmul.f32 %v4104, %v4104
  %v4169 = vmul.f32 %v4105, %v4105
  %v4170 = vmul.f32 %v4106, %v4106
  %v4171 = vmul.f32 %v4107, %v4107
  %v4172 = vmul.f32 %v4108, %v4108
  %v4173 = vmul.f32 %v4109, %v4109
  %v4174 = vmul.f32 %v4110, %v4110
  %v4175 = vmul.f32 %v4111, %v4111
  %v4176 = vmul.f32 %v4112, %v4112
  %v4177 = vmul.f32 %v4113, %v4113
  %v4178 = vmul.f32 %v4114, %v4114
  %v4179 = vmul.f32 %v4115, %v4115
  %v4180 = vmul.f32 %v4116, %v4116
  %v4181 = vmul.f32 %v4117, %v4117
  %v4182 = vmul.f32 %v4118, %v4118
  %v4183 = vmul.f32 %v4119, %v4119
  %v4184 = vmul.f32 %v4120, %v4120
  %v4185 = vmul.f32 %v4121, %v4121
  %v4186 = vmul.f32 %v4122, %v4122
  %v4187 = vmul.f32 %v4123, %v4123
  %v4188 = vmul.f32 %v4124, %v4124
  %v4189 = vmul.f32 %v4125, %v4125
  %v4190 = vmul.f32 %v4126, %v4126
  %v4191 = vmul.f32 %v4127, %v4127
  %v4192 = vmul.f32 %v4128, %v4128
  %v4193 = vmul.f32 %v4129, %v4129
  %v4194 = vmul.f32 %v4130, %v4130
  %v4195 = vsel %vm3925, %v4131, 0.0
  %v4196 = vsel %vm3925, %v4132, 0.0
  %v4197 = vadd.f32 %v4195, %v4196
  %v4198 = vsel %vm3925, %v4133, 0.0
  %v4199 = vadd.f32 %v4197, %v4198
  %v4200 = vsel %vm3925, %v4134, 0.0
  %v4201 = vadd.f32 %v4199, %v4200
  %v4202 = vsel %vm3925, %v4135, 0.0
  %v4203 = vadd.f32 %v4201, %v4202
  %v4204 = vsel %vm3925, %v4136, 0.0
  %v4205 = vadd.f32 %v4203, %v4204
  %v4206 = vsel %vm3925, %v4137, 0.0
  %v4207 = vadd.f32 %v4205, %v4206
  %v4208 = vsel %vm3925, %v4138, 0.0
  %v4209 = vadd.f32 %v4207, %v4208
  %v4210 = vsel %vm3925, %v4139, 0.0
  %v4211 = vadd.f32 %v4209, %v4210
  %v4212 = vsel %vm3925, %v4140, 0.0
  %v4213 = vadd.f32 %v4211, %v4212
  %v4214 = vsel %vm3925, %v4141, 0.0
  %v4215 = vadd.f32 %v4213, %v4214
  %v4216 = vsel %vm3925, %v4142, 0.0
  %v4217 = vadd.f32 %v4215, %v4216
  %v4218 = vsel %vm3925, %v4143, 0.0
  %v4219 = vadd.f32 %v4217, %v4218
  %v4220 = vsel %vm3925, %v4144, 0.0
  %v4221 = vadd.f32 %v4219, %v4220
  %v4222 = vsel %vm3925, %v4145, 0.0
  %v4223 = vadd.f32 %v4221, %v4222
  %v4224 = vsel %vm3925, %v4146, 0.0
  %v4225 = vadd.f32 %v4223, %v4224
  %v4226 = vsel %vm3925, %v4147, 0.0
  %v4227 = vadd.f32 %v4225, %v4226
  %v4228 = vsel %vm3925, %v4148, 0.0
  %v4229 = vadd.f32 %v4227, %v4228
  %v4230 = vsel %vm3925, %v4149, 0.0
  %v4231 = vadd.f32 %v4229, %v4230
  %v4232 = vsel %vm3925, %v4150, 0.0
  %v4233 = vadd.f32 %v4231, %v4232
  %v4234 = vsel %vm3925, %v4151, 0.0
  %v4235 = vadd.f32 %v4233, %v4234
  %v4236 = vsel %vm3925, %v4152, 0.0
  %v4237 = vadd.f32 %v4235, %v4236
  %v4238 = vsel %vm3925, %v4153, 0.0
  %v4239 = vadd.f32 %v4237, %v4238
  %v4240 = vsel %vm3925, %v4154, 0.0
  %v4241 = vadd.f32 %v4239, %v4240
  %v4242 = vsel %vm3925, %v4155, 0.0
  %v4243 = vadd.f32 %v4241, %v4242
  %v4244 = vsel %vm3925, %v4156, 0.0
  %v4245 = vadd.f32 %v4243, %v4244
  %v4246 = vsel %vm3925, %v4157, 0.0
  %v4247 = vadd.f32 %v4245, %v4246
  %v4248 = vsel %vm3925, %v4158, 0.0
  %v4249 = vadd.f32 %v4247, %v4248
  %v4250 = vsel %vm3925, %v4159, 0.0
  %v4251 = vadd.f32 %v4249, %v4250
  %v4252 = vsel %vm3925, %v4160, 0.0
  %v4253 = vadd.f32 %v4251, %v4252
  %v4254 = vsel %vm3925, %v4161, 0.0
  %v4255 = vadd.f32 %v4253, %v4254
  %v4256 = vsel %vm3925, %v4162, 0.0
  %v4257 = vadd.f32 %v4255, %v4256
  %v4258 = vsel %vm3925, %v4163, 0.0
  %v4259 = vadd.f32 %v4257, %v4258
  %v4260 = vsel %vm3925, %v4164, 0.0
  %v4261 = vadd.f32 %v4259, %v4260
  %v4262 = vsel %vm3925, %v4165, 0.0
  %v4263 = vadd.f32 %v4261, %v4262
  %v4264 = vsel %vm3925, %v4166, 0.0
  %v4265 = vadd.f32 %v4263, %v4264
  %v4266 = vsel %vm3925, %v4167, 0.0
  %v4267 = vadd.f32 %v4265, %v4266
  %v4268 = vsel %vm3925, %v4168, 0.0
  %v4269 = vadd.f32 %v4267, %v4268
  %v4270 = vsel %vm3925, %v4169, 0.0
  %v4271 = vadd.f32 %v4269, %v4270
  %v4272 = vsel %vm3925, %v4170, 0.0
  %v4273 = vadd.f32 %v4271, %v4272
  %v4274 = vsel %vm3925, %v4171, 0.0
  %v4275 = vadd.f32 %v4273, %v4274
  %v4276 = vsel %vm3925, %v4172, 0.0
  %v4277 = vadd.f32 %v4275, %v4276
  %v4278 = vsel %vm3925, %v4173, 0.0
  %v4279 = vadd.f32 %v4277, %v4278
  %v4280 = vsel %vm3925, %v4174, 0.0
  %v4281 = vadd.f32 %v4279, %v4280
  %v4282 = vsel %vm3925, %v4175, 0.0
  %v4283 = vadd.f32 %v4281, %v4282
  %v4284 = vsel %vm3925, %v4176, 0.0
  %v4285 = vadd.f32 %v4283, %v4284
  %v4286 = vsel %vm3925, %v4177, 0.0
  %v4287 = vadd.f32 %v4285, %v4286
  %v4288 = vsel %vm3925, %v4178, 0.0
  %v4289 = vadd.f32 %v4287, %v4288
  %v4290 = vsel %vm3925, %v4179, 0.0
  %v4291 = vadd.f32 %v4289, %v4290
  %v4292 = vsel %vm3925, %v4180, 0.0
  %v4293 = vadd.f32 %v4291, %v4292
  %v4294 = vsel %vm3925, %v4181, 0.0
  %v4295 = vadd.f32 %v4293, %v4294
  %v4296 = vsel %vm3925, %v4182, 0.0
  %v4297 = vadd.f32 %v4295, %v4296
  %v4298 = vsel %vm3925, %v4183, 0.0
  %v4299 = vadd.f32 %v4297, %v4298
  %v4300 = vsel %vm3925, %v4184, 0.0
  %v4301 = vadd.f32 %v4299, %v4300
  %v4302 = vsel %vm3925, %v4185, 0.0
  %v4303 = vadd.f32 %v4301, %v4302
  %v4304 = vsel %vm3925, %v4186, 0.0
  %v4305 = vadd.f32 %v4303, %v4304
  %v4306 = vsel %vm3925, %v4187, 0.0
  %v4307 = vadd.f32 %v4305, %v4306
  %v4308 = vsel %vm3925, %v4188, 0.0
  %v4309 = vadd.f32 %v4307, %v4308
  %v4310 = vsel %vm3925, %v4189, 0.0
  %v4311 = vadd.f32 %v4309, %v4310
  %v4312 = vsel %vm3925, %v4190, 0.0
  %v4313 = vadd.f32 %v4311, %v4312
  %v4314 = vsel %vm3925, %v4191, 0.0
  %v4315 = vadd.f32 %v4313, %v4314
  %v4316 = vsel %vm3925, %v4192, 0.0
  %v4317 = vadd.f32 %v4315, %v4316
  %v4318 = vsel %vm3925, %v4193, 0.0
  %v4319 = vadd.f32 %v4317, %v4318
  %v4320 = vsel %vm3925, %v4194, 0.0
  %v4321 = vadd.f32 %v4319, %v4320
  %v4322 = vrot.slane %v4321, 4
  %v4323 = vadd.f32 %v4321, %v4322
  %v4324 = vrot.slane %v4323, 2
  %v4325 = vadd.f32 %v4323, %v4324
  %v4326 = vrot.slane %v4325, 1
  %v4327 = vadd.f32 %v4325, %v4326
  %v4328 = vmul.f32 %v4327, %v4065
  %v4329 = vld [vmem:[%s2] sm:$0x1]
  %v4330 = vadd.f32 %v4328, 1e-05
  %v4331 = vrsqrt.pop %v4330
  %v4332 = vmul.f32 %v4331, %v4330
  %v4333 = vmul.f32 %v4332, %v4331
  %v4334 = vmul.f32 0.5, %v4333
  %v4335 = vsub.f32 1.5, %v4334
  %v4336 = vmul.f32 %v4331, %v4335
  %vm4337 = vweird.f32 %v4330
  %vm4338 = vweird.f32 %v4331
  %vm4339 = vmor %vm4337, %vm4338
  %v4340 = vsel %vm4339, %v4331, %v4336
  %v4341 = vmul.f32 %v4329, %v4340
  %v4343 = vperm.slane %v4341, 0
  %v4345 = vmul.f32 %v4067, %v4343
  %v4346 = vmul.f32 %v4068, %v4343
  %v4347 = vmul.f32 %v4069, %v4343
  %v4348 = vmul.f32 %v4070, %v4343
  %v4349 = vmul.f32 %v4071, %v4343
  %v4350 = vmul.f32 %v4072, %v4343
  %v4351 = vmul.f32 %v4073, %v4343
  %v4352 = vmul.f32 %v4074, %v4343
  %v4353 = vmul.f32 %v4075, %v4343
  %v4354 = vmul.f32 %v4076, %v4343
  %v4355 = vmul.f32 %v4077, %v4343
  %v4356 = vmul.f32 %v4078, %v4343
  %v4357 = vmul.f32 %v4079, %v4343
  %v4358 = vmul.f32 %v4080, %v4343
  %v4359 = vmul.f32 %v4081, %v4343
  %v4360 = vmul.f32 %v4082, %v4343
  %v4361 = vmul.f32 %v4083, %v4343
  %v4362 = vmul.f32 %v4084, %v4343
  %v4363 = vmul.f32 %v4085, %v4343
  %v4364 = vmul.f32 %v4086, %v4343
  %v4365 = vmul.f32 %v4087, %v4343
  %v4366 = vmul.f32 %v4088, %v4343
  %v4367 = vmul.f32 %v4089, %v4343
  %v4368 = vmul.f32 %v4090, %v4343
  %v4369 = vmul.f32 %v4091, %v4343
  %v4370 = vmul.f32 %v4092, %v4343
  %v4371 = vmul.f32 %v4093, %v4343
  %v4372 = vmul.f32 %v4094, %v4343
  %v4373 = vmul.f32 %v4095, %v4343
  %v4374 = vmul.f32 %v4096, %v4343
  %v4375 = vmul.f32 %v4097, %v4343
  %v4376 = vmul.f32 %v4098, %v4343
  %v4377 = vmul.f32 %v4099, %v4343
  %v4378 = vmul.f32 %v4100, %v4343
  %v4379 = vmul.f32 %v4101, %v4343
  %v4380 = vmul.f32 %v4102, %v4343
  %v4381 = vmul.f32 %v4103, %v4343
  %v4382 = vmul.f32 %v4104, %v4343
  %v4383 = vmul.f32 %v4105, %v4343
  %v4384 = vmul.f32 %v4106, %v4343
  %v4385 = vmul.f32 %v4107, %v4343
  %v4386 = vmul.f32 %v4108, %v4343
  %v4387 = vmul.f32 %v4109, %v4343
  %v4388 = vmul.f32 %v4110, %v4343
  %v4389 = vmul.f32 %v4111, %v4343
  %v4390 = vmul.f32 %v4112, %v4343
  %v4391 = vmul.f32 %v4113, %v4343
  %v4392 = vmul.f32 %v4114, %v4343
  %v4393 = vmul.f32 %v4115, %v4343
  %v4394 = vmul.f32 %v4116, %v4343
  %v4395 = vmul.f32 %v4117, %v4343
  %v4396 = vmul.f32 %v4118, %v4343
  %v4397 = vmul.f32 %v4119, %v4343
  %v4398 = vmul.f32 %v4120, %v4343
  %v4399 = vmul.f32 %v4121, %v4343
  %v4400 = vmul.f32 %v4122, %v4343
  %v4401 = vmul.f32 %v4123, %v4343
  %v4402 = vmul.f32 %v4124, %v4343
  %v4403 = vmul.f32 %v4125, %v4343
  %v4404 = vmul.f32 %v4126, %v4343
  %v4405 = vmul.f32 %v4127, %v4343
  %v4406 = vmul.f32 %v4128, %v4343
  %v4407 = vmul.f32 %v4129, %v4343
  %v4408 = vmul.f32 %v4130, %v4343
  %v4409 = vld [vmem:[%s3] sm:$0x1]
  %v4411 = vperm.slane %v4409, 0
  %v4413 = vadd.f32 %v4345, %v4411
  %v4414 = vadd.f32 %v4346, %v4411
  %v4415 = vadd.f32 %v4347, %v4411
  %v4416 = vadd.f32 %v4348, %v4411
  %v4417 = vadd.f32 %v4349, %v4411
  %v4418 = vadd.f32 %v4350, %v4411
  %v4419 = vadd.f32 %v4351, %v4411
  %v4420 = vadd.f32 %v4352, %v4411
  %v4421 = vadd.f32 %v4353, %v4411
  %v4422 = vadd.f32 %v4354, %v4411
  %v4423 = vadd.f32 %v4355, %v4411
  %v4424 = vadd.f32 %v4356, %v4411
  %v4425 = vadd.f32 %v4357, %v4411
  %v4426 = vadd.f32 %v4358, %v4411
  %v4427 = vadd.f32 %v4359, %v4411
  %v4428 = vadd.f32 %v4360, %v4411
  %v4429 = vadd.f32 %v4361, %v4411
  %v4430 = vadd.f32 %v4362, %v4411
  %v4431 = vadd.f32 %v4363, %v4411
  %v4432 = vadd.f32 %v4364, %v4411
  %v4433 = vadd.f32 %v4365, %v4411
  %v4434 = vadd.f32 %v4366, %v4411
  %v4435 = vadd.f32 %v4367, %v4411
  %v4436 = vadd.f32 %v4368, %v4411
  %v4437 = vadd.f32 %v4369, %v4411
  %v4438 = vadd.f32 %v4370, %v4411
  %v4439 = vadd.f32 %v4371, %v4411
  %v4440 = vadd.f32 %v4372, %v4411
  %v4441 = vadd.f32 %v4373, %v4411
  %v4442 = vadd.f32 %v4374, %v4411
  %v4443 = vadd.f32 %v4375, %v4411
  %v4444 = vadd.f32 %v4376, %v4411
  %v4445 = vadd.f32 %v4377, %v4411
  %v4446 = vadd.f32 %v4378, %v4411
  %v4447 = vadd.f32 %v4379, %v4411
  %v4448 = vadd.f32 %v4380, %v4411
  %v4449 = vadd.f32 %v4381, %v4411
  %v4450 = vadd.f32 %v4382, %v4411
  %v4451 = vadd.f32 %v4383, %v4411
  %v4452 = vadd.f32 %v4384, %v4411
  %v4453 = vadd.f32 %v4385, %v4411
  %v4454 = vadd.f32 %v4386, %v4411
  %v4455 = vadd.f32 %v4387, %v4411
  %v4456 = vadd.f32 %v4388, %v4411
  %v4457 = vadd.f32 %v4389, %v4411
  %v4458 = vadd.f32 %v4390, %v4411
  %v4459 = vadd.f32 %v4391, %v4411
  %v4460 = vadd.f32 %v4392, %v4411
  %v4461 = vadd.f32 %v4393, %v4411
  %v4462 = vadd.f32 %v4394, %v4411
  %v4463 = vadd.f32 %v4395, %v4411
  %v4464 = vadd.f32 %v4396, %v4411
  %v4465 = vadd.f32 %v4397, %v4411
  %v4466 = vadd.f32 %v4398, %v4411
  %v4467 = vadd.f32 %v4399, %v4411
  %v4468 = vadd.f32 %v4400, %v4411
  %v4469 = vadd.f32 %v4401, %v4411
  %v4470 = vadd.f32 %v4402, %v4411
  %v4471 = vadd.f32 %v4403, %v4411
  %v4472 = vadd.f32 %v4404, %v4411
  %v4473 = vadd.f32 %v4405, %v4411
  %v4474 = vadd.f32 %v4406, %v4411
  %v4475 = vadd.f32 %v4407, %v4411
  %v4476 = vadd.f32 %v4408, %v4411
  %v4477 = vmax.f32 %v4413, 0.0
  %v4478 = vmax.f32 %v4414, 0.0
  %v4479 = vmax.f32 %v4415, 0.0
  %v4480 = vmax.f32 %v4416, 0.0
  %v4481 = vmax.f32 %v4417, 0.0
  %v4482 = vmax.f32 %v4418, 0.0
  %v4483 = vmax.f32 %v4419, 0.0
  %v4484 = vmax.f32 %v4420, 0.0
  %v4485 = vmax.f32 %v4421, 0.0
  %v4486 = vmax.f32 %v4422, 0.0
  %v4487 = vmax.f32 %v4423, 0.0
  %v4488 = vmax.f32 %v4424, 0.0
  %v4489 = vmax.f32 %v4425, 0.0
  %v4490 = vmax.f32 %v4426, 0.0
  %v4491 = vmax.f32 %v4427, 0.0
  %v4492 = vmax.f32 %v4428, 0.0
  %v4493 = vmax.f32 %v4429, 0.0
  %v4494 = vmax.f32 %v4430, 0.0
  %v4495 = vmax.f32 %v4431, 0.0
  %v4496 = vmax.f32 %v4432, 0.0
  %v4497 = vmax.f32 %v4433, 0.0
  %v4498 = vmax.f32 %v4434, 0.0
  %v4499 = vmax.f32 %v4435, 0.0
  %v4500 = vmax.f32 %v4436, 0.0
  %v4501 = vmax.f32 %v4437, 0.0
  %v4502 = vmax.f32 %v4438, 0.0
  %v4503 = vmax.f32 %v4439, 0.0
  %v4504 = vmax.f32 %v4440, 0.0
  %v4505 = vmax.f32 %v4441, 0.0
  %v4506 = vmax.f32 %v4442, 0.0
  %v4507 = vmax.f32 %v4443, 0.0
  %v4508 = vmax.f32 %v4444, 0.0
  %v4509 = vmax.f32 %v4445, 0.0
  %v4510 = vmax.f32 %v4446, 0.0
  %v4511 = vmax.f32 %v4447, 0.0
  %v4512 = vmax.f32 %v4448, 0.0
  %v4513 = vmax.f32 %v4449, 0.0
  %v4514 = vmax.f32 %v4450, 0.0
  %v4515 = vmax.f32 %v4451, 0.0
  %v4516 = vmax.f32 %v4452, 0.0
  %v4517 = vmax.f32 %v4453, 0.0
  %v4518 = vmax.f32 %v4454, 0.0
  %v4519 = vmax.f32 %v4455, 0.0
  %v4520 = vmax.f32 %v4456, 0.0
  %v4521 = vmax.f32 %v4457, 0.0
  %v4522 = vmax.f32 %v4458, 0.0
  %v4523 = vmax.f32 %v4459, 0.0
  %v4524 = vmax.f32 %v4460, 0.0
  %v4525 = vmax.f32 %v4461, 0.0
  %v4526 = vmax.f32 %v4462, 0.0
  %v4527 = vmax.f32 %v4463, 0.0
  %v4528 = vmax.f32 %v4464, 0.0
  %v4529 = vmax.f32 %v4465, 0.0
  %v4530 = vmax.f32 %v4466, 0.0
  %v4531 = vmax.f32 %v4467, 0.0
  %v4532 = vmax.f32 %v4468, 0.0
  %v4533 = vmax.f32 %v4469, 0.0
  %v4534 = vmax.f32 %v4470, 0.0
  %v4535 = vmax.f32 %v4471, 0.0
  %v4536 = vmax.f32 %v4472, 0.0
  %v4537 = vmax.f32 %v4473, 0.0
  %v4538 = vmax.f32 %v4474, 0.0
  %v4539 = vmax.f32 %v4475, 0.0
  %v4540 = vmax.f32 %v4476, 0.0
  %4541 = vst.msk [vmem:[#allocation4] sm:$0xff] %vm3925, 0.0
  %4542 = vst.msk [vmem:[#allocation4 + $0x8] sm:$0xff] %vm3925, 0.0
  %vm4543 = vcmask 58368
  %4544 = vst.msk [vmem:[#allocation4 + $0x10] sm:$0x3] %vm4543, 0.0
  %4545 = vst.msk [vmem:[#allocation4 + $0x18] sm:$0xff] %vm3925, 0.0
  %4546 = vst.msk [vmem:[#allocation4 + $0x20] sm:$0xff] %vm3925, 0.0
  %4547 = vst.msk [vmem:[#allocation4 + $0x28] sm:$0x3] %vm4543, 0.0
  %4548 = vst.msk [vmem:[#allocation4 + $0x30] sm:$0xff] %vm3925, 0.0
  %4549 = vst.msk [vmem:[#allocation4 + $0x38] sm:$0xff] %vm3925, 0.0
  %4550 = vst.msk [vmem:[#allocation4 + $0x40] sm:$0x3] %vm4543, 0.0
  %4551 = vst.msk [vmem:[#allocation4 + $0x48] sm:$0xff] %vm3925, 0.0
  %4552 = vst.msk [vmem:[#allocation4 + $0x50] sm:$0xff] %vm3925, 0.0
  %4553 = vst.msk [vmem:[#allocation4 + $0x58] sm:$0x3] %vm4543, 0.0
  %4554 = vst.msk [vmem:[#allocation4 + $0x60] sm:$0xff] %vm3925, 0.0
  %4555 = vst.msk [vmem:[#allocation4 + $0x68] sm:$0xff] %vm3925, 0.0
  %4556 = vst.msk [vmem:[#allocation4 + $0x70] sm:$0x3] %vm4543, 0.0
  %4557 = vst.msk [vmem:[#allocation4 + $0x78] sm:$0xff] %vm3925, 0.0
  %4558 = vst.msk [vmem:[#allocation4 + $0x80] sm:$0xff] %vm3925, 0.0
  %4559 = vst.msk [vmem:[#allocation4 + $0x88] sm:$0x3] %vm4543, 0.0
  %4560 = vst.msk [vmem:[#allocation4 + $0x90] sm:$0xff] %vm3925, 0.0
  %4561 = vst.msk [vmem:[#allocation4 + $0x98] sm:$0xff] %vm3925, 0.0
  %4562 = vst.msk [vmem:[#allocation4 + $0xa0] sm:$0x3] %vm4543, 0.0
  %4563 = vst.msk [vmem:[#allocation4 + $0xa8] sm:$0xff] %vm3925, 0.0
  %4564 = vst.msk [vmem:[#allocation4 + $0xb0] sm:$0xff] %vm3925, 0.0
  %4565 = vst.msk [vmem:[#allocation4 + $0xb8] sm:$0x3] %vm4543, 0.0
  %4566 = vst.msk [vmem:[#allocation4 + $0xc0] sm:$0xff] %vm3925, 0.0
  %4567 = vst.msk [vmem:[#allocation4 + $0xc8] sm:$0xff] %vm3925, 0.0
  %4568 = vst.msk [vmem:[#allocation4 + $0xd0] sm:$0x3] %vm4543, 0.0
  %4569 = vst.msk [vmem:[#allocation4 + $0xd8] sm:$0xff] %vm3925, 0.0
  %4570 = vst.msk [vmem:[#allocation4 + $0xe0] sm:$0xff] %vm3925, 0.0
  %4571 = vst.msk [vmem:[#allocation4 + $0xe8] sm:$0x3] %vm4543, 0.0
  %4572 = vst.msk [vmem:[#allocation4 + $0xf0] sm:$0xff] %vm3925, 0.0
  %4573 = vst.msk [vmem:[#allocation4 + $0xf8] sm:$0xff] %vm3925, 0.0
  %4574 = vst.msk [vmem:[#allocation4 + $0x100] sm:$0x3] %vm4543, 0.0
  %4575 = vst.msk [vmem:[#allocation4 + $0x108] sm:$0xff] %vm3925, 0.0
  %4576 = vst.msk [vmem:[#allocation4 + $0x110] sm:$0xff] %vm3925, 0.0
  %4577 = vst.msk [vmem:[#allocation4 + $0x118] sm:$0x3] %vm4543, 0.0
  %4578 = vst.msk [vmem:[#allocation4 + $0x120] sm:$0xff] %vm3925, 0.0
  %4579 = vst.msk [vmem:[#allocation4 + $0x128] sm:$0xff] %vm3925, 0.0
  %4580 = vst.msk [vmem:[#allocation4 + $0x130] sm:$0x3] %vm4543, 0.0
  %4581 = vst.msk [vmem:[#allocation4 + $0x138] sm:$0xff] %vm3925, 0.0
  %4582 = vst.msk [vmem:[#allocation4 + $0x140] sm:$0xff] %vm3925, 0.0
  %4583 = vst.msk [vmem:[#allocation4 + $0x148] sm:$0x3] %vm4543, 0.0
  %4584 = vst.msk [vmem:[#allocation4 + $0x150] sm:$0xff] %vm3925, 0.0
  %4585 = vst.msk [vmem:[#allocation4 + $0x158] sm:$0xff] %vm3925, 0.0
  %4586 = vst.msk [vmem:[#allocation4 + $0x160] sm:$0x3] %vm4543, 0.0
  %4587 = vst.msk [vmem:[#allocation4 + $0x168] sm:$0xff] %vm3925, 0.0
  %4588 = vst.msk [vmem:[#allocation4 + $0x170] sm:$0xff] %vm3925, 0.0
  %4589 = vst.msk [vmem:[#allocation4 + $0x178] sm:$0x3] %vm4543, 0.0
  %4590 = vst.msk [vmem:[#allocation4 + $0x180] sm:$0xff] %vm3925, 0.0
  %4591 = vst.msk [vmem:[#allocation4 + $0x188] sm:$0xff] %vm3925, 0.0
  %4592 = vst.msk [vmem:[#allocation4 + $0x190] sm:$0x3] %vm4543, 0.0
  %4593 = vst.msk [vmem:[#allocation4 + $0x198] sm:$0xff] %vm3925, 0.0
  %4594 = vst.msk [vmem:[#allocation4 + $0x1a0] sm:$0xff] %vm3925, 0.0
  %4595 = vst.msk [vmem:[#allocation4 + $0x1a8] sm:$0x3] %vm4543, 0.0
  %4596 = vst.msk [vmem:[#allocation4 + $0x1b0] sm:$0xff] %vm3925, 0.0
  %4597 = vst.msk [vmem:[#allocation4 + $0x1b8] sm:$0xff] %vm3925, 0.0
  %4598 = vst.msk [vmem:[#allocation4 + $0x1c0] sm:$0x3] %vm4543, 0.0
  %4599 = vst.msk [vmem:[#allocation4 + $0x1c8] sm:$0xff] %vm3925, 0.0
  %4600 = vst.msk [vmem:[#allocation4 + $0x1d0] sm:$0xff] %vm3925, 0.0
  %4601 = vst.msk [vmem:[#allocation4 + $0x1d8] sm:$0x3] %vm4543, 0.0
  %4602 = vst.msk [vmem:[#allocation4 + $0x1e0] sm:$0xff] %vm3925, 0.0
  %4603 = vst.msk [vmem:[#allocation4 + $0x1e8] sm:$0xff] %vm3925, 0.0
  %4604 = vst.msk [vmem:[#allocation4 + $0x1f0] sm:$0x3] %vm4543, 0.0
  %4605 = vst.msk [vmem:[#allocation4 + $0x1f8] sm:$0xff] %vm3925, 0.0
  %4606 = vst.msk [vmem:[#allocation4 + $0x200] sm:$0xff] %vm3925, 0.0
  %4607 = vst.msk [vmem:[#allocation4 + $0x208] sm:$0x3] %vm4543, 0.0
  %4608 = vst.msk [vmem:[#allocation4 + $0x210] sm:$0xff] %vm3925, 0.0
  %4609 = vst.msk [vmem:[#allocation4 + $0x218] sm:$0xff] %vm3925, 0.0
  %4610 = vst.msk [vmem:[#allocation4 + $0x220] sm:$0x3] %vm4543, 0.0
  %4611 = vst.msk [vmem:[#allocation4 + $0x228] sm:$0xff] %vm3925, 0.0
  %4612 = vst.msk [vmem:[#allocation4 + $0x230] sm:$0xff] %vm3925, 0.0
  %4613 = vst.msk [vmem:[#allocation4 + $0x238] sm:$0x3] %vm4543, 0.0
  %4614 = vst.msk [vmem:[#allocation4 + $0x240] sm:$0xff] %vm3925, 0.0
  %4615 = vst.msk [vmem:[#allocation4 + $0x248] sm:$0xff] %vm3925, 0.0
  %4616 = vst.msk [vmem:[#allocation4 + $0x250] sm:$0x3] %vm4543, 0.0
  %4617 = vst.msk [vmem:[#allocation4 + $0x258] sm:$0xff] %vm3925, 0.0
  %4618 = vst.msk [vmem:[#allocation4 + $0x260] sm:$0xff] %vm3925, 0.0
  %4619 = vst.msk [vmem:[#allocation4 + $0x268] sm:$0x3] %vm4543, 0.0
  %4620 = vst.msk [vmem:[#allocation4 + $0x270] sm:$0xff] %vm3925, 0.0
  %4621 = vst.msk [vmem:[#allocation4 + $0x278] sm:$0xff] %vm3925, 0.0
  %4622 = vst.msk [vmem:[#allocation4 + $0x280] sm:$0x3] %vm4543, 0.0
  %4623 = vst.msk [vmem:[#allocation4 + $0x288] sm:$0xff] %vm3925, 0.0
  %4624 = vst.msk [vmem:[#allocation4 + $0x290] sm:$0xff] %vm3925, 0.0
  %4625 = vst.msk [vmem:[#allocation4 + $0x298] sm:$0x3] %vm4543, 0.0
  %4626 = vst.msk [vmem:[#allocation4 + $0x2a0] sm:$0xff] %vm3925, 0.0
  %4627 = vst.msk [vmem:[#allocation4 + $0x2a8] sm:$0xff] %vm3925, 0.0
  %4628 = vst.msk [vmem:[#allocation4 + $0x2b0] sm:$0x3] %vm4543, 0.0
  %4629 = vst.msk [vmem:[#allocation4 + $0x2b8] sm:$0xff] %vm3925, 0.0
  %4630 = vst.msk [vmem:[#allocation4 + $0x2c0] sm:$0xff] %vm3925, 0.0
  %4631 = vst.msk [vmem:[#allocation4 + $0x2c8] sm:$0x3] %vm4543, 0.0
  %4632 = vst.msk [vmem:[#allocation4 + $0x2d0] sm:$0xff] %vm3925, 0.0
  %4633 = vst.msk [vmem:[#allocation4 + $0x2d8] sm:$0xff] %vm3925, 0.0
  %4634 = vst.msk [vmem:[#allocation4 + $0x2e0] sm:$0x3] %vm4543, 0.0
  %4635 = vst.msk [vmem:[#allocation4 + $0x2e8] sm:$0xff] %vm3925, 0.0
  %4636 = vst.msk [vmem:[#allocation4 + $0x2f0] sm:$0xff] %vm3925, 0.0
  %4637 = vst.msk [vmem:[#allocation4 + $0x2f8] sm:$0x3] %vm4543, 0.0
  %4638 = vst.msk [vmem:[#allocation4 + $0x300] sm:$0xff] %vm3925, 0.0
  %4639 = vst.msk [vmem:[#allocation4 + $0x308] sm:$0xff] %vm3925, 0.0
  %4640 = vst.msk [vmem:[#allocation4 + $0x310] sm:$0x3] %vm4543, 0.0
  %4641 = vst.msk [vmem:[#allocation4 + $0x318] sm:$0xff] %vm3925, 0.0
  %4642 = vst.msk [vmem:[#allocation4 + $0x320] sm:$0xff] %vm3925, 0.0
  %4643 = vst.msk [vmem:[#allocation4 + $0x328] sm:$0x3] %vm4543, 0.0
  %4644 = vst.msk [vmem:[#allocation4 + $0x330] sm:$0xff] %vm3925, 0.0
  %4645 = vst.msk [vmem:[#allocation4 + $0x338] sm:$0xff] %vm3925, 0.0
  %4646 = vst.msk [vmem:[#allocation4 + $0x340] sm:$0x3] %vm4543, 0.0
  %4647 = vst.msk [vmem:[#allocation4 + $0x348] sm:$0xff] %vm3925, 0.0
  %4648 = vst.msk [vmem:[#allocation4 + $0x350] sm:$0xff] %vm3925, 0.0
  %4649 = vst.msk [vmem:[#allocation4 + $0x358] sm:$0x3] %vm4543, 0.0
  %s4650 = scalar_lea.vmem [#allocation4], 24
  %4651 = vst.msk [vmem:[%s4650 + $0x1] sm:$0xff] %vm3925, %v4477
  %4652 = vst.msk [vmem:[%s4650 + $0x9] sm:$0xff] %vm3925, %v4478
  %4653 = vst.msk [vmem:[%s4650 + $0x19] sm:$0xff] %vm3925, %v4479
  %4654 = vst.msk [vmem:[%s4650 + $0x21] sm:$0xff] %vm3925, %v4480
  %4655 = vst.msk [vmem:[%s4650 + $0x31] sm:$0xff] %vm3925, %v4481
  %4656 = vst.msk [vmem:[%s4650 + $0x39] sm:$0xff] %vm3925, %v4482
  %4657 = vst.msk [vmem:[%s4650 + $0x49] sm:$0xff] %vm3925, %v4483
  %4658 = vst.msk [vmem:[%s4650 + $0x51] sm:$0xff] %vm3925, %v4484
  %4659 = vst.msk [vmem:[%s4650 + $0x61] sm:$0xff] %vm3925, %v4485
  %4660 = vst.msk [vmem:[%s4650 + $0x69] sm:$0xff] %vm3925, %v4486
  %4661 = vst.msk [vmem:[%s4650 + $0x79] sm:$0xff] %vm3925, %v4487
  %4662 = vst.msk [vmem:[%s4650 + $0x81] sm:$0xff] %vm3925, %v4488
  %4663 = vst.msk [vmem:[%s4650 + $0x91] sm:$0xff] %vm3925, %v4489
  %4664 = vst.msk [vmem:[%s4650 + $0x99] sm:$0xff] %vm3925, %v4490
  %4665 = vst.msk [vmem:[%s4650 + $0xa9] sm:$0xff] %vm3925, %v4491
  %4666 = vst.msk [vmem:[%s4650 + $0xb1] sm:$0xff] %vm3925, %v4492
  %4667 = vst.msk [vmem:[%s4650 + $0xc1] sm:$0xff] %vm3925, %v4493
  %4668 = vst.msk [vmem:[%s4650 + $0xc9] sm:$0xff] %vm3925, %v4494
  %4669 = vst.msk [vmem:[%s4650 + $0xd9] sm:$0xff] %vm3925, %v4495
  %4670 = vst.msk [vmem:[%s4650 + $0xe1] sm:$0xff] %vm3925, %v4496
  %4671 = vst.msk [vmem:[%s4650 + $0xf1] sm:$0xff] %vm3925, %v4497
  %4672 = vst.msk [vmem:[%s4650 + $0xf9] sm:$0xff] %vm3925, %v4498
  %4673 = vst.msk [vmem:[%s4650 + $0x109] sm:$0xff] %vm3925, %v4499
  %4674 = vst.msk [vmem:[%s4650 + $0x111] sm:$0xff] %vm3925, %v4500
  %4675 = vst.msk [vmem:[%s4650 + $0x121] sm:$0xff] %vm3925, %v4501
  %4676 = vst.msk [vmem:[%s4650 + $0x129] sm:$0xff] %vm3925, %v4502
  %4677 = vst.msk [vmem:[%s4650 + $0x139] sm:$0xff] %vm3925, %v4503
  %4678 = vst.msk [vmem:[%s4650 + $0x141] sm:$0xff] %vm3925, %v4504
  %4679 = vst.msk [vmem:[%s4650 + $0x151] sm:$0xff] %vm3925, %v4505
  %4680 = vst.msk [vmem:[%s4650 + $0x159] sm:$0xff] %vm3925, %v4506
  %4681 = vst.msk [vmem:[%s4650 + $0x169] sm:$0xff] %vm3925, %v4507
  %4682 = vst.msk [vmem:[%s4650 + $0x171] sm:$0xff] %vm3925, %v4508
  %4683 = vst.msk [vmem:[%s4650 + $0x1b1] sm:$0xff] %vm3925, %v4509
  %4684 = vst.msk [vmem:[%s4650 + $0x1b9] sm:$0xff] %vm3925, %v4510
  %4685 = vst.msk [vmem:[%s4650 + $0x1c9] sm:$0xff] %vm3925, %v4511
  %4686 = vst.msk [vmem:[%s4650 + $0x1d1] sm:$0xff] %vm3925, %v4512
  %4687 = vst.msk [vmem:[%s4650 + $0x1e1] sm:$0xff] %vm3925, %v4513
  %4688 = vst.msk [vmem:[%s4650 + $0x1e9] sm:$0xff] %vm3925, %v4514
  %4689 = vst.msk [vmem:[%s4650 + $0x1f9] sm:$0xff] %vm3925, %v4515
  %4690 = vst.msk [vmem:[%s4650 + $0x201] sm:$0xff] %vm3925, %v4516
  %4691 = vst.msk [vmem:[%s4650 + $0x211] sm:$0xff] %vm3925, %v4517
  %4692 = vst.msk [vmem:[%s4650 + $0x219] sm:$0xff] %vm3925, %v4518
  %4693 = vst.msk [vmem:[%s4650 + $0x229] sm:$0xff] %vm3925, %v4519
  %4694 = vst.msk [vmem:[%s4650 + $0x231] sm:$0xff] %vm3925, %v4520
  %4695 = vst.msk [vmem:[%s4650 + $0x241] sm:$0xff] %vm3925, %v4521
  %4696 = vst.msk [vmem:[%s4650 + $0x249] sm:$0xff] %vm3925, %v4522
  %4697 = vst.msk [vmem:[%s4650 + $0x259] sm:$0xff] %vm3925, %v4523
  %4698 = vst.msk [vmem:[%s4650 + $0x261] sm:$0xff] %vm3925, %v4524
  %4699 = vst.msk [vmem:[%s4650 + $0x271] sm:$0xff] %vm3925, %v4525
  %4700 = vst.msk [vmem:[%s4650 + $0x279] sm:$0xff] %vm3925, %v4526
  %4701 = vst.msk [vmem:[%s4650 + $0x289] sm:$0xff] %vm3925, %v4527
  %4702 = vst.msk [vmem:[%s4650 + $0x291] sm:$0xff] %vm3925, %v4528
  %4703 = vst.msk [vmem:[%s4650 + $0x2a1] sm:$0xff] %vm3925, %v4529
  %4704 = vst.msk [vmem:[%s4650 + $0x2a9] sm:$0xff] %vm3925, %v4530
  %4705 = vst.msk [vmem:[%s4650 + $0x2b9] sm:$0xff] %vm3925, %v4531
  %4706 = vst.msk [vmem:[%s4650 + $0x2c1] sm:$0xff] %vm3925, %v4532
  %4707 = vst.msk [vmem:[%s4650 + $0x2d1] sm:$0xff] %vm3925, %v4533
  %4708 = vst.msk [vmem:[%s4650 + $0x2d9] sm:$0xff] %vm3925, %v4534
  %4709 = vst.msk [vmem:[%s4650 + $0x2e9] sm:$0xff] %vm3925, %v4535
  %4710 = vst.msk [vmem:[%s4650 + $0x2f1] sm:$0xff] %vm3925, %v4536
  %4711 = vst.msk [vmem:[%s4650 + $0x301] sm:$0xff] %vm3925, %v4537
  %4712 = vst.msk [vmem:[%s4650 + $0x309] sm:$0xff] %vm3925, %v4538
  %4713 = vst.msk [vmem:[%s4650 + $0x319] sm:$0xff] %vm3925, %v4539
  %4714 = vst.msk [vmem:[%s4650 + $0x321] sm:$0xff] %vm3925, %v4540
  %v4715 = vld [vmem:[#allocation4] sm:$0xff]
  %v4716 = vld [vmem:[#allocation4 + $0x8] sm:$0xff]
  %v4717 = vld [vmem:[#allocation4 + $0x18] sm:$0xff]
  %v4718 = vld [vmem:[#allocation4 + $0x20] sm:$0xff]
  %v4719 = vld [vmem:[#allocation4 + $0x30] sm:$0xff]
  %v4720 = vld [vmem:[#allocation4 + $0x38] sm:$0xff]
  %v4721 = vld [vmem:[#allocation4 + $0x48] sm:$0xff]
  %v4722 = vld [vmem:[#allocation4 + $0x50] sm:$0xff]
  %v4723 = vld [vmem:[#allocation4 + $0x60] sm:$0xff]
  %v4724 = vld [vmem:[#allocation4 + $0x68] sm:$0xff]
  %v4725 = vld [vmem:[#allocation4 + $0x78] sm:$0xff]
  %v4726 = vld [vmem:[#allocation4 + $0x80] sm:$0xff]
  %v4727 = vld [vmem:[#allocation4 + $0x90] sm:$0xff]
  %v4728 = vld [vmem:[#allocation4 + $0x98] sm:$0xff]
  %v4729 = vld [vmem:[#allocation4 + $0xa8] sm:$0xff]
  %v4730 = vld [vmem:[#allocation4 + $0xb0] sm:$0xff]
  %v4731 = vld [vmem:[#allocation4 + $0xc0] sm:$0xff]
  %v4732 = vld [vmem:[#allocation4 + $0xc8] sm:$0xff]
  %v4733 = vld [vmem:[#allocation4 + $0xd8] sm:$0xff]
  %v4734 = vld [vmem:[#allocation4 + $0xe0] sm:$0xff]
  %v4735 = vld [vmem:[#allocation4 + $0xf0] sm:$0xff]
  %v4736 = vld [vmem:[#allocation4 + $0xf8] sm:$0xff]
  %v4737 = vld [vmem:[#allocation4 + $0x108] sm:$0xff]
  %v4738 = vld [vmem:[#allocation4 + $0x110] sm:$0xff]
  %v4739 = vld [vmem:[#allocation4 + $0x120] sm:$0xff]
  %v4740 = vld [vmem:[#allocation4 + $0x128] sm:$0xff]
  %v4741 = vld [vmem:[#allocation4 + $0x138] sm:$0xff]
  %v4742 = vld [vmem:[#allocation4 + $0x140] sm:$0xff]
  %v4743 = vld [vmem:[#allocation4 + $0x150] sm:$0xff]
  %v4744 = vld [vmem:[#allocation4 + $0x158] sm:$0xff]
  %v4745 = vld [vmem:[#allocation4 + $0x168] sm:$0xff]
  %v4746 = vld [vmem:[#allocation4 + $0x170] sm:$0xff]
  %v4747 = vld [vmem:[#allocation4 + $0x1b0] sm:$0xff]
  %v4748 = vld [vmem:[#allocation4 + $0x1b8] sm:$0xff]
  %v4749 = vld [vmem:[#allocation4 + $0x1c8] sm:$0xff]
  %v4750 = vld [vmem:[#allocation4 + $0x1d0] sm:$0xff]
  %v4751 = vld [vmem:[#allocation4 + $0x1e0] sm:$0xff]
  %v4752 = vld [vmem:[#allocation4 + $0x1e8] sm:$0xff]
  %v4753 = vld [vmem:[#allocation4 + $0x1f8] sm:$0xff]
  %v4754 = vld [vmem:[#allocation4 + $0x200] sm:$0xff]
  %v4755 = vld [vmem:[#allocation4 + $0x210] sm:$0xff]
  %v4756 = vld [vmem:[#allocation4 + $0x218] sm:$0xff]
  %v4757 = vld [vmem:[#allocation4 + $0x228] sm:$0xff]
  %v4758 = vld [vmem:[#allocation4 + $0x230] sm:$0xff]
  %v4759 = vld [vmem:[#allocation4 + $0x240] sm:$0xff]
  %v4760 = vld [vmem:[#allocation4 + $0x248] sm:$0xff]
  %v4761 = vld [vmem:[#allocation4 + $0x258] sm:$0xff]
  %v4762 = vld [vmem:[#allocation4 + $0x260] sm:$0xff]
  %v4763 = vld [vmem:[#allocation4 + $0x270] sm:$0xff]
  %v4764 = vld [vmem:[#allocation4 + $0x278] sm:$0xff]
  %v4765 = vld [vmem:[#allocation4 + $0x288] sm:$0xff]
  %v4766 = vld [vmem:[#allocation4 + $0x290] sm:$0xff]
  %v4767 = vld [vmem:[#allocation4 + $0x2a0] sm:$0xff]
  %v4768 = vld [vmem:[#allocation4 + $0x2a8] sm:$0xff]
  %v4769 = vld [vmem:[#allocation4 + $0x2b8] sm:$0xff]
  %v4770 = vld [vmem:[#allocation4 + $0x2c0] sm:$0xff]
  %v4771 = vld [vmem:[#allocation4 + $0x2d0] sm:$0xff]
  %v4772 = vld [vmem:[#allocation4 + $0x2d8] sm:$0xff]
  %v4773 = vld [vmem:[#allocation4 + $0x2e8] sm:$0xff]
  %v4774 = vld [vmem:[#allocation4 + $0x2f0] sm:$0xff]
  %v4775 = vld [vmem:[#allocation4 + $0x300] sm:$0xff]
  %v4776 = vld [vmem:[#allocation4 + $0x308] sm:$0xff]
  %v4777 = vld [vmem:[#allocation4 + $0x318] sm:$0xff]
  %v4778 = vld [vmem:[#allocation4 + $0x320] sm:$0xff]
  %4779 = vst.msk [vmem:[#allocation5] sm:$0xff] %vm3925, %v4715
  %4780 = vst.msk [vmem:[#allocation5 + $0x8] sm:$0xff] %vm3925, %v4716
  %4781 = vst.msk [vmem:[#allocation5 + $0x10] sm:$0xff] %vm3925, %v4717
  %4782 = vst.msk [vmem:[#allocation5 + $0x18] sm:$0xff] %vm3925, %v4718
  %4783 = vst.msk [vmem:[#allocation5 + $0x20] sm:$0xff] %vm3925, %v4719
  %4784 = vst.msk [vmem:[#allocation5 + $0x28] sm:$0xff] %vm3925, %v4720
  %4785 = vst.msk [vmem:[#allocation5 + $0x30] sm:$0xff] %vm3925, %v4721
  %4786 = vst.msk [vmem:[#allocation5 + $0x38] sm:$0xff] %vm3925, %v4722
  %4787 = vst.msk [vmem:[#allocation5 + $0x40] sm:$0xff] %vm3925, %v4723
  %4788 = vst.msk [vmem:[#allocation5 + $0x48] sm:$0xff] %vm3925, %v4724
  %4789 = vst.msk [vmem:[#allocation5 + $0x50] sm:$0xff] %vm3925, %v4725
  %4790 = vst.msk [vmem:[#allocation5 + $0x58] sm:$0xff] %vm3925, %v4726
  %4791 = vst.msk [vmem:[#allocation5 + $0x60] sm:$0xff] %vm3925, %v4727
  %4792 = vst.msk [vmem:[#allocation5 + $0x68] sm:$0xff] %vm3925, %v4728
  %4793 = vst.msk [vmem:[#allocation5 + $0x70] sm:$0xff] %vm3925, %v4729
  %4794 = vst.msk [vmem:[#allocation5 + $0x78] sm:$0xff] %vm3925, %v4730
  %4795 = vst.msk [vmem:[#allocation5 + $0x80] sm:$0xff] %vm3925, %v4731
  %4796 = vst.msk [vmem:[#allocation5 + $0x88] sm:$0xff] %vm3925, %v4732
  %4797 = vst.msk [vmem:[#allocation5 + $0x90] sm:$0xff] %vm3925, %v4733
  %4798 = vst.msk [vmem:[#allocation5 + $0x98] sm:$0xff] %vm3925, %v4734
  %4799 = vst.msk [vmem:[#allocation5 + $0xa0] sm:$0xff] %vm3925, %v4735
  %4800 = vst.msk [vmem:[#allocation5 + $0xa8] sm:$0xff] %vm3925, %v4736
  %4801 = vst.msk [vmem:[#allocation5 + $0xb0] sm:$0xff] %vm3925, %v4737
  %4802 = vst.msk [vmem:[#allocation5 + $0xb8] sm:$0xff] %vm3925, %v4738
  %4803 = vst.msk [vmem:[#allocation5 + $0xc0] sm:$0xff] %vm3925, %v4739
  %4804 = vst.msk [vmem:[#allocation5 + $0xc8] sm:$0xff] %vm3925, %v4740
  %4805 = vst.msk [vmem:[#allocation5 + $0xd0] sm:$0xff] %vm3925, %v4741
  %4806 = vst.msk [vmem:[#allocation5 + $0xd8] sm:$0xff] %vm3925, %v4742
  %4807 = vst.msk [vmem:[#allocation5 + $0xe0] sm:$0xff] %vm3925, %v4743
  %4808 = vst.msk [vmem:[#allocation5 + $0xe8] sm:$0xff] %vm3925, %v4744
  %4809 = vst.msk [vmem:[#allocation5 + $0xf0] sm:$0xff] %vm3925, %v4745
  %4810 = vst.msk [vmem:[#allocation5 + $0xf8] sm:$0xff] %vm3925, %v4746
  %4811 = vst.msk [vmem:[#allocation5 + $0x100] sm:$0xff] %vm3925, %v4747
  %4812 = vst.msk [vmem:[#allocation5 + $0x108] sm:$0xff] %vm3925, %v4748
  %4813 = vst.msk [vmem:[#allocation5 + $0x110] sm:$0xff] %vm3925, %v4749
  %4814 = vst.msk [vmem:[#allocation5 + $0x118] sm:$0xff] %vm3925, %v4750
  %4815 = vst.msk [vmem:[#allocation5 + $0x120] sm:$0xff] %vm3925, %v4751
  %4816 = vst.msk [vmem:[#allocation5 + $0x128] sm:$0xff] %vm3925, %v4752
  %4817 = vst.msk [vmem:[#allocation5 + $0x130] sm:$0xff] %vm3925, %v4753
  %4818 = vst.msk [vmem:[#allocation5 + $0x138] sm:$0xff] %vm3925, %v4754
  %4819 = vst.msk [vmem:[#allocation5 + $0x140] sm:$0xff] %vm3925, %v4755
  %4820 = vst.msk [vmem:[#allocation5 + $0x148] sm:$0xff] %vm3925, %v4756
  %4821 = vst.msk [vmem:[#allocation5 + $0x150] sm:$0xff] %vm3925, %v4757
  %4822 = vst.msk [vmem:[#allocation5 + $0x158] sm:$0xff] %vm3925, %v4758
  %4823 = vst.msk [vmem:[#allocation5 + $0x160] sm:$0xff] %vm3925, %v4759
  %4824 = vst.msk [vmem:[#allocation5 + $0x168] sm:$0xff] %vm3925, %v4760
  %4825 = vst.msk [vmem:[#allocation5 + $0x170] sm:$0xff] %vm3925, %v4761
  %4826 = vst.msk [vmem:[#allocation5 + $0x178] sm:$0xff] %vm3925, %v4762
  %4827 = vst.msk [vmem:[#allocation5 + $0x180] sm:$0xff] %vm3925, %v4763
  %4828 = vst.msk [vmem:[#allocation5 + $0x188] sm:$0xff] %vm3925, %v4764
  %4829 = vst.msk [vmem:[#allocation5 + $0x190] sm:$0xff] %vm3925, %v4765
  %4830 = vst.msk [vmem:[#allocation5 + $0x198] sm:$0xff] %vm3925, %v4766
  %4831 = vst.msk [vmem:[#allocation5 + $0x1a0] sm:$0xff] %vm3925, %v4767
  %4832 = vst.msk [vmem:[#allocation5 + $0x1a8] sm:$0xff] %vm3925, %v4768
  %4833 = vst.msk [vmem:[#allocation5 + $0x1b0] sm:$0xff] %vm3925, %v4769
  %4834 = vst.msk [vmem:[#allocation5 + $0x1b8] sm:$0xff] %vm3925, %v4770
  %4835 = vst.msk [vmem:[#allocation5 + $0x1c0] sm:$0xff] %vm3925, %v4771
  %4836 = vst.msk [vmem:[#allocation5 + $0x1c8] sm:$0xff] %vm3925, %v4772
  %4837 = vst.msk [vmem:[#allocation5 + $0x1d0] sm:$0xff] %vm3925, %v4773
  %4838 = vst.msk [vmem:[#allocation5 + $0x1d8] sm:$0xff] %vm3925, %v4774
  %4839 = vst.msk [vmem:[#allocation5 + $0x1e0] sm:$0xff] %vm3925, %v4775
  %4840 = vst.msk [vmem:[#allocation5 + $0x1e8] sm:$0xff] %vm3925, %v4776
  %4841 = vst.msk [vmem:[#allocation5 + $0x1f0] sm:$0xff] %vm3925, %v4777
  %4842 = vst.msk [vmem:[#allocation5 + $0x1f8] sm:$0xff] %vm3925, %v4778
  %v4843 = vld [vmem:[#allocation4 + $0x1] sm:$0xff]
  %v4844 = vld [vmem:[#allocation4 + $0x9] sm:$0xff]
  %v4845 = vld [vmem:[#allocation4 + $0x19] sm:$0xff]
  %v4846 = vld [vmem:[#allocation4 + $0x21] sm:$0xff]
  %v4847 = vld [vmem:[#allocation4 + $0x31] sm:$0xff]
  %v4848 = vld [vmem:[#allocation4 + $0x39] sm:$0xff]
  %v4849 = vld [vmem:[#allocation4 + $0x49] sm:$0xff]
  %v4850 = vld [vmem:[#allocation4 + $0x51] sm:$0xff]
  %v4851 = vld [vmem:[#allocation4 + $0x61] sm:$0xff]
  %v4852 = vld [vmem:[#allocation4 + $0x69] sm:$0xff]
  %v4853 = vld [vmem:[#allocation4 + $0x79] sm:$0xff]
  %v4854 = vld [vmem:[#allocation4 + $0x81] sm:$0xff]
  %v4855 = vld [vmem:[#allocation4 + $0x91] sm:$0xff]
  %v4856 = vld [vmem:[#allocation4 + $0x99] sm:$0xff]
  %v4857 = vld [vmem:[#allocation4 + $0xa9] sm:$0xff]
  %v4858 = vld [vmem:[#allocation4 + $0xb1] sm:$0xff]
  %v4859 = vld [vmem:[#allocation4 + $0xc1] sm:$0xff]
  %v4860 = vld [vmem:[#allocation4 + $0xc9] sm:$0xff]
  %v4861 = vld [vmem:[#allocation4 + $0xd9] sm:$0xff]
  %v4862 = vld [vmem:[#allocation4 + $0xe1] sm:$0xff]
  %v4863 = vld [vmem:[#allocation4 + $0xf1] sm:$0xff]
  %v4864 = vld [vmem:[#allocation4 + $0xf9] sm:$0xff]
  %v4865 = vld [vmem:[#allocation4 + $0x109] sm:$0xff]
  %v4866 = vld [vmem:[#allocation4 + $0x111] sm:$0xff]
  %v4867 = vld [vmem:[#allocation4 + $0x121] sm:$0xff]
  %v4868 = vld [vmem:[#allocation4 + $0x129] sm:$0xff]
  %v4869 = vld [vmem:[#allocation4 + $0x139] sm:$0xff]
  %v4870 = vld [vmem:[#allocation4 + $0x141] sm:$0xff]
  %v4871 = vld [vmem:[#allocation4 + $0x151] sm:$0xff]
  %v4872 = vld [vmem:[#allocation4 + $0x159] sm:$0xff]
  %v4873 = vld [vmem:[#allocation4 + $0x169] sm:$0xff]
  %v4874 = vld [vmem:[#allocation4 + $0x171] sm:$0xff]
  %v4875 = vld [vmem:[#allocation4 + $0x1b1] sm:$0xff]
  %v4876 = vld [vmem:[#allocation4 + $0x1b9] sm:$0xff]
  %v4877 = vld [vmem:[#allocation4 + $0x1c9] sm:$0xff]
  %v4878 = vld [vmem:[#allocation4 + $0x1d1] sm:$0xff]
  %v4879 = vld [vmem:[#allocation4 + $0x1e1] sm:$0xff]
  %v4880 = vld [vmem:[#allocation4 + $0x1e9] sm:$0xff]
  %v4881 = vld [vmem:[#allocation4 + $0x1f9] sm:$0xff]
  %v4882 = vld [vmem:[#allocation4 + $0x201] sm:$0xff]
  %v4883 = vld [vmem:[#allocation4 + $0x211] sm:$0xff]
  %v4884 = vld [vmem:[#allocation4 + $0x219] sm:$0xff]
  %v4885 = vld [vmem:[#allocation4 + $0x229] sm:$0xff]
  %v4886 = vld [vmem:[#allocation4 + $0x231] sm:$0xff]
  %v4887 = vld [vmem:[#allocation4 + $0x241] sm:$0xff]
  %v4888 = vld [vmem:[#allocation4 + $0x249] sm:$0xff]
  %v4889 = vld [vmem:[#allocation4 + $0x259] sm:$0xff]
  %v4890 = vld [vmem:[#allocation4 + $0x261] sm:$0xff]
  %v4891 = vld [vmem:[#allocation4 + $0x271] sm:$0xff]
  %v4892 = vld [vmem:[#allocation4 + $0x279] sm:$0xff]
  %v4893 = vld [vmem:[#allocation4 + $0x289] sm:$0xff]
  %v4894 = vld [vmem:[#allocation4 + $0x291] sm:$0xff]
  %v4895 = vld [vmem:[#allocation4 + $0x2a1] sm:$0xff]
  %v4896 = vld [vmem:[#allocation4 + $0x2a9] sm:$0xff]
  %v4897 = vld [vmem:[#allocation4 + $0x2b9] sm:$0xff]
  %v4898 = vld [vmem:[#allocation4 + $0x2c1] sm:$0xff]
  %v4899 = vld [vmem:[#allocation4 + $0x2d1] sm:$0xff]
  %v4900 = vld [vmem:[#allocation4 + $0x2d9] sm:$0xff]
  %v4901 = vld [vmem:[#allocation4 + $0x2e9] sm:$0xff]
  %v4902 = vld [vmem:[#allocation4 + $0x2f1] sm:$0xff]
  %v4903 = vld [vmem:[#allocation4 + $0x301] sm:$0xff]
  %v4904 = vld [vmem:[#allocation4 + $0x309] sm:$0xff]
  %v4905 = vld [vmem:[#allocation4 + $0x319] sm:$0xff]
  %v4906 = vld [vmem:[#allocation4 + $0x321] sm:$0xff]
  %4971 = vrot.lane.b32.xlu0 %v4843, 8
  %v4972 = vpop.permute.xlu0 %4971
  %4973 = vrot.lane.b32.xlu0 %v4844, 8
  %v4974 = vpop.permute.xlu0 %4973
  %4975 = vrot.lane.b32.xlu0 %v4845, 8
  %v4976 = vpop.permute.xlu0 %4975
  %4977 = vrot.lane.b32.xlu0 %v4846, 8
  %v4978 = vpop.permute.xlu0 %4977
  %4979 = vrot.lane.b32.xlu0 %v4847, 8
  %v4980 = vpop.permute.xlu0 %4979
  %4981 = vrot.lane.b32.xlu0 %v4848, 8
  %v4982 = vpop.permute.xlu0 %4981
  %4983 = vrot.lane.b32.xlu0 %v4849, 8
  %v4984 = vpop.permute.xlu0 %4983
  %4985 = vrot.lane.b32.xlu0 %v4850, 8
  %v4986 = vpop.permute.xlu0 %4985
  %4987 = vrot.lane.b32.xlu0 %v4851, 8
  %v4988 = vpop.permute.xlu0 %4987
  %4989 = vrot.lane.b32.xlu0 %v4852, 8
  %v4990 = vpop.permute.xlu0 %4989
  %4991 = vrot.lane.b32.xlu0 %v4853, 8
  %v4992 = vpop.permute.xlu0 %4991
  %4993 = vrot.lane.b32.xlu0 %v4854, 8
  %v4994 = vpop.permute.xlu0 %4993
  %4995 = vrot.lane.b32.xlu0 %v4855, 8
  %v4996 = vpop.permute.xlu0 %4995
  %4997 = vrot.lane.b32.xlu0 %v4856, 8
  %v4998 = vpop.permute.xlu0 %4997
  %4999 = vrot.lane.b32.xlu0 %v4857, 8
  %v5000 = vpop.permute.xlu0 %4999
  %5001 = vrot.lane.b32.xlu0 %v4858, 8
  %v5002 = vpop.permute.xlu0 %5001
  %5003 = vrot.lane.b32.xlu0 %v4859, 8
  %v5004 = vpop.permute.xlu0 %5003
  %5005 = vrot.lane.b32.xlu0 %v4860, 8
  %v5006 = vpop.permute.xlu0 %5005
  %5007 = vrot.lane.b32.xlu0 %v4861, 8
  %v5008 = vpop.permute.xlu0 %5007
  %5009 = vrot.lane.b32.xlu0 %v4862, 8
  %v5010 = vpop.permute.xlu0 %5009
  %5011 = vrot.lane.b32.xlu0 %v4863, 8
  %v5012 = vpop.permute.xlu0 %5011
  %5013 = vrot.lane.b32.xlu0 %v4864, 8
  %v5014 = vpop.permute.xlu0 %5013
  %5015 = vrot.lane.b32.xlu0 %v4865, 8
  %v5016 = vpop.permute.xlu0 %5015
  %5017 = vrot.lane.b32.xlu0 %v4866, 8
  %v5018 = vpop.permute.xlu0 %5017
  %5019 = vrot.lane.b32.xlu0 %v4867, 8
  %v5020 = vpop.permute.xlu0 %5019
  %5021 = vrot.lane.b32.xlu0 %v4868, 8
  %v5022 = vpop.permute.xlu0 %5021
  %5023 = vrot.lane.b32.xlu0 %v4869, 8
  %v5024 = vpop.permute.xlu0 %5023
  %5025 = vrot.lane.b32.xlu0 %v4870, 8
  %v5026 = vpop.permute.xlu0 %5025
  %5027 = vrot.lane.b32.xlu0 %v4871, 8
  %v5028 = vpop.permute.xlu0 %5027
  %5029 = vrot.lane.b32.xlu0 %v4872, 8
  %v5030 = vpop.permute.xlu0 %5029
  %5031 = vrot.lane.b32.xlu0 %v4873, 8
  %v5032 = vpop.permute.xlu0 %5031
  %5033 = vrot.lane.b32.xlu0 %v4874, 8
  %v5034 = vpop.permute.xlu0 %5033
  %5035 = vrot.lane.b32.xlu0 %v4875, 8
  %v5036 = vpop.permute.xlu0 %5035
  %5037 = vrot.lane.b32.xlu0 %v4876, 8
  %v5038 = vpop.permute.xlu0 %5037
  %5039 = vrot.lane.b32.xlu0 %v4877, 8
  %v5040 = vpop.permute.xlu0 %5039
  %5041 = vrot.lane.b32.xlu0 %v4878, 8
  %v5042 = vpop.permute.xlu0 %5041
  %5043 = vrot.lane.b32.xlu0 %v4879, 8
  %v5044 = vpop.permute.xlu0 %5043
  %5045 = vrot.lane.b32.xlu0 %v4880, 8
  %v5046 = vpop.permute.xlu0 %5045
  %5047 = vrot.lane.b32.xlu0 %v4881, 8
  %v5048 = vpop.permute.xlu0 %5047
  %5049 = vrot.lane.b32.xlu0 %v4882, 8
  %v5050 = vpop.permute.xlu0 %5049
  %5051 = vrot.lane.b32.xlu0 %v4883, 8
  %v5052 = vpop.permute.xlu0 %5051
  %5053 = vrot.lane.b32.xlu0 %v4884, 8
  %v5054 = vpop.permute.xlu0 %5053
  %5055 = vrot.lane.b32.xlu0 %v4885, 8
  %v5056 = vpop.permute.xlu0 %5055
  %5057 = vrot.lane.b32.xlu0 %v4886, 8
  %v5058 = vpop.permute.xlu0 %5057
  %5059 = vrot.lane.b32.xlu0 %v4887, 8
  %v5060 = vpop.permute.xlu0 %5059
  %5061 = vrot.lane.b32.xlu0 %v4888, 8
  %v5062 = vpop.permute.xlu0 %5061
  %5063 = vrot.lane.b32.xlu0 %v4889, 8
  %v5064 = vpop.permute.xlu0 %5063
  %5065 = vrot.lane.b32.xlu0 %v4890, 8
  %v5066 = vpop.permute.xlu0 %5065
  %5067 = vrot.lane.b32.xlu0 %v4891, 8
  %v5068 = vpop.permute.xlu0 %5067
  %5069 = vrot.lane.b32.xlu0 %v4892, 8
  %v5070 = vpop.permute.xlu0 %5069
  %5071 = vrot.lane.b32.xlu0 %v4893, 8
  %v5072 = vpop.permute.xlu0 %5071
  %5073 = vrot.lane.b32.xlu0 %v4894, 8
  %v5074 = vpop.permute.xlu0 %5073
  %5075 = vrot.lane.b32.xlu0 %v4895, 8
  %v5076 = vpop.permute.xlu0 %5075
  %5077 = vrot.lane.b32.xlu0 %v4896, 8
  %v5078 = vpop.permute.xlu0 %5077
  %5079 = vrot.lane.b32.xlu0 %v4897, 8
  %v5080 = vpop.permute.xlu0 %5079
  %5081 = vrot.lane.b32.xlu0 %v4898, 8
  %v5082 = vpop.permute.xlu0 %5081
  %5083 = vrot.lane.b32.xlu0 %v4899, 8
  %v5084 = vpop.permute.xlu0 %5083
  %5085 = vrot.lane.b32.xlu0 %v4900, 8
  %v5086 = vpop.permute.xlu0 %5085
  %5087 = vrot.lane.b32.xlu0 %v4901, 8
  %v5088 = vpop.permute.xlu0 %5087
  %5089 = vrot.lane.b32.xlu0 %v4902, 8
  %v5090 = vpop.permute.xlu0 %5089
  %5091 = vrot.lane.b32.xlu0 %v4903, 8
  %v5092 = vpop.permute.xlu0 %5091
  %5093 = vrot.lane.b32.xlu0 %v4904, 8
  %v5094 = vpop.permute.xlu0 %5093
  %5095 = vrot.lane.b32.xlu0 %v4905, 8
  %v5096 = vpop.permute.xlu0 %5095
  %5097 = vrot.lane.b32.xlu0 %v4906, 8
  %v5098 = vpop.permute.xlu0 %5097
  %vm5163 = vcmask 130112
  %5164 = vst.msk [vmem:[#allocation5] sm:$0xff] %vm5163, %v4972
  %5165 = vst.msk [vmem:[#allocation5 + $0x8] sm:$0xff] %vm5163, %v4974
  %5166 = vst.msk [vmem:[#allocation5 + $0x10] sm:$0xff] %vm5163, %v4976
  %5167 = vst.msk [vmem:[#allocation5 + $0x18] sm:$0xff] %vm5163, %v4978
  %5168 = vst.msk [vmem:[#allocation5 + $0x20] sm:$0xff] %vm5163, %v4980
  %5169 = vst.msk [vmem:[#allocation5 + $0x28] sm:$0xff] %vm5163, %v4982
  %5170 = vst.msk [vmem:[#allocation5 + $0x30] sm:$0xff] %vm5163, %v4984
  %5171 = vst.msk [vmem:[#allocation5 + $0x38] sm:$0xff] %vm5163, %v4986
  %5172 = vst.msk [vmem:[#allocation5 + $0x40] sm:$0xff] %vm5163, %v4988
  %5173 = vst.msk [vmem:[#allocation5 + $0x48] sm:$0xff] %vm5163, %v4990
  %5174 = vst.msk [vmem:[#allocation5 + $0x50] sm:$0xff] %vm5163, %v4992
  %5175 = vst.msk [vmem:[#allocation5 + $0x58] sm:$0xff] %vm5163, %v4994
  %5176 = vst.msk [vmem:[#allocation5 + $0x60] sm:$0xff] %vm5163, %v4996
  %5177 = vst.msk [vmem:[#allocation5 + $0x68] sm:$0xff] %vm5163, %v4998
  %5178 = vst.msk [vmem:[#allocation5 + $0x70] sm:$0xff] %vm5163, %v5000
  %5179 = vst.msk [vmem:[#allocation5 + $0x78] sm:$0xff] %vm5163, %v5002
  %5180 = vst.msk [vmem:[#allocation5 + $0x80] sm:$0xff] %vm5163, %v5004
  %5181 = vst.msk [vmem:[#allocation5 + $0x88] sm:$0xff] %vm5163, %v5006
  %5182 = vst.msk [vmem:[#allocation5 + $0x90] sm:$0xff] %vm5163, %v5008
  %5183 = vst.msk [vmem:[#allocation5 + $0x98] sm:$0xff] %vm5163, %v5010
  %5184 = vst.msk [vmem:[#allocation5 + $0xa0] sm:$0xff] %vm5163, %v5012
  %5185 = vst.msk [vmem:[#allocation5 + $0xa8] sm:$0xff] %vm5163, %v5014
  %5186 = vst.msk [vmem:[#allocation5 + $0xb0] sm:$0xff] %vm5163, %v5016
  %5187 = vst.msk [vmem:[#allocation5 + $0xb8] sm:$0xff] %vm5163, %v5018
  %5188 = vst.msk [vmem:[#allocation5 + $0xc0] sm:$0xff] %vm5163, %v5020
  %5189 = vst.msk [vmem:[#allocation5 + $0xc8] sm:$0xff] %vm5163, %v5022
  %5190 = vst.msk [vmem:[#allocation5 + $0xd0] sm:$0xff] %vm5163, %v5024
  %5191 = vst.msk [vmem:[#allocation5 + $0xd8] sm:$0xff] %vm5163, %v5026
  %5192 = vst.msk [vmem:[#allocation5 + $0xe0] sm:$0xff] %vm5163, %v5028
  %5193 = vst.msk [vmem:[#allocation5 + $0xe8] sm:$0xff] %vm5163, %v5030
  %5194 = vst.msk [vmem:[#allocation5 + $0xf0] sm:$0xff] %vm5163, %v5032
  %5195 = vst.msk [vmem:[#allocation5 + $0xf8] sm:$0xff] %vm5163, %v5034
  %5196 = vst.msk [vmem:[#allocation5 + $0x100] sm:$0xff] %vm5163, %v5036
  %5197 = vst.msk [vmem:[#allocation5 + $0x108] sm:$0xff] %vm5163, %v5038
  %5198 = vst.msk [vmem:[#allocation5 + $0x110] sm:$0xff] %vm5163, %v5040
  %5199 = vst.msk [vmem:[#allocation5 + $0x118] sm:$0xff] %vm5163, %v5042
  %5200 = vst.msk [vmem:[#allocation5 + $0x120] sm:$0xff] %vm5163, %v5044
  %5201 = vst.msk [vmem:[#allocation5 + $0x128] sm:$0xff] %vm5163, %v5046
  %5202 = vst.msk [vmem:[#allocation5 + $0x130] sm:$0xff] %vm5163, %v5048
  %5203 = vst.msk [vmem:[#allocation5 + $0x138] sm:$0xff] %vm5163, %v5050
  %5204 = vst.msk [vmem:[#allocation5 + $0x140] sm:$0xff] %vm5163, %v5052
  %5205 = vst.msk [vmem:[#allocation5 + $0x148] sm:$0xff] %vm5163, %v5054
  %5206 = vst.msk [vmem:[#allocation5 + $0x150] sm:$0xff] %vm5163, %v5056
  %5207 = vst.msk [vmem:[#allocation5 + $0x158] sm:$0xff] %vm5163, %v5058
  %5208 = vst.msk [vmem:[#allocation5 + $0x160] sm:$0xff] %vm5163, %v5060
  %5209 = vst.msk [vmem:[#allocation5 + $0x168] sm:$0xff] %vm5163, %v5062
  %5210 = vst.msk [vmem:[#allocation5 + $0x170] sm:$0xff] %vm5163, %v5064
  %5211 = vst.msk [vmem:[#allocation5 + $0x178] sm:$0xff] %vm5163, %v5066
  %5212 = vst.msk [vmem:[#allocation5 + $0x180] sm:$0xff] %vm5163, %v5068
  %5213 = vst.msk [vmem:[#allocation5 + $0x188] sm:$0xff] %vm5163, %v5070
  %5214 = vst.msk [vmem:[#allocation5 + $0x190] sm:$0xff] %vm5163, %v5072
  %5215 = vst.msk [vmem:[#allocation5 + $0x198] sm:$0xff] %vm5163, %v5074
  %5216 = vst.msk [vmem:[#allocation5 + $0x1a0] sm:$0xff] %vm5163, %v5076
  %5217 = vst.msk [vmem:[#allocation5 + $0x1a8] sm:$0xff] %vm5163, %v5078
  %5218 = vst.msk [vmem:[#allocation5 + $0x1b0] sm:$0xff] %vm5163, %v5080
  %5219 = vst.msk [vmem:[#allocation5 + $0x1b8] sm:$0xff] %vm5163, %v5082
  %5220 = vst.msk [vmem:[#allocation5 + $0x1c0] sm:$0xff] %vm5163, %v5084
  %5221 = vst.msk [vmem:[#allocation5 + $0x1c8] sm:$0xff] %vm5163, %v5086
  %5222 = vst.msk [vmem:[#allocation5 + $0x1d0] sm:$0xff] %vm5163, %v5088
  %5223 = vst.msk [vmem:[#allocation5 + $0x1d8] sm:$0xff] %vm5163, %v5090
  %5224 = vst.msk [vmem:[#allocation5 + $0x1e0] sm:$0xff] %vm5163, %v5092
  %5225 = vst.msk [vmem:[#allocation5 + $0x1e8] sm:$0xff] %vm5163, %v5094
  %5226 = vst.msk [vmem:[#allocation5 + $0x1f0] sm:$0xff] %vm5163, %v5096
  %5227 = vst.msk [vmem:[#allocation5 + $0x1f8] sm:$0xff] %vm5163, %v5098
  %v5228 = vld [vmem:[#allocation4 + $0x2] sm:$0xff]
  %v5229 = vld [vmem:[#allocation4 + $0xa] sm:$0xff]
  %v5230 = vld [vmem:[#allocation4 + $0x1a] sm:$0xff]
  %v5231 = vld [vmem:[#allocation4 + $0x22] sm:$0xff]
  %v5232 = vld [vmem:[#allocation4 + $0x32] sm:$0xff]
  %v5233 = vld [vmem:[#allocation4 + $0x3a] sm:$0xff]
  %v5234 = vld [vmem:[#allocation4 + $0x4a] sm:$0xff]
  %v5235 = vld [vmem:[#allocation4 + $0x52] sm:$0xff]
  %v5236 = vld [vmem:[#allocation4 + $0x62] sm:$0xff]
  %v5237 = vld [vmem:[#allocation4 + $0x6a] sm:$0xff]
  %v5238 = vld [vmem:[#allocation4 + $0x7a] sm:$0xff]
  %v5239 = vld [vmem:[#allocation4 + $0x82] sm:$0xff]
  %v5240 = vld [vmem:[#allocation4 + $0x92] sm:$0xff]
  %v5241 = vld [vmem:[#allocation4 + $0x9a] sm:$0xff]
  %v5242 = vld [vmem:[#allocation4 + $0xaa] sm:$0xff]
  %v5243 = vld [vmem:[#allocation4 + $0xb2] sm:$0xff]
  %v5244 = vld [vmem:[#allocation4 + $0xc2] sm:$0xff]
  %v5245 = vld [vmem:[#allocation4 + $0xca] sm:$0xff]
  %v5246 = vld [vmem:[#allocation4 + $0xda] sm:$0xff]
  %v5247 = vld [vmem:[#allocation4 + $0xe2] sm:$0xff]
  %v5248 = vld [vmem:[#allocation4 + $0xf2] sm:$0xff]
  %v5249 = vld [vmem:[#allocation4 + $0xfa] sm:$0xff]
  %v5250 = vld [vmem:[#allocation4 + $0x10a] sm:$0xff]
  %v5251 = vld [vmem:[#allocation4 + $0x112] sm:$0xff]
  %v5252 = vld [vmem:[#allocation4 + $0x122] sm:$0xff]
  %v5253 = vld [vmem:[#allocation4 + $0x12a] sm:$0xff]
  %v5254 = vld [vmem:[#allocation4 + $0x13a] sm:$0xff]
  %v5255 = vld [vmem:[#allocation4 + $0x142] sm:$0xff]
  %v5256 = vld [vmem:[#allocation4 + $0x152] sm:$0xff]
  %v5257 = vld [vmem:[#allocation4 + $0x15a] sm:$0xff]
  %v5258 = vld [vmem:[#allocation4 + $0x16a] sm:$0xff]
  %v5259 = vld [vmem:[#allocation4 + $0x172] sm:$0xff]
  %v5260 = vld [vmem:[#allocation4 + $0x1b2] sm:$0xff]
  %v5261 = vld [vmem:[#allocation4 + $0x1ba] sm:$0xff]
  %v5262 = vld [vmem:[#allocation4 + $0x1ca] sm:$0xff]
  %v5263 = vld [vmem:[#allocation4 + $0x1d2] sm:$0xff]
  %v5264 = vld [vmem:[#allocation4 + $0x1e2] sm:$0xff]
  %v5265 = vld [vmem:[#allocation4 + $0x1ea] sm:$0xff]
  %v5266 = vld [vmem:[#allocation4 + $0x1fa] sm:$0xff]
  %v5267 = vld [vmem:[#allocation4 + $0x202] sm:$0xff]
  %v5268 = vld [vmem:[#allocation4 + $0x212] sm:$0xff]
  %v5269 = vld [vmem:[#allocation4 + $0x21a] sm:$0xff]
  %v5270 = vld [vmem:[#allocation4 + $0x22a] sm:$0xff]
  %v5271 = vld [vmem:[#allocation4 + $0x232] sm:$0xff]
  %v5272 = vld [vmem:[#allocation4 + $0x242] sm:$0xff]
  %v5273 = vld [vmem:[#allocation4 + $0x24a] sm:$0xff]
  %v5274 = vld [vmem:[#allocation4 + $0x25a] sm:$0xff]
  %v5275 = vld [vmem:[#allocation4 + $0x262] sm:$0xff]
  %v5276 = vld [vmem:[#allocation4 + $0x272] sm:$0xff]
  %v5277 = vld [vmem:[#allocation4 + $0x27a] sm:$0xff]
  %v5278 = vld [vmem:[#allocation4 + $0x28a] sm:$0xff]
  %v5279 = vld [vmem:[#allocation4 + $0x292] sm:$0xff]
  %v5280 = vld [vmem:[#allocation4 + $0x2a2] sm:$0xff]
  %v5281 = vld [vmem:[#allocation4 + $0x2aa] sm:$0xff]
  %v5282 = vld [vmem:[#allocation4 + $0x2ba] sm:$0xff]
  %v5283 = vld [vmem:[#allocation4 + $0x2c2] sm:$0xff]
  %v5284 = vld [vmem:[#allocation4 + $0x2d2] sm:$0xff]
  %v5285 = vld [vmem:[#allocation4 + $0x2da] sm:$0xff]
  %v5286 = vld [vmem:[#allocation4 + $0x2ea] sm:$0xff]
  %v5287 = vld [vmem:[#allocation4 + $0x2f2] sm:$0xff]
  %v5288 = vld [vmem:[#allocation4 + $0x302] sm:$0xff]
  %v5289 = vld [vmem:[#allocation4 + $0x30a] sm:$0xff]
  %v5290 = vld [vmem:[#allocation4 + $0x31a] sm:$0xff]
  %v5291 = vld [vmem:[#allocation4 + $0x322] sm:$0xff]
  %5356 = vrot.lane.b32.xlu0 %v5228, 16
  %v5357 = vpop.permute.xlu0 %5356
  %5358 = vrot.lane.b32.xlu0 %v5229, 16
  %v5359 = vpop.permute.xlu0 %5358
  %5360 = vrot.lane.b32.xlu0 %v5230, 16
  %v5361 = vpop.permute.xlu0 %5360
  %5362 = vrot.lane.b32.xlu0 %v5231, 16
  %v5363 = vpop.permute.xlu0 %5362
  %5364 = vrot.lane.b32.xlu0 %v5232, 16
  %v5365 = vpop.permute.xlu0 %5364
  %5366 = vrot.lane.b32.xlu0 %v5233, 16
  %v5367 = vpop.permute.xlu0 %5366
  %5368 = vrot.lane.b32.xlu0 %v5234, 16
  %v5369 = vpop.permute.xlu0 %5368
  %5370 = vrot.lane.b32.xlu0 %v5235, 16
  %v5371 = vpop.permute.xlu0 %5370
  %5372 = vrot.lane.b32.xlu0 %v5236, 16
  %v5373 = vpop.permute.xlu0 %5372
  %5374 = vrot.lane.b32.xlu0 %v5237, 16
  %v5375 = vpop.permute.xlu0 %5374
  %5376 = vrot.lane.b32.xlu0 %v5238, 16
  %v5377 = vpop.permute.xlu0 %5376
  %5378 = vrot.lane.b32.xlu0 %v5239, 16
  %v5379 = vpop.permute.xlu0 %5378
  %5380 = vrot.lane.b32.xlu0 %v5240, 16
  %v5381 = vpop.permute.xlu0 %5380
  %5382 = vrot.lane.b32.xlu0 %v5241, 16
  %v5383 = vpop.permute.xlu0 %5382
  %5384 = vrot.lane.b32.xlu0 %v5242, 16
  %v5385 = vpop.permute.xlu0 %5384
  %5386 = vrot.lane.b32.xlu0 %v5243, 16
  %v5387 = vpop.permute.xlu0 %5386
  %5388 = vrot.lane.b32.xlu0 %v5244, 16
  %v5389 = vpop.permute.xlu0 %5388
  %5390 = vrot.lane.b32.xlu0 %v5245, 16
  %v5391 = vpop.permute.xlu0 %5390
  %5392 = vrot.lane.b32.xlu0 %v5246, 16
  %v5393 = vpop.permute.xlu0 %5392
  %5394 = vrot.lane.b32.xlu0 %v5247, 16
  %v5395 = vpop.permute.xlu0 %5394
  %5396 = vrot.lane.b32.xlu0 %v5248, 16
  %v5397 = vpop.permute.xlu0 %5396
  %5398 = vrot.lane.b32.xlu0 %v5249, 16
  %v5399 = vpop.permute.xlu0 %5398
  %5400 = vrot.lane.b32.xlu0 %v5250, 16
  %v5401 = vpop.permute.xlu0 %5400
  %5402 = vrot.lane.b32.xlu0 %v5251, 16
  %v5403 = vpop.permute.xlu0 %5402
  %5404 = vrot.lane.b32.xlu0 %v5252, 16
  %v5405 = vpop.permute.xlu0 %5404
  %5406 = vrot.lane.b32.xlu0 %v5253, 16
  %v5407 = vpop.permute.xlu0 %5406
  %5408 = vrot.lane.b32.xlu0 %v5254, 16
  %v5409 = vpop.permute.xlu0 %5408
  %5410 = vrot.lane.b32.xlu0 %v5255, 16
  %v5411 = vpop.permute.xlu0 %5410
  %5412 = vrot.lane.b32.xlu0 %v5256, 16
  %v5413 = vpop.permute.xlu0 %5412
  %5414 = vrot.lane.b32.xlu0 %v5257, 16
  %v5415 = vpop.permute.xlu0 %5414
  %5416 = vrot.lane.b32.xlu0 %v5258, 16
  %v5417 = vpop.permute.xlu0 %5416
  %5418 = vrot.lane.b32.xlu0 %v5259, 16
  %v5419 = vpop.permute.xlu0 %5418
  %5420 = vrot.lane.b32.xlu0 %v5260, 16
  %v5421 = vpop.permute.xlu0 %5420
  %5422 = vrot.lane.b32.xlu0 %v5261, 16
  %v5423 = vpop.permute.xlu0 %5422
  %5424 = vrot.lane.b32.xlu0 %v5262, 16
  %v5425 = vpop.permute.xlu0 %5424
  %5426 = vrot.lane.b32.xlu0 %v5263, 16
  %v5427 = vpop.permute.xlu0 %5426
  %5428 = vrot.lane.b32.xlu0 %v5264, 16
  %v5429 = vpop.permute.xlu0 %5428
  %5430 = vrot.lane.b32.xlu0 %v5265, 16
  %v5431 = vpop.permute.xlu0 %5430
  %5432 = vrot.lane.b32.xlu0 %v5266, 16
  %v5433 = vpop.permute.xlu0 %5432
  %5434 = vrot.lane.b32.xlu0 %v5267, 16
  %v5435 = vpop.permute.xlu0 %5434
  %5436 = vrot.lane.b32.xlu0 %v5268, 16
  %v5437 = vpop.permute.xlu0 %5436
  %5438 = vrot.lane.b32.xlu0 %v5269, 16
  %v5439 = vpop.permute.xlu0 %5438
  %5440 = vrot.lane.b32.xlu0 %v5270, 16
  %v5441 = vpop.permute.xlu0 %5440
  %5442 = vrot.lane.b32.xlu0 %v5271, 16
  %v5443 = vpop.permute.xlu0 %5442
  %5444 = vrot.lane.b32.xlu0 %v5272, 16
  %v5445 = vpop.permute.xlu0 %5444
  %5446 = vrot.lane.b32.xlu0 %v5273, 16
  %v5447 = vpop.permute.xlu0 %5446
  %5448 = vrot.lane.b32.xlu0 %v5274, 16
  %v5449 = vpop.permute.xlu0 %5448
  %5450 = vrot.lane.b32.xlu0 %v5275, 16
  %v5451 = vpop.permute.xlu0 %5450
  %5452 = vrot.lane.b32.xlu0 %v5276, 16
  %v5453 = vpop.permute.xlu0 %5452
  %5454 = vrot.lane.b32.xlu0 %v5277, 16
  %v5455 = vpop.permute.xlu0 %5454
  %5456 = vrot.lane.b32.xlu0 %v5278, 16
  %v5457 = vpop.permute.xlu0 %5456
  %5458 = vrot.lane.b32.xlu0 %v5279, 16
  %v5459 = vpop.permute.xlu0 %5458
  %5460 = vrot.lane.b32.xlu0 %v5280, 16
  %v5461 = vpop.permute.xlu0 %5460
  %5462 = vrot.lane.b32.xlu0 %v5281, 16
  %v5463 = vpop.permute.xlu0 %5462
  %5464 = vrot.lane.b32.xlu0 %v5282, 16
  %v5465 = vpop.permute.xlu0 %5464
  %5466 = vrot.lane.b32.xlu0 %v5283, 16
  %v5467 = vpop.permute.xlu0 %5466
  %5468 = vrot.lane.b32.xlu0 %v5284, 16
  %v5469 = vpop.permute.xlu0 %5468
  %5470 = vrot.lane.b32.xlu0 %v5285, 16
  %v5471 = vpop.permute.xlu0 %5470
  %5472 = vrot.lane.b32.xlu0 %v5286, 16
  %v5473 = vpop.permute.xlu0 %5472
  %5474 = vrot.lane.b32.xlu0 %v5287, 16
  %v5475 = vpop.permute.xlu0 %5474
  %5476 = vrot.lane.b32.xlu0 %v5288, 16
  %v5477 = vpop.permute.xlu0 %5476
  %5478 = vrot.lane.b32.xlu0 %v5289, 16
  %v5479 = vpop.permute.xlu0 %5478
  %5480 = vrot.lane.b32.xlu0 %v5290, 16
  %v5481 = vpop.permute.xlu0 %5480
  %5482 = vrot.lane.b32.xlu0 %v5291, 16
  %v5483 = vpop.permute.xlu0 %5482
  %vm5548 = vcmask 195712
  %5549 = vst.msk [vmem:[#allocation5] sm:$0xff] %vm5548, %v5357
  %5550 = vst.msk [vmem:[#allocation5 + $0x8] sm:$0xff] %vm5548, %v5359
  %5551 = vst.msk [vmem:[#allocation5 + $0x10] sm:$0xff] %vm5548, %v5361
  %5552 = vst.msk [vmem:[#allocation5 + $0x18] sm:$0xff] %vm5548, %v5363
  %5553 = vst.msk [vmem:[#allocation5 + $0x20] sm:$0xff] %vm5548, %v5365
  %5554 = vst.msk [vmem:[#allocation5 + $0x28] sm:$0xff] %vm5548, %v5367
  %5555 = vst.msk [vmem:[#allocation5 + $0x30] sm:$0xff] %vm5548, %v5369
  %5556 = vst.msk [vmem:[#allocation5 + $0x38] sm:$0xff] %vm5548, %v5371
  %5557 = vst.msk [vmem:[#allocation5 + $0x40] sm:$0xff] %vm5548, %v5373
  %5558 = vst.msk [vmem:[#allocation5 + $0x48] sm:$0xff] %vm5548, %v5375
  %5559 = vst.msk [vmem:[#allocation5 + $0x50] sm:$0xff] %vm5548, %v5377
  %5560 = vst.msk [vmem:[#allocation5 + $0x58] sm:$0xff] %vm5548, %v5379
  %5561 = vst.msk [vmem:[#allocation5 + $0x60] sm:$0xff] %vm5548, %v5381
  %5562 = vst.msk [vmem:[#allocation5 + $0x68] sm:$0xff] %vm5548, %v5383
  %5563 = vst.msk [vmem:[#allocation5 + $0x70] sm:$0xff] %vm5548, %v5385
  %5564 = vst.msk [vmem:[#allocation5 + $0x78] sm:$0xff] %vm5548, %v5387
  %5565 = vst.msk [vmem:[#allocation5 + $0x80] sm:$0xff] %vm5548, %v5389
  %5566 = vst.msk [vmem:[#allocation5 + $0x88] sm:$0xff] %vm5548, %v5391
  %5567 = vst.msk [vmem:[#allocation5 + $0x90] sm:$0xff] %vm5548, %v5393
  %5568 = vst.msk [vmem:[#allocation5 + $0x98] sm:$0xff] %vm5548, %v5395
  %5569 = vst.msk [vmem:[#allocation5 + $0xa0] sm:$0xff] %vm5548, %v5397
  %5570 = vst.msk [vmem:[#allocation5 + $0xa8] sm:$0xff] %vm5548, %v5399
  %5571 = vst.msk [vmem:[#allocation5 + $0xb0] sm:$0xff] %vm5548, %v5401
  %5572 = vst.msk [vmem:[#allocation5 + $0xb8] sm:$0xff] %vm5548, %v5403
  %5573 = vst.msk [vmem:[#allocation5 + $0xc0] sm:$0xff] %vm5548, %v5405
  %5574 = vst.msk [vmem:[#allocation5 + $0xc8] sm:$0xff] %vm5548, %v5407
  %5575 = vst.msk [vmem:[#allocation5 + $0xd0] sm:$0xff] %vm5548, %v5409
  %5576 = vst.msk [vmem:[#allocation5 + $0xd8] sm:$0xff] %vm5548, %v5411
  %5577 = vst.msk [vmem:[#allocation5 + $0xe0] sm:$0xff] %vm5548, %v5413
  %5578 = vst.msk [vmem:[#allocation5 + $0xe8] sm:$0xff] %vm5548, %v5415
  %5579 = vst.msk [vmem:[#allocation5 + $0xf0] sm:$0xff] %vm5548, %v5417
  %5580 = vst.msk [vmem:[#allocation5 + $0xf8] sm:$0xff] %vm5548, %v5419
  %5581 = vst.msk [vmem:[#allocation5 + $0x100] sm:$0xff] %vm5548, %v5421
  %5582 = vst.msk [vmem:[#allocation5 + $0x108] sm:$0xff] %vm5548, %v5423
  %5583 = vst.msk [vmem:[#allocation5 + $0x110] sm:$0xff] %vm5548, %v5425
  %5584 = vst.msk [vmem:[#allocation5 + $0x118] sm:$0xff] %vm5548, %v5427
  %5585 = vst.msk [vmem:[#allocation5 + $0x120] sm:$0xff] %vm5548, %v5429
  %5586 = vst.msk [vmem:[#allocation5 + $0x128] sm:$0xff] %vm5548, %v5431
  %5587 = vst.msk [vmem:[#allocation5 + $0x130] sm:$0xff] %vm5548, %v5433
  %5588 = vst.msk [vmem:[#allocation5 + $0x138] sm:$0xff] %vm5548, %v5435
  %5589 = vst.msk [vmem:[#allocation5 + $0x140] sm:$0xff] %vm5548, %v5437
  %5590 = vst.msk [vmem:[#allocation5 + $0x148] sm:$0xff] %vm5548, %v5439
  %5591 = vst.msk [vmem:[#allocation5 + $0x150] sm:$0xff] %vm5548, %v5441
  %5592 = vst.msk [vmem:[#allocation5 + $0x158] sm:$0xff] %vm5548, %v5443
  %5593 = vst.msk [vmem:[#allocation5 + $0x160] sm:$0xff] %vm5548, %v5445
  %5594 = vst.msk [vmem:[#allocation5 + $0x168] sm:$0xff] %vm5548, %v5447
  %5595 = vst.msk [vmem:[#allocation5 + $0x170] sm:$0xff] %vm5548, %v5449
  %5596 = vst.msk [vmem:[#allocation5 + $0x178] sm:$0xff] %vm5548, %v5451
  %5597 = vst.msk [vmem:[#allocation5 + $0x180] sm:$0xff] %vm5548, %v5453
  %5598 = vst.msk [vmem:[#allocation5 + $0x188] sm:$0xff] %vm5548, %v5455
  %5599 = vst.msk [vmem:[#allocation5 + $0x190] sm:$0xff] %vm5548, %v5457
  %5600 = vst.msk [vmem:[#allocation5 + $0x198] sm:$0xff] %vm5548, %v5459
  %5601 = vst.msk [vmem:[#allocation5 + $0x1a0] sm:$0xff] %vm5548, %v5461
  %5602 = vst.msk [vmem:[#allocation5 + $0x1a8] sm:$0xff] %vm5548, %v5463
  %5603 = vst.msk [vmem:[#allocation5 + $0x1b0] sm:$0xff] %vm5548, %v5465
  %5604 = vst.msk [vmem:[#allocation5 + $0x1b8] sm:$0xff] %vm5548, %v5467
  %5605 = vst.msk [vmem:[#allocation5 + $0x1c0] sm:$0xff] %vm5548, %v5469
  %5606 = vst.msk [vmem:[#allocation5 + $0x1c8] sm:$0xff] %vm5548, %v5471
  %5607 = vst.msk [vmem:[#allocation5 + $0x1d0] sm:$0xff] %vm5548, %v5473
  %5608 = vst.msk [vmem:[#allocation5 + $0x1d8] sm:$0xff] %vm5548, %v5475
  %5609 = vst.msk [vmem:[#allocation5 + $0x1e0] sm:$0xff] %vm5548, %v5477
  %5610 = vst.msk [vmem:[#allocation5 + $0x1e8] sm:$0xff] %vm5548, %v5479
  %5611 = vst.msk [vmem:[#allocation5 + $0x1f0] sm:$0xff] %vm5548, %v5481
  %5612 = vst.msk [vmem:[#allocation5 + $0x1f8] sm:$0xff] %vm5548, %v5483
  %v5613 = vld [vmem:[%s4650] sm:$0xff]
  %v5614 = vld [vmem:[%s4650 + $0x8] sm:$0xff]
  %v5615 = vld [vmem:[%s4650 + $0x18] sm:$0xff]
  %v5616 = vld [vmem:[%s4650 + $0x20] sm:$0xff]
  %v5617 = vld [vmem:[%s4650 + $0x30] sm:$0xff]
  %v5618 = vld [vmem:[%s4650 + $0x38] sm:$0xff]
  %v5619 = vld [vmem:[%s4650 + $0x48] sm:$0xff]
  %v5620 = vld [vmem:[%s4650 + $0x50] sm:$0xff]
  %v5621 = vld [vmem:[%s4650 + $0x60] sm:$0xff]
  %v5622 = vld [vmem:[%s4650 + $0x68] sm:$0xff]
  %v5623 = vld [vmem:[%s4650 + $0x78] sm:$0xff]
  %v5624 = vld [vmem:[%s4650 + $0x80] sm:$0xff]
  %v5625 = vld [vmem:[%s4650 + $0x90] sm:$0xff]
  %v5626 = vld [vmem:[%s4650 + $0x98] sm:$0xff]
  %v5627 = vld [vmem:[%s4650 + $0xa8] sm:$0xff]
  %v5628 = vld [vmem:[%s4650 + $0xb0] sm:$0xff]
  %v5629 = vld [vmem:[%s4650 + $0xc0] sm:$0xff]
  %v5630 = vld [vmem:[%s4650 + $0xc8] sm:$0xff]
  %v5631 = vld [vmem:[%s4650 + $0xd8] sm:$0xff]
  %v5632 = vld [vmem:[%s4650 + $0xe0] sm:$0xff]
  %v5633 = vld [vmem:[%s4650 + $0xf0] sm:$0xff]
  %v5634 = vld [vmem:[%s4650 + $0xf8] sm:$0xff]
  %v5635 = vld [vmem:[%s4650 + $0x108] sm:$0xff]
  %v5636 = vld [vmem:[%s4650 + $0x110] sm:$0xff]
  %v5637 = vld [vmem:[%s4650 + $0x120] sm:$0xff]
  %v5638 = vld [vmem:[%s4650 + $0x128] sm:$0xff]
  %v5639 = vld [vmem:[%s4650 + $0x138] sm:$0xff]
  %v5640 = vld [vmem:[%s4650 + $0x140] sm:$0xff]
  %v5641 = vld [vmem:[%s4650 + $0x150] sm:$0xff]
  %v5642 = vld [vmem:[%s4650 + $0x158] sm:$0xff]
  %v5643 = vld [vmem:[%s4650 + $0x168] sm:$0xff]
  %v5644 = vld [vmem:[%s4650 + $0x170] sm:$0xff]
  %v5645 = vld [vmem:[%s4650 + $0x1b0] sm:$0xff]
  %v5646 = vld [vmem:[%s4650 + $0x1b8] sm:$0xff]
  %v5647 = vld [vmem:[%s4650 + $0x1c8] sm:$0xff]
  %v5648 = vld [vmem:[%s4650 + $0x1d0] sm:$0xff]
  %v5649 = vld [vmem:[%s4650 + $0x1e0] sm:$0xff]
  %v5650 = vld [vmem:[%s4650 + $0x1e8] sm:$0xff]
  %v5651 = vld [vmem:[%s4650 + $0x1f8] sm:$0xff]
  %v5652 = vld [vmem:[%s4650 + $0x200] sm:$0xff]
  %v5653 = vld [vmem:[%s4650 + $0x210] sm:$0xff]
  %v5654 = vld [vmem:[%s4650 + $0x218] sm:$0xff]
  %v5655 = vld [vmem:[%s4650 + $0x228] sm:$0xff]
  %v5656 = vld [vmem:[%s4650 + $0x230] sm:$0xff]
  %v5657 = vld [vmem:[%s4650 + $0x240] sm:$0xff]
  %v5658 = vld [vmem:[%s4650 + $0x248] sm:$0xff]
  %v5659 = vld [vmem:[%s4650 + $0x258] sm:$0xff]
  %v5660 = vld [vmem:[%s4650 + $0x260] sm:$0xff]
  %v5661 = vld [vmem:[%s4650 + $0x270] sm:$0xff]
  %v5662 = vld [vmem:[%s4650 + $0x278] sm:$0xff]
  %v5663 = vld [vmem:[%s4650 + $0x288] sm:$0xff]
  %v5664 = vld [vmem:[%s4650 + $0x290] sm:$0xff]
  %v5665 = vld [vmem:[%s4650 + $0x2a0] sm:$0xff]
  %v5666 = vld [vmem:[%s4650 + $0x2a8] sm:$0xff]
  %v5667 = vld [vmem:[%s4650 + $0x2b8] sm:$0xff]
  %v5668 = vld [vmem:[%s4650 + $0x2c0] sm:$0xff]
  %v5669 = vld [vmem:[%s4650 + $0x2d0] sm:$0xff]
  %v5670 = vld [vmem:[%s4650 + $0x2d8] sm:$0xff]
  %v5671 = vld [vmem:[%s4650 + $0x2e8] sm:$0xff]
  %v5672 = vld [vmem:[%s4650 + $0x2f0] sm:$0xff]
  %v5673 = vld [vmem:[%s4650 + $0x300] sm:$0xff]
  %v5674 = vld [vmem:[%s4650 + $0x308] sm:$0xff]
  %v5675 = vld [vmem:[%s4650 + $0x318] sm:$0xff]
  %v5676 = vld [vmem:[%s4650 + $0x320] sm:$0xff]
  %5741 = vrot.lane.b32.xlu0 %v5613, 24
  %v5742 = vpop.permute.xlu0 %5741
  %5743 = vrot.lane.b32.xlu0 %v5614, 24
  %v5744 = vpop.permute.xlu0 %5743
  %5745 = vrot.lane.b32.xlu0 %v5615, 24
  %v5746 = vpop.permute.xlu0 %5745
  %5747 = vrot.lane.b32.xlu0 %v5616, 24
  %v5748 = vpop.permute.xlu0 %5747
  %5749 = vrot.lane.b32.xlu0 %v5617, 24
  %v5750 = vpop.permute.xlu0 %5749
  %5751 = vrot.lane.b32.xlu0 %v5618, 24
  %v5752 = vpop.permute.xlu0 %5751
  %5753 = vrot.lane.b32.xlu0 %v5619, 24
  %v5754 = vpop.permute.xlu0 %5753
  %5755 = vrot.lane.b32.xlu0 %v5620, 24
  %v5756 = vpop.permute.xlu0 %5755
  %5757 = vrot.lane.b32.xlu0 %v5621, 24
  %v5758 = vpop.permute.xlu0 %5757
  %5759 = vrot.lane.b32.xlu0 %v5622, 24
  %v5760 = vpop.permute.xlu0 %5759
  %5761 = vrot.lane.b32.xlu0 %v5623, 24
  %v5762 = vpop.permute.xlu0 %5761
  %5763 = vrot.lane.b32.xlu0 %v5624, 24
  %v5764 = vpop.permute.xlu0 %5763
  %5765 = vrot.lane.b32.xlu0 %v5625, 24
  %v5766 = vpop.permute.xlu0 %5765
  %5767 = vrot.lane.b32.xlu0 %v5626, 24
  %v5768 = vpop.permute.xlu0 %5767
  %5769 = vrot.lane.b32.xlu0 %v5627, 24
  %v5770 = vpop.permute.xlu0 %5769
  %5771 = vrot.lane.b32.xlu0 %v5628, 24
  %v5772 = vpop.permute.xlu0 %5771
  %5773 = vrot.lane.b32.xlu0 %v5629, 24
  %v5774 = vpop.permute.xlu0 %5773
  %5775 = vrot.lane.b32.xlu0 %v5630, 24
  %v5776 = vpop.permute.xlu0 %5775
  %5777 = vrot.lane.b32.xlu0 %v5631, 24
  %v5778 = vpop.permute.xlu0 %5777
  %5779 = vrot.lane.b32.xlu0 %v5632, 24
  %v5780 = vpop.permute.xlu0 %5779
  %5781 = vrot.lane.b32.xlu0 %v5633, 24
  %v5782 = vpop.permute.xlu0 %5781
  %5783 = vrot.lane.b32.xlu0 %v5634, 24
  %v5784 = vpop.permute.xlu0 %5783
  %5785 = vrot.lane.b32.xlu0 %v5635, 24
  %v5786 = vpop.permute.xlu0 %5785
  %5787 = vrot.lane.b32.xlu0 %v5636, 24
  %v5788 = vpop.permute.xlu0 %5787
  %5789 = vrot.lane.b32.xlu0 %v5637, 24
  %v5790 = vpop.permute.xlu0 %5789
  %5791 = vrot.lane.b32.xlu0 %v5638, 24
  %v5792 = vpop.permute.xlu0 %5791
  %5793 = vrot.lane.b32.xlu0 %v5639, 24
  %v5794 = vpop.permute.xlu0 %5793
  %5795 = vrot.lane.b32.xlu0 %v5640, 24
  %v5796 = vpop.permute.xlu0 %5795
  %5797 = vrot.lane.b32.xlu0 %v5641, 24
  %v5798 = vpop.permute.xlu0 %5797
  %5799 = vrot.lane.b32.xlu0 %v5642, 24
  %v5800 = vpop.permute.xlu0 %5799
  %5801 = vrot.lane.b32.xlu0 %v5643, 24
  %v5802 = vpop.permute.xlu0 %5801
  %5803 = vrot.lane.b32.xlu0 %v5644, 24
  %v5804 = vpop.permute.xlu0 %5803
  %5805 = vrot.lane.b32.xlu0 %v5645, 24
  %v5806 = vpop.permute.xlu0 %5805
  %5807 = vrot.lane.b32.xlu0 %v5646, 24
  %v5808 = vpop.permute.xlu0 %5807
  %5809 = vrot.lane.b32.xlu0 %v5647, 24
  %v5810 = vpop.permute.xlu0 %5809
  %5811 = vrot.lane.b32.xlu0 %v5648, 24
  %v5812 = vpop.permute.xlu0 %5811
  %5813 = vrot.lane.b32.xlu0 %v5649, 24
  %v5814 = vpop.permute.xlu0 %5813
  %5815 = vrot.lane.b32.xlu0 %v5650, 24
  %v5816 = vpop.permute.xlu0 %5815
  %5817 = vrot.lane.b32.xlu0 %v5651, 24
  %v5818 = vpop.permute.xlu0 %5817
  %5819 = vrot.lane.b32.xlu0 %v5652, 24
  %v5820 = vpop.permute.xlu0 %5819
  %5821 = vrot.lane.b32.xlu0 %v5653, 24
  %v5822 = vpop.permute.xlu0 %5821
  %5823 = vrot.lane.b32.xlu0 %v5654, 24
  %v5824 = vpop.permute.xlu0 %5823
  %5825 = vrot.lane.b32.xlu0 %v5655, 24
  %v5826 = vpop.permute.xlu0 %5825
  %5827 = vrot.lane.b32.xlu0 %v5656, 24
  %v5828 = vpop.permute.xlu0 %5827
  %5829 = vrot.lane.b32.xlu0 %v5657, 24
  %v5830 = vpop.permute.xlu0 %5829
  %5831 = vrot.lane.b32.xlu0 %v5658, 24
  %v5832 = vpop.permute.xlu0 %5831
  %5833 = vrot.lane.b32.xlu0 %v5659, 24
  %v5834 = vpop.permute.xlu0 %5833
  %5835 = vrot.lane.b32.xlu0 %v5660, 24
  %v5836 = vpop.permute.xlu0 %5835
  %5837 = vrot.lane.b32.xlu0 %v5661, 24
  %v5838 = vpop.permute.xlu0 %5837
  %5839 = vrot.lane.b32.xlu0 %v5662, 24
  %v5840 = vpop.permute.xlu0 %5839
  %5841 = vrot.lane.b32.xlu0 %v5663, 24
  %v5842 = vpop.permute.xlu0 %5841
  %5843 = vrot.lane.b32.xlu0 %v5664, 24
  %v5844 = vpop.permute.xlu0 %5843
  %5845 = vrot.lane.b32.xlu0 %v5665, 24
  %v5846 = vpop.permute.xlu0 %5845
  %5847 = vrot.lane.b32.xlu0 %v5666, 24
  %v5848 = vpop.permute.xlu0 %5847
  %5849 = vrot.lane.b32.xlu0 %v5667, 24
  %v5850 = vpop.permute.xlu0 %5849
  %5851 = vrot.lane.b32.xlu0 %v5668, 24
  %v5852 = vpop.permute.xlu0 %5851
  %5853 = vrot.lane.b32.xlu0 %v5669, 24
  %v5854 = vpop.permute.xlu0 %5853
  %5855 = vrot.lane.b32.xlu0 %v5670, 24
  %v5856 = vpop.permute.xlu0 %5855
  %5857 = vrot.lane.b32.xlu0 %v5671, 24
  %v5858 = vpop.permute.xlu0 %5857
  %5859 = vrot.lane.b32.xlu0 %v5672, 24
  %v5860 = vpop.permute.xlu0 %5859
  %5861 = vrot.lane.b32.xlu0 %v5673, 24
  %v5862 = vpop.permute.xlu0 %5861
  %5863 = vrot.lane.b32.xlu0 %v5674, 24
  %v5864 = vpop.permute.xlu0 %5863
  %5865 = vrot.lane.b32.xlu0 %v5675, 24
  %v5866 = vpop.permute.xlu0 %5865
  %5867 = vrot.lane.b32.xlu0 %v5676, 24
  %v5868 = vpop.permute.xlu0 %5867
  %vm5933 = vcmask 261312
  %5934 = vst.msk [vmem:[#allocation5] sm:$0xff] %vm5933, %v5742
  %5935 = vst.msk [vmem:[#allocation5 + $0x8] sm:$0xff] %vm5933, %v5744
  %5936 = vst.msk [vmem:[#allocation5 + $0x10] sm:$0xff] %vm5933, %v5746
  %5937 = vst.msk [vmem:[#allocation5 + $0x18] sm:$0xff] %vm5933, %v5748
  %5938 = vst.msk [vmem:[#allocation5 + $0x20] sm:$0xff] %vm5933, %v5750
  %5939 = vst.msk [vmem:[#allocation5 + $0x28] sm:$0xff] %vm5933, %v5752
  %5940 = vst.msk [vmem:[#allocation5 + $0x30] sm:$0xff] %vm5933, %v5754
  %5941 = vst.msk [vmem:[#allocation5 + $0x38] sm:$0xff] %vm5933, %v5756
  %5942 = vst.msk [vmem:[#allocation5 + $0x40] sm:$0xff] %vm5933, %v5758
  %5943 = vst.msk [vmem:[#allocation5 + $0x48] sm:$0xff] %vm5933, %v5760
  %5944 = vst.msk [vmem:[#allocation5 + $0x50] sm:$0xff] %vm5933, %v5762
  %5945 = vst.msk [vmem:[#allocation5 + $0x58] sm:$0xff] %vm5933, %v5764
  %5946 = vst.msk [vmem:[#allocation5 + $0x60] sm:$0xff] %vm5933, %v5766
  %5947 = vst.msk [vmem:[#allocation5 + $0x68] sm:$0xff] %vm5933, %v5768
  %5948 = vst.msk [vmem:[#allocation5 + $0x70] sm:$0xff] %vm5933, %v5770
  %5949 = vst.msk [vmem:[#allocation5 + $0x78] sm:$0xff] %vm5933, %v5772
  %5950 = vst.msk [vmem:[#allocation5 + $0x80] sm:$0xff] %vm5933, %v5774
  %5951 = vst.msk [vmem:[#allocation5 + $0x88] sm:$0xff] %vm5933, %v5776
  %5952 = vst.msk [vmem:[#allocation5 + $0x90] sm:$0xff] %vm5933, %v5778
  %5953 = vst.msk [vmem:[#allocation5 + $0x98] sm:$0xff] %vm5933, %v5780
  %5954 = vst.msk [vmem:[#allocation5 + $0xa0] sm:$0xff] %vm5933, %v5782
  %5955 = vst.msk [vmem:[#allocation5 + $0xa8] sm:$0xff] %vm5933, %v5784
  %5956 = vst.msk [vmem:[#allocation5 + $0xb0] sm:$0xff] %vm5933, %v5786
  %5957 = vst.msk [vmem:[#allocation5 + $0xb8] sm:$0xff] %vm5933, %v5788
  %5958 = vst.msk [vmem:[#allocation5 + $0xc0] sm:$0xff] %vm5933, %v5790
  %5959 = vst.msk [vmem:[#allocation5 + $0xc8] sm:$0xff] %vm5933, %v5792
  %5960 = vst.msk [vmem:[#allocation5 + $0xd0] sm:$0xff] %vm5933, %v5794
  %5961 = vst.msk [vmem:[#allocation5 + $0xd8] sm:$0xff] %vm5933, %v5796
  %5962 = vst.msk [vmem:[#allocation5 + $0xe0] sm:$0xff] %vm5933, %v5798
  %5963 = vst.msk [vmem:[#allocation5 + $0xe8] sm:$0xff] %vm5933, %v5800
  %5964 = vst.msk [vmem:[#allocation5 + $0xf0] sm:$0xff] %vm5933, %v5802
  %5965 = vst.msk [vmem:[#allocation5 + $0xf8] sm:$0xff] %vm5933, %v5804
  %5966 = vst.msk [vmem:[#allocation5 + $0x100] sm:$0xff] %vm5933, %v5806
  %5967 = vst.msk [vmem:[#allocation5 + $0x108] sm:$0xff] %vm5933, %v5808
  %5968 = vst.msk [vmem:[#allocation5 + $0x110] sm:$0xff] %vm5933, %v5810
  %5969 = vst.msk [vmem:[#allocation5 + $0x118] sm:$0xff] %vm5933, %v5812
  %5970 = vst.msk [vmem:[#allocation5 + $0x120] sm:$0xff] %vm5933, %v5814
  %5971 = vst.msk [vmem:[#allocation5 + $0x128] sm:$0xff] %vm5933, %v5816
  %5972 = vst.msk [vmem:[#allocation5 + $0x130] sm:$0xff] %vm5933, %v5818
  %5973 = vst.msk [vmem:[#allocation5 + $0x138] sm:$0xff] %vm5933, %v5820
  %5974 = vst.msk [vmem:[#allocation5 + $0x140] sm:$0xff] %vm5933, %v5822
  %5975 = vst.msk [vmem:[#allocation5 + $0x148] sm:$0xff] %vm5933, %v5824
  %5976 = vst.msk [vmem:[#allocation5 + $0x150] sm:$0xff] %vm5933, %v5826
  %5977 = vst.msk [vmem:[#allocation5 + $0x158] sm:$0xff] %vm5933, %v5828
  %5978 = vst.msk [vmem:[#allocation5 + $0x160] sm:$0xff] %vm5933, %v5830
  %5979 = vst.msk [vmem:[#allocation5 + $0x168] sm:$0xff] %vm5933, %v5832
  %5980 = vst.msk [vmem:[#allocation5 + $0x170] sm:$0xff] %vm5933, %v5834
  %5981 = vst.msk [vmem:[#allocation5 + $0x178] sm:$0xff] %vm5933, %v5836
  %5982 = vst.msk [vmem:[#allocation5 + $0x180] sm:$0xff] %vm5933, %v5838
  %5983 = vst.msk [vmem:[#allocation5 + $0x188] sm:$0xff] %vm5933, %v5840
  %5984 = vst.msk [vmem:[#allocation5 + $0x190] sm:$0xff] %vm5933, %v5842
  %5985 = vst.msk [vmem:[#allocation5 + $0x198] sm:$0xff] %vm5933, %v5844
  %5986 = vst.msk [vmem:[#allocation5 + $0x1a0] sm:$0xff] %vm5933, %v5846
  %5987 = vst.msk [vmem:[#allocation5 + $0x1a8] sm:$0xff] %vm5933, %v5848
  %5988 = vst.msk [vmem:[#allocation5 + $0x1b0] sm:$0xff] %vm5933, %v5850
  %5989 = vst.msk [vmem:[#allocation5 + $0x1b8] sm:$0xff] %vm5933, %v5852
  %5990 = vst.msk [vmem:[#allocation5 + $0x1c0] sm:$0xff] %vm5933, %v5854
  %5991 = vst.msk [vmem:[#allocation5 + $0x1c8] sm:$0xff] %vm5933, %v5856
  %5992 = vst.msk [vmem:[#allocation5 + $0x1d0] sm:$0xff] %vm5933, %v5858
  %5993 = vst.msk [vmem:[#allocation5 + $0x1d8] sm:$0xff] %vm5933, %v5860
  %5994 = vst.msk [vmem:[#allocation5 + $0x1e0] sm:$0xff] %vm5933, %v5862
  %5995 = vst.msk [vmem:[#allocation5 + $0x1e8] sm:$0xff] %vm5933, %v5864
  %5996 = vst.msk [vmem:[#allocation5 + $0x1f0] sm:$0xff] %vm5933, %v5866
  %5997 = vst.msk [vmem:[#allocation5 + $0x1f8] sm:$0xff] %vm5933, %v5868
  %v5998 = vld [vmem:[%s4650 + $0x1] sm:$0xff]
  %v5999 = vld [vmem:[%s4650 + $0x9] sm:$0xff]
  %v6000 = vld [vmem:[%s4650 + $0x19] sm:$0xff]
  %v6001 = vld [vmem:[%s4650 + $0x21] sm:$0xff]
  %v6002 = vld [vmem:[%s4650 + $0x31] sm:$0xff]
  %v6003 = vld [vmem:[%s4650 + $0x39] sm:$0xff]
  %v6004 = vld [vmem:[%s4650 + $0x49] sm:$0xff]
  %v6005 = vld [vmem:[%s4650 + $0x51] sm:$0xff]
  %v6006 = vld [vmem:[%s4650 + $0x61] sm:$0xff]
  %v6007 = vld [vmem:[%s4650 + $0x69] sm:$0xff]
  %v6008 = vld [vmem:[%s4650 + $0x79] sm:$0xff]
  %v6009 = vld [vmem:[%s4650 + $0x81] sm:$0xff]
  %v6010 = vld [vmem:[%s4650 + $0x91] sm:$0xff]
  %v6011 = vld [vmem:[%s4650 + $0x99] sm:$0xff]
  %v6012 = vld [vmem:[%s4650 + $0xa9] sm:$0xff]
  %v6013 = vld [vmem:[%s4650 + $0xb1] sm:$0xff]
  %v6014 = vld [vmem:[%s4650 + $0xc1] sm:$0xff]
  %v6015 = vld [vmem:[%s4650 + $0xc9] sm:$0xff]
  %v6016 = vld [vmem:[%s4650 + $0xd9] sm:$0xff]
  %v6017 = vld [vmem:[%s4650 + $0xe1] sm:$0xff]
  %v6018 = vld [vmem:[%s4650 + $0xf1] sm:$0xff]
  %v6019 = vld [vmem:[%s4650 + $0xf9] sm:$0xff]
  %v6020 = vld [vmem:[%s4650 + $0x109] sm:$0xff]
  %v6021 = vld [vmem:[%s4650 + $0x111] sm:$0xff]
  %v6022 = vld [vmem:[%s4650 + $0x121] sm:$0xff]
  %v6023 = vld [vmem:[%s4650 + $0x129] sm:$0xff]
  %v6024 = vld [vmem:[%s4650 + $0x139] sm:$0xff]
  %v6025 = vld [vmem:[%s4650 + $0x141] sm:$0xff]
  %v6026 = vld [vmem:[%s4650 + $0x151] sm:$0xff]
  %v6027 = vld [vmem:[%s4650 + $0x159] sm:$0xff]
  %v6028 = vld [vmem:[%s4650 + $0x169] sm:$0xff]
  %v6029 = vld [vmem:[%s4650 + $0x171] sm:$0xff]
  %v6030 = vld [vmem:[%s4650 + $0x1b1] sm:$0xff]
  %v6031 = vld [vmem:[%s4650 + $0x1b9] sm:$0xff]
  %v6032 = vld [vmem:[%s4650 + $0x1c9] sm:$0xff]
  %v6033 = vld [vmem:[%s4650 + $0x1d1] sm:$0xff]
  %v6034 = vld [vmem:[%s4650 + $0x1e1] sm:$0xff]
  %v6035 = vld [vmem:[%s4650 + $0x1e9] sm:$0xff]
  %v6036 = vld [vmem:[%s4650 + $0x1f9] sm:$0xff]
  %v6037 = vld [vmem:[%s4650 + $0x201] sm:$0xff]
  %v6038 = vld [vmem:[%s4650 + $0x211] sm:$0xff]
  %v6039 = vld [vmem:[%s4650 + $0x219] sm:$0xff]
  %v6040 = vld [vmem:[%s4650 + $0x229] sm:$0xff]
  %v6041 = vld [vmem:[%s4650 + $0x231] sm:$0xff]
  %v6042 = vld [vmem:[%s4650 + $0x241] sm:$0xff]
  %v6043 = vld [vmem:[%s4650 + $0x249] sm:$0xff]
  %v6044 = vld [vmem:[%s4650 + $0x259] sm:$0xff]
  %v6045 = vld [vmem:[%s4650 + $0x261] sm:$0xff]
  %v6046 = vld [vmem:[%s4650 + $0x271] sm:$0xff]
  %v6047 = vld [vmem:[%s4650 + $0x279] sm:$0xff]
  %v6048 = vld [vmem:[%s4650 + $0x289] sm:$0xff]
  %v6049 = vld [vmem:[%s4650 + $0x291] sm:$0xff]
  %v6050 = vld [vmem:[%s4650 + $0x2a1] sm:$0xff]
  %v6051 = vld [vmem:[%s4650 + $0x2a9] sm:$0xff]
  %v6052 = vld [vmem:[%s4650 + $0x2b9] sm:$0xff]
  %v6053 = vld [vmem:[%s4650 + $0x2c1] sm:$0xff]
  %v6054 = vld [vmem:[%s4650 + $0x2d1] sm:$0xff]
  %v6055 = vld [vmem:[%s4650 + $0x2d9] sm:$0xff]
  %v6056 = vld [vmem:[%s4650 + $0x2e9] sm:$0xff]
  %v6057 = vld [vmem:[%s4650 + $0x2f1] sm:$0xff]
  %v6058 = vld [vmem:[%s4650 + $0x301] sm:$0xff]
  %v6059 = vld [vmem:[%s4650 + $0x309] sm:$0xff]
  %v6060 = vld [vmem:[%s4650 + $0x319] sm:$0xff]
  %v6061 = vld [vmem:[%s4650 + $0x321] sm:$0xff]
  %6126 = vrot.lane.b32.xlu0 %v5998, 32
  %v6127 = vpop.permute.xlu0 %6126
  %6128 = vrot.lane.b32.xlu0 %v5999, 32
  %v6129 = vpop.permute.xlu0 %6128
  %6130 = vrot.lane.b32.xlu0 %v6000, 32
  %v6131 = vpop.permute.xlu0 %6130
  %6132 = vrot.lane.b32.xlu0 %v6001, 32
  %v6133 = vpop.permute.xlu0 %6132
  %6134 = vrot.lane.b32.xlu0 %v6002, 32
  %v6135 = vpop.permute.xlu0 %6134
  %6136 = vrot.lane.b32.xlu0 %v6003, 32
  %v6137 = vpop.permute.xlu0 %6136
  %6138 = vrot.lane.b32.xlu0 %v6004, 32
  %v6139 = vpop.permute.xlu0 %6138
  %6140 = vrot.lane.b32.xlu0 %v6005, 32
  %v6141 = vpop.permute.xlu0 %6140
  %6142 = vrot.lane.b32.xlu0 %v6006, 32
  %v6143 = vpop.permute.xlu0 %6142
  %6144 = vrot.lane.b32.xlu0 %v6007, 32
  %v6145 = vpop.permute.xlu0 %6144
  %6146 = vrot.lane.b32.xlu0 %v6008, 32
  %v6147 = vpop.permute.xlu0 %6146
  %6148 = vrot.lane.b32.xlu0 %v6009, 32
  %v6149 = vpop.permute.xlu0 %6148
  %6150 = vrot.lane.b32.xlu0 %v6010, 32
  %v6151 = vpop.permute.xlu0 %6150
  %6152 = vrot.lane.b32.xlu0 %v6011, 32
  %v6153 = vpop.permute.xlu0 %6152
  %6154 = vrot.lane.b32.xlu0 %v6012, 32
  %v6155 = vpop.permute.xlu0 %6154
  %6156 = vrot.lane.b32.xlu0 %v6013, 32
  %v6157 = vpop.permute.xlu0 %6156
  %6158 = vrot.lane.b32.xlu0 %v6014, 32
  %v6159 = vpop.permute.xlu0 %6158
  %6160 = vrot.lane.b32.xlu0 %v6015, 32
  %v6161 = vpop.permute.xlu0 %6160
  %6162 = vrot.lane.b32.xlu0 %v6016, 32
  %v6163 = vpop.permute.xlu0 %6162
  %6164 = vrot.lane.b32.xlu0 %v6017, 32
  %v6165 = vpop.permute.xlu0 %6164
  %6166 = vrot.lane.b32.xlu0 %v6018, 32
  %v6167 = vpop.permute.xlu0 %6166
  %6168 = vrot.lane.b32.xlu0 %v6019, 32
  %v6169 = vpop.permute.xlu0 %6168
  %6170 = vrot.lane.b32.xlu0 %v6020, 32
  %v6171 = vpop.permute.xlu0 %6170
  %6172 = vrot.lane.b32.xlu0 %v6021, 32
  %v6173 = vpop.permute.xlu0 %6172
  %6174 = vrot.lane.b32.xlu0 %v6022, 32
  %v6175 = vpop.permute.xlu0 %6174
  %6176 = vrot.lane.b32.xlu0 %v6023, 32
  %v6177 = vpop.permute.xlu0 %6176
  %6178 = vrot.lane.b32.xlu0 %v6024, 32
  %v6179 = vpop.permute.xlu0 %6178
  %6180 = vrot.lane.b32.xlu0 %v6025, 32
  %v6181 = vpop.permute.xlu0 %6180
  %6182 = vrot.lane.b32.xlu0 %v6026, 32
  %v6183 = vpop.permute.xlu0 %6182
  %6184 = vrot.lane.b32.xlu0 %v6027, 32
  %v6185 = vpop.permute.xlu0 %6184
  %6186 = vrot.lane.b32.xlu0 %v6028, 32
  %v6187 = vpop.permute.xlu0 %6186
  %6188 = vrot.lane.b32.xlu0 %v6029, 32
  %v6189 = vpop.permute.xlu0 %6188
  %6190 = vrot.lane.b32.xlu0 %v6030, 32
  %v6191 = vpop.permute.xlu0 %6190
  %6192 = vrot.lane.b32.xlu0 %v6031, 32
  %v6193 = vpop.permute.xlu0 %6192
  %6194 = vrot.lane.b32.xlu0 %v6032, 32
  %v6195 = vpop.permute.xlu0 %6194
  %6196 = vrot.lane.b32.xlu0 %v6033, 32
  %v6197 = vpop.permute.xlu0 %6196
  %6198 = vrot.lane.b32.xlu0 %v6034, 32
  %v6199 = vpop.permute.xlu0 %6198
  %6200 = vrot.lane.b32.xlu0 %v6035, 32
  %v6201 = vpop.permute.xlu0 %6200
  %6202 = vrot.lane.b32.xlu0 %v6036, 32
  %v6203 = vpop.permute.xlu0 %6202
  %6204 = vrot.lane.b32.xlu0 %v6037, 32
  %v6205 = vpop.permute.xlu0 %6204
  %6206 = vrot.lane.b32.xlu0 %v6038, 32
  %v6207 = vpop.permute.xlu0 %6206
  %6208 = vrot.lane.b32.xlu0 %v6039, 32
  %v6209 = vpop.permute.xlu0 %6208
  %6210 = vrot.lane.b32.xlu0 %v6040, 32
  %v6211 = vpop.permute.xlu0 %6210
  %6212 = vrot.lane.b32.xlu0 %v6041, 32
  %v6213 = vpop.permute.xlu0 %6212
  %6214 = vrot.lane.b32.xlu0 %v6042, 32
  %v6215 = vpop.permute.xlu0 %6214
  %6216 = vrot.lane.b32.xlu0 %v6043, 32
  %v6217 = vpop.permute.xlu0 %6216
  %6218 = vrot.lane.b32.xlu0 %v6044, 32
  %v6219 = vpop.permute.xlu0 %6218
  %6220 = vrot.lane.b32.xlu0 %v6045, 32
  %v6221 = vpop.permute.xlu0 %6220
  %6222 = vrot.lane.b32.xlu0 %v6046, 32
  %v6223 = vpop.permute.xlu0 %6222
  %6224 = vrot.lane.b32.xlu0 %v6047, 32
  %v6225 = vpop.permute.xlu0 %6224
  %6226 = vrot.lane.b32.xlu0 %v6048, 32
  %v6227 = vpop.permute.xlu0 %6226
  %6228 = vrot.lane.b32.xlu0 %v6049, 32
  %v6229 = vpop.permute.xlu0 %6228
  %6230 = vrot.lane.b32.xlu0 %v6050, 32
  %v6231 = vpop.permute.xlu0 %6230
  %6232 = vrot.lane.b32.xlu0 %v6051, 32
  %v6233 = vpop.permute.xlu0 %6232
  %6234 = vrot.lane.b32.xlu0 %v6052, 32
  %v6235 = vpop.permute.xlu0 %6234
  %6236 = vrot.lane.b32.xlu0 %v6053, 32
  %v6237 = vpop.permute.xlu0 %6236
  %6238 = vrot.lane.b32.xlu0 %v6054, 32
  %v6239 = vpop.permute.xlu0 %6238
  %6240 = vrot.lane.b32.xlu0 %v6055, 32
  %v6241 = vpop.permute.xlu0 %6240
  %6242 = vrot.lane.b32.xlu0 %v6056, 32
  %v6243 = vpop.permute.xlu0 %6242
  %6244 = vrot.lane.b32.xlu0 %v6057, 32
  %v6245 = vpop.permute.xlu0 %6244
  %6246 = vrot.lane.b32.xlu0 %v6058, 32
  %v6247 = vpop.permute.xlu0 %6246
  %6248 = vrot.lane.b32.xlu0 %v6059, 32
  %v6249 = vpop.permute.xlu0 %6248
  %6250 = vrot.lane.b32.xlu0 %v6060, 32
  %v6251 = vpop.permute.xlu0 %6250
  %6252 = vrot.lane.b32.xlu0 %v6061, 32
  %v6253 = vpop.permute.xlu0 %6252
  %vm6318 = vcmask 326912
  %6319 = vst.msk [vmem:[#allocation5] sm:$0xff] %vm6318, %v6127
  %6320 = vst.msk [vmem:[#allocation5 + $0x8] sm:$0xff] %vm6318, %v6129
  %6321 = vst.msk [vmem:[#allocation5 + $0x10] sm:$0xff] %vm6318, %v6131
  %6322 = vst.msk [vmem:[#allocation5 + $0x18] sm:$0xff] %vm6318, %v6133
  %6323 = vst.msk [vmem:[#allocation5 + $0x20] sm:$0xff] %vm6318, %v6135
  %6324 = vst.msk [vmem:[#allocation5 + $0x28] sm:$0xff] %vm6318, %v6137
  %6325 = vst.msk [vmem:[#allocation5 + $0x30] sm:$0xff] %vm6318, %v6139
  %6326 = vst.msk [vmem:[#allocation5 + $0x38] sm:$0xff] %vm6318, %v6141
  %6327 = vst.msk [vmem:[#allocation5 + $0x40] sm:$0xff] %vm6318, %v6143
  %6328 = vst.msk [vmem:[#allocation5 + $0x48] sm:$0xff] %vm6318, %v6145
  %6329 = vst.msk [vmem:[#allocation5 + $0x50] sm:$0xff] %vm6318, %v6147
  %6330 = vst.msk [vmem:[#allocation5 + $0x58] sm:$0xff] %vm6318, %v6149
  %6331 = vst.msk [vmem:[#allocation5 + $0x60] sm:$0xff] %vm6318, %v6151
  %6332 = vst.msk [vmem:[#allocation5 + $0x68] sm:$0xff] %vm6318, %v6153
  %6333 = vst.msk [vmem:[#allocation5 + $0x70] sm:$0xff] %vm6318, %v6155
  %6334 = vst.msk [vmem:[#allocation5 + $0x78] sm:$0xff] %vm6318, %v6157
  %6335 = vst.msk [vmem:[#allocation5 + $0x80] sm:$0xff] %vm6318, %v6159
  %6336 = vst.msk [vmem:[#allocation5 + $0x88] sm:$0xff] %vm6318, %v6161
  %6337 = vst.msk [vmem:[#allocation5 + $0x90] sm:$0xff] %vm6318, %v6163
  %6338 = vst.msk [vmem:[#allocation5 + $0x98] sm:$0xff] %vm6318, %v6165
  %6339 = vst.msk [vmem:[#allocation5 + $0xa0] sm:$0xff] %vm6318, %v6167
  %6340 = vst.msk [vmem:[#allocation5 + $0xa8] sm:$0xff] %vm6318, %v6169
  %6341 = vst.msk [vmem:[#allocation5 + $0xb0] sm:$0xff] %vm6318, %v6171
  %6342 = vst.msk [vmem:[#allocation5 + $0xb8] sm:$0xff] %vm6318, %v6173
  %6343 = vst.msk [vmem:[#allocation5 + $0xc0] sm:$0xff] %vm6318, %v6175
  %6344 = vst.msk [vmem:[#allocation5 + $0xc8] sm:$0xff] %vm6318, %v6177
  %6345 = vst.msk [vmem:[#allocation5 + $0xd0] sm:$0xff] %vm6318, %v6179
  %6346 = vst.msk [vmem:[#allocation5 + $0xd8] sm:$0xff] %vm6318, %v6181
  %6347 = vst.msk [vmem:[#allocation5 + $0xe0] sm:$0xff] %vm6318, %v6183
  %6348 = vst.msk [vmem:[#allocation5 + $0xe8] sm:$0xff] %vm6318, %v6185
  %6349 = vst.msk [vmem:[#allocation5 + $0xf0] sm:$0xff] %vm6318, %v6187
  %6350 = vst.msk [vmem:[#allocation5 + $0xf8] sm:$0xff] %vm6318, %v6189
  %6351 = vst.msk [vmem:[#allocation5 + $0x100] sm:$0xff] %vm6318, %v6191
  %6352 = vst.msk [vmem:[#allocation5 + $0x108] sm:$0xff] %vm6318, %v6193
  %6353 = vst.msk [vmem:[#allocation5 + $0x110] sm:$0xff] %vm6318, %v6195
  %6354 = vst.msk [vmem:[#allocation5 + $0x118] sm:$0xff] %vm6318, %v6197
  %6355 = vst.msk [vmem:[#allocation5 + $0x120] sm:$0xff] %vm6318, %v6199
  %6356 = vst.msk [vmem:[#allocation5 + $0x128] sm:$0xff] %vm6318, %v6201
  %6357 = vst.msk [vmem:[#allocation5 + $0x130] sm:$0xff] %vm6318, %v6203
  %6358 = vst.msk [vmem:[#allocation5 + $0x138] sm:$0xff] %vm6318, %v6205
  %6359 = vst.msk [vmem:[#allocation5 + $0x140] sm:$0xff] %vm6318, %v6207
  %6360 = vst.msk [vmem:[#allocation5 + $0x148] sm:$0xff] %vm6318, %v6209
  %6361 = vst.msk [vmem:[#allocation5 + $0x150] sm:$0xff] %vm6318, %v6211
  %6362 = vst.msk [vmem:[#allocation5 + $0x158] sm:$0xff] %vm6318, %v6213
  %6363 = vst.msk [vmem:[#allocation5 + $0x160] sm:$0xff] %vm6318, %v6215
  %6364 = vst.msk [vmem:[#allocation5 + $0x168] sm:$0xff] %vm6318, %v6217
  %6365 = vst.msk [vmem:[#allocation5 + $0x170] sm:$0xff] %vm6318, %v6219
  %6366 = vst.msk [vmem:[#allocation5 + $0x178] sm:$0xff] %vm6318, %v6221
  %6367 = vst.msk [vmem:[#allocation5 + $0x180] sm:$0xff] %vm6318, %v6223
  %6368 = vst.msk [vmem:[#allocation5 + $0x188] sm:$0xff] %vm6318, %v6225
  %6369 = vst.msk [vmem:[#allocation5 + $0x190] sm:$0xff] %vm6318, %v6227
  %6370 = vst.msk [vmem:[#allocation5 + $0x198] sm:$0xff] %vm6318, %v6229
  %6371 = vst.msk [vmem:[#allocation5 + $0x1a0] sm:$0xff] %vm6318, %v6231
  %6372 = vst.msk [vmem:[#allocation5 + $0x1a8] sm:$0xff] %vm6318, %v6233
  %6373 = vst.msk [vmem:[#allocation5 + $0x1b0] sm:$0xff] %vm6318, %v6235
  %6374 = vst.msk [vmem:[#allocation5 + $0x1b8] sm:$0xff] %vm6318, %v6237
  %6375 = vst.msk [vmem:[#allocation5 + $0x1c0] sm:$0xff] %vm6318, %v6239
  %6376 = vst.msk [vmem:[#allocation5 + $0x1c8] sm:$0xff] %vm6318, %v6241
  %6377 = vst.msk [vmem:[#allocation5 + $0x1d0] sm:$0xff] %vm6318, %v6243
  %6378 = vst.msk [vmem:[#allocation5 + $0x1d8] sm:$0xff] %vm6318, %v6245
  %6379 = vst.msk [vmem:[#allocation5 + $0x1e0] sm:$0xff] %vm6318, %v6247
  %6380 = vst.msk [vmem:[#allocation5 + $0x1e8] sm:$0xff] %vm6318, %v6249
  %6381 = vst.msk [vmem:[#allocation5 + $0x1f0] sm:$0xff] %vm6318, %v6251
  %6382 = vst.msk [vmem:[#allocation5 + $0x1f8] sm:$0xff] %vm6318, %v6253
  %v6383 = vld [vmem:[%s4650 + $0x2] sm:$0xff]
  %v6384 = vld [vmem:[%s4650 + $0xa] sm:$0xff]
  %v6385 = vld [vmem:[%s4650 + $0x1a] sm:$0xff]
  %v6386 = vld [vmem:[%s4650 + $0x22] sm:$0xff]
  %v6387 = vld [vmem:[%s4650 + $0x32] sm:$0xff]
  %v6388 = vld [vmem:[%s4650 + $0x3a] sm:$0xff]
  %v6389 = vld [vmem:[%s4650 + $0x4a] sm:$0xff]
  %v6390 = vld [vmem:[%s4650 + $0x52] sm:$0xff]
  %v6391 = vld [vmem:[%s4650 + $0x62] sm:$0xff]
  %v6392 = vld [vmem:[%s4650 + $0x6a] sm:$0xff]
  %v6393 = vld [vmem:[%s4650 + $0x7a] sm:$0xff]
  %v6394 = vld [vmem:[%s4650 + $0x82] sm:$0xff]
  %v6395 = vld [vmem:[%s4650 + $0x92] sm:$0xff]
  %v6396 = vld [vmem:[%s4650 + $0x9a] sm:$0xff]
  %v6397 = vld [vmem:[%s4650 + $0xaa] sm:$0xff]
  %v6398 = vld [vmem:[%s4650 + $0xb2] sm:$0xff]
  %v6399 = vld [vmem:[%s4650 + $0xc2] sm:$0xff]
  %v6400 = vld [vmem:[%s4650 + $0xca] sm:$0xff]
  %v6401 = vld [vmem:[%s4650 + $0xda] sm:$0xff]
  %v6402 = vld [vmem:[%s4650 + $0xe2] sm:$0xff]
  %v6403 = vld [vmem:[%s4650 + $0xf2] sm:$0xff]
  %v6404 = vld [vmem:[%s4650 + $0xfa] sm:$0xff]
  %v6405 = vld [vmem:[%s4650 + $0x10a] sm:$0xff]
  %v6406 = vld [vmem:[%s4650 + $0x112] sm:$0xff]
  %v6407 = vld [vmem:[%s4650 + $0x122] sm:$0xff]
  %v6408 = vld [vmem:[%s4650 + $0x12a] sm:$0xff]
  %v6409 = vld [vmem:[%s4650 + $0x13a] sm:$0xff]
  %v6410 = vld [vmem:[%s4650 + $0x142] sm:$0xff]
  %v6411 = vld [vmem:[%s4650 + $0x152] sm:$0xff]
  %v6412 = vld [vmem:[%s4650 + $0x15a] sm:$0xff]
  %v6413 = vld [vmem:[%s4650 + $0x16a] sm:$0xff]
  %v6414 = vld [vmem:[%s4650 + $0x172] sm:$0xff]
  %v6415 = vld [vmem:[%s4650 + $0x1b2] sm:$0xff]
  %v6416 = vld [vmem:[%s4650 + $0x1ba] sm:$0xff]
  %v6417 = vld [vmem:[%s4650 + $0x1ca] sm:$0xff]
  %v6418 = vld [vmem:[%s4650 + $0x1d2] sm:$0xff]
  %v6419 = vld [vmem:[%s4650 + $0x1e2] sm:$0xff]
  %v6420 = vld [vmem:[%s4650 + $0x1ea] sm:$0xff]
  %v6421 = vld [vmem:[%s4650 + $0x1fa] sm:$0xff]
  %v6422 = vld [vmem:[%s4650 + $0x202] sm:$0xff]
  %v6423 = vld [vmem:[%s4650 + $0x212] sm:$0xff]
  %v6424 = vld [vmem:[%s4650 + $0x21a] sm:$0xff]
  %v6425 = vld [vmem:[%s4650 + $0x22a] sm:$0xff]
  %v6426 = vld [vmem:[%s4650 + $0x232] sm:$0xff]
  %v6427 = vld [vmem:[%s4650 + $0x242] sm:$0xff]
  %v6428 = vld [vmem:[%s4650 + $0x24a] sm:$0xff]
  %v6429 = vld [vmem:[%s4650 + $0x25a] sm:$0xff]
  %v6430 = vld [vmem:[%s4650 + $0x262] sm:$0xff]
  %v6431 = vld [vmem:[%s4650 + $0x272] sm:$0xff]
  %v6432 = vld [vmem:[%s4650 + $0x27a] sm:$0xff]
  %v6433 = vld [vmem:[%s4650 + $0x28a] sm:$0xff]
  %v6434 = vld [vmem:[%s4650 + $0x292] sm:$0xff]
  %v6435 = vld [vmem:[%s4650 + $0x2a2] sm:$0xff]
  %v6436 = vld [vmem:[%s4650 + $0x2aa] sm:$0xff]
  %v6437 = vld [vmem:[%s4650 + $0x2ba] sm:$0xff]
  %v6438 = vld [vmem:[%s4650 + $0x2c2] sm:$0xff]
  %v6439 = vld [vmem:[%s4650 + $0x2d2] sm:$0xff]
  %v6440 = vld [vmem:[%s4650 + $0x2da] sm:$0xff]
  %v6441 = vld [vmem:[%s4650 + $0x2ea] sm:$0xff]
  %v6442 = vld [vmem:[%s4650 + $0x2f2] sm:$0xff]
  %v6443 = vld [vmem:[%s4650 + $0x302] sm:$0xff]
  %v6444 = vld [vmem:[%s4650 + $0x30a] sm:$0xff]
  %v6445 = vld [vmem:[%s4650 + $0x31a] sm:$0xff]
  %v6446 = vld [vmem:[%s4650 + $0x322] sm:$0xff]
  %6511 = vrot.lane.b32.xlu0 %v6383, 40
  %v6512 = vpop.permute.xlu0 %6511
  %6513 = vrot.lane.b32.xlu0 %v6384, 40
  %v6514 = vpop.permute.xlu0 %6513
  %6515 = vrot.lane.b32.xlu0 %v6385, 40
  %v6516 = vpop.permute.xlu0 %6515
  %6517 = vrot.lane.b32.xlu0 %v6386, 40
  %v6518 = vpop.permute.xlu0 %6517
  %6519 = vrot.lane.b32.xlu0 %v6387, 40
  %v6520 = vpop.permute.xlu0 %6519
  %6521 = vrot.lane.b32.xlu0 %v6388, 40
  %v6522 = vpop.permute.xlu0 %6521
  %6523 = vrot.lane.b32.xlu0 %v6389, 40
  %v6524 = vpop.permute.xlu0 %6523
  %6525 = vrot.lane.b32.xlu0 %v6390, 40
  %v6526 = vpop.permute.xlu0 %6525
  %6527 = vrot.lane.b32.xlu0 %v6391, 40
  %v6528 = vpop.permute.xlu0 %6527
  %6529 = vrot.lane.b32.xlu0 %v6392, 40
  %v6530 = vpop.permute.xlu0 %6529
  %6531 = vrot.lane.b32.xlu0 %v6393, 40
  %v6532 = vpop.permute.xlu0 %6531
  %6533 = vrot.lane.b32.xlu0 %v6394, 40
  %v6534 = vpop.permute.xlu0 %6533
  %6535 = vrot.lane.b32.xlu0 %v6395, 40
  %v6536 = vpop.permute.xlu0 %6535
  %6537 = vrot.lane.b32.xlu0 %v6396, 40
  %v6538 = vpop.permute.xlu0 %6537
  %6539 = vrot.lane.b32.xlu0 %v6397, 40
  %v6540 = vpop.permute.xlu0 %6539
  %6541 = vrot.lane.b32.xlu0 %v6398, 40
  %v6542 = vpop.permute.xlu0 %6541
  %6543 = vrot.lane.b32.xlu0 %v6399, 40
  %v6544 = vpop.permute.xlu0 %6543
  %6545 = vrot.lane.b32.xlu0 %v6400, 40
  %v6546 = vpop.permute.xlu0 %6545
  %6547 = vrot.lane.b32.xlu0 %v6401, 40
  %v6548 = vpop.permute.xlu0 %6547
  %6549 = vrot.lane.b32.xlu0 %v6402, 40
  %v6550 = vpop.permute.xlu0 %6549
  %6551 = vrot.lane.b32.xlu0 %v6403, 40
  %v6552 = vpop.permute.xlu0 %6551
  %6553 = vrot.lane.b32.xlu0 %v6404, 40
  %v6554 = vpop.permute.xlu0 %6553
  %6555 = vrot.lane.b32.xlu0 %v6405, 40
  %v6556 = vpop.permute.xlu0 %6555
  %6557 = vrot.lane.b32.xlu0 %v6406, 40
  %v6558 = vpop.permute.xlu0 %6557
  %6559 = vrot.lane.b32.xlu0 %v6407, 40
  %v6560 = vpop.permute.xlu0 %6559
  %6561 = vrot.lane.b32.xlu0 %v6408, 40
  %v6562 = vpop.permute.xlu0 %6561
  %6563 = vrot.lane.b32.xlu0 %v6409, 40
  %v6564 = vpop.permute.xlu0 %6563
  %6565 = vrot.lane.b32.xlu0 %v6410, 40
  %v6566 = vpop.permute.xlu0 %6565
  %6567 = vrot.lane.b32.xlu0 %v6411, 40
  %v6568 = vpop.permute.xlu0 %6567
  %6569 = vrot.lane.b32.xlu0 %v6412, 40
  %v6570 = vpop.permute.xlu0 %6569
  %6571 = vrot.lane.b32.xlu0 %v6413, 40
  %v6572 = vpop.permute.xlu0 %6571
  %6573 = vrot.lane.b32.xlu0 %v6414, 40
  %v6574 = vpop.permute.xlu0 %6573
  %6575 = vrot.lane.b32.xlu0 %v6415, 40
  %v6576 = vpop.permute.xlu0 %6575
  %6577 = vrot.lane.b32.xlu0 %v6416, 40
  %v6578 = vpop.permute.xlu0 %6577
  %6579 = vrot.lane.b32.xlu0 %v6417, 40
  %v6580 = vpop.permute.xlu0 %6579
  %6581 = vrot.lane.b32.xlu0 %v6418, 40
  %v6582 = vpop.permute.xlu0 %6581
  %6583 = vrot.lane.b32.xlu0 %v6419, 40
  %v6584 = vpop.permute.xlu0 %6583
  %6585 = vrot.lane.b32.xlu0 %v6420, 40
  %v6586 = vpop.permute.xlu0 %6585
  %6587 = vrot.lane.b32.xlu0 %v6421, 40
  %v6588 = vpop.permute.xlu0 %6587
  %6589 = vrot.lane.b32.xlu0 %v6422, 40
  %v6590 = vpop.permute.xlu0 %6589
  %6591 = vrot.lane.b32.xlu0 %v6423, 40
  %v6592 = vpop.permute.xlu0 %6591
  %6593 = vrot.lane.b32.xlu0 %v6424, 40
  %v6594 = vpop.permute.xlu0 %6593
  %6595 = vrot.lane.b32.xlu0 %v6425, 40
  %v6596 = vpop.permute.xlu0 %6595
  %6597 = vrot.lane.b32.xlu0 %v6426, 40
  %v6598 = vpop.permute.xlu0 %6597
  %6599 = vrot.lane.b32.xlu0 %v6427, 40
  %v6600 = vpop.permute.xlu0 %6599
  %6601 = vrot.lane.b32.xlu0 %v6428, 40
  %v6602 = vpop.permute.xlu0 %6601
  %6603 = vrot.lane.b32.xlu0 %v6429, 40
  %v6604 = vpop.permute.xlu0 %6603
  %6605 = vrot.lane.b32.xlu0 %v6430, 40
  %v6606 = vpop.permute.xlu0 %6605
  %6607 = vrot.lane.b32.xlu0 %v6431, 40
  %v6608 = vpop.permute.xlu0 %6607
  %6609 = vrot.lane.b32.xlu0 %v6432, 40
  %v6610 = vpop.permute.xlu0 %6609
  %6611 = vrot.lane.b32.xlu0 %v6433, 40
  %v6612 = vpop.permute.xlu0 %6611
  %6613 = vrot.lane.b32.xlu0 %v6434, 40
  %v6614 = vpop.permute.xlu0 %6613
  %6615 = vrot.lane.b32.xlu0 %v6435, 40
  %v6616 = vpop.permute.xlu0 %6615
  %6617 = vrot.lane.b32.xlu0 %v6436, 40
  %v6618 = vpop.permute.xlu0 %6617
  %6619 = vrot.lane.b32.xlu0 %v6437, 40
  %v6620 = vpop.permute.xlu0 %6619
  %6621 = vrot.lane.b32.xlu0 %v6438, 40
  %v6622 = vpop.permute.xlu0 %6621
  %6623 = vrot.lane.b32.xlu0 %v6439, 40
  %v6624 = vpop.permute.xlu0 %6623
  %6625 = vrot.lane.b32.xlu0 %v6440, 40
  %v6626 = vpop.permute.xlu0 %6625
  %6627 = vrot.lane.b32.xlu0 %v6441, 40
  %v6628 = vpop.permute.xlu0 %6627
  %6629 = vrot.lane.b32.xlu0 %v6442, 40
  %v6630 = vpop.permute.xlu0 %6629
  %6631 = vrot.lane.b32.xlu0 %v6443, 40
  %v6632 = vpop.permute.xlu0 %6631
  %6633 = vrot.lane.b32.xlu0 %v6444, 40
  %v6634 = vpop.permute.xlu0 %6633
  %6635 = vrot.lane.b32.xlu0 %v6445, 40
  %v6636 = vpop.permute.xlu0 %6635
  %6637 = vrot.lane.b32.xlu0 %v6446, 40
  %v6638 = vpop.permute.xlu0 %6637
  %vm6703 = vcmask 392512
  %6704 = vst.msk [vmem:[#allocation5] sm:$0xff] %vm6703, %v6512
  %6705 = vst.msk [vmem:[#allocation5 + $0x8] sm:$0xff] %vm6703, %v6514
  %6706 = vst.msk [vmem:[#allocation5 + $0x10] sm:$0xff] %vm6703, %v6516
  %6707 = vst.msk [vmem:[#allocation5 + $0x18] sm:$0xff] %vm6703, %v6518
  %6708 = vst.msk [vmem:[#allocation5 + $0x20] sm:$0xff] %vm6703, %v6520
  %6709 = vst.msk [vmem:[#allocation5 + $0x28] sm:$0xff] %vm6703, %v6522
  %6710 = vst.msk [vmem:[#allocation5 + $0x30] sm:$0xff] %vm6703, %v6524
  %6711 = vst.msk [vmem:[#allocation5 + $0x38] sm:$0xff] %vm6703, %v6526
  %6712 = vst.msk [vmem:[#allocation5 + $0x40] sm:$0xff] %vm6703, %v6528
  %6713 = vst.msk [vmem:[#allocation5 + $0x48] sm:$0xff] %vm6703, %v6530
  %6714 = vst.msk [vmem:[#allocation5 + $0x50] sm:$0xff] %vm6703, %v6532
  %6715 = vst.msk [vmem:[#allocation5 + $0x58] sm:$0xff] %vm6703, %v6534
  %6716 = vst.msk [vmem:[#allocation5 + $0x60] sm:$0xff] %vm6703, %v6536
  %6717 = vst.msk [vmem:[#allocation5 + $0x68] sm:$0xff] %vm6703, %v6538
  %6718 = vst.msk [vmem:[#allocation5 + $0x70] sm:$0xff] %vm6703, %v6540
  %6719 = vst.msk [vmem:[#allocation5 + $0x78] sm:$0xff] %vm6703, %v6542
  %6720 = vst.msk [vmem:[#allocation5 + $0x80] sm:$0xff] %vm6703, %v6544
  %6721 = vst.msk [vmem:[#allocation5 + $0x88] sm:$0xff] %vm6703, %v6546
  %6722 = vst.msk [vmem:[#allocation5 + $0x90] sm:$0xff] %vm6703, %v6548
  %6723 = vst.msk [vmem:[#allocation5 + $0x98] sm:$0xff] %vm6703, %v6550
  %6724 = vst.msk [vmem:[#allocation5 + $0xa0] sm:$0xff] %vm6703, %v6552
  %6725 = vst.msk [vmem:[#allocation5 + $0xa8] sm:$0xff] %vm6703, %v6554
  %6726 = vst.msk [vmem:[#allocation5 + $0xb0] sm:$0xff] %vm6703, %v6556
  %6727 = vst.msk [vmem:[#allocation5 + $0xb8] sm:$0xff] %vm6703, %v6558
  %6728 = vst.msk [vmem:[#allocation5 + $0xc0] sm:$0xff] %vm6703, %v6560
  %6729 = vst.msk [vmem:[#allocation5 + $0xc8] sm:$0xff] %vm6703, %v6562
  %6730 = vst.msk [vmem:[#allocation5 + $0xd0] sm:$0xff] %vm6703, %v6564
  %6731 = vst.msk [vmem:[#allocation5 + $0xd8] sm:$0xff] %vm6703, %v6566
  %6732 = vst.msk [vmem:[#allocation5 + $0xe0] sm:$0xff] %vm6703, %v6568
  %6733 = vst.msk [vmem:[#allocation5 + $0xe8] sm:$0xff] %vm6703, %v6570
  %6734 = vst.msk [vmem:[#allocation5 + $0xf0] sm:$0xff] %vm6703, %v6572
  %6735 = vst.msk [vmem:[#allocation5 + $0xf8] sm:$0xff] %vm6703, %v6574
  %6736 = vst.msk [vmem:[#allocation5 + $0x100] sm:$0xff] %vm6703, %v6576
  %6737 = vst.msk [vmem:[#allocation5 + $0x108] sm:$0xff] %vm6703, %v6578
  %6738 = vst.msk [vmem:[#allocation5 + $0x110] sm:$0xff] %vm6703, %v6580
  %6739 = vst.msk [vmem:[#allocation5 + $0x118] sm:$0xff] %vm6703, %v6582
  %6740 = vst.msk [vmem:[#allocation5 + $0x120] sm:$0xff] %vm6703, %v6584
  %6741 = vst.msk [vmem:[#allocation5 + $0x128] sm:$0xff] %vm6703, %v6586
  %6742 = vst.msk [vmem:[#allocation5 + $0x130] sm:$0xff] %vm6703, %v6588
  %6743 = vst.msk [vmem:[#allocation5 + $0x138] sm:$0xff] %vm6703, %v6590
  %6744 = vst.msk [vmem:[#allocation5 + $0x140] sm:$0xff] %vm6703, %v6592
  %6745 = vst.msk [vmem:[#allocation5 + $0x148] sm:$0xff] %vm6703, %v6594
  %6746 = vst.msk [vmem:[#allocation5 + $0x150] sm:$0xff] %vm6703, %v6596
  %6747 = vst.msk [vmem:[#allocation5 + $0x158] sm:$0xff] %vm6703, %v6598
  %6748 = vst.msk [vmem:[#allocation5 + $0x160] sm:$0xff] %vm6703, %v6600
  %6749 = vst.msk [vmem:[#allocation5 + $0x168] sm:$0xff] %vm6703, %v6602
  %6750 = vst.msk [vmem:[#allocation5 + $0x170] sm:$0xff] %vm6703, %v6604
  %6751 = vst.msk [vmem:[#allocation5 + $0x178] sm:$0xff] %vm6703, %v6606
  %6752 = vst.msk [vmem:[#allocation5 + $0x180] sm:$0xff] %vm6703, %v6608
  %6753 = vst.msk [vmem:[#allocation5 + $0x188] sm:$0xff] %vm6703, %v6610
  %6754 = vst.msk [vmem:[#allocation5 + $0x190] sm:$0xff] %vm6703, %v6612
  %6755 = vst.msk [vmem:[#allocation5 + $0x198] sm:$0xff] %vm6703, %v6614
  %6756 = vst.msk [vmem:[#allocation5 + $0x1a0] sm:$0xff] %vm6703, %v6616
  %6757 = vst.msk [vmem:[#allocation5 + $0x1a8] sm:$0xff] %vm6703, %v6618
  %6758 = vst.msk [vmem:[#allocation5 + $0x1b0] sm:$0xff] %vm6703, %v6620
  %6759 = vst.msk [vmem:[#allocation5 + $0x1b8] sm:$0xff] %vm6703, %v6622
  %6760 = vst.msk [vmem:[#allocation5 + $0x1c0] sm:$0xff] %vm6703, %v6624
  %6761 = vst.msk [vmem:[#allocation5 + $0x1c8] sm:$0xff] %vm6703, %v6626
  %6762 = vst.msk [vmem:[#allocation5 + $0x1d0] sm:$0xff] %vm6703, %v6628
  %6763 = vst.msk [vmem:[#allocation5 + $0x1d8] sm:$0xff] %vm6703, %v6630
  %6764 = vst.msk [vmem:[#allocation5 + $0x1e0] sm:$0xff] %vm6703, %v6632
  %6765 = vst.msk [vmem:[#allocation5 + $0x1e8] sm:$0xff] %vm6703, %v6634
  %6766 = vst.msk [vmem:[#allocation5 + $0x1f0] sm:$0xff] %vm6703, %v6636
  %6767 = vst.msk [vmem:[#allocation5 + $0x1f8] sm:$0xff] %vm6703, %v6638
  %s6768 = scalar_lea.vmem [#allocation4], 48
  %v6769 = vld [vmem:[%s6768] sm:$0xff]
  %v6770 = vld [vmem:[%s6768 + $0x8] sm:$0xff]
  %v6771 = vld [vmem:[%s6768 + $0x18] sm:$0xff]
  %v6772 = vld [vmem:[%s6768 + $0x20] sm:$0xff]
  %v6773 = vld [vmem:[%s6768 + $0x30] sm:$0xff]
  %v6774 = vld [vmem:[%s6768 + $0x38] sm:$0xff]
  %v6775 = vld [vmem:[%s6768 + $0x48] sm:$0xff]
  %v6776 = vld [vmem:[%s6768 + $0x50] sm:$0xff]
  %v6777 = vld [vmem:[%s6768 + $0x60] sm:$0xff]
  %v6778 = vld [vmem:[%s6768 + $0x68] sm:$0xff]
  %v6779 = vld [vmem:[%s6768 + $0x78] sm:$0xff]
  %v6780 = vld [vmem:[%s6768 + $0x80] sm:$0xff]
  %v6781 = vld [vmem:[%s6768 + $0x90] sm:$0xff]
  %v6782 = vld [vmem:[%s6768 + $0x98] sm:$0xff]
  %v6783 = vld [vmem:[%s6768 + $0xa8] sm:$0xff]
  %v6784 = vld [vmem:[%s6768 + $0xb0] sm:$0xff]
  %v6785 = vld [vmem:[%s6768 + $0xc0] sm:$0xff]
  %v6786 = vld [vmem:[%s6768 + $0xc8] sm:$0xff]
  %v6787 = vld [vmem:[%s6768 + $0xd8] sm:$0xff]
  %v6788 = vld [vmem:[%s6768 + $0xe0] sm:$0xff]
  %v6789 = vld [vmem:[%s6768 + $0xf0] sm:$0xff]
  %v6790 = vld [vmem:[%s6768 + $0xf8] sm:$0xff]
  %v6791 = vld [vmem:[%s6768 + $0x108] sm:$0xff]
  %v6792 = vld [vmem:[%s6768 + $0x110] sm:$0xff]
  %v6793 = vld [vmem:[%s6768 + $0x120] sm:$0xff]
  %v6794 = vld [vmem:[%s6768 + $0x128] sm:$0xff]
  %v6795 = vld [vmem:[%s6768 + $0x138] sm:$0xff]
  %v6796 = vld [vmem:[%s6768 + $0x140] sm:$0xff]
  %v6797 = vld [vmem:[%s6768 + $0x150] sm:$0xff]
  %v6798 = vld [vmem:[%s6768 + $0x158] sm:$0xff]
  %v6799 = vld [vmem:[%s6768 + $0x168] sm:$0xff]
  %v6800 = vld [vmem:[%s6768 + $0x170] sm:$0xff]
  %v6801 = vld [vmem:[%s6768 + $0x1b0] sm:$0xff]
  %v6802 = vld [vmem:[%s6768 + $0x1b8] sm:$0xff]
  %v6803 = vld [vmem:[%s6768 + $0x1c8] sm:$0xff]
  %v6804 = vld [vmem:[%s6768 + $0x1d0] sm:$0xff]
  %v6805 = vld [vmem:[%s6768 + $0x1e0] sm:$0xff]
  %v6806 = vld [vmem:[%s6768 + $0x1e8] sm:$0xff]
  %v6807 = vld [vmem:[%s6768 + $0x1f8] sm:$0xff]
  %v6808 = vld [vmem:[%s6768 + $0x200] sm:$0xff]
  %v6809 = vld [vmem:[%s6768 + $0x210] sm:$0xff]
  %v6810 = vld [vmem:[%s6768 + $0x218] sm:$0xff]
  %v6811 = vld [vmem:[%s6768 + $0x228] sm:$0xff]
  %v6812 = vld [vmem:[%s6768 + $0x230] sm:$0xff]
  %v6813 = vld [vmem:[%s6768 + $0x240] sm:$0xff]
  %v6814 = vld [vmem:[%s6768 + $0x248] sm:$0xff]
  %v6815 = vld [vmem:[%s6768 + $0x258] sm:$0xff]
  %v6816 = vld [vmem:[%s6768 + $0x260] sm:$0xff]
  %v6817 = vld [vmem:[%s6768 + $0x270] sm:$0xff]
  %v6818 = vld [vmem:[%s6768 + $0x278] sm:$0xff]
  %v6819 = vld [vmem:[%s6768 + $0x288] sm:$0xff]
  %v6820 = vld [vmem:[%s6768 + $0x290] sm:$0xff]
  %v6821 = vld [vmem:[%s6768 + $0x2a0] sm:$0xff]
  %v6822 = vld [vmem:[%s6768 + $0x2a8] sm:$0xff]
  %v6823 = vld [vmem:[%s6768 + $0x2b8] sm:$0xff]
  %v6824 = vld [vmem:[%s6768 + $0x2c0] sm:$0xff]
  %v6825 = vld [vmem:[%s6768 + $0x2d0] sm:$0xff]
  %v6826 = vld [vmem:[%s6768 + $0x2d8] sm:$0xff]
  %v6827 = vld [vmem:[%s6768 + $0x2e8] sm:$0xff]
  %v6828 = vld [vmem:[%s6768 + $0x2f0] sm:$0xff]
  %v6829 = vld [vmem:[%s6768 + $0x300] sm:$0xff]
  %v6830 = vld [vmem:[%s6768 + $0x308] sm:$0xff]
  %v6831 = vld [vmem:[%s6768 + $0x318] sm:$0xff]
  %v6832 = vld [vmem:[%s6768 + $0x320] sm:$0xff]
  %6897 = vrot.lane.b32.xlu0 %v6769, 48
  %v6898 = vpop.permute.xlu0 %6897
  %6899 = vrot.lane.b32.xlu0 %v6770, 48
  %v6900 = vpop.permute.xlu0 %6899
  %6901 = vrot.lane.b32.xlu0 %v6771, 48
  %v6902 = vpop.permute.xlu0 %6901
  %6903 = vrot.lane.b32.xlu0 %v6772, 48
  %v6904 = vpop.permute.xlu0 %6903
  %6905 = vrot.lane.b32.xlu0 %v6773, 48
  %v6906 = vpop.permute.xlu0 %6905
  %6907 = vrot.lane.b32.xlu0 %v6774, 48
  %v6908 = vpop.permute.xlu0 %6907
  %6909 = vrot.lane.b32.xlu0 %v6775, 48
  %v6910 = vpop.permute.xlu0 %6909
  %6911 = vrot.lane.b32.xlu0 %v6776, 48
  %v6912 = vpop.permute.xlu0 %6911
  %6913 = vrot.lane.b32.xlu0 %v6777, 48
  %v6914 = vpop.permute.xlu0 %6913
  %6915 = vrot.lane.b32.xlu0 %v6778, 48
  %v6916 = vpop.permute.xlu0 %6915
  %6917 = vrot.lane.b32.xlu0 %v6779, 48
  %v6918 = vpop.permute.xlu0 %6917
  %6919 = vrot.lane.b32.xlu0 %v6780, 48
  %v6920 = vpop.permute.xlu0 %6919
  %6921 = vrot.lane.b32.xlu0 %v6781, 48
  %v6922 = vpop.permute.xlu0 %6921
  %6923 = vrot.lane.b32.xlu0 %v6782, 48
  %v6924 = vpop.permute.xlu0 %6923
  %6925 = vrot.lane.b32.xlu0 %v6783, 48
  %v6926 = vpop.permute.xlu0 %6925
  %6927 = vrot.lane.b32.xlu0 %v6784, 48
  %v6928 = vpop.permute.xlu0 %6927
  %6929 = vrot.lane.b32.xlu0 %v6785, 48
  %v6930 = vpop.permute.xlu0 %6929
  %6931 = vrot.lane.b32.xlu0 %v6786, 48
  %v6932 = vpop.permute.xlu0 %6931
  %6933 = vrot.lane.b32.xlu0 %v6787, 48
  %v6934 = vpop.permute.xlu0 %6933
  %6935 = vrot.lane.b32.xlu0 %v6788, 48
  %v6936 = vpop.permute.xlu0 %6935
  %6937 = vrot.lane.b32.xlu0 %v6789, 48
  %v6938 = vpop.permute.xlu0 %6937
  %6939 = vrot.lane.b32.xlu0 %v6790, 48
  %v6940 = vpop.permute.xlu0 %6939
  %6941 = vrot.lane.b32.xlu0 %v6791, 48
  %v6942 = vpop.permute.xlu0 %6941
  %6943 = vrot.lane.b32.xlu0 %v6792, 48
  %v6944 = vpop.permute.xlu0 %6943
  %6945 = vrot.lane.b32.xlu0 %v6793, 48
  %v6946 = vpop.permute.xlu0 %6945
  %6947 = vrot.lane.b32.xlu0 %v6794, 48
  %v6948 = vpop.permute.xlu0 %6947
  %6949 = vrot.lane.b32.xlu0 %v6795, 48
  %v6950 = vpop.permute.xlu0 %6949
  %6951 = vrot.lane.b32.xlu0 %v6796, 48
  %v6952 = vpop.permute.xlu0 %6951
  %6953 = vrot.lane.b32.xlu0 %v6797, 48
  %v6954 = vpop.permute.xlu0 %6953
  %6955 = vrot.lane.b32.xlu0 %v6798, 48
  %v6956 = vpop.permute.xlu0 %6955
  %6957 = vrot.lane.b32.xlu0 %v6799, 48
  %v6958 = vpop.permute.xlu0 %6957
  %6959 = vrot.lane.b32.xlu0 %v6800, 48
  %v6960 = vpop.permute.xlu0 %6959
  %6961 = vrot.lane.b32.xlu0 %v6801, 48
  %v6962 = vpop.permute.xlu0 %6961
  %6963 = vrot.lane.b32.xlu0 %v6802, 48
  %v6964 = vpop.permute.xlu0 %6963
  %6965 = vrot.lane.b32.xlu0 %v6803, 48
  %v6966 = vpop.permute.xlu0 %6965
  %6967 = vrot.lane.b32.xlu0 %v6804, 48
  %v6968 = vpop.permute.xlu0 %6967
  %6969 = vrot.lane.b32.xlu0 %v6805, 48
  %v6970 = vpop.permute.xlu0 %6969
  %6971 = vrot.lane.b32.xlu0 %v6806, 48
  %v6972 = vpop.permute.xlu0 %6971
  %6973 = vrot.lane.b32.xlu0 %v6807, 48
  %v6974 = vpop.permute.xlu0 %6973
  %6975 = vrot.lane.b32.xlu0 %v6808, 48
  %v6976 = vpop.permute.xlu0 %6975
  %6977 = vrot.lane.b32.xlu0 %v6809, 48
  %v6978 = vpop.permute.xlu0 %6977
  %6979 = vrot.lane.b32.xlu0 %v6810, 48
  %v6980 = vpop.permute.xlu0 %6979
  %6981 = vrot.lane.b32.xlu0 %v6811, 48
  %v6982 = vpop.permute.xlu0 %6981
  %6983 = vrot.lane.b32.xlu0 %v6812, 48
  %v6984 = vpop.permute.xlu0 %6983
  %6985 = vrot.lane.b32.xlu0 %v6813, 48
  %v6986 = vpop.permute.xlu0 %6985
  %6987 = vrot.lane.b32.xlu0 %v6814, 48
  %v6988 = vpop.permute.xlu0 %6987
  %6989 = vrot.lane.b32.xlu0 %v6815, 48
  %v6990 = vpop.permute.xlu0 %6989
  %6991 = vrot.lane.b32.xlu0 %v6816, 48
  %v6992 = vpop.permute.xlu0 %6991
  %6993 = vrot.lane.b32.xlu0 %v6817, 48
  %v6994 = vpop.permute.xlu0 %6993
  %6995 = vrot.lane.b32.xlu0 %v6818, 48
  %v6996 = vpop.permute.xlu0 %6995
  %6997 = vrot.lane.b32.xlu0 %v6819, 48
  %v6998 = vpop.permute.xlu0 %6997
  %6999 = vrot.lane.b32.xlu0 %v6820, 48
  %v7000 = vpop.permute.xlu0 %6999
  %7001 = vrot.lane.b32.xlu0 %v6821, 48
  %v7002 = vpop.permute.xlu0 %7001
  %7003 = vrot.lane.b32.xlu0 %v6822, 48
  %v7004 = vpop.permute.xlu0 %7003
  %7005 = vrot.lane.b32.xlu0 %v6823, 48
  %v7006 = vpop.permute.xlu0 %7005
  %7007 = vrot.lane.b32.xlu0 %v6824, 48
  %v7008 = vpop.permute.xlu0 %7007
  %7009 = vrot.lane.b32.xlu0 %v6825, 48
  %v7010 = vpop.permute.xlu0 %7009
  %7011 = vrot.lane.b32.xlu0 %v6826, 48
  %v7012 = vpop.permute.xlu0 %7011
  %7013 = vrot.lane.b32.xlu0 %v6827, 48
  %v7014 = vpop.permute.xlu0 %7013
  %7015 = vrot.lane.b32.xlu0 %v6828, 48
  %v7016 = vpop.permute.xlu0 %7015
  %7017 = vrot.lane.b32.xlu0 %v6829, 48
  %v7018 = vpop.permute.xlu0 %7017
  %7019 = vrot.lane.b32.xlu0 %v6830, 48
  %v7020 = vpop.permute.xlu0 %7019
  %7021 = vrot.lane.b32.xlu0 %v6831, 48
  %v7022 = vpop.permute.xlu0 %7021
  %7023 = vrot.lane.b32.xlu0 %v6832, 48
  %v7024 = vpop.permute.xlu0 %7023
  %vm7089 = vcmask 458112
  %7090 = vst.msk [vmem:[#allocation5] sm:$0xff] %vm7089, %v6898
  %7091 = vst.msk [vmem:[#allocation5 + $0x8] sm:$0xff] %vm7089, %v6900
  %7092 = vst.msk [vmem:[#allocation5 + $0x10] sm:$0xff] %vm7089, %v6902
  %7093 = vst.msk [vmem:[#allocation5 + $0x18] sm:$0xff] %vm7089, %v6904
  %7094 = vst.msk [vmem:[#allocation5 + $0x20] sm:$0xff] %vm7089, %v6906
  %7095 = vst.msk [vmem:[#allocation5 + $0x28] sm:$0xff] %vm7089, %v6908
  %7096 = vst.msk [vmem:[#allocation5 + $0x30] sm:$0xff] %vm7089, %v6910
  %7097 = vst.msk [vmem:[#allocation5 + $0x38] sm:$0xff] %vm7089, %v6912
  %7098 = vst.msk [vmem:[#allocation5 + $0x40] sm:$0xff] %vm7089, %v6914
  %7099 = vst.msk [vmem:[#allocation5 + $0x48] sm:$0xff] %vm7089, %v6916
  %7100 = vst.msk [vmem:[#allocation5 + $0x50] sm:$0xff] %vm7089, %v6918
  %7101 = vst.msk [vmem:[#allocation5 + $0x58] sm:$0xff] %vm7089, %v6920
  %7102 = vst.msk [vmem:[#allocation5 + $0x60] sm:$0xff] %vm7089, %v6922
  %7103 = vst.msk [vmem:[#allocation5 + $0x68] sm:$0xff] %vm7089, %v6924
  %7104 = vst.msk [vmem:[#allocation5 + $0x70] sm:$0xff] %vm7089, %v6926
  %7105 = vst.msk [vmem:[#allocation5 + $0x78] sm:$0xff] %vm7089, %v6928
  %7106 = vst.msk [vmem:[#allocation5 + $0x80] sm:$0xff] %vm7089, %v6930
  %7107 = vst.msk [vmem:[#allocation5 + $0x88] sm:$0xff] %vm7089, %v6932
  %7108 = vst.msk [vmem:[#allocation5 + $0x90] sm:$0xff] %vm7089, %v6934
  %7109 = vst.msk [vmem:[#allocation5 + $0x98] sm:$0xff] %vm7089, %v6936
  %7110 = vst.msk [vmem:[#allocation5 + $0xa0] sm:$0xff] %vm7089, %v6938
  %7111 = vst.msk [vmem:[#allocation5 + $0xa8] sm:$0xff] %vm7089, %v6940
  %7112 = vst.msk [vmem:[#allocation5 + $0xb0] sm:$0xff] %vm7089, %v6942
  %7113 = vst.msk [vmem:[#allocation5 + $0xb8] sm:$0xff] %vm7089, %v6944
  %7114 = vst.msk [vmem:[#allocation5 + $0xc0] sm:$0xff] %vm7089, %v6946
  %7115 = vst.msk [vmem:[#allocation5 + $0xc8] sm:$0xff] %vm7089, %v6948
  %7116 = vst.msk [vmem:[#allocation5 + $0xd0] sm:$0xff] %vm7089, %v6950
  %7117 = vst.msk [vmem:[#allocation5 + $0xd8] sm:$0xff] %vm7089, %v6952
  %7118 = vst.msk [vmem:[#allocation5 + $0xe0] sm:$0xff] %vm7089, %v6954
  %7119 = vst.msk [vmem:[#allocation5 + $0xe8] sm:$0xff] %vm7089, %v6956
  %7120 = vst.msk [vmem:[#allocation5 + $0xf0] sm:$0xff] %vm7089, %v6958
  %7121 = vst.msk [vmem:[#allocation5 + $0xf8] sm:$0xff] %vm7089, %v6960
  %7122 = vst.msk [vmem:[#allocation5 + $0x100] sm:$0xff] %vm7089, %v6962
  %7123 = vst.msk [vmem:[#allocation5 + $0x108] sm:$0xff] %vm7089, %v6964
  %7124 = vst.msk [vmem:[#allocation5 + $0x110] sm:$0xff] %vm7089, %v6966
  %7125 = vst.msk [vmem:[#allocation5 + $0x118] sm:$0xff] %vm7089, %v6968
  %7126 = vst.msk [vmem:[#allocation5 + $0x120] sm:$0xff] %vm7089, %v6970
  %7127 = vst.msk [vmem:[#allocation5 + $0x128] sm:$0xff] %vm7089, %v6972
  %7128 = vst.msk [vmem:[#allocation5 + $0x130] sm:$0xff] %vm7089, %v6974
  %7129 = vst.msk [vmem:[#allocation5 + $0x138] sm:$0xff] %vm7089, %v6976
  %7130 = vst.msk [vmem:[#allocation5 + $0x140] sm:$0xff] %vm7089, %v6978
  %7131 = vst.msk [vmem:[#allocation5 + $0x148] sm:$0xff] %vm7089, %v6980
  %7132 = vst.msk [vmem:[#allocation5 + $0x150] sm:$0xff] %vm7089, %v6982
  %7133 = vst.msk [vmem:[#allocation5 + $0x158] sm:$0xff] %vm7089, %v6984
  %7134 = vst.msk [vmem:[#allocation5 + $0x160] sm:$0xff] %vm7089, %v6986
  %7135 = vst.msk [vmem:[#allocation5 + $0x168] sm:$0xff] %vm7089, %v6988
  %7136 = vst.msk [vmem:[#allocation5 + $0x170] sm:$0xff] %vm7089, %v6990
  %7137 = vst.msk [vmem:[#allocation5 + $0x178] sm:$0xff] %vm7089, %v6992
  %7138 = vst.msk [vmem:[#allocation5 + $0x180] sm:$0xff] %vm7089, %v6994
  %7139 = vst.msk [vmem:[#allocation5 + $0x188] sm:$0xff] %vm7089, %v6996
  %7140 = vst.msk [vmem:[#allocation5 + $0x190] sm:$0xff] %vm7089, %v6998
  %7141 = vst.msk [vmem:[#allocation5 + $0x198] sm:$0xff] %vm7089, %v7000
  %7142 = vst.msk [vmem:[#allocation5 + $0x1a0] sm:$0xff] %vm7089, %v7002
  %7143 = vst.msk [vmem:[#allocation5 + $0x1a8] sm:$0xff] %vm7089, %v7004
  %7144 = vst.msk [vmem:[#allocation5 + $0x1b0] sm:$0xff] %vm7089, %v7006
  %7145 = vst.msk [vmem:[#allocation5 + $0x1b8] sm:$0xff] %vm7089, %v7008
  %7146 = vst.msk [vmem:[#allocation5 + $0x1c0] sm:$0xff] %vm7089, %v7010
  %7147 = vst.msk [vmem:[#allocation5 + $0x1c8] sm:$0xff] %vm7089, %v7012
  %7148 = vst.msk [vmem:[#allocation5 + $0x1d0] sm:$0xff] %vm7089, %v7014
  %7149 = vst.msk [vmem:[#allocation5 + $0x1d8] sm:$0xff] %vm7089, %v7016
  %7150 = vst.msk [vmem:[#allocation5 + $0x1e0] sm:$0xff] %vm7089, %v7018
  %7151 = vst.msk [vmem:[#allocation5 + $0x1e8] sm:$0xff] %vm7089, %v7020
  %7152 = vst.msk [vmem:[#allocation5 + $0x1f0] sm:$0xff] %vm7089, %v7022
  %7153 = vst.msk [vmem:[#allocation5 + $0x1f8] sm:$0xff] %vm7089, %v7024
  %v7154 = vld [vmem:[%s6768 + $0x1] sm:$0xff]
  %v7155 = vld [vmem:[%s6768 + $0x9] sm:$0xff]
  %v7156 = vld [vmem:[%s6768 + $0x19] sm:$0xff]
  %v7157 = vld [vmem:[%s6768 + $0x21] sm:$0xff]
  %v7158 = vld [vmem:[%s6768 + $0x31] sm:$0xff]
  %v7159 = vld [vmem:[%s6768 + $0x39] sm:$0xff]
  %v7160 = vld [vmem:[%s6768 + $0x49] sm:$0xff]
  %v7161 = vld [vmem:[%s6768 + $0x51] sm:$0xff]
  %v7162 = vld [vmem:[%s6768 + $0x61] sm:$0xff]
  %v7163 = vld [vmem:[%s6768 + $0x69] sm:$0xff]
  %v7164 = vld [vmem:[%s6768 + $0x79] sm:$0xff]
  %v7165 = vld [vmem:[%s6768 + $0x81] sm:$0xff]
  %v7166 = vld [vmem:[%s6768 + $0x91] sm:$0xff]
  %v7167 = vld [vmem:[%s6768 + $0x99] sm:$0xff]
  %v7168 = vld [vmem:[%s6768 + $0xa9] sm:$0xff]
  %v7169 = vld [vmem:[%s6768 + $0xb1] sm:$0xff]
  %v7170 = vld [vmem:[%s6768 + $0xc1] sm:$0xff]
  %v7171 = vld [vmem:[%s6768 + $0xc9] sm:$0xff]
  %v7172 = vld [vmem:[%s6768 + $0xd9] sm:$0xff]
  %v7173 = vld [vmem:[%s6768 + $0xe1] sm:$0xff]
  %v7174 = vld [vmem:[%s6768 + $0xf1] sm:$0xff]
  %v7175 = vld [vmem:[%s6768 + $0xf9] sm:$0xff]
  %v7176 = vld [vmem:[%s6768 + $0x109] sm:$0xff]
  %v7177 = vld [vmem:[%s6768 + $0x111] sm:$0xff]
  %v7178 = vld [vmem:[%s6768 + $0x121] sm:$0xff]
  %v7179 = vld [vmem:[%s6768 + $0x129] sm:$0xff]
  %v7180 = vld [vmem:[%s6768 + $0x139] sm:$0xff]
  %v7181 = vld [vmem:[%s6768 + $0x141] sm:$0xff]
  %v7182 = vld [vmem:[%s6768 + $0x151] sm:$0xff]
  %v7183 = vld [vmem:[%s6768 + $0x159] sm:$0xff]
  %v7184 = vld [vmem:[%s6768 + $0x169] sm:$0xff]
  %v7185 = vld [vmem:[%s6768 + $0x171] sm:$0xff]
  %v7186 = vld [vmem:[%s6768 + $0x1b1] sm:$0xff]
  %v7187 = vld [vmem:[%s6768 + $0x1b9] sm:$0xff]
  %v7188 = vld [vmem:[%s6768 + $0x1c9] sm:$0xff]
  %v7189 = vld [vmem:[%s6768 + $0x1d1] sm:$0xff]
  %v7190 = vld [vmem:[%s6768 + $0x1e1] sm:$0xff]
  %v7191 = vld [vmem:[%s6768 + $0x1e9] sm:$0xff]
  %v7192 = vld [vmem:[%s6768 + $0x1f9] sm:$0xff]
  %v7193 = vld [vmem:[%s6768 + $0x201] sm:$0xff]
  %v7194 = vld [vmem:[%s6768 + $0x211] sm:$0xff]
  %v7195 = vld [vmem:[%s6768 + $0x219] sm:$0xff]
  %v7196 = vld [vmem:[%s6768 + $0x229] sm:$0xff]
  %v7197 = vld [vmem:[%s6768 + $0x231] sm:$0xff]
  %v7198 = vld [vmem:[%s6768 + $0x241] sm:$0xff]
  %v7199 = vld [vmem:[%s6768 + $0x249] sm:$0xff]
  %v7200 = vld [vmem:[%s6768 + $0x259] sm:$0xff]
  %v7201 = vld [vmem:[%s6768 + $0x261] sm:$0xff]
  %v7202 = vld [vmem:[%s6768 + $0x271] sm:$0xff]
  %v7203 = vld [vmem:[%s6768 + $0x279] sm:$0xff]
  %v7204 = vld [vmem:[%s6768 + $0x289] sm:$0xff]
  %v7205 = vld [vmem:[%s6768 + $0x291] sm:$0xff]
  %v7206 = vld [vmem:[%s6768 + $0x2a1] sm:$0xff]
  %v7207 = vld [vmem:[%s6768 + $0x2a9] sm:$0xff]
  %v7208 = vld [vmem:[%s6768 + $0x2b9] sm:$0xff]
  %v7209 = vld [vmem:[%s6768 + $0x2c1] sm:$0xff]
  %v7210 = vld [vmem:[%s6768 + $0x2d1] sm:$0xff]
  %v7211 = vld [vmem:[%s6768 + $0x2d9] sm:$0xff]
  %v7212 = vld [vmem:[%s6768 + $0x2e9] sm:$0xff]
  %v7213 = vld [vmem:[%s6768 + $0x2f1] sm:$0xff]
  %v7214 = vld [vmem:[%s6768 + $0x301] sm:$0xff]
  %v7215 = vld [vmem:[%s6768 + $0x309] sm:$0xff]
  %v7216 = vld [vmem:[%s6768 + $0x319] sm:$0xff]
  %v7217 = vld [vmem:[%s6768 + $0x321] sm:$0xff]
  %7282 = vrot.lane.b32.xlu0 %v7154, 56
  %v7283 = vpop.permute.xlu0 %7282
  %7284 = vrot.lane.b32.xlu0 %v7155, 56
  %v7285 = vpop.permute.xlu0 %7284
  %7286 = vrot.lane.b32.xlu0 %v7156, 56
  %v7287 = vpop.permute.xlu0 %7286
  %7288 = vrot.lane.b32.xlu0 %v7157, 56
  %v7289 = vpop.permute.xlu0 %7288
  %7290 = vrot.lane.b32.xlu0 %v7158, 56
  %v7291 = vpop.permute.xlu0 %7290
  %7292 = vrot.lane.b32.xlu0 %v7159, 56
  %v7293 = vpop.permute.xlu0 %7292
  %7294 = vrot.lane.b32.xlu0 %v7160, 56
  %v7295 = vpop.permute.xlu0 %7294
  %7296 = vrot.lane.b32.xlu0 %v7161, 56
  %v7297 = vpop.permute.xlu0 %7296
  %7298 = vrot.lane.b32.xlu0 %v7162, 56
  %v7299 = vpop.permute.xlu0 %7298
  %7300 = vrot.lane.b32.xlu0 %v7163, 56
  %v7301 = vpop.permute.xlu0 %7300
  %7302 = vrot.lane.b32.xlu0 %v7164, 56
  %v7303 = vpop.permute.xlu0 %7302
  %7304 = vrot.lane.b32.xlu0 %v7165, 56
  %v7305 = vpop.permute.xlu0 %7304
  %7306 = vrot.lane.b32.xlu0 %v7166, 56
  %v7307 = vpop.permute.xlu0 %7306
  %7308 = vrot.lane.b32.xlu0 %v7167, 56
  %v7309 = vpop.permute.xlu0 %7308
  %7310 = vrot.lane.b32.xlu0 %v7168, 56
  %v7311 = vpop.permute.xlu0 %7310
  %7312 = vrot.lane.b32.xlu0 %v7169, 56
  %v7313 = vpop.permute.xlu0 %7312
  %7314 = vrot.lane.b32.xlu0 %v7170, 56
  %v7315 = vpop.permute.xlu0 %7314
  %7316 = vrot.lane.b32.xlu0 %v7171, 56
  %v7317 = vpop.permute.xlu0 %7316
  %7318 = vrot.lane.b32.xlu0 %v7172, 56
  %v7319 = vpop.permute.xlu0 %7318
  %7320 = vrot.lane.b32.xlu0 %v7173, 56
  %v7321 = vpop.permute.xlu0 %7320
  %7322 = vrot.lane.b32.xlu0 %v7174, 56
  %v7323 = vpop.permute.xlu0 %7322
  %7324 = vrot.lane.b32.xlu0 %v7175, 56
  %v7325 = vpop.permute.xlu0 %7324
  %7326 = vrot.lane.b32.xlu0 %v7176, 56
  %v7327 = vpop.permute.xlu0 %7326
  %7328 = vrot.lane.b32.xlu0 %v7177, 56
  %v7329 = vpop.permute.xlu0 %7328
  %7330 = vrot.lane.b32.xlu0 %v7178, 56
  %v7331 = vpop.permute.xlu0 %7330
  %7332 = vrot.lane.b32.xlu0 %v7179, 56
  %v7333 = vpop.permute.xlu0 %7332
  %7334 = vrot.lane.b32.xlu0 %v7180, 56
  %v7335 = vpop.permute.xlu0 %7334
  %7336 = vrot.lane.b32.xlu0 %v7181, 56
  %v7337 = vpop.permute.xlu0 %7336
  %7338 = vrot.lane.b32.xlu0 %v7182, 56
  %v7339 = vpop.permute.xlu0 %7338
  %7340 = vrot.lane.b32.xlu0 %v7183, 56
  %v7341 = vpop.permute.xlu0 %7340
  %7342 = vrot.lane.b32.xlu0 %v7184, 56
  %v7343 = vpop.permute.xlu0 %7342
  %7344 = vrot.lane.b32.xlu0 %v7185, 56
  %v7345 = vpop.permute.xlu0 %7344
  %7346 = vrot.lane.b32.xlu0 %v7186, 56
  %v7347 = vpop.permute.xlu0 %7346
  %7348 = vrot.lane.b32.xlu0 %v7187, 56
  %v7349 = vpop.permute.xlu0 %7348
  %7350 = vrot.lane.b32.xlu0 %v7188, 56
  %v7351 = vpop.permute.xlu0 %7350
  %7352 = vrot.lane.b32.xlu0 %v7189, 56
  %v7353 = vpop.permute.xlu0 %7352
  %7354 = vrot.lane.b32.xlu0 %v7190, 56
  %v7355 = vpop.permute.xlu0 %7354
  %7356 = vrot.lane.b32.xlu0 %v7191, 56
  %v7357 = vpop.permute.xlu0 %7356
  %7358 = vrot.lane.b32.xlu0 %v7192, 56
  %v7359 = vpop.permute.xlu0 %7358
  %7360 = vrot.lane.b32.xlu0 %v7193, 56
  %v7361 = vpop.permute.xlu0 %7360
  %7362 = vrot.lane.b32.xlu0 %v7194, 56
  %v7363 = vpop.permute.xlu0 %7362
  %7364 = vrot.lane.b32.xlu0 %v7195, 56
  %v7365 = vpop.permute.xlu0 %7364
  %7366 = vrot.lane.b32.xlu0 %v7196, 56
  %v7367 = vpop.permute.xlu0 %7366
  %7368 = vrot.lane.b32.xlu0 %v7197, 56
  %v7369 = vpop.permute.xlu0 %7368
  %7370 = vrot.lane.b32.xlu0 %v7198, 56
  %v7371 = vpop.permute.xlu0 %7370
  %7372 = vrot.lane.b32.xlu0 %v7199, 56
  %v7373 = vpop.permute.xlu0 %7372
  %7374 = vrot.lane.b32.xlu0 %v7200, 56
  %v7375 = vpop.permute.xlu0 %7374
  %7376 = vrot.lane.b32.xlu0 %v7201, 56
  %v7377 = vpop.permute.xlu0 %7376
  %7378 = vrot.lane.b32.xlu0 %v7202, 56
  %v7379 = vpop.permute.xlu0 %7378
  %7380 = vrot.lane.b32.xlu0 %v7203, 56
  %v7381 = vpop.permute.xlu0 %7380
  %7382 = vrot.lane.b32.xlu0 %v7204, 56
  %v7383 = vpop.permute.xlu0 %7382
  %7384 = vrot.lane.b32.xlu0 %v7205, 56
  %v7385 = vpop.permute.xlu0 %7384
  %7386 = vrot.lane.b32.xlu0 %v7206, 56
  %v7387 = vpop.permute.xlu0 %7386
  %7388 = vrot.lane.b32.xlu0 %v7207, 56
  %v7389 = vpop.permute.xlu0 %7388
  %7390 = vrot.lane.b32.xlu0 %v7208, 56
  %v7391 = vpop.permute.xlu0 %7390
  %7392 = vrot.lane.b32.xlu0 %v7209, 56
  %v7393 = vpop.permute.xlu0 %7392
  %7394 = vrot.lane.b32.xlu0 %v7210, 56
  %v7395 = vpop.permute.xlu0 %7394
  %7396 = vrot.lane.b32.xlu0 %v7211, 56
  %v7397 = vpop.permute.xlu0 %7396
  %7398 = vrot.lane.b32.xlu0 %v7212, 56
  %v7399 = vpop.permute.xlu0 %7398
  %7400 = vrot.lane.b32.xlu0 %v7213, 56
  %v7401 = vpop.permute.xlu0 %7400
  %7402 = vrot.lane.b32.xlu0 %v7214, 56
  %v7403 = vpop.permute.xlu0 %7402
  %7404 = vrot.lane.b32.xlu0 %v7215, 56
  %v7405 = vpop.permute.xlu0 %7404
  %7406 = vrot.lane.b32.xlu0 %v7216, 56
  %v7407 = vpop.permute.xlu0 %7406
  %7408 = vrot.lane.b32.xlu0 %v7217, 56
  %v7409 = vpop.permute.xlu0 %7408
  %vm7474 = vcmask 523712
  %7475 = vst.msk [vmem:[#allocation5] sm:$0xff] %vm7474, %v7283
  %7476 = vst.msk [vmem:[#allocation5 + $0x8] sm:$0xff] %vm7474, %v7285
  %7477 = vst.msk [vmem:[#allocation5 + $0x10] sm:$0xff] %vm7474, %v7287
  %7478 = vst.msk [vmem:[#allocation5 + $0x18] sm:$0xff] %vm7474, %v7289
  %7479 = vst.msk [vmem:[#allocation5 + $0x20] sm:$0xff] %vm7474, %v7291
  %7480 = vst.msk [vmem:[#allocation5 + $0x28] sm:$0xff] %vm7474, %v7293
  %7481 = vst.msk [vmem:[#allocation5 + $0x30] sm:$0xff] %vm7474, %v7295
  %7482 = vst.msk [vmem:[#allocation5 + $0x38] sm:$0xff] %vm7474, %v7297
  %7483 = vst.msk [vmem:[#allocation5 + $0x40] sm:$0xff] %vm7474, %v7299
  %7484 = vst.msk [vmem:[#allocation5 + $0x48] sm:$0xff] %vm7474, %v7301
  %7485 = vst.msk [vmem:[#allocation5 + $0x50] sm:$0xff] %vm7474, %v7303
  %7486 = vst.msk [vmem:[#allocation5 + $0x58] sm:$0xff] %vm7474, %v7305
  %7487 = vst.msk [vmem:[#allocation5 + $0x60] sm:$0xff] %vm7474, %v7307
  %7488 = vst.msk [vmem:[#allocation5 + $0x68] sm:$0xff] %vm7474, %v7309
  %7489 = vst.msk [vmem:[#allocation5 + $0x70] sm:$0xff] %vm7474, %v7311
  %7490 = vst.msk [vmem:[#allocation5 + $0x78] sm:$0xff] %vm7474, %v7313
  %7491 = vst.msk [vmem:[#allocation5 + $0x80] sm:$0xff] %vm7474, %v7315
  %7492 = vst.msk [vmem:[#allocation5 + $0x88] sm:$0xff] %vm7474, %v7317
  %7493 = vst.msk [vmem:[#allocation5 + $0x90] sm:$0xff] %vm7474, %v7319
  %7494 = vst.msk [vmem:[#allocation5 + $0x98] sm:$0xff] %vm7474, %v7321
  %7495 = vst.msk [vmem:[#allocation5 + $0xa0] sm:$0xff] %vm7474, %v7323
  %7496 = vst.msk [vmem:[#allocation5 + $0xa8] sm:$0xff] %vm7474, %v7325
  %7497 = vst.msk [vmem:[#allocation5 + $0xb0] sm:$0xff] %vm7474, %v7327
  %7498 = vst.msk [vmem:[#allocation5 + $0xb8] sm:$0xff] %vm7474, %v7329
  %7499 = vst.msk [vmem:[#allocation5 + $0xc0] sm:$0xff] %vm7474, %v7331
  %7500 = vst.msk [vmem:[#allocation5 + $0xc8] sm:$0xff] %vm7474, %v7333
  %7501 = vst.msk [vmem:[#allocation5 + $0xd0] sm:$0xff] %vm7474, %v7335
  %7502 = vst.msk [vmem:[#allocation5 + $0xd8] sm:$0xff] %vm7474, %v7337
  %7503 = vst.msk [vmem:[#allocation5 + $0xe0] sm:$0xff] %vm7474, %v7339
  %7504 = vst.msk [vmem:[#allocation5 + $0xe8] sm:$0xff] %vm7474, %v7341
  %7505 = vst.msk [vmem:[#allocation5 + $0xf0] sm:$0xff] %vm7474, %v7343
  %7506 = vst.msk [vmem:[#allocation5 + $0xf8] sm:$0xff] %vm7474, %v7345
  %7507 = vst.msk [vmem:[#allocation5 + $0x100] sm:$0xff] %vm7474, %v7347
  %7508 = vst.msk [vmem:[#allocation5 + $0x108] sm:$0xff] %vm7474, %v7349
  %7509 = vst.msk [vmem:[#allocation5 + $0x110] sm:$0xff] %vm7474, %v7351
  %7510 = vst.msk [vmem:[#allocation5 + $0x118] sm:$0xff] %vm7474, %v7353
  %7511 = vst.msk [vmem:[#allocation5 + $0x120] sm:$0xff] %vm7474, %v7355
  %7512 = vst.msk [vmem:[#allocation5 + $0x128] sm:$0xff] %vm7474, %v7357
  %7513 = vst.msk [vmem:[#allocation5 + $0x130] sm:$0xff] %vm7474, %v7359
  %7514 = vst.msk [vmem:[#allocation5 + $0x138] sm:$0xff] %vm7474, %v7361
  %7515 = vst.msk [vmem:[#allocation5 + $0x140] sm:$0xff] %vm7474, %v7363
  %7516 = vst.msk [vmem:[#allocation5 + $0x148] sm:$0xff] %vm7474, %v7365
  %7517 = vst.msk [vmem:[#allocation5 + $0x150] sm:$0xff] %vm7474, %v7367
  %7518 = vst.msk [vmem:[#allocation5 + $0x158] sm:$0xff] %vm7474, %v7369
  %7519 = vst.msk [vmem:[#allocation5 + $0x160] sm:$0xff] %vm7474, %v7371
  %7520 = vst.msk [vmem:[#allocation5 + $0x168] sm:$0xff] %vm7474, %v7373
  %7521 = vst.msk [vmem:[#allocation5 + $0x170] sm:$0xff] %vm7474, %v7375
  %7522 = vst.msk [vmem:[#allocation5 + $0x178] sm:$0xff] %vm7474, %v7377
  %7523 = vst.msk [vmem:[#allocation5 + $0x180] sm:$0xff] %vm7474, %v7379
  %7524 = vst.msk [vmem:[#allocation5 + $0x188] sm:$0xff] %vm7474, %v7381
  %7525 = vst.msk [vmem:[#allocation5 + $0x190] sm:$0xff] %vm7474, %v7383
  %7526 = vst.msk [vmem:[#allocation5 + $0x198] sm:$0xff] %vm7474, %v7385
  %7527 = vst.msk [vmem:[#allocation5 + $0x1a0] sm:$0xff] %vm7474, %v7387
  %7528 = vst.msk [vmem:[#allocation5 + $0x1a8] sm:$0xff] %vm7474, %v7389
  %7529 = vst.msk [vmem:[#allocation5 + $0x1b0] sm:$0xff] %vm7474, %v7391
  %7530 = vst.msk [vmem:[#allocation5 + $0x1b8] sm:$0xff] %vm7474, %v7393
  %7531 = vst.msk [vmem:[#allocation5 + $0x1c0] sm:$0xff] %vm7474, %v7395
  %7532 = vst.msk [vmem:[#allocation5 + $0x1c8] sm:$0xff] %vm7474, %v7397
  %7533 = vst.msk [vmem:[#allocation5 + $0x1d0] sm:$0xff] %vm7474, %v7399
  %7534 = vst.msk [vmem:[#allocation5 + $0x1d8] sm:$0xff] %vm7474, %v7401
  %7535 = vst.msk [vmem:[#allocation5 + $0x1e0] sm:$0xff] %vm7474, %v7403
  %7536 = vst.msk [vmem:[#allocation5 + $0x1e8] sm:$0xff] %vm7474, %v7405
  %7537 = vst.msk [vmem:[#allocation5 + $0x1f0] sm:$0xff] %vm7474, %v7407
  %7538 = vst.msk [vmem:[#allocation5 + $0x1f8] sm:$0xff] %vm7474, %v7409
  %v7539 = vld [vmem:[%s6768 + $0x2] sm:$0xff]
  %v7540 = vld [vmem:[%s6768 + $0xa] sm:$0xff]
  %v7541 = vld [vmem:[%s6768 + $0x1a] sm:$0xff]
  %v7542 = vld [vmem:[%s6768 + $0x22] sm:$0xff]
  %v7543 = vld [vmem:[%s6768 + $0x32] sm:$0xff]
  %v7544 = vld [vmem:[%s6768 + $0x3a] sm:$0xff]
  %v7545 = vld [vmem:[%s6768 + $0x4a] sm:$0xff]
  %v7546 = vld [vmem:[%s6768 + $0x52] sm:$0xff]
  %v7547 = vld [vmem:[%s6768 + $0x62] sm:$0xff]
  %v7548 = vld [vmem:[%s6768 + $0x6a] sm:$0xff]
  %v7549 = vld [vmem:[%s6768 + $0x7a] sm:$0xff]
  %v7550 = vld [vmem:[%s6768 + $0x82] sm:$0xff]
  %v7551 = vld [vmem:[%s6768 + $0x92] sm:$0xff]
  %v7552 = vld [vmem:[%s6768 + $0x9a] sm:$0xff]
  %v7553 = vld [vmem:[%s6768 + $0xaa] sm:$0xff]
  %v7554 = vld [vmem:[%s6768 + $0xb2] sm:$0xff]
  %v7555 = vld [vmem:[%s6768 + $0xc2] sm:$0xff]
  %v7556 = vld [vmem:[%s6768 + $0xca] sm:$0xff]
  %v7557 = vld [vmem:[%s6768 + $0xda] sm:$0xff]
  %v7558 = vld [vmem:[%s6768 + $0xe2] sm:$0xff]
  %v7559 = vld [vmem:[%s6768 + $0xf2] sm:$0xff]
  %v7560 = vld [vmem:[%s6768 + $0xfa] sm:$0xff]
  %v7561 = vld [vmem:[%s6768 + $0x10a] sm:$0xff]
  %v7562 = vld [vmem:[%s6768 + $0x112] sm:$0xff]
  %v7563 = vld [vmem:[%s6768 + $0x122] sm:$0xff]
  %v7564 = vld [vmem:[%s6768 + $0x12a] sm:$0xff]
  %v7565 = vld [vmem:[%s6768 + $0x13a] sm:$0xff]
  %v7566 = vld [vmem:[%s6768 + $0x142] sm:$0xff]
  %v7567 = vld [vmem:[%s6768 + $0x152] sm:$0xff]
  %v7568 = vld [vmem:[%s6768 + $0x15a] sm:$0xff]
  %v7569 = vld [vmem:[%s6768 + $0x16a] sm:$0xff]
  %v7570 = vld [vmem:[%s6768 + $0x172] sm:$0xff]
  %v7571 = vld [vmem:[%s6768 + $0x1b2] sm:$0xff]
  %v7572 = vld [vmem:[%s6768 + $0x1ba] sm:$0xff]
  %v7573 = vld [vmem:[%s6768 + $0x1ca] sm:$0xff]
  %v7574 = vld [vmem:[%s6768 + $0x1d2] sm:$0xff]
  %v7575 = vld [vmem:[%s6768 + $0x1e2] sm:$0xff]
  %v7576 = vld [vmem:[%s6768 + $0x1ea] sm:$0xff]
  %v7577 = vld [vmem:[%s6768 + $0x1fa] sm:$0xff]
  %v7578 = vld [vmem:[%s6768 + $0x202] sm:$0xff]
  %v7579 = vld [vmem:[%s6768 + $0x212] sm:$0xff]
  %v7580 = vld [vmem:[%s6768 + $0x21a] sm:$0xff]
  %v7581 = vld [vmem:[%s6768 + $0x22a] sm:$0xff]
  %v7582 = vld [vmem:[%s6768 + $0x232] sm:$0xff]
  %v7583 = vld [vmem:[%s6768 + $0x242] sm:$0xff]
  %v7584 = vld [vmem:[%s6768 + $0x24a] sm:$0xff]
  %v7585 = vld [vmem:[%s6768 + $0x25a] sm:$0xff]
  %v7586 = vld [vmem:[%s6768 + $0x262] sm:$0xff]
  %v7587 = vld [vmem:[%s6768 + $0x272] sm:$0xff]
  %v7588 = vld [vmem:[%s6768 + $0x27a] sm:$0xff]
  %v7589 = vld [vmem:[%s6768 + $0x28a] sm:$0xff]
  %v7590 = vld [vmem:[%s6768 + $0x292] sm:$0xff]
  %v7591 = vld [vmem:[%s6768 + $0x2a2] sm:$0xff]
  %v7592 = vld [vmem:[%s6768 + $0x2aa] sm:$0xff]
  %v7593 = vld [vmem:[%s6768 + $0x2ba] sm:$0xff]
  %v7594 = vld [vmem:[%s6768 + $0x2c2] sm:$0xff]
  %v7595 = vld [vmem:[%s6768 + $0x2d2] sm:$0xff]
  %v7596 = vld [vmem:[%s6768 + $0x2da] sm:$0xff]
  %v7597 = vld [vmem:[%s6768 + $0x2ea] sm:$0xff]
  %v7598 = vld [vmem:[%s6768 + $0x2f2] sm:$0xff]
  %v7599 = vld [vmem:[%s6768 + $0x302] sm:$0xff]
  %v7600 = vld [vmem:[%s6768 + $0x30a] sm:$0xff]
  %v7601 = vld [vmem:[%s6768 + $0x31a] sm:$0xff]
  %v7602 = vld [vmem:[%s6768 + $0x322] sm:$0xff]
  %7667 = vrot.lane.b32.xlu0 %v7539, 64
  %v7668 = vpop.permute.xlu0 %7667
  %7669 = vrot.lane.b32.xlu0 %v7540, 64
  %v7670 = vpop.permute.xlu0 %7669
  %7671 = vrot.lane.b32.xlu0 %v7541, 64
  %v7672 = vpop.permute.xlu0 %7671
  %7673 = vrot.lane.b32.xlu0 %v7542, 64
  %v7674 = vpop.permute.xlu0 %7673
  %7675 = vrot.lane.b32.xlu0 %v7543, 64
  %v7676 = vpop.permute.xlu0 %7675
  %7677 = vrot.lane.b32.xlu0 %v7544, 64
  %v7678 = vpop.permute.xlu0 %7677
  %7679 = vrot.lane.b32.xlu0 %v7545, 64
  %v7680 = vpop.permute.xlu0 %7679
  %7681 = vrot.lane.b32.xlu0 %v7546, 64
  %v7682 = vpop.permute.xlu0 %7681
  %7683 = vrot.lane.b32.xlu0 %v7547, 64
  %v7684 = vpop.permute.xlu0 %7683
  %7685 = vrot.lane.b32.xlu0 %v7548, 64
  %v7686 = vpop.permute.xlu0 %7685
  %7687 = vrot.lane.b32.xlu0 %v7549, 64
  %v7688 = vpop.permute.xlu0 %7687
  %7689 = vrot.lane.b32.xlu0 %v7550, 64
  %v7690 = vpop.permute.xlu0 %7689
  %7691 = vrot.lane.b32.xlu0 %v7551, 64
  %v7692 = vpop.permute.xlu0 %7691
  %7693 = vrot.lane.b32.xlu0 %v7552, 64
  %v7694 = vpop.permute.xlu0 %7693
  %7695 = vrot.lane.b32.xlu0 %v7553, 64
  %v7696 = vpop.permute.xlu0 %7695
  %7697 = vrot.lane.b32.xlu0 %v7554, 64
  %v7698 = vpop.permute.xlu0 %7697
  %7699 = vrot.lane.b32.xlu0 %v7555, 64
  %v7700 = vpop.permute.xlu0 %7699
  %7701 = vrot.lane.b32.xlu0 %v7556, 64
  %v7702 = vpop.permute.xlu0 %7701
  %7703 = vrot.lane.b32.xlu0 %v7557, 64
  %v7704 = vpop.permute.xlu0 %7703
  %7705 = vrot.lane.b32.xlu0 %v7558, 64
  %v7706 = vpop.permute.xlu0 %7705
  %7707 = vrot.lane.b32.xlu0 %v7559, 64
  %v7708 = vpop.permute.xlu0 %7707
  %7709 = vrot.lane.b32.xlu0 %v7560, 64
  %v7710 = vpop.permute.xlu0 %7709
  %7711 = vrot.lane.b32.xlu0 %v7561, 64
  %v7712 = vpop.permute.xlu0 %7711
  %7713 = vrot.lane.b32.xlu0 %v7562, 64
  %v7714 = vpop.permute.xlu0 %7713
  %7715 = vrot.lane.b32.xlu0 %v7563, 64
  %v7716 = vpop.permute.xlu0 %7715
  %7717 = vrot.lane.b32.xlu0 %v7564, 64
  %v7718 = vpop.permute.xlu0 %7717
  %7719 = vrot.lane.b32.xlu0 %v7565, 64
  %v7720 = vpop.permute.xlu0 %7719
  %7721 = vrot.lane.b32.xlu0 %v7566, 64
  %v7722 = vpop.permute.xlu0 %7721
  %7723 = vrot.lane.b32.xlu0 %v7567, 64
  %v7724 = vpop.permute.xlu0 %7723
  %7725 = vrot.lane.b32.xlu0 %v7568, 64
  %v7726 = vpop.permute.xlu0 %7725
  %7727 = vrot.lane.b32.xlu0 %v7569, 64
  %v7728 = vpop.permute.xlu0 %7727
  %7729 = vrot.lane.b32.xlu0 %v7570, 64
  %v7730 = vpop.permute.xlu0 %7729
  %7731 = vrot.lane.b32.xlu0 %v7571, 64
  %v7732 = vpop.permute.xlu0 %7731
  %7733 = vrot.lane.b32.xlu0 %v7572, 64
  %v7734 = vpop.permute.xlu0 %7733
  %7735 = vrot.lane.b32.xlu0 %v7573, 64
  %v7736 = vpop.permute.xlu0 %7735
  %7737 = vrot.lane.b32.xlu0 %v7574, 64
  %v7738 = vpop.permute.xlu0 %7737
  %7739 = vrot.lane.b32.xlu0 %v7575, 64
  %v7740 = vpop.permute.xlu0 %7739
  %7741 = vrot.lane.b32.xlu0 %v7576, 64
  %v7742 = vpop.permute.xlu0 %7741
  %7743 = vrot.lane.b32.xlu0 %v7577, 64
  %v7744 = vpop.permute.xlu0 %7743
  %7745 = vrot.lane.b32.xlu0 %v7578, 64
  %v7746 = vpop.permute.xlu0 %7745
  %7747 = vrot.lane.b32.xlu0 %v7579, 64
  %v7748 = vpop.permute.xlu0 %7747
  %7749 = vrot.lane.b32.xlu0 %v7580, 64
  %v7750 = vpop.permute.xlu0 %7749
  %7751 = vrot.lane.b32.xlu0 %v7581, 64
  %v7752 = vpop.permute.xlu0 %7751
  %7753 = vrot.lane.b32.xlu0 %v7582, 64
  %v7754 = vpop.permute.xlu0 %7753
  %7755 = vrot.lane.b32.xlu0 %v7583, 64
  %v7756 = vpop.permute.xlu0 %7755
  %7757 = vrot.lane.b32.xlu0 %v7584, 64
  %v7758 = vpop.permute.xlu0 %7757
  %7759 = vrot.lane.b32.xlu0 %v7585, 64
  %v7760 = vpop.permute.xlu0 %7759
  %7761 = vrot.lane.b32.xlu0 %v7586, 64
  %v7762 = vpop.permute.xlu0 %7761
  %7763 = vrot.lane.b32.xlu0 %v7587, 64
  %v7764 = vpop.permute.xlu0 %7763
  %7765 = vrot.lane.b32.xlu0 %v7588, 64
  %v7766 = vpop.permute.xlu0 %7765
  %7767 = vrot.lane.b32.xlu0 %v7589, 64
  %v7768 = vpop.permute.xlu0 %7767
  %7769 = vrot.lane.b32.xlu0 %v7590, 64
  %v7770 = vpop.permute.xlu0 %7769
  %7771 = vrot.lane.b32.xlu0 %v7591, 64
  %v7772 = vpop.permute.xlu0 %7771
  %7773 = vrot.lane.b32.xlu0 %v7592, 64
  %v7774 = vpop.permute.xlu0 %7773
  %7775 = vrot.lane.b32.xlu0 %v7593, 64
  %v7776 = vpop.permute.xlu0 %7775
  %7777 = vrot.lane.b32.xlu0 %v7594, 64
  %v7778 = vpop.permute.xlu0 %7777
  %7779 = vrot.lane.b32.xlu0 %v7595, 64
  %v7780 = vpop.permute.xlu0 %7779
  %7781 = vrot.lane.b32.xlu0 %v7596, 64
  %v7782 = vpop.permute.xlu0 %7781
  %7783 = vrot.lane.b32.xlu0 %v7597, 64
  %v7784 = vpop.permute.xlu0 %7783
  %7785 = vrot.lane.b32.xlu0 %v7598, 64
  %v7786 = vpop.permute.xlu0 %7785
  %7787 = vrot.lane.b32.xlu0 %v7599, 64
  %v7788 = vpop.permute.xlu0 %7787
  %7789 = vrot.lane.b32.xlu0 %v7600, 64
  %v7790 = vpop.permute.xlu0 %7789
  %7791 = vrot.lane.b32.xlu0 %v7601, 64
  %v7792 = vpop.permute.xlu0 %7791
  %7793 = vrot.lane.b32.xlu0 %v7602, 64
  %v7794 = vpop.permute.xlu0 %7793
  %vm7859 = vcmask 589312
  %7860 = vst.msk [vmem:[#allocation5] sm:$0xff] %vm7859, %v7668
  %7861 = vst.msk [vmem:[#allocation5 + $0x8] sm:$0xff] %vm7859, %v7670
  %7862 = vst.msk [vmem:[#allocation5 + $0x10] sm:$0xff] %vm7859, %v7672
  %7863 = vst.msk [vmem:[#allocation5 + $0x18] sm:$0xff] %vm7859, %v7674
  %7864 = vst.msk [vmem:[#allocation5 + $0x20] sm:$0xff] %vm7859, %v7676
  %7865 = vst.msk [vmem:[#allocation5 + $0x28] sm:$0xff] %vm7859, %v7678
  %7866 = vst.msk [vmem:[#allocation5 + $0x30] sm:$0xff] %vm7859, %v7680
  %7867 = vst.msk [vmem:[#allocation5 + $0x38] sm:$0xff] %vm7859, %v7682
  %7868 = vst.msk [vmem:[#allocation5 + $0x40] sm:$0xff] %vm7859, %v7684
  %7869 = vst.msk [vmem:[#allocation5 + $0x48] sm:$0xff] %vm7859, %v7686
  %7870 = vst.msk [vmem:[#allocation5 + $0x50] sm:$0xff] %vm7859, %v7688
  %7871 = vst.msk [vmem:[#allocation5 + $0x58] sm:$0xff] %vm7859, %v7690
  %7872 = vst.msk [vmem:[#allocation5 + $0x60] sm:$0xff] %vm7859, %v7692
  %7873 = vst.msk [vmem:[#allocation5 + $0x68] sm:$0xff] %vm7859, %v7694
  %7874 = vst.msk [vmem:[#allocation5 + $0x70] sm:$0xff] %vm7859, %v7696
  %7875 = vst.msk [vmem:[#allocation5 + $0x78] sm:$0xff] %vm7859, %v7698
  %7876 = vst.msk [vmem:[#allocation5 + $0x80] sm:$0xff] %vm7859, %v7700
  %7877 = vst.msk [vmem:[#allocation5 + $0x88] sm:$0xff] %vm7859, %v7702
  %7878 = vst.msk [vmem:[#allocation5 + $0x90] sm:$0xff] %vm7859, %v7704
  %7879 = vst.msk [vmem:[#allocation5 + $0x98] sm:$0xff] %vm7859, %v7706
  %7880 = vst.msk [vmem:[#allocation5 + $0xa0] sm:$0xff] %vm7859, %v7708
  %7881 = vst.msk [vmem:[#allocation5 + $0xa8] sm:$0xff] %vm7859, %v7710
  %7882 = vst.msk [vmem:[#allocation5 + $0xb0] sm:$0xff] %vm7859, %v7712
  %7883 = vst.msk [vmem:[#allocation5 + $0xb8] sm:$0xff] %vm7859, %v7714
  %7884 = vst.msk [vmem:[#allocation5 + $0xc0] sm:$0xff] %vm7859, %v7716
  %7885 = vst.msk [vmem:[#allocation5 + $0xc8] sm:$0xff] %vm7859, %v7718
  %7886 = vst.msk [vmem:[#allocation5 + $0xd0] sm:$0xff] %vm7859, %v7720
  %7887 = vst.msk [vmem:[#allocation5 + $0xd8] sm:$0xff] %vm7859, %v7722
  %7888 = vst.msk [vmem:[#allocation5 + $0xe0] sm:$0xff] %vm7859, %v7724
  %7889 = vst.msk [vmem:[#allocation5 + $0xe8] sm:$0xff] %vm7859, %v7726
  %7890 = vst.msk [vmem:[#allocation5 + $0xf0] sm:$0xff] %vm7859, %v7728
  %7891 = vst.msk [vmem:[#allocation5 + $0xf8] sm:$0xff] %vm7859, %v7730
  %7892 = vst.msk [vmem:[#allocation5 + $0x100] sm:$0xff] %vm7859, %v7732
  %7893 = vst.msk [vmem:[#allocation5 + $0x108] sm:$0xff] %vm7859, %v7734
  %7894 = vst.msk [vmem:[#allocation5 + $0x110] sm:$0xff] %vm7859, %v7736
  %7895 = vst.msk [vmem:[#allocation5 + $0x118] sm:$0xff] %vm7859, %v7738
  %7896 = vst.msk [vmem:[#allocation5 + $0x120] sm:$0xff] %vm7859, %v7740
  %7897 = vst.msk [vmem:[#allocation5 + $0x128] sm:$0xff] %vm7859, %v7742
  %7898 = vst.msk [vmem:[#allocation5 + $0x130] sm:$0xff] %vm7859, %v7744
  %7899 = vst.msk [vmem:[#allocation5 + $0x138] sm:$0xff] %vm7859, %v7746
  %7900 = vst.msk [vmem:[#allocation5 + $0x140] sm:$0xff] %vm7859, %v7748
  %7901 = vst.msk [vmem:[#allocation5 + $0x148] sm:$0xff] %vm7859, %v7750
  %7902 = vst.msk [vmem:[#allocation5 + $0x150] sm:$0xff] %vm7859, %v7752
  %7903 = vst.msk [vmem:[#allocation5 + $0x158] sm:$0xff] %vm7859, %v7754
  %7904 = vst.msk [vmem:[#allocation5 + $0x160] sm:$0xff] %vm7859, %v7756
  %7905 = vst.msk [vmem:[#allocation5 + $0x168] sm:$0xff] %vm7859, %v7758
  %7906 = vst.msk [vmem:[#allocation5 + $0x170] sm:$0xff] %vm7859, %v7760
  %7907 = vst.msk [vmem:[#allocation5 + $0x178] sm:$0xff] %vm7859, %v7762
  %7908 = vst.msk [vmem:[#allocation5 + $0x180] sm:$0xff] %vm7859, %v7764
  %7909 = vst.msk [vmem:[#allocation5 + $0x188] sm:$0xff] %vm7859, %v7766
  %7910 = vst.msk [vmem:[#allocation5 + $0x190] sm:$0xff] %vm7859, %v7768
  %7911 = vst.msk [vmem:[#allocation5 + $0x198] sm:$0xff] %vm7859, %v7770
  %7912 = vst.msk [vmem:[#allocation5 + $0x1a0] sm:$0xff] %vm7859, %v7772
  %7913 = vst.msk [vmem:[#allocation5 + $0x1a8] sm:$0xff] %vm7859, %v7774
  %7914 = vst.msk [vmem:[#allocation5 + $0x1b0] sm:$0xff] %vm7859, %v7776
  %7915 = vst.msk [vmem:[#allocation5 + $0x1b8] sm:$0xff] %vm7859, %v7778
  %7916 = vst.msk [vmem:[#allocation5 + $0x1c0] sm:$0xff] %vm7859, %v7780
  %7917 = vst.msk [vmem:[#allocation5 + $0x1c8] sm:$0xff] %vm7859, %v7782
  %7918 = vst.msk [vmem:[#allocation5 + $0x1d0] sm:$0xff] %vm7859, %v7784
  %7919 = vst.msk [vmem:[#allocation5 + $0x1d8] sm:$0xff] %vm7859, %v7786
  %7920 = vst.msk [vmem:[#allocation5 + $0x1e0] sm:$0xff] %vm7859, %v7788
  %7921 = vst.msk [vmem:[#allocation5 + $0x1e8] sm:$0xff] %vm7859, %v7790
  %7922 = vst.msk [vmem:[#allocation5 + $0x1f0] sm:$0xff] %vm7859, %v7792
  %7923 = vst.msk [vmem:[#allocation5 + $0x1f8] sm:$0xff] %vm7859, %v7794
  %v7924 = vld [vmem:[#allocation5] sm:$0xff]
  %v7925 = vld [vmem:[#allocation5 + $0x8] sm:$0xff]
  %v7926 = vld [vmem:[#allocation5 + $0x10] sm:$0xff]
  %v7927 = vld [vmem:[#allocation5 + $0x18] sm:$0xff]
  %v7928 = vld [vmem:[#allocation5 + $0x20] sm:$0xff]
  %v7929 = vld [vmem:[#allocation5 + $0x28] sm:$0xff]
  %v7930 = vld [vmem:[#allocation5 + $0x30] sm:$0xff]
  %v7931 = vld [vmem:[#allocation5 + $0x38] sm:$0xff]
  %v7932 = vld [vmem:[#allocation5 + $0x40] sm:$0xff]
  %v7933 = vld [vmem:[#allocation5 + $0x48] sm:$0xff]
  %v7934 = vld [vmem:[#allocation5 + $0x50] sm:$0xff]
  %v7935 = vld [vmem:[#allocation5 + $0x58] sm:$0xff]
  %v7936 = vld [vmem:[#allocation5 + $0x60] sm:$0xff]
  %v7937 = vld [vmem:[#allocation5 + $0x68] sm:$0xff]
  %v7938 = vld [vmem:[#allocation5 + $0x70] sm:$0xff]
  %v7939 = vld [vmem:[#allocation5 + $0x78] sm:$0xff]
  %v7940 = vld [vmem:[#allocation5 + $0x80] sm:$0xff]
  %v7941 = vld [vmem:[#allocation5 + $0x88] sm:$0xff]
  %v7942 = vld [vmem:[#allocation5 + $0x90] sm:$0xff]
  %v7943 = vld [vmem:[#allocation5 + $0x98] sm:$0xff]
  %v7944 = vld [vmem:[#allocation5 + $0xa0] sm:$0xff]
  %v7945 = vld [vmem:[#allocation5 + $0xa8] sm:$0xff]
  %v7946 = vld [vmem:[#allocation5 + $0xb0] sm:$0xff]
  %v7947 = vld [vmem:[#allocation5 + $0xb8] sm:$0xff]
  %v7948 = vld [vmem:[#allocation5 + $0xc0] sm:$0xff]
  %v7949 = vld [vmem:[#allocation5 + $0xc8] sm:$0xff]
  %v7950 = vld [vmem:[#allocation5 + $0xd0] sm:$0xff]
  %v7951 = vld [vmem:[#allocation5 + $0xd8] sm:$0xff]
  %v7952 = vld [vmem:[#allocation5 + $0xe0] sm:$0xff]
  %v7953 = vld [vmem:[#allocation5 + $0xe8] sm:$0xff]
  %v7954 = vld [vmem:[#allocation5 + $0xf0] sm:$0xff]
  %v7955 = vld [vmem:[#allocation5 + $0xf8] sm:$0xff]
  %v7956 = vld [vmem:[#allocation5 + $0x100] sm:$0xff]
  %v7957 = vld [vmem:[#allocation5 + $0x108] sm:$0xff]
  %v7958 = vld [vmem:[#allocation5 + $0x110] sm:$0xff]
  %v7959 = vld [vmem:[#allocation5 + $0x118] sm:$0xff]
  %v7960 = vld [vmem:[#allocation5 + $0x120] sm:$0xff]
  %v7961 = vld [vmem:[#allocation5 + $0x128] sm:$0xff]
  %v7962 = vld [vmem:[#allocation5 + $0x130] sm:$0xff]
  %v7963 = vld [vmem:[#allocation5 + $0x138] sm:$0xff]
  %v7964 = vld [vmem:[#allocation5 + $0x140] sm:$0xff]
  %v7965 = vld [vmem:[#allocation5 + $0x148] sm:$0xff]
  %v7966 = vld [vmem:[#allocation5 + $0x150] sm:$0xff]
  %v7967 = vld [vmem:[#allocation5 + $0x158] sm:$0xff]
  %v7968 = vld [vmem:[#allocation5 + $0x160] sm:$0xff]
  %v7969 = vld [vmem:[#allocation5 + $0x168] sm:$0xff]
  %v7970 = vld [vmem:[#allocation5 + $0x170] sm:$0xff]
  %v7971 = vld [vmem:[#allocation5 + $0x178] sm:$0xff]
  %v7972 = vld [vmem:[#allocation5 + $0x180] sm:$0xff]
  %v7973 = vld [vmem:[#allocation5 + $0x188] sm:$0xff]
  %v7974 = vld [vmem:[#allocation5 + $0x190] sm:$0xff]
  %v7975 = vld [vmem:[#allocation5 + $0x198] sm:$0xff]
  %v7976 = vld [vmem:[#allocation5 + $0x1a0] sm:$0xff]
  %v7977 = vld [vmem:[#allocation5 + $0x1a8] sm:$0xff]
  %v7978 = vld [vmem:[#allocation5 + $0x1b0] sm:$0xff]
  %v7979 = vld [vmem:[#allocation5 + $0x1b8] sm:$0xff]
  %v7980 = vld [vmem:[#allocation5 + $0x1c0] sm:$0xff]
  %v7981 = vld [vmem:[#allocation5 + $0x1c8] sm:$0xff]
  %v7982 = vld [vmem:[#allocation5 + $0x1d0] sm:$0xff]
  %v7983 = vld [vmem:[#allocation5 + $0x1d8] sm:$0xff]
  %v7984 = vld [vmem:[#allocation5 + $0x1e0] sm:$0xff]
  %v7985 = vld [vmem:[#allocation5 + $0x1e8] sm:$0xff]
  %v7986 = vld [vmem:[#allocation5 + $0x1f0] sm:$0xff]
  %v7987 = vld [vmem:[#allocation5 + $0x1f8] sm:$0xff]
  %v7988 = vpack.c.bf16 %v7925, %v7924
  %v7989 = vpack.c.bf16 %v7927, %v7926
  %v7990 = vpack.c.bf16 %v7929, %v7928
  %v7991 = vpack.c.bf16 %v7931, %v7930
  %v7992 = vpack.c.bf16 %v7933, %v7932
  %v7993 = vpack.c.bf16 %v7935, %v7934
  %v7994 = vpack.c.bf16 %v7937, %v7936
  %v7995 = vpack.c.bf16 %v7939, %v7938
  %v7996 = vpack.c.bf16 %v7941, %v7940
  %v7997 = vpack.c.bf16 %v7943, %v7942
  %v7998 = vpack.c.bf16 %v7945, %v7944
  %v7999 = vpack.c.bf16 %v7947, %v7946
  %v8000 = vpack.c.bf16 %v7949, %v7948
  %v8001 = vpack.c.bf16 %v7951, %v7950
  %v8002 = vpack.c.bf16 %v7953, %v7952
  %v8003 = vpack.c.bf16 %v7955, %v7954
  %v8004 = vpack.c.bf16 %v7957, %v7956
  %v8005 = vpack.c.bf16 %v7959, %v7958
  %v8006 = vpack.c.bf16 %v7961, %v7960
  %v8007 = vpack.c.bf16 %v7963, %v7962
  %v8008 = vpack.c.bf16 %v7965, %v7964
  %v8009 = vpack.c.bf16 %v7967, %v7966
  %v8010 = vpack.c.bf16 %v7969, %v7968
  %v8011 = vpack.c.bf16 %v7971, %v7970
  %v8012 = vpack.c.bf16 %v7973, %v7972
  %v8013 = vpack.c.bf16 %v7975, %v7974
  %v8014 = vpack.c.bf16 %v7977, %v7976
  %v8015 = vpack.c.bf16 %v7979, %v7978
  %v8016 = vpack.c.bf16 %v7981, %v7980
  %v8017 = vpack.c.bf16 %v7983, %v7982
  %v8018 = vpack.c.bf16 %v7985, %v7984
  %v8019 = vpack.c.bf16 %v7987, %v7986
  %v8020 = vld [vmem:[%s4] sm:$0xf]
  %v8021 = vld [vmem:[%s4 + $0x4] sm:$0xf]
  %v8022 = vld [vmem:[%s4 + $0x8] sm:$0xf]
  %v8023 = vld [vmem:[%s4 + $0xc] sm:$0xf]
  %v8024 = vld [vmem:[%s4 + $0x10] sm:$0xf]
  %v8025 = vld [vmem:[%s4 + $0x14] sm:$0xf]
  %v8026 = vld [vmem:[%s4 + $0x18] sm:$0xf]
  %v8027 = vld [vmem:[%s4 + $0x1c] sm:$0xf]
  %v8028 = vld [vmem:[%s4 + $0x20] sm:$0xf]
  %v8038 = vunpack.c.l.b16 %v8020
  %v8039 = vunpack.c.l.b16 %v8021
  %v8040 = vunpack.c.l.b16 %v8022
  %v8041 = vunpack.c.l.b16 %v8023
  %v8042 = vunpack.c.l.b16 %v8024
  %v8043 = vunpack.c.l.b16 %v8025
  %v8044 = vunpack.c.l.b16 %v8026
  %v8045 = vunpack.c.l.b16 %v8027
  %v8046 = vunpack.c.l.b16 %v8028
  %v8047 = vpack.c.b16 %v8039, %v8038
  %v8048 = vpack.c.b16 %v8041, %v8040
  %v8049 = vpack.c.b16 %v8043, %v8042
  %v8050 = vpack.c.b16 %v8045, %v8044
  %v8051 = vpack.c.b16 %v8046, %v8046
  %vm8056 = vcmask 588800
  %v8058 = vsel %vm8056, %v7988, 0
  %v8061 = vsel %vm8056, %v7989, 0
  %v8064 = vsel %vm8056, %v7990, 0
  %v8067 = vsel %vm8056, %v7991, 0
  %v8070 = vsel %vm8056, %v7992, 0
  %v8073 = vsel %vm8056, %v7993, 0
  %v8076 = vsel %vm8056, %v7994, 0
  %v8079 = vsel %vm8056, %v7995, 0
  %v8082 = vsel %vm8056, %v7996, 0
  %v8085 = vsel %vm8056, %v7997, 0
  %v8088 = vsel %vm8056, %v7998, 0
  %v8091 = vsel %vm8056, %v7999, 0
  %v8094 = vsel %vm8056, %v8000, 0
  %v8097 = vsel %vm8056, %v8001, 0
  %v8100 = vsel %vm8056, %v8002, 0
  %v8103 = vsel %vm8056, %v8003, 0
  %v8106 = vsel %vm8056, %v8004, 0
  %v8109 = vsel %vm8056, %v8005, 0
  %v8112 = vsel %vm8056, %v8006, 0
  %v8115 = vsel %vm8056, %v8007, 0
  %v8118 = vsel %vm8056, %v8008, 0
  %v8121 = vsel %vm8056, %v8009, 0
  %v8124 = vsel %vm8056, %v8010, 0
  %v8127 = vsel %vm8056, %v8011, 0
  %v8130 = vsel %vm8056, %v8012, 0
  %v8133 = vsel %vm8056, %v8013, 0
  %v8136 = vsel %vm8056, %v8014, 0
  %v8139 = vsel %vm8056, %v8015, 0
  %v8142 = vsel %vm8056, %v8016, 0
  %v8145 = vsel %vm8056, %v8017, 0
  %v8148 = vsel %vm8056, %v8018, 0
  %v8151 = vsel %vm8056, %v8019, 0
  %vm8153 = vcmask 1043456
  %v8155 = vsel %vm8153, %v8051, 0
  %8157 = vmatpush.bf16.msra.mxu0 0
  %8158 = vmatpush.bf16.msra.mxu0 0
  %8159 = vmatpush.bf16.msra.mxu0 0
  %8160 = vmatpush.bf16.msra.mxu0 %v8155
  %8161 = vmatpush.bf16.msra.mxu0 %v8050
  %8162 = vmatpush.bf16.msra.mxu0 %v8049
  %8163 = vmatpush.bf16.msra.mxu0 %v8048
  %8164 = vmatpush.bf16.msra.mxu0 %v8047
  %8165 = vmatmul.bf16.gmra.mxu0 %v8058
  %v8166 = vpop.f32.mrf.mxu0
  %v8167 = vadd.f32 0.0, %v8166
  %v8168 = vpop.f32.mrf.mxu0
  %v8169 = vadd.f32 0.0, %v8168
  %8170 = vmatmul.bf16.gmra.mxu0 %v8061
  %v8171 = vpop.f32.mrf.mxu0
  %v8172 = vadd.f32 0.0, %v8171
  %v8173 = vpop.f32.mrf.mxu0
  %v8174 = vadd.f32 0.0, %v8173
  %8175 = vmatmul.bf16.gmra.mxu0 %v8064
  %v8176 = vpop.f32.mrf.mxu0
  %v8177 = vadd.f32 0.0, %v8176
  %v8178 = vpop.f32.mrf.mxu0
  %v8179 = vadd.f32 0.0, %v8178
  %8180 = vmatmul.bf16.gmra.mxu0 %v8067
  %v8181 = vpop.f32.mrf.mxu0
  %v8182 = vadd.f32 0.0, %v8181
  %v8183 = vpop.f32.mrf.mxu0
  %v8184 = vadd.f32 0.0, %v8183
  %8185 = vmatmul.bf16.gmra.mxu0 %v8070
  %v8186 = vpop.f32.mrf.mxu0
  %v8187 = vadd.f32 0.0, %v8186
  %v8188 = vpop.f32.mrf.mxu0
  %v8189 = vadd.f32 0.0, %v8188
  %8190 = vmatmul.bf16.gmra.mxu0 %v8073
  %v8191 = vpop.f32.mrf.mxu0
  %v8192 = vadd.f32 0.0, %v8191
  %v8193 = vpop.f32.mrf.mxu0
  %v8194 = vadd.f32 0.0, %v8193
  %8195 = vmatmul.bf16.gmra.mxu0 %v8076
  %v8196 = vpop.f32.mrf.mxu0
  %v8197 = vadd.f32 0.0, %v8196
  %v8198 = vpop.f32.mrf.mxu0
  %v8199 = vadd.f32 0.0, %v8198
  %8200 = vmatmul.bf16.gmra.mxu0 %v8079
  %v8201 = vpop.f32.mrf.mxu0
  %v8202 = vadd.f32 0.0, %v8201
  %v8203 = vpop.f32.mrf.mxu0
  %v8204 = vadd.f32 0.0, %v8203
  %8205 = vmatmul.bf16.gmra.mxu0 %v8082
  %v8206 = vpop.f32.mrf.mxu0
  %v8207 = vadd.f32 0.0, %v8206
  %v8208 = vpop.f32.mrf.mxu0
  %v8209 = vadd.f32 0.0, %v8208
  %8210 = vmatmul.bf16.gmra.mxu0 %v8085
  %v8211 = vpop.f32.mrf.mxu0
  %v8212 = vadd.f32 0.0, %v8211
  %v8213 = vpop.f32.mrf.mxu0
  %v8214 = vadd.f32 0.0, %v8213
  %8215 = vmatmul.bf16.gmra.mxu0 %v8088
  %v8216 = vpop.f32.mrf.mxu0
  %v8217 = vadd.f32 0.0, %v8216
  %v8218 = vpop.f32.mrf.mxu0
  %v8219 = vadd.f32 0.0, %v8218
  %8220 = vmatmul.bf16.gmra.mxu0 %v8091
  %v8221 = vpop.f32.mrf.mxu0
  %v8222 = vadd.f32 0.0, %v8221
  %v8223 = vpop.f32.mrf.mxu0
  %v8224 = vadd.f32 0.0, %v8223
  %8225 = vmatmul.bf16.gmra.mxu0 %v8094
  %v8226 = vpop.f32.mrf.mxu0
  %v8227 = vadd.f32 0.0, %v8226
  %v8228 = vpop.f32.mrf.mxu0
  %v8229 = vadd.f32 0.0, %v8228
  %8230 = vmatmul.bf16.gmra.mxu0 %v8097
  %v8231 = vpop.f32.mrf.mxu0
  %v8232 = vadd.f32 0.0, %v8231
  %v8233 = vpop.f32.mrf.mxu0
  %v8234 = vadd.f32 0.0, %v8233
  %8235 = vmatmul.bf16.gmra.mxu0 %v8100
  %v8236 = vpop.f32.mrf.mxu0
  %v8237 = vadd.f32 0.0, %v8236
  %v8238 = vpop.f32.mrf.mxu0
  %v8239 = vadd.f32 0.0, %v8238
  %8240 = vmatmul.bf16.gmra.mxu0 %v8103
  %v8241 = vpop.f32.mrf.mxu0
  %v8242 = vadd.f32 0.0, %v8241
  %v8243 = vpop.f32.mrf.mxu0
  %v8244 = vadd.f32 0.0, %v8243
  %8245 = vmatmul.bf16.gmra.mxu0 %v8106
  %v8246 = vpop.f32.mrf.mxu0
  %v8247 = vadd.f32 0.0, %v8246
  %v8248 = vpop.f32.mrf.mxu0
  %v8249 = vadd.f32 0.0, %v8248
  %8250 = vmatmul.bf16.gmra.mxu0 %v8109
  %v8251 = vpop.f32.mrf.mxu0
  %v8252 = vadd.f32 0.0, %v8251
  %v8253 = vpop.f32.mrf.mxu0
  %v8254 = vadd.f32 0.0, %v8253
  %8255 = vmatmul.bf16.gmra.mxu0 %v8112
  %v8256 = vpop.f32.mrf.mxu0
  %v8257 = vadd.f32 0.0, %v8256
  %v8258 = vpop.f32.mrf.mxu0
  %v8259 = vadd.f32 0.0, %v8258
  %8260 = vmatmul.bf16.gmra.mxu0 %v8115
  %v8261 = vpop.f32.mrf.mxu0
  %v8262 = vadd.f32 0.0, %v8261
  %v8263 = vpop.f32.mrf.mxu0
  %v8264 = vadd.f32 0.0, %v8263
  %8265 = vmatmul.bf16.gmra.mxu0 %v8118
  %v8266 = vpop.f32.mrf.mxu0
  %v8267 = vadd.f32 0.0, %v8266
  %v8268 = vpop.f32.mrf.mxu0
  %v8269 = vadd.f32 0.0, %v8268
  %8270 = vmatmul.bf16.gmra.mxu0 %v8121
  %v8271 = vpop.f32.mrf.mxu0
  %v8272 = vadd.f32 0.0, %v8271
  %v8273 = vpop.f32.mrf.mxu0
  %v8274 = vadd.f32 0.0, %v8273
  %8275 = vmatmul.bf16.gmra.mxu0 %v8124
  %v8276 = vpop.f32.mrf.mxu0
  %v8277 = vadd.f32 0.0, %v8276
  %v8278 = vpop.f32.mrf.mxu0
  %v8279 = vadd.f32 0.0, %v8278
  %8280 = vmatmul.bf16.gmra.mxu0 %v8127
  %v8281 = vpop.f32.mrf.mxu0
  %v8282 = vadd.f32 0.0, %v8281
  %v8283 = vpop.f32.mrf.mxu0
  %v8284 = vadd.f32 0.0, %v8283
  %8285 = vmatmul.bf16.gmra.mxu0 %v8130
  %v8286 = vpop.f32.mrf.mxu0
  %v8287 = vadd.f32 0.0, %v8286
  %v8288 = vpop.f32.mrf.mxu0
  %v8289 = vadd.f32 0.0, %v8288
  %8290 = vmatmul.bf16.gmra.mxu0 %v8133
  %v8291 = vpop.f32.mrf.mxu0
  %v8292 = vadd.f32 0.0, %v8291
  %v8293 = vpop.f32.mrf.mxu0
  %v8294 = vadd.f32 0.0, %v8293
  %8295 = vmatmul.bf16.gmra.mxu0 %v8136
  %v8296 = vpop.f32.mrf.mxu0
  %v8297 = vadd.f32 0.0, %v8296
  %v8298 = vpop.f32.mrf.mxu0
  %v8299 = vadd.f32 0.0, %v8298
  %8300 = vmatmul.bf16.gmra.mxu0 %v8139
  %v8301 = vpop.f32.mrf.mxu0
  %v8302 = vadd.f32 0.0, %v8301
  %v8303 = vpop.f32.mrf.mxu0
  %v8304 = vadd.f32 0.0, %v8303
  %8305 = vmatmul.bf16.gmra.mxu0 %v8142
  %v8306 = vpop.f32.mrf.mxu0
  %v8307 = vadd.f32 0.0, %v8306
  %v8308 = vpop.f32.mrf.mxu0
  %v8309 = vadd.f32 0.0, %v8308
  %8310 = vmatmul.bf16.gmra.mxu0 %v8145
  %v8311 = vpop.f32.mrf.mxu0
  %v8312 = vadd.f32 0.0, %v8311
  %v8313 = vpop.f32.mrf.mxu0
  %v8314 = vadd.f32 0.0, %v8313
  %8315 = vmatmul.bf16.gmra.mxu0 %v8148
  %v8316 = vpop.f32.mrf.mxu0
  %v8317 = vadd.f32 0.0, %v8316
  %v8318 = vpop.f32.mrf.mxu0
  %v8319 = vadd.f32 0.0, %v8318
  %8320 = vmatmul.bf16.gmra.mxu0 %v8151
  %v8321 = vpop.f32.mrf.mxu0
  %v8322 = vadd.f32 0.0, %v8321
  %v8323 = vpop.f32.mrf.mxu0
  %v8324 = vadd.f32 0.0, %v8323
  %8325 = vdwg.mxu0
  %v8326 = vsel %vm3925, %v8167, 0.0
  %v8327 = vsel %vm3925, %v8169, 0.0
  %v8328 = vadd.f32 %v8326, %v8327
  %v8329 = vsel %vm3925, %v8172, 0.0
  %v8330 = vadd.f32 %v8328, %v8329
  %v8331 = vsel %vm3925, %v8174, 0.0
  %v8332 = vadd.f32 %v8330, %v8331
  %v8333 = vsel %vm3925, %v8177, 0.0
  %v8334 = vadd.f32 %v8332, %v8333
  %v8335 = vsel %vm3925, %v8179, 0.0
  %v8336 = vadd.f32 %v8334, %v8335
  %v8337 = vsel %vm3925, %v8182, 0.0
  %v8338 = vadd.f32 %v8336, %v8337
  %v8339 = vsel %vm3925, %v8184, 0.0
  %v8340 = vadd.f32 %v8338, %v8339
  %v8341 = vsel %vm3925, %v8187, 0.0
  %v8342 = vadd.f32 %v8340, %v8341
  %v8343 = vsel %vm3925, %v8189, 0.0
  %v8344 = vadd.f32 %v8342, %v8343
  %v8345 = vsel %vm3925, %v8192, 0.0
  %v8346 = vadd.f32 %v8344, %v8345
  %v8347 = vsel %vm3925, %v8194, 0.0
  %v8348 = vadd.f32 %v8346, %v8347
  %v8349 = vsel %vm3925, %v8197, 0.0
  %v8350 = vadd.f32 %v8348, %v8349
  %v8351 = vsel %vm3925, %v8199, 0.0
  %v8352 = vadd.f32 %v8350, %v8351
  %v8353 = vsel %vm3925, %v8202, 0.0
  %v8354 = vadd.f32 %v8352, %v8353
  %v8355 = vsel %vm3925, %v8204, 0.0
  %v8356 = vadd.f32 %v8354, %v8355
  %v8357 = vsel %vm3925, %v8207, 0.0
  %v8358 = vadd.f32 %v8356, %v8357
  %v8359 = vsel %vm3925, %v8209, 0.0
  %v8360 = vadd.f32 %v8358, %v8359
  %v8361 = vsel %vm3925, %v8212, 0.0
  %v8362 = vadd.f32 %v8360, %v8361
  %v8363 = vsel %vm3925, %v8214, 0.0
  %v8364 = vadd.f32 %v8362, %v8363
  %v8365 = vsel %vm3925, %v8217, 0.0
  %v8366 = vadd.f32 %v8364, %v8365
  %v8367 = vsel %vm3925, %v8219, 0.0
  %v8368 = vadd.f32 %v8366, %v8367
  %v8369 = vsel %vm3925, %v8222, 0.0
  %v8370 = vadd.f32 %v8368, %v8369
  %v8371 = vsel %vm3925, %v8224, 0.0
  %v8372 = vadd.f32 %v8370, %v8371
  %v8373 = vsel %vm3925, %v8227, 0.0
  %v8374 = vadd.f32 %v8372, %v8373
  %v8375 = vsel %vm3925, %v8229, 0.0
  %v8376 = vadd.f32 %v8374, %v8375
  %v8377 = vsel %vm3925, %v8232, 0.0
  %v8378 = vadd.f32 %v8376, %v8377
  %v8379 = vsel %vm3925, %v8234, 0.0
  %v8380 = vadd.f32 %v8378, %v8379
  %v8381 = vsel %vm3925, %v8237, 0.0
  %v8382 = vadd.f32 %v8380, %v8381
  %v8383 = vsel %vm3925, %v8239, 0.0
  %v8384 = vadd.f32 %v8382, %v8383
  %v8385 = vsel %vm3925, %v8242, 0.0
  %v8386 = vadd.f32 %v8384, %v8385
  %v8387 = vsel %vm3925, %v8244, 0.0
  %v8388 = vadd.f32 %v8386, %v8387
  %v8389 = vsel %vm3925, %v8247, 0.0
  %v8390 = vadd.f32 %v8388, %v8389
  %v8391 = vsel %vm3925, %v8249, 0.0
  %v8392 = vadd.f32 %v8390, %v8391
  %v8393 = vsel %vm3925, %v8252, 0.0
  %v8394 = vadd.f32 %v8392, %v8393
  %v8395 = vsel %vm3925, %v8254, 0.0
  %v8396 = vadd.f32 %v8394, %v8395
  %v8397 = vsel %vm3925, %v8257, 0.0
  %v8398 = vadd.f32 %v8396, %v8397
  %v8399 = vsel %vm3925, %v8259, 0.0
  %v8400 = vadd.f32 %v8398, %v8399
  %v8401 = vsel %vm3925, %v8262, 0.0
  %v8402 = vadd.f32 %v8400, %v8401
  %v8403 = vsel %vm3925, %v8264, 0.0
  %v8404 = vadd.f32 %v8402, %v8403
  %v8405 = vsel %vm3925, %v8267, 0.0
  %v8406 = vadd.f32 %v8404, %v8405
  %v8407 = vsel %vm3925, %v8269, 0.0
  %v8408 = vadd.f32 %v8406, %v8407
  %v8409 = vsel %vm3925, %v8272, 0.0
  %v8410 = vadd.f32 %v8408, %v8409
  %v8411 = vsel %vm3925, %v8274, 0.0
  %v8412 = vadd.f32 %v8410, %v8411
  %v8413 = vsel %vm3925, %v8277, 0.0
  %v8414 = vadd.f32 %v8412, %v8413
  %v8415 = vsel %vm3925, %v8279, 0.0
  %v8416 = vadd.f32 %v8414, %v8415
  %v8417 = vsel %vm3925, %v8282, 0.0
  %v8418 = vadd.f32 %v8416, %v8417
  %v8419 = vsel %vm3925, %v8284, 0.0
  %v8420 = vadd.f32 %v8418, %v8419
  %v8421 = vsel %vm3925, %v8287, 0.0
  %v8422 = vadd.f32 %v8420, %v8421
  %v8423 = vsel %vm3925, %v8289, 0.0
  %v8424 = vadd.f32 %v8422, %v8423
  %v8425 = vsel %vm3925, %v8292, 0.0
  %v8426 = vadd.f32 %v8424, %v8425
  %v8427 = vsel %vm3925, %v8294, 0.0
  %v8428 = vadd.f32 %v8426, %v8427
  %v8429 = vsel %vm3925, %v8297, 0.0
  %v8430 = vadd.f32 %v8428, %v8429
  %v8431 = vsel %vm3925, %v8299, 0.0
  %v8432 = vadd.f32 %v8430, %v8431
  %v8433 = vsel %vm3925, %v8302, 0.0
  %v8434 = vadd.f32 %v8432, %v8433
  %v8435 = vsel %vm3925, %v8304, 0.0
  %v8436 = vadd.f32 %v8434, %v8435
  %v8437 = vsel %vm3925, %v8307, 0.0
  %v8438 = vadd.f32 %v8436, %v8437
  %v8439 = vsel %vm3925, %v8309, 0.0
  %v8440 = vadd.f32 %v8438, %v8439
  %v8441 = vsel %vm3925, %v8312, 0.0
  %v8442 = vadd.f32 %v8440, %v8441
  %v8443 = vsel %vm3925, %v8314, 0.0
  %v8444 = vadd.f32 %v8442, %v8443
  %v8445 = vsel %vm3925, %v8317, 0.0
  %v8446 = vadd.f32 %v8444, %v8445
  %v8447 = vsel %vm3925, %v8319, 0.0
  %v8448 = vadd.f32 %v8446, %v8447
  %v8449 = vsel %vm3925, %v8322, 0.0
  %v8450 = vadd.f32 %v8448, %v8449
  %v8451 = vsel %vm3925, %v8324, 0.0
  %v8452 = vadd.f32 %v8450, %v8451
  %v8453 = vrot.slane %v8452, 4
  %v8454 = vadd.f32 %v8452, %v8453
  %v8455 = vrot.slane %v8454, 2
  %v8456 = vadd.f32 %v8454, %v8455
  %v8457 = vrot.slane %v8456, 1
  %v8458 = vadd.f32 %v8456, %v8457
  %v8459 = vmul.f32 %v8458, %v4065
  %v8460 = vsub.f32 %v8167, %v8459
  %v8461 = vsub.f32 %v8169, %v8459
  %v8462 = vsub.f32 %v8172, %v8459
  %v8463 = vsub.f32 %v8174, %v8459
  %v8464 = vsub.f32 %v8177, %v8459
  %v8465 = vsub.f32 %v8179, %v8459
  %v8466 = vsub.f32 %v8182, %v8459
  %v8467 = vsub.f32 %v8184, %v8459
  %v8468 = vsub.f32 %v8187, %v8459
  %v8469 = vsub.f32 %v8189, %v8459
  %v8470 = vsub.f32 %v8192, %v8459
  %v8471 = vsub.f32 %v8194, %v8459
  %v8472 = vsub.f32 %v8197, %v8459
  %v8473 = vsub.f32 %v8199, %v8459
  %v8474 = vsub.f32 %v8202, %v8459
  %v8475 = vsub.f32 %v8204, %v8459
  %v8476 = vsub.f32 %v8207, %v8459
  %v8477 = vsub.f32 %v8209, %v8459
  %v8478 = vsub.f32 %v8212, %v8459
  %v8479 = vsub.f32 %v8214, %v8459
  %v8480 = vsub.f32 %v8217, %v8459
  %v8481 = vsub.f32 %v8219, %v8459
  %v8482 = vsub.f32 %v8222, %v8459
  %v8483 = vsub.f32 %v8224, %v8459
  %v8484 = vsub.f32 %v8227, %v8459
  %v8485 = vsub.f32 %v8229, %v8459
  %v8486 = vsub.f32 %v8232, %v8459
  %v8487 = vsub.f32 %v8234, %v8459
  %v8488 = vsub.f32 %v8237, %v8459
  %v8489 = vsub.f32 %v8239, %v8459
  %v8490 = vsub.f32 %v8242, %v8459
  %v8491 = vsub.f32 %v8244, %v8459
  %v8492 = vsub.f32 %v8247, %v8459
  %v8493 = vsub.f32 %v8249, %v8459
  %v8494 = vsub.f32 %v8252, %v8459
  %v8495 = vsub.f32 %v8254, %v8459
  %v8496 = vsub.f32 %v8257, %v8459
  %v8497 = vsub.f32 %v8259, %v8459
  %v8498 = vsub.f32 %v8262, %v8459
  %v8499 = vsub.f32 %v8264, %v8459
  %v8500 = vsub.f32 %v8267, %v8459
  %v8501 = vsub.f32 %v8269, %v8459
  %v8502 = vsub.f32 %v8272, %v8459
  %v8503 = vsub.f32 %v8274, %v8459
  %v8504 = vsub.f32 %v8277, %v8459
  %v8505 = vsub.f32 %v8279, %v8459
  %v8506 = vsub.f32 %v8282, %v8459
  %v8507 = vsub.f32 %v8284, %v8459
  %v8508 = vsub.f32 %v8287, %v8459
  %v8509 = vsub.f32 %v8289, %v8459
  %v8510 = vsub.f32 %v8292, %v8459
  %v8511 = vsub.f32 %v8294, %v8459
  %v8512 = vsub.f32 %v8297, %v8459
  %v8513 = vsub.f32 %v8299, %v8459
  %v8514 = vsub.f32 %v8302, %v8459
  %v8515 = vsub.f32 %v8304, %v8459
  %v8516 = vsub.f32 %v8307, %v8459
  %v8517 = vsub.f32 %v8309, %v8459
  %v8518 = vsub.f32 %v8312, %v8459
  %v8519 = vsub.f32 %v8314, %v8459
  %v8520 = vsub.f32 %v8317, %v8459
  %v8521 = vsub.f32 %v8319, %v8459
  %v8522 = vsub.f32 %v8322, %v8459
  %v8523 = vsub.f32 %v8324, %v8459
  %v8524 = vmul.f32 %v8460, %v8460
  %v8525 = vmul.f32 %v8461, %v8461
  %v8526 = vmul.f32 %v8462, %v8462
  %v8527 = vmul.f32 %v8463, %v8463
  %v8528 = vmul.f32 %v8464, %v8464
  %v8529 = vmul.f32 %v8465, %v8465
  %v8530 = vmul.f32 %v8466, %v8466
  %v8531 = vmul.f32 %v8467, %v8467
  %v8532 = vmul.f32 %v8468, %v8468
  %v8533 = vmul.f32 %v8469, %v8469
  %v8534 = vmul.f32 %v8470, %v8470
  %v8535 = vmul.f32 %v8471, %v8471
  %v8536 = vmul.f32 %v8472, %v8472
  %v8537 = vmul.f32 %v8473, %v8473
  %v8538 = vmul.f32 %v8474, %v8474
  %v8539 = vmul.f32 %v8475, %v8475
  %v8540 = vmul.f32 %v8476, %v8476
  %v8541 = vmul.f32 %v8477, %v8477
  %v8542 = vmul.f32 %v8478, %v8478
  %v8543 = vmul.f32 %v8479, %v8479
  %v8544 = vmul.f32 %v8480, %v8480
  %v8545 = vmul.f32 %v8481, %v8481
  %v8546 = vmul.f32 %v8482, %v8482
  %v8547 = vmul.f32 %v8483, %v8483
  %v8548 = vmul.f32 %v8484, %v8484
  %v8549 = vmul.f32 %v8485, %v8485
  %v8550 = vmul.f32 %v8486, %v8486
  %v8551 = vmul.f32 %v8487, %v8487
  %v8552 = vmul.f32 %v8488, %v8488
  %v8553 = vmul.f32 %v8489, %v8489
  %v8554 = vmul.f32 %v8490, %v8490
  %v8555 = vmul.f32 %v8491, %v8491
  %v8556 = vmul.f32 %v8492, %v8492
  %v8557 = vmul.f32 %v8493, %v8493
  %v8558 = vmul.f32 %v8494, %v8494
  %v8559 = vmul.f32 %v8495, %v8495
  %v8560 = vmul.f32 %v8496, %v8496
  %v8561 = vmul.f32 %v8497, %v8497
  %v8562 = vmul.f32 %v8498, %v8498
  %v8563 = vmul.f32 %v8499, %v8499
  %v8564 = vmul.f32 %v8500, %v8500
  %v8565 = vmul.f32 %v8501, %v8501
  %v8566 = vmul.f32 %v8502, %v8502
  %v8567 = vmul.f32 %v8503, %v8503
  %v8568 = vmul.f32 %v8504, %v8504
  %v8569 = vmul.f32 %v8505, %v8505
  %v8570 = vmul.f32 %v8506, %v8506
  %v8571 = vmul.f32 %v8507, %v8507
  %v8572 = vmul.f32 %v8508, %v8508
  %v8573 = vmul.f32 %v8509, %v8509
  %v8574 = vmul.f32 %v8510, %v8510
  %v8575 = vmul.f32 %v8511, %v8511
  %v8576 = vmul.f32 %v8512, %v8512
  %v8577 = vmul.f32 %v8513, %v8513
  %v8578 = vmul.f32 %v8514, %v8514
  %v8579 = vmul.f32 %v8515, %v8515
  %v8580 = vmul.f32 %v8516, %v8516
  %v8581 = vmul.f32 %v8517, %v8517
  %v8582 = vmul.f32 %v8518, %v8518
  %v8583 = vmul.f32 %v8519, %v8519
  %v8584 = vmul.f32 %v8520, %v8520
  %v8585 = vmul.f32 %v8521, %v8521
  %v8586 = vmul.f32 %v8522, %v8522
  %v8587 = vmul.f32 %v8523, %v8523
  %v8588 = vsel %vm3925, %v8524, 0.0
  %v8589 = vsel %vm3925, %v8525, 0.0
  %v8590 = vadd.f32 %v8588, %v8589
  %v8591 = vsel %vm3925, %v8526, 0.0
  %v8592 = vadd.f32 %v8590, %v8591
  %v8593 = vsel %vm3925, %v8527, 0.0
  %v8594 = vadd.f32 %v8592, %v8593
  %v8595 = vsel %vm3925, %v8528, 0.0
  %v8596 = vadd.f32 %v8594, %v8595
  %v8597 = vsel %vm3925, %v8529, 0.0
  %v8598 = vadd.f32 %v8596, %v8597
  %v8599 = vsel %vm3925, %v8530, 0.0
  %v8600 = vadd.f32 %v8598, %v8599
  %v8601 = vsel %vm3925, %v8531, 0.0
  %v8602 = vadd.f32 %v8600, %v8601
  %v8603 = vsel %vm3925, %v8532, 0.0
  %v8604 = vadd.f32 %v8602, %v8603
  %v8605 = vsel %vm3925, %v8533, 0.0
  %v8606 = vadd.f32 %v8604, %v8605
  %v8607 = vsel %vm3925, %v8534, 0.0
  %v8608 = vadd.f32 %v8606, %v8607
  %v8609 = vsel %vm3925, %v8535, 0.0
  %v8610 = vadd.f32 %v8608, %v8609
  %v8611 = vsel %vm3925, %v8536, 0.0
  %v8612 = vadd.f32 %v8610, %v8611
  %v8613 = vsel %vm3925, %v8537, 0.0
  %v8614 = vadd.f32 %v8612, %v8613
  %v8615 = vsel %vm3925, %v8538, 0.0
  %v8616 = vadd.f32 %v8614, %v8615
  %v8617 = vsel %vm3925, %v8539, 0.0
  %v8618 = vadd.f32 %v8616, %v8617
  %v8619 = vsel %vm3925, %v8540, 0.0
  %v8620 = vadd.f32 %v8618, %v8619
  %v8621 = vsel %vm3925, %v8541, 0.0
  %v8622 = vadd.f32 %v8620, %v8621
  %v8623 = vsel %vm3925, %v8542, 0.0
  %v8624 = vadd.f32 %v8622, %v8623
  %v8625 = vsel %vm3925, %v8543, 0.0
  %v8626 = vadd.f32 %v8624, %v8625
  %v8627 = vsel %vm3925, %v8544, 0.0
  %v8628 = vadd.f32 %v8626, %v8627
  %v8629 = vsel %vm3925, %v8545, 0.0
  %v8630 = vadd.f32 %v8628, %v8629
  %v8631 = vsel %vm3925, %v8546, 0.0
  %v8632 = vadd.f32 %v8630, %v8631
  %v8633 = vsel %vm3925, %v8547, 0.0
  %v8634 = vadd.f32 %v8632, %v8633
  %v8635 = vsel %vm3925, %v8548, 0.0
  %v8636 = vadd.f32 %v8634, %v8635
  %v8637 = vsel %vm3925, %v8549, 0.0
  %v8638 = vadd.f32 %v8636, %v8637
  %v8639 = vsel %vm3925, %v8550, 0.0
  %v8640 = vadd.f32 %v8638, %v8639
  %v8641 = vsel %vm3925, %v8551, 0.0
  %v8642 = vadd.f32 %v8640, %v8641
  %v8643 = vsel %vm3925, %v8552, 0.0
  %v8644 = vadd.f32 %v8642, %v8643
  %v8645 = vsel %vm3925, %v8553, 0.0
  %v8646 = vadd.f32 %v8644, %v8645
  %v8647 = vsel %vm3925, %v8554, 0.0
  %v8648 = vadd.f32 %v8646, %v8647
  %v8649 = vsel %vm3925, %v8555, 0.0
  %v8650 = vadd.f32 %v8648, %v8649
  %v8651 = vsel %vm3925, %v8556, 0.0
  %v8652 = vadd.f32 %v8650, %v8651
  %v8653 = vsel %vm3925, %v8557, 0.0
  %v8654 = vadd.f32 %v8652, %v8653
  %v8655 = vsel %vm3925, %v8558, 0.0
  %v8656 = vadd.f32 %v8654, %v8655
  %v8657 = vsel %vm3925, %v8559, 0.0
  %v8658 = vadd.f32 %v8656, %v8657
  %v8659 = vsel %vm3925, %v8560, 0.0
  %v8660 = vadd.f32 %v8658, %v8659
  %v8661 = vsel %vm3925, %v8561, 0.0
  %v8662 = vadd.f32 %v8660, %v8661
  %v8663 = vsel %vm3925, %v8562, 0.0
  %v8664 = vadd.f32 %v8662, %v8663
  %v8665 = vsel %vm3925, %v8563, 0.0
  %v8666 = vadd.f32 %v8664, %v8665
  %v8667 = vsel %vm3925, %v8564, 0.0
  %v8668 = vadd.f32 %v8666, %v8667
  %v8669 = vsel %vm3925, %v8565, 0.0
  %v8670 = vadd.f32 %v8668, %v8669
  %v8671 = vsel %vm3925, %v8566, 0.0
  %v8672 = vadd.f32 %v8670, %v8671
  %v8673 = vsel %vm3925, %v8567, 0.0
  %v8674 = vadd.f32 %v8672, %v8673
  %v8675 = vsel %vm3925, %v8568, 0.0
  %v8676 = vadd.f32 %v8674, %v8675
  %v8677 = vsel %vm3925, %v8569, 0.0
  %v8678 = vadd.f32 %v8676, %v8677
  %v8679 = vsel %vm3925, %v8570, 0.0
  %v8680 = vadd.f32 %v8678, %v8679
  %v8681 = vsel %vm3925, %v8571, 0.0
  %v8682 = vadd.f32 %v8680, %v8681
  %v8683 = vsel %vm3925, %v8572, 0.0
  %v8684 = vadd.f32 %v8682, %v8683
  %v8685 = vsel %vm3925, %v8573, 0.0
  %v8686 = vadd.f32 %v8684, %v8685
  %v8687 = vsel %vm3925, %v8574, 0.0
  %v8688 = vadd.f32 %v8686, %v8687
  %v8689 = vsel %vm3925, %v8575, 0.0
  %v8690 = vadd.f32 %v8688, %v8689
  %v8691 = vsel %vm3925, %v8576, 0.0
  %v8692 = vadd.f32 %v8690, %v8691
  %v8693 = vsel %vm3925, %v8577, 0.0
  %v8694 = vadd.f32 %v8692, %v8693
  %v8695 = vsel %vm3925, %v8578, 0.0
  %v8696 = vadd.f32 %v8694, %v8695
  %v8697 = vsel %vm3925, %v8579, 0.0
  %v8698 = vadd.f32 %v8696, %v8697
  %v8699 = vsel %vm3925, %v8580, 0.0
  %v8700 = vadd.f32 %v8698, %v8699
  %v8701 = vsel %vm3925, %v8581, 0.0
  %v8702 = vadd.f32 %v8700, %v8701
  %v8703 = vsel %vm3925, %v8582, 0.0
  %v8704 = vadd.f32 %v8702, %v8703
  %v8705 = vsel %vm3925, %v8583, 0.0
  %v8706 = vadd.f32 %v8704, %v8705
  %v8707 = vsel %vm3925, %v8584, 0.0
  %v8708 = vadd.f32 %v8706, %v8707
  %v8709 = vsel %vm3925, %v8585, 0.0
  %v8710 = vadd.f32 %v8708, %v8709
  %v8711 = vsel %vm3925, %v8586, 0.0
  %v8712 = vadd.f32 %v8710, %v8711
  %v8713 = vsel %vm3925, %v8587, 0.0
  %v8714 = vadd.f32 %v8712, %v8713
  %v8715 = vrot.slane %v8714, 4
  %v8716 = vadd.f32 %v8714, %v8715
  %v8717 = vrot.slane %v8716, 2
  %v8718 = vadd.f32 %v8716, %v8717
  %v8719 = vrot.slane %v8718, 1
  %v8720 = vadd.f32 %v8718, %v8719
  %v8721 = vmul.f32 %v8720, %v4065
  %v8722 = vld [vmem:[%s5] sm:$0x1]
  %v8723 = vadd.f32 %v8721, 1e-05
  %v8724 = vrsqrt.pop %v8723
  %v8725 = vmul.f32 %v8724, %v8723
  %v8726 = vmul.f32 %v8725, %v8724
  %v8727 = vmul.f32 0.5, %v8726
  %v8728 = vsub.f32 1.5, %v8727
  %v8729 = vmul.f32 %v8724, %v8728
  %vm8730 = vweird.f32 %v8723
  %vm8731 = vweird.f32 %v8724
  %vm8732 = vmor %vm8730, %vm8731
  %v8733 = vsel %vm8732, %v8724, %v8729
  %v8734 = vmul.f32 %v8722, %v8733
  %v8736 = vperm.slane %v8734, 0
  %v8738 = vmul.f32 %v8460, %v8736
  %v8739 = vmul.f32 %v8461, %v8736
  %v8740 = vmul.f32 %v8462, %v8736
  %v8741 = vmul.f32 %v8463, %v8736
  %v8742 = vmul.f32 %v8464, %v8736
  %v8743 = vmul.f32 %v8465, %v8736
  %v8744 = vmul.f32 %v8466, %v8736
  %v8745 = vmul.f32 %v8467, %v8736
  %v8746 = vmul.f32 %v8468, %v8736
  %v8747 = vmul.f32 %v8469, %v8736
  %v8748 = vmul.f32 %v8470, %v8736
  %v8749 = vmul.f32 %v8471, %v8736
  %v8750 = vmul.f32 %v8472, %v8736
  %v8751 = vmul.f32 %v8473, %v8736
  %v8752 = vmul.f32 %v8474, %v8736
  %v8753 = vmul.f32 %v8475, %v8736
  %v8754 = vmul.f32 %v8476, %v8736
  %v8755 = vmul.f32 %v8477, %v8736
  %v8756 = vmul.f32 %v8478, %v8736
  %v8757 = vmul.f32 %v8479, %v8736
  %v8758 = vmul.f32 %v8480, %v8736
  %v8759 = vmul.f32 %v8481, %v8736
  %v8760 = vmul.f32 %v8482, %v8736
  %v8761 = vmul.f32 %v8483, %v8736
  %v8762 = vmul.f32 %v8484, %v8736
  %v8763 = vmul.f32 %v8485, %v8736
  %v8764 = vmul.f32 %v8486, %v8736
  %v8765 = vmul.f32 %v8487, %v8736
  %v8766 = vmul.f32 %v8488, %v8736
  %v8767 = vmul.f32 %v8489, %v8736
  %v8768 = vmul.f32 %v8490, %v8736
  %v8769 = vmul.f32 %v8491, %v8736
  %v8770 = vmul.f32 %v8492, %v8736
  %v8771 = vmul.f32 %v8493, %v8736
  %v8772 = vmul.f32 %v8494, %v8736
  %v8773 = vmul.f32 %v8495, %v8736
  %v8774 = vmul.f32 %v8496, %v8736
  %v8775 = vmul.f32 %v8497, %v8736
  %v8776 = vmul.f32 %v8498, %v8736
  %v8777 = vmul.f32 %v8499, %v8736
  %v8778 = vmul.f32 %v8500, %v8736
  %v8779 = vmul.f32 %v8501, %v8736
  %v8780 = vmul.f32 %v8502, %v8736
  %v8781 = vmul.f32 %v8503, %v8736
  %v8782 = vmul.f32 %v8504, %v8736
  %v8783 = vmul.f32 %v8505, %v8736
  %v8784 = vmul.f32 %v8506, %v8736
  %v8785 = vmul.f32 %v8507, %v8736
  %v8786 = vmul.f32 %v8508, %v8736
  %v8787 = vmul.f32 %v8509, %v8736
  %v8788 = vmul.f32 %v8510, %v8736
  %v8789 = vmul.f32 %v8511, %v8736
  %v8790 = vmul.f32 %v8512, %v8736
  %v8791 = vmul.f32 %v8513, %v8736
  %v8792 = vmul.f32 %v8514, %v8736
  %v8793 = vmul.f32 %v8515, %v8736
  %v8794 = vmul.f32 %v8516, %v8736
  %v8795 = vmul.f32 %v8517, %v8736
  %v8796 = vmul.f32 %v8518, %v8736
  %v8797 = vmul.f32 %v8519, %v8736
  %v8798 = vmul.f32 %v8520, %v8736
  %v8799 = vmul.f32 %v8521, %v8736
  %v8800 = vmul.f32 %v8522, %v8736
  %v8801 = vmul.f32 %v8523, %v8736
  %v8802 = vld [vmem:[%s6] sm:$0x1]
  %v8804 = vperm.slane %v8802, 0
  %v8806 = vadd.f32 %v8738, %v8804
  %v8807 = vadd.f32 %v8739, %v8804
  %v8808 = vadd.f32 %v8740, %v8804
  %v8809 = vadd.f32 %v8741, %v8804
  %v8810 = vadd.f32 %v8742, %v8804
  %v8811 = vadd.f32 %v8743, %v8804
  %v8812 = vadd.f32 %v8744, %v8804
  %v8813 = vadd.f32 %v8745, %v8804
  %v8814 = vadd.f32 %v8746, %v8804
  %v8815 = vadd.f32 %v8747, %v8804
  %v8816 = vadd.f32 %v8748, %v8804
  %v8817 = vadd.f32 %v8749, %v8804
  %v8818 = vadd.f32 %v8750, %v8804
  %v8819 = vadd.f32 %v8751, %v8804
  %v8820 = vadd.f32 %v8752, %v8804
  %v8821 = vadd.f32 %v8753, %v8804
  %v8822 = vadd.f32 %v8754, %v8804
  %v8823 = vadd.f32 %v8755, %v8804
  %v8824 = vadd.f32 %v8756, %v8804
  %v8825 = vadd.f32 %v8757, %v8804
  %v8826 = vadd.f32 %v8758, %v8804
  %v8827 = vadd.f32 %v8759, %v8804
  %v8828 = vadd.f32 %v8760, %v8804
  %v8829 = vadd.f32 %v8761, %v8804
  %v8830 = vadd.f32 %v8762, %v8804
  %v8831 = vadd.f32 %v8763, %v8804
  %v8832 = vadd.f32 %v8764, %v8804
  %v8833 = vadd.f32 %v8765, %v8804
  %v8834 = vadd.f32 %v8766, %v8804
  %v8835 = vadd.f32 %v8767, %v8804
  %v8836 = vadd.f32 %v8768, %v8804
  %v8837 = vadd.f32 %v8769, %v8804
  %v8838 = vadd.f32 %v8770, %v8804
  %v8839 = vadd.f32 %v8771, %v8804
  %v8840 = vadd.f32 %v8772, %v8804
  %v8841 = vadd.f32 %v8773, %v8804
  %v8842 = vadd.f32 %v8774, %v8804
  %v8843 = vadd.f32 %v8775, %v8804
  %v8844 = vadd.f32 %v8776, %v8804
  %v8845 = vadd.f32 %v8777, %v8804
  %v8846 = vadd.f32 %v8778, %v8804
  %v8847 = vadd.f32 %v8779, %v8804
  %v8848 = vadd.f32 %v8780, %v8804
  %v8849 = vadd.f32 %v8781, %v8804
  %v8850 = vadd.f32 %v8782, %v8804
  %v8851 = vadd.f32 %v8783, %v8804
  %v8852 = vadd.f32 %v8784, %v8804
  %v8853 = vadd.f32 %v8785, %v8804
  %v8854 = vadd.f32 %v8786, %v8804
  %v8855 = vadd.f32 %v8787, %v8804
  %v8856 = vadd.f32 %v8788, %v8804
  %v8857 = vadd.f32 %v8789, %v8804
  %v8858 = vadd.f32 %v8790, %v8804
  %v8859 = vadd.f32 %v8791, %v8804
  %v8860 = vadd.f32 %v8792, %v8804
  %v8861 = vadd.f32 %v8793, %v8804
  %v8862 = vadd.f32 %v8794, %v8804
  %v8863 = vadd.f32 %v8795, %v8804
  %v8864 = vadd.f32 %v8796, %v8804
  %v8865 = vadd.f32 %v8797, %v8804
  %v8866 = vadd.f32 %v8798, %v8804
  %v8867 = vadd.f32 %v8799, %v8804
  %v8868 = vadd.f32 %v8800, %v8804
  %v8869 = vadd.f32 %v8801, %v8804
  %v8870 = vmax.f32 %v8806, 0.0
  %v8871 = vmax.f32 %v8807, 0.0
  %v8872 = vmax.f32 %v8808, 0.0
  %v8873 = vmax.f32 %v8809, 0.0
  %v8874 = vmax.f32 %v8810, 0.0
  %v8875 = vmax.f32 %v8811, 0.0
  %v8876 = vmax.f32 %v8812, 0.0
  %v8877 = vmax.f32 %v8813, 0.0
  %v8878 = vmax.f32 %v8814, 0.0
  %v8879 = vmax.f32 %v8815, 0.0
  %v8880 = vmax.f32 %v8816, 0.0
  %v8881 = vmax.f32 %v8817, 0.0
  %v8882 = vmax.f32 %v8818, 0.0
  %v8883 = vmax.f32 %v8819, 0.0
  %v8884 = vmax.f32 %v8820, 0.0
  %v8885 = vmax.f32 %v8821, 0.0
  %v8886 = vmax.f32 %v8822, 0.0
  %v8887 = vmax.f32 %v8823, 0.0
  %v8888 = vmax.f32 %v8824, 0.0
  %v8889 = vmax.f32 %v8825, 0.0
  %v8890 = vmax.f32 %v8826, 0.0
  %v8891 = vmax.f32 %v8827, 0.0
  %v8892 = vmax.f32 %v8828, 0.0
  %v8893 = vmax.f32 %v8829, 0.0
  %v8894 = vmax.f32 %v8830, 0.0
  %v8895 = vmax.f32 %v8831, 0.0
  %v8896 = vmax.f32 %v8832, 0.0
  %v8897 = vmax.f32 %v8833, 0.0
  %v8898 = vmax.f32 %v8834, 0.0
  %v8899 = vmax.f32 %v8835, 0.0
  %v8900 = vmax.f32 %v8836, 0.0
  %v8901 = vmax.f32 %v8837, 0.0
  %v8902 = vmax.f32 %v8838, 0.0
  %v8903 = vmax.f32 %v8839, 0.0
  %v8904 = vmax.f32 %v8840, 0.0
  %v8905 = vmax.f32 %v8841, 0.0
  %v8906 = vmax.f32 %v8842, 0.0
  %v8907 = vmax.f32 %v8843, 0.0
  %v8908 = vmax.f32 %v8844, 0.0
  %v8909 = vmax.f32 %v8845, 0.0
  %v8910 = vmax.f32 %v8846, 0.0
  %v8911 = vmax.f32 %v8847, 0.0
  %v8912 = vmax.f32 %v8848, 0.0
  %v8913 = vmax.f32 %v8849, 0.0
  %v8914 = vmax.f32 %v8850, 0.0
  %v8915 = vmax.f32 %v8851, 0.0
  %v8916 = vmax.f32 %v8852, 0.0
  %v8917 = vmax.f32 %v8853, 0.0
  %v8918 = vmax.f32 %v8854, 0.0
  %v8919 = vmax.f32 %v8855, 0.0
  %v8920 = vmax.f32 %v8856, 0.0
  %v8921 = vmax.f32 %v8857, 0.0
  %v8922 = vmax.f32 %v8858, 0.0
  %v8923 = vmax.f32 %v8859, 0.0
  %v8924 = vmax.f32 %v8860, 0.0
  %v8925 = vmax.f32 %v8861, 0.0
  %v8926 = vmax.f32 %v8862, 0.0
  %v8927 = vmax.f32 %v8863, 0.0
  %v8928 = vmax.f32 %v8864, 0.0
  %v8929 = vmax.f32 %v8865, 0.0
  %v8930 = vmax.f32 %v8866, 0.0
  %v8931 = vmax.f32 %v8867, 0.0
  %v8932 = vmax.f32 %v8868, 0.0
  %v8933 = vmax.f32 %v8869, 0.0
  %8934 = vst.msk [vmem:[%s7] sm:$0xff] %vm3925, %v8870
  %8935 = vst.msk [vmem:[%s7 + $0x8] sm:$0xff] %vm3925, %v8871
  %8936 = vst.msk [vmem:[%s7 + $0x10] sm:$0xff] %vm3925, %v8872
  %8937 = vst.msk [vmem:[%s7 + $0x18] sm:$0xff] %vm3925, %v8873
  %8938 = vst.msk [vmem:[%s7 + $0x20] sm:$0xff] %vm3925, %v8874
  %8939 = vst.msk [vmem:[%s7 + $0x28] sm:$0xff] %vm3925, %v8875
  %8940 = vst.msk [vmem:[%s7 + $0x30] sm:$0xff] %vm3925, %v8876
  %8941 = vst.msk [vmem:[%s7 + $0x38] sm:$0xff] %vm3925, %v8877
  %8942 = vst.msk [vmem:[%s7 + $0x40] sm:$0xff] %vm3925, %v8878
  %8943 = vst.msk [vmem:[%s7 + $0x48] sm:$0xff] %vm3925, %v8879
  %8944 = vst.msk [vmem:[%s7 + $0x50] sm:$0xff] %vm3925, %v8880
  %8945 = vst.msk [vmem:[%s7 + $0x58] sm:$0xff] %vm3925, %v8881
  %8946 = vst.msk [vmem:[%s7 + $0x60] sm:$0xff] %vm3925, %v8882
  %8947 = vst.msk [vmem:[%s7 + $0x68] sm:$0xff] %vm3925, %v8883
  %8948 = vst.msk [vmem:[%s7 + $0x70] sm:$0xff] %vm3925, %v8884
  %8949 = vst.msk [vmem:[%s7 + $0x78] sm:$0xff] %vm3925, %v8885
  %8950 = vst.msk [vmem:[%s7 + $0x80] sm:$0xff] %vm3925, %v8886
  %8951 = vst.msk [vmem:[%s7 + $0x88] sm:$0xff] %vm3925, %v8887
  %8952 = vst.msk [vmem:[%s7 + $0x90] sm:$0xff] %vm3925, %v8888
  %8953 = vst.msk [vmem:[%s7 + $0x98] sm:$0xff] %vm3925, %v8889
  %8954 = vst.msk [vmem:[%s7 + $0xa0] sm:$0xff] %vm3925, %v8890
  %8955 = vst.msk [vmem:[%s7 + $0xa8] sm:$0xff] %vm3925, %v8891
  %8956 = vst.msk [vmem:[%s7 + $0xb0] sm:$0xff] %vm3925, %v8892
  %8957 = vst.msk [vmem:[%s7 + $0xb8] sm:$0xff] %vm3925, %v8893
  %8958 = vst.msk [vmem:[%s7 + $0xc0] sm:$0xff] %vm3925, %v8894
  %8959 = vst.msk [vmem:[%s7 + $0xc8] sm:$0xff] %vm3925, %v8895
  %8960 = vst.msk [vmem:[%s7 + $0xd0] sm:$0xff] %vm3925, %v8896
  %8961 = vst.msk [vmem:[%s7 + $0xd8] sm:$0xff] %vm3925, %v8897
  %8962 = vst.msk [vmem:[%s7 + $0xe0] sm:$0xff] %vm3925, %v8898
  %8963 = vst.msk [vmem:[%s7 + $0xe8] sm:$0xff] %vm3925, %v8899
  %8964 = vst.msk [vmem:[%s7 + $0xf0] sm:$0xff] %vm3925, %v8900
  %8965 = vst.msk [vmem:[%s7 + $0xf8] sm:$0xff] %vm3925, %v8901
  %8966 = vst.msk [vmem:[%s7 + $0x100] sm:$0xff] %vm3925, %v8902
  %8967 = vst.msk [vmem:[%s7 + $0x108] sm:$0xff] %vm3925, %v8903
  %8968 = vst.msk [vmem:[%s7 + $0x110] sm:$0xff] %vm3925, %v8904
  %8969 = vst.msk [vmem:[%s7 + $0x118] sm:$0xff] %vm3925, %v8905
  %8970 = vst.msk [vmem:[%s7 + $0x120] sm:$0xff] %vm3925, %v8906
  %8971 = vst.msk [vmem:[%s7 + $0x128] sm:$0xff] %vm3925, %v8907
  %8972 = vst.msk [vmem:[%s7 + $0x130] sm:$0xff] %vm3925, %v8908
  %8973 = vst.msk [vmem:[%s7 + $0x138] sm:$0xff] %vm3925, %v8909
  %8974 = vst.msk [vmem:[%s7 + $0x140] sm:$0xff] %vm3925, %v8910
  %8975 = vst.msk [vmem:[%s7 + $0x148] sm:$0xff] %vm3925, %v8911
  %8976 = vst.msk [vmem:[%s7 + $0x150] sm:$0xff] %vm3925, %v8912
  %8977 = vst.msk [vmem:[%s7 + $0x158] sm:$0xff] %vm3925, %v8913
  %8978 = vst.msk [vmem:[%s7 + $0x160] sm:$0xff] %vm3925, %v8914
  %8979 = vst.msk [vmem:[%s7 + $0x168] sm:$0xff] %vm3925, %v8915
  %8980 = vst.msk [vmem:[%s7 + $0x170] sm:$0xff] %vm3925, %v8916
  %8981 = vst.msk [vmem:[%s7 + $0x178] sm:$0xff] %vm3925, %v8917
  %8982 = vst.msk [vmem:[%s7 + $0x180] sm:$0xff] %vm3925, %v8918
  %8983 = vst.msk [vmem:[%s7 + $0x188] sm:$0xff] %vm3925, %v8919
  %8984 = vst.msk [vmem:[%s7 + $0x190] sm:$0xff] %vm3925, %v8920
  %8985 = vst.msk [vmem:[%s7 + $0x198] sm:$0xff] %vm3925, %v8921
  %8986 = vst.msk [vmem:[%s7 + $0x1a0] sm:$0xff] %vm3925, %v8922
  %8987 = vst.msk [vmem:[%s7 + $0x1a8] sm:$0xff] %vm3925, %v8923
  %8988 = vst.msk [vmem:[%s7 + $0x1b0] sm:$0xff] %vm3925, %v8924
  %8989 = vst.msk [vmem:[%s7 + $0x1b8] sm:$0xff] %vm3925, %v8925
  %8990 = vst.msk [vmem:[%s7 + $0x1c0] sm:$0xff] %vm3925, %v8926
  %8991 = vst.msk [vmem:[%s7 + $0x1c8] sm:$0xff] %vm3925, %v8927
  %8992 = vst.msk [vmem:[%s7 + $0x1d0] sm:$0xff] %vm3925, %v8928
  %8993 = vst.msk [vmem:[%s7 + $0x1d8] sm:$0xff] %vm3925, %v8929
  %8994 = vst.msk [vmem:[%s7 + $0x1e0] sm:$0xff] %vm3925, %v8930
  %8995 = vst.msk [vmem:[%s7 + $0x1e8] sm:$0xff] %vm3925, %v8931
  %8996 = vst.msk [vmem:[%s7 + $0x1f0] sm:$0xff] %vm3925, %v8932
  %8997 = vst.msk [vmem:[%s7 + $0x1f8] sm:$0xff] %vm3925, %v8933
  // Predicated region
  $region30: #{tpu_custom_call.1} parent=0 // pred_check
    _
  $region31: #{tpu_custom_call.1} parent=0 // pred_check_branch
    %8999 = sbr.rel (0) target = $region33
  $region32: #{tpu_custom_call.1} parent=0 // pred_region
    _
  $region33: #{tpu_custom_call.1} parent=0 // pred_fallthru
    _
  // Predicated region
  $region34: #{tpu_custom_call.1} parent=0 // pred_check
    _
  $region35: #{tpu_custom_call.1} parent=0 // pred_check_branch
    %9001 = sbr.rel (0) target = $region37
  $region36: #{tpu_custom_call.1} parent=0 // pred_region
    _
  $region37: #{tpu_custom_call.1} parent=0 // pred_fallthru
    _

</llo_original>
